<compile_context>
chip_gen: v6e
topology: v6e:2x2x1
jax: 0.10.0
libtpu: 0.0.40
codegen_flags: <defaults>
</compile_context>

<pallas_src>
import math

import jax
import jax.numpy as jnp
from jax import lax
from jax.experimental import pallas as pl
from jax.experimental.pallas import tpu as pltpu

D = 640                      # embed dim (hardcoded in the PyTorch module)
NUM_HEADS = 4
HEAD_DIM = D // NUM_HEADS    # 160


# --------------------------------------------------------------------------- #
# Kernel
# --------------------------------------------------------------------------- #
def _mha_kernel(x_ref, wqkv_ref, bqkv_ref, wout_ref, bout_ref, o_ref):
    # One grid step == TB batch elements (TS = TB*S rows).
    TB, S, Dd = x_ref.shape
    TS = TB * S
    # S is kept a multiple of 8 in the wrapper, so this leading-dims merge does
    # not cross an (8,128) tile boundary (no relayout copy).
    x = x_ref[...].reshape(TS, Dd).astype(jnp.bfloat16)

    # Single wide projection: (TS,640) @ (640,1920) -> f32.  Columns are
    # [Q(640) | K(640) | V(640)]; the 1/sqrt(head_dim) scale is folded into the
    # Q weight/bias block offline.
    qkv = jnp.dot(x, wqkv_ref[...], preferred_element_type=jnp.float32)
    qkv = qkv + bqkv_ref[...]                                   # (TS, 3D) f32

    if TB > 1:
        # Block-diagonal mask: row i may only attend to columns of its own
        # sequence (rows/cols with i//S == j//S).
        r = lax.broadcasted_iota(jnp.int32, (TS, TS), 0) // S
        c = lax.broadcasted_iota(jnp.int32, (TS, TS), 1) // S
        same_seq = r == c

    o_heads = []
    for h in range(NUM_HEADS):                                  # static unroll
        lo = h * HEAD_DIM
        qh = qkv[:, lo:lo + HEAD_DIM].astype(jnp.bfloat16)
        kh = qkv[:, Dd + lo:Dd + lo + HEAD_DIM].astype(jnp.bfloat16)
        vh = qkv[:, 2 * Dd + lo:2 * Dd + lo + HEAD_DIM].astype(jnp.bfloat16)

        # scores (TS, TS): contract the head dim of q and k (transposed-B
        # matmul, no explicit transpose).  f32 accumulation.
        s = lax.dot_general(qh, kh, (((1,), (1,)), ((), ())),
                            preferred_element_type=jnp.float32)
        if TB > 1:
            s = jnp.where(same_seq, s, -1e30)

        # numerically-stable softmax in f32 (VPU/EUP); only MXU inputs are bf16
        m = jnp.max(s, axis=-1, keepdims=True)
        e = jnp.exp(s - m)
        denom = jnp.sum(e, axis=-1, keepdims=True)
        p = (e * pl.reciprocal(denom, approx=False)).astype(jnp.bfloat16)

        oh = jnp.dot(p, vh, preferred_element_type=jnp.float32)    # (TS, HD)
        o_heads.append(oh.astype(jnp.bfloat16))

    # Single out_proj matmul over the lane-concatenated heads (K=640, N=640).
    o_cat = jnp.concatenate(o_heads, axis=-1)                       # (TS, D)
    out = jnp.dot(o_cat, wout_ref[...], preferred_element_type=jnp.float32)
    out = out + bout_ref[...]                                       # (1, D)
    o_ref[...] = out.reshape(TB, S, Dd).astype(o_ref.dtype)


# --------------------------------------------------------------------------- #
# Wrapper
# --------------------------------------------------------------------------- #
def _choose_tb(B, S, target_rows=256):
    """Largest TB dividing B with TB*S <= target_rows.  Never shrinks TB just
    to manufacture extra grid steps (an under-filled MXU M dim costs more than
    megacore gains); caps TB*S near 256 so block-diagonal-mask waste at small S
    stays bounded."""
    tb = max(1, min(B, max(1, target_rows // max(S, 1))))
    while B % tb:
        tb -= 1
    return tb


def _fuse_params(p):
    """Fuse outer q/k/v Linear with the MHA in_proj into one (D, 3D) weight,
    fold the softmax scale into the Q block, and cast matmul weights to bf16.
    Biases stay f32 (added after f32 accumulation)."""
    hp = lax.Precision.HIGHEST
    scale = 1.0 / math.sqrt(HEAD_DIM)

    def fuse(w_outer, b_outer, w_in, b_in, s=1.0):
        w = jnp.dot(w_outer, w_in, precision=hp) * s            # (D, D)
        b = (jnp.dot(b_outer, w_in, precision=hp) + b_in) * s   # (D,)
        return w, b

    wq, bq = fuse(p["wq"], p["bq"], p["wiq"], p["biq"], scale)
    wk, bk = fuse(p["wk"], p["bk"], p["wik"], p["bik"])
    wv, bv = fuse(p["wv"], p["bv"], p["wiv"], p["biv"])
    wqkv = jnp.concatenate([wq, wk, wv], axis=1).astype(jnp.bfloat16)   # (D,3D)
    bqkv = jnp.concatenate([bq, bk, bv], axis=0).reshape(1, 3 * D)      # f32
    wout = p["wout"].astype(jnp.bfloat16)                               # (D, D)
    bout = p["bout"].reshape(1, D)                                      # f32
    return dict(wqkv=wqkv, bqkv=bqkv, wout=wout, bout=bout)


def _weight_spec(shape, single_buffer):
    idx_map = lambda b: (0,) * len(shape)
    if single_buffer:
        # Grid-invariant: double-buffering buys nothing; halve VMEM residency.
        return pl.BlockSpec(shape, idx_map, pipeline_mode=pl.Buffered(1))
    return pl.BlockSpec(shape, idx_map)


def _mha_call(x, f, single_buffer_weights):
    B, S, _ = x.shape
    TB = _choose_tb(B, S)
    grid = (B // TB,)

    in_specs = [
        pl.BlockSpec((TB, S, D), lambda b: (b, 0, 0)),              # x
        _weight_spec((D, 3 * D), single_buffer_weights),            # wqkv bf16
        _weight_spec((1, 3 * D), single_buffer_weights),            # bqkv f32
        _weight_spec((D, D), single_buffer_weights),                # wout bf16
        _weight_spec((1, D), single_buffer_weights),                # bout f32
    ]

    kernel = pl.pallas_call(
        _mha_kernel,
        out_shape=jax.ShapeDtypeStruct((B, S, D), jnp.float32),
        grid_spec=pltpu.PrefetchScalarGridSpec(
            num_scalar_prefetch=0,
            grid=grid,
            in_specs=in_specs,
            out_specs=pl.BlockSpec((TB, S, D), lambda b: (b, 0, 0)),
        ),
        compiler_params=pltpu.CompilerParams(
            dimension_semantics=("parallel",),
            vmem_limit_bytes=48 * 1024 * 1024,
        ),
    )
    return kernel(x, f["wqkv"], f["bqkv"], f["wout"], f["bout"])


def mha_forward(x, params):
    """x: (B, S, D) float32. params: raw (unfused) weights in (in, out) layout."""
    f = _fuse_params(params)
    if hasattr(pl, "Buffered"):
        try:
            out = _mha_call(x, f, single_buffer_weights=True)
            return jax.block_until_ready(out)
        except Exception:
            pass
    # TODO(synk): pl.Buffered(1) single-buffering of grid-invariant weights not
    # supported on this Pallas/Mosaic build; fall back to default buffering.
    return _mha_call(x, f, single_buffer_weights=False)


# --------------------------------------------------------------------------- #
# Synthetic params + pure-JAX reference (mirrors the PyTorch module)
# --------------------------------------------------------------------------- #
def make_params(key):
    """Deterministic synthetic weights. All W stored as (in, out); biases (D,)."""
    ks = jax.random.split(key, 14)
    s_lin = 1.0 / math.sqrt(D)
    u = lambda k, shape: jax.random.uniform(k, shape, jnp.float32, -s_lin, s_lin)
    return {
        # outer q/k/v Linear layers
        "wq": u(ks[0], (D, D)), "bq": u(ks[1], (D,)),
        "wk": u(ks[2], (D, D)), "bk": u(ks[3], (D,)),
        "wv": u(ks[4], (D, D)), "bv": u(ks[5], (D,)),
        # MHA in_proj (q/k/v pieces of the (3D, D) in_proj_weight)
        "wiq": u(ks[6], (D, D)), "biq": u(ks[7], (D,)),
        "wik": u(ks[8], (D, D)), "bik": u(ks[9], (D,)),
        "wiv": u(ks[10], (D, D)), "biv": u(ks[11], (D,)),
        # MHA out_proj
        "wout": u(ks[12], (D, D)), "bout": u(ks[13], (D,)),
    }


def mha_reference(x, p):
    """Pure-JAX reference mirroring torch.nn.MultiheadAttention forward (f32)."""
    hp = lax.Precision.HIGHEST
    q = jnp.dot(x, p["wq"], precision=hp) + p["bq"]
    k = jnp.dot(x, p["wk"], precision=hp) + p["bk"]
    v = jnp.dot(x, p["wv"], precision=hp) + p["bv"]
    qp = jnp.dot(q, p["wiq"], precision=hp) + p["biq"]
    kp = jnp.dot(k, p["wik"], precision=hp) + p["bik"]
    vp = jnp.dot(v, p["wiv"], precision=hp) + p["biv"]
    B, S, _ = x.shape
    qh = qp.reshape(B, S, NUM_HEADS, HEAD_DIM).transpose(0, 2, 1, 3)
    kh = kp.reshape(B, S, NUM_HEADS, HEAD_DIM).transpose(0, 2, 1, 3)
    vh = vp.reshape(B, S, NUM_HEADS, HEAD_DIM).transpose(0, 2, 1, 3)
    s = jnp.einsum("bhqd,bhkd->bhqk", qh, kh, precision=hp) / math.sqrt(HEAD_DIM)
    patt = jax.nn.softmax(s, axis=-1)
    o = jnp.einsum("bhqk,bhkd->bhqd", patt, vh, precision=hp)
    o = o.transpose(0, 2, 1, 3).reshape(B, S, D)
    return jnp.dot(o, p["wout"], precision=hp) + p["bout"]


if __name__ == "__main__":
    key = jax.random.PRNGKey(0)
    k_x, k_p = jax.random.split(key)
    params = make_params(k_p)

    # (1,8): TB=1 no-mask path; (2,8)/(4,8): masked single-step path;
    # (64,8): TB=32 -> 2-step parallel grid with block-diagonal mask.
    for B, S in ((1, 8), (2, 8), (4, 8), (64, 8)):
        x = jax.random.normal(jax.random.fold_in(k_x, 1000 * B + S), (B, S, D),
                              dtype=jnp.float32)
        out = jax.block_until_ready(mha_forward(x, params))
        ref = mha_reference(x, params)
        assert out.shape == (B, S, D)
        err = float(jnp.max(jnp.abs(out - ref)))
        assert jnp.allclose(out, ref, atol=2e-2, rtol=2e-2), \
            f"mismatch vs reference (B={B}, S={S}, max_abs_err={err})"

    print("KERNEL_OK")
</pallas_src>

<mosaic_0001>
module attributes {stable_mosaic.version = 11 : i64} {
  func.func @_mha_kernel(%arg0: i32, %arg1: memref<1x8x640xf32, #tpu.memory_space<vmem>>, %arg2: memref<640x1920xbf16, #tpu.memory_space<vmem>>, %arg3: memref<1x1920xf32, #tpu.memory_space<vmem>>, %arg4: memref<640x640xbf16, #tpu.memory_space<vmem>>, %arg5: memref<1x640xf32, #tpu.memory_space<vmem>>, %arg6: memref<1x8x640xf32, #tpu.memory_space<vmem>>) attributes {dimension_semantics = [#tpu.dimension_semantics<parallel>], iteration_bounds = array<i64: 1>, scalar_prefetch = 0 : i64, scratch_operands = 0 : i64, tpu.core_type = #tpu.core_type<tc>, window_params = [{transform_indices = @transform_0, window_bounds = array<i64: 1, 8, 640>}, {pipeline_mode = #tpu.pipeline_mode<synchronous>, transform_indices = @transform_1, window_bounds = array<i64: 640, 1920>}, {pipeline_mode = #tpu.pipeline_mode<synchronous>, transform_indices = @transform_2, window_bounds = array<i64: 1, 1920>}, {pipeline_mode = #tpu.pipeline_mode<synchronous>, transform_indices = @transform_3, window_bounds = array<i64: 640, 640>}, {pipeline_mode = #tpu.pipeline_mode<synchronous>, transform_indices = @transform_4, window_bounds = array<i64: 1, 640>}, {transform_indices = @transform_5, window_bounds = array<i64: 1, 8, 640>}]} {
    %c0 = arith.constant 0 : index
    %c0_0 = arith.constant 0 : index
    %c0_1 = arith.constant 0 : index
    %0 = vector.load %arg1[%c0, %c0_0, %c0_1] : memref<1x8x640xf32, #tpu.memory_space<vmem>>, vector<1x8x640xf32>
    %1 = vector.shape_cast %0 : vector<1x8x640xf32> to vector<8x640xf32>
    %2 = arith.truncf %1 : vector<8x640xf32> to vector<8x640xbf16>
    %c0_2 = arith.constant 0 : index
    %c0_3 = arith.constant 0 : index
    %3 = vector.load %arg2[%c0_2, %c0_3] : memref<640x1920xbf16, #tpu.memory_space<vmem>>, vector<640x1920xbf16>
    %cst = arith.constant dense<0.000000e+00> : vector<8x1920xf32>
    %4 = tpu.matmul %2, %3, %cst {dimension_numbers = #tpu.dot_dimension_numbers<[1], [0], [0], [1], [0, 0, 1, 1], [], []>} : vector<8x640xbf16>, vector<640x1920xbf16>, vector<8x1920xf32> -> vector<8x1920xf32>
    %c0_4 = arith.constant 0 : index
    %c0_5 = arith.constant 0 : index
    %5 = vector.load %arg3[%c0_4, %c0_5] : memref<1x1920xf32, #tpu.memory_space<vmem>>, vector<1x1920xf32>
    %6 = vector.broadcast %5 : vector<1x1920xf32> to vector<8x1920xf32>
    %7 = arith.addf %4, %6 : vector<8x1920xf32>
    %8 = vector.extract_strided_slice %7 {offsets = [0, 0], sizes = [8, 160], strides = [1, 1]} : vector<8x1920xf32> to vector<8x160xf32>
    %9 = arith.truncf %8 : vector<8x160xf32> to vector<8x160xbf16>
    %10 = vector.extract_strided_slice %7 {offsets = [0, 640], sizes = [8, 160], strides = [1, 1]} : vector<8x1920xf32> to vector<8x160xf32>
    %11 = arith.truncf %10 : vector<8x160xf32> to vector<8x160xbf16>
    %12 = vector.extract_strided_slice %7 {offsets = [0, 1280], sizes = [8, 160], strides = [1, 1]} : vector<8x1920xf32> to vector<8x160xf32>
    %13 = arith.truncf %12 : vector<8x160xf32> to vector<8x160xbf16>
    %cst_6 = arith.constant dense<0.000000e+00> : vector<8x8xf32>
    %14 = tpu.matmul %9, %11, %cst_6 {dimension_numbers = #tpu.dot_dimension_numbers<[1], [1], [0], [0], [0, 0, 1, 0], [], []>} : vector<8x160xbf16>, vector<8x160xbf16>, vector<8x8xf32> -> vector<8x8xf32>
    %cst_7 = arith.constant dense<0xFF800000> : vector<8xf32>
    %15 = vector.multi_reduction <maximumf>, %14, %cst_7 [1] : vector<8x8xf32> to vector<8xf32>
    %16 = vector.shape_cast %15 : vector<8xf32> to vector<8x1xf32>
    %17 = vector.broadcast %16 : vector<8x1xf32> to vector<8x8xf32>
    %18 = arith.subf %14, %17 : vector<8x8xf32>
    %19 = math.exp %18 : vector<8x8xf32>
    %cst_8 = arith.constant dense<0.000000e+00> : vector<8xf32>
    %20 = vector.multi_reduction <add>, %19, %cst_8 [1] : vector<8x8xf32> to vector<8xf32>
    %21 = vector.shape_cast %20 : vector<8xf32> to vector<8x1xf32>
    %22 = tpu.reciprocal %21 : vector<8x1xf32> -> vector<8x1xf32>
    %23 = vector.broadcast %22 : vector<8x1xf32> to vector<8x8xf32>
    %24 = arith.mulf %19, %23 : vector<8x8xf32>
    %25 = arith.truncf %24 : vector<8x8xf32> to vector<8x8xbf16>
    %cst_9 = arith.constant dense<0.000000e+00> : vector<8x160xf32>
    %26 = tpu.matmul %25, %13, %cst_9 {dimension_numbers = #tpu.dot_dimension_numbers<[1], [0], [0], [1], [0, 0, 1, 1], [], []>} : vector<8x8xbf16>, vector<8x160xbf16>, vector<8x160xf32> -> vector<8x160xf32>
    %27 = arith.truncf %26 : vector<8x160xf32> to vector<8x160xbf16>
    %28 = vector.extract_strided_slice %7 {offsets = [0, 160], sizes = [8, 160], strides = [1, 1]} : vector<8x1920xf32> to vector<8x160xf32>
    %29 = arith.truncf %28 : vector<8x160xf32> to vector<8x160xbf16>
    %30 = vector.extract_strided_slice %7 {offsets = [0, 800], sizes = [8, 160], strides = [1, 1]} : vector<8x1920xf32> to vector<8x160xf32>
    %31 = arith.truncf %30 : vector<8x160xf32> to vector<8x160xbf16>
    %32 = vector.extract_strided_slice %7 {offsets = [0, 1440], sizes = [8, 160], strides = [1, 1]} : vector<8x1920xf32> to vector<8x160xf32>
    %33 = arith.truncf %32 : vector<8x160xf32> to vector<8x160xbf16>
    %cst_10 = arith.constant dense<0.000000e+00> : vector<8x8xf32>
    %34 = tpu.matmul %29, %31, %cst_10 {dimension_numbers = #tpu.dot_dimension_numbers<[1], [1], [0], [0], [0, 0, 1, 0], [], []>} : vector<8x160xbf16>, vector<8x160xbf16>, vector<8x8xf32> -> vector<8x8xf32>
    %cst_11 = arith.constant dense<0xFF800000> : vector<8xf32>
    %35 = vector.multi_reduction <maximumf>, %34, %cst_11 [1] : vector<8x8xf32> to vector<8xf32>
    %36 = vector.shape_cast %35 : vector<8xf32> to vector<8x1xf32>
    %37 = vector.broadcast %36 : vector<8x1xf32> to vector<8x8xf32>
    %38 = arith.subf %34, %37 : vector<8x8xf32>
    %39 = math.exp %38 : vector<8x8xf32>
    %cst_12 = arith.constant dense<0.000000e+00> : vector<8xf32>
    %40 = vector.multi_reduction <add>, %39, %cst_12 [1] : vector<8x8xf32> to vector<8xf32>
    %41 = vector.shape_cast %40 : vector<8xf32> to vector<8x1xf32>
    %42 = tpu.reciprocal %41 : vector<8x1xf32> -> vector<8x1xf32>
    %43 = vector.broadcast %42 : vector<8x1xf32> to vector<8x8xf32>
    %44 = arith.mulf %39, %43 : vector<8x8xf32>
    %45 = arith.truncf %44 : vector<8x8xf32> to vector<8x8xbf16>
    %cst_13 = arith.constant dense<0.000000e+00> : vector<8x160xf32>
    %46 = tpu.matmul %45, %33, %cst_13 {dimension_numbers = #tpu.dot_dimension_numbers<[1], [0], [0], [1], [0, 0, 1, 1], [], []>} : vector<8x8xbf16>, vector<8x160xbf16>, vector<8x160xf32> -> vector<8x160xf32>
    %47 = arith.truncf %46 : vector<8x160xf32> to vector<8x160xbf16>
    %48 = vector.extract_strided_slice %7 {offsets = [0, 320], sizes = [8, 160], strides = [1, 1]} : vector<8x1920xf32> to vector<8x160xf32>
    %49 = arith.truncf %48 : vector<8x160xf32> to vector<8x160xbf16>
    %50 = vector.extract_strided_slice %7 {offsets = [0, 960], sizes = [8, 160], strides = [1, 1]} : vector<8x1920xf32> to vector<8x160xf32>
    %51 = arith.truncf %50 : vector<8x160xf32> to vector<8x160xbf16>
    %52 = vector.extract_strided_slice %7 {offsets = [0, 1600], sizes = [8, 160], strides = [1, 1]} : vector<8x1920xf32> to vector<8x160xf32>
    %53 = arith.truncf %52 : vector<8x160xf32> to vector<8x160xbf16>
    %cst_14 = arith.constant dense<0.000000e+00> : vector<8x8xf32>
    %54 = tpu.matmul %49, %51, %cst_14 {dimension_numbers = #tpu.dot_dimension_numbers<[1], [1], [0], [0], [0, 0, 1, 0], [], []>} : vector<8x160xbf16>, vector<8x160xbf16>, vector<8x8xf32> -> vector<8x8xf32>
    %cst_15 = arith.constant dense<0xFF800000> : vector<8xf32>
    %55 = vector.multi_reduction <maximumf>, %54, %cst_15 [1] : vector<8x8xf32> to vector<8xf32>
    %56 = vector.shape_cast %55 : vector<8xf32> to vector<8x1xf32>
    %57 = vector.broadcast %56 : vector<8x1xf32> to vector<8x8xf32>
    %58 = arith.subf %54, %57 : vector<8x8xf32>
    %59 = math.exp %58 : vector<8x8xf32>
    %cst_16 = arith.constant dense<0.000000e+00> : vector<8xf32>
    %60 = vector.multi_reduction <add>, %59, %cst_16 [1] : vector<8x8xf32> to vector<8xf32>
    %61 = vector.shape_cast %60 : vector<8xf32> to vector<8x1xf32>
    %62 = tpu.reciprocal %61 : vector<8x1xf32> -> vector<8x1xf32>
    %63 = vector.broadcast %62 : vector<8x1xf32> to vector<8x8xf32>
    %64 = arith.mulf %59, %63 : vector<8x8xf32>
    %65 = arith.truncf %64 : vector<8x8xf32> to vector<8x8xbf16>
    %cst_17 = arith.constant dense<0.000000e+00> : vector<8x160xf32>
    %66 = tpu.matmul %65, %53, %cst_17 {dimension_numbers = #tpu.dot_dimension_numbers<[1], [0], [0], [1], [0, 0, 1, 1], [], []>} : vector<8x8xbf16>, vector<8x160xbf16>, vector<8x160xf32> -> vector<8x160xf32>
    %67 = arith.truncf %66 : vector<8x160xf32> to vector<8x160xbf16>
    %68 = vector.extract_strided_slice %7 {offsets = [0, 480], sizes = [8, 160], strides = [1, 1]} : vector<8x1920xf32> to vector<8x160xf32>
    %69 = arith.truncf %68 : vector<8x160xf32> to vector<8x160xbf16>
    %70 = vector.extract_strided_slice %7 {offsets = [0, 1120], sizes = [8, 160], strides = [1, 1]} : vector<8x1920xf32> to vector<8x160xf32>
    %71 = arith.truncf %70 : vector<8x160xf32> to vector<8x160xbf16>
    %72 = vector.extract_strided_slice %7 {offsets = [0, 1760], sizes = [8, 160], strides = [1, 1]} : vector<8x1920xf32> to vector<8x160xf32>
    %73 = arith.truncf %72 : vector<8x160xf32> to vector<8x160xbf16>
    %cst_18 = arith.constant dense<0.000000e+00> : vector<8x8xf32>
    %74 = tpu.matmul %69, %71, %cst_18 {dimension_numbers = #tpu.dot_dimension_numbers<[1], [1], [0], [0], [0, 0, 1, 0], [], []>} : vector<8x160xbf16>, vector<8x160xbf16>, vector<8x8xf32> -> vector<8x8xf32>
    %cst_19 = arith.constant dense<0xFF800000> : vector<8xf32>
    %75 = vector.multi_reduction <maximumf>, %74, %cst_19 [1] : vector<8x8xf32> to vector<8xf32>
    %76 = vector.shape_cast %75 : vector<8xf32> to vector<8x1xf32>
    %77 = vector.broadcast %76 : vector<8x1xf32> to vector<8x8xf32>
    %78 = arith.subf %74, %77 : vector<8x8xf32>
    %79 = math.exp %78 : vector<8x8xf32>
    %cst_20 = arith.constant dense<0.000000e+00> : vector<8xf32>
    %80 = vector.multi_reduction <add>, %79, %cst_20 [1] : vector<8x8xf32> to vector<8xf32>
    %81 = vector.shape_cast %80 : vector<8xf32> to vector<8x1xf32>
    %82 = tpu.reciprocal %81 : vector<8x1xf32> -> vector<8x1xf32>
    %83 = vector.broadcast %82 : vector<8x1xf32> to vector<8x8xf32>
    %84 = arith.mulf %79, %83 : vector<8x8xf32>
    %85 = arith.truncf %84 : vector<8x8xf32> to vector<8x8xbf16>
    %cst_21 = arith.constant dense<0.000000e+00> : vector<8x160xf32>
    %86 = tpu.matmul %85, %73, %cst_21 {dimension_numbers = #tpu.dot_dimension_numbers<[1], [0], [0], [1], [0, 0, 1, 1], [], []>} : vector<8x8xbf16>, vector<8x160xbf16>, vector<8x160xf32> -> vector<8x160xf32>
    %87 = arith.truncf %86 : vector<8x160xf32> to vector<8x160xbf16>
    %88 = tpu.concatenate %27, %47, %67, %87 in 1 : vector<8x160xbf16>, vector<8x160xbf16>, vector<8x160xbf16>, vector<8x160xbf16> -> vector<8x640xbf16>
    %c0_22 = arith.constant 0 : index
    %c0_23 = arith.constant 0 : index
    %89 = vector.load %arg4[%c0_22, %c0_23] : memref<640x640xbf16, #tpu.memory_space<vmem>>, vector<640x640xbf16>
    %cst_24 = arith.constant dense<0.000000e+00> : vector<8x640xf32>
    %90 = tpu.matmul %88, %89, %cst_24 {dimension_numbers = #tpu.dot_dimension_numbers<[1], [0], [0], [1], [0, 0, 1, 1], [], []>} : vector<8x640xbf16>, vector<640x640xbf16>, vector<8x640xf32> -> vector<8x640xf32>
    %c0_25 = arith.constant 0 : index
    %c0_26 = arith.constant 0 : index
    %91 = vector.load %arg5[%c0_25, %c0_26] : memref<1x640xf32, #tpu.memory_space<vmem>>, vector<1x640xf32>
    %92 = vector.broadcast %91 : vector<1x640xf32> to vector<8x640xf32>
    %93 = arith.addf %90, %92 : vector<8x640xf32>
    %94 = vector.shape_cast %93 : vector<8x640xf32> to vector<1x8x640xf32>
    %c0_27 = arith.constant 0 : index
    %c0_28 = arith.constant 0 : index
    %c0_29 = arith.constant 0 : index
    %95 = vector.load %arg6[%c0_27, %c0_28, %c0_29] : memref<1x8x640xf32, #tpu.memory_space<vmem>>, vector<1x8x640xf32>
    tpu.vector_store %arg6[%c0_27, %c0_28, %c0_29], %94 {strides = array<i32>} : memref<1x8x640xf32, #tpu.memory_space<vmem>>, vector<1x8x640xf32>,
    return
  }
  func.func @transform_0(%arg0: i32) -> (i32, i32, i32) {
    %c0_i32 = arith.constant 0 : i32
    %c0_i32_0 = arith.constant 0 : i32
    %c0_i32_1 = arith.constant 0 : i32
    return %arg0, %c0_i32, %c0_i32_0 : i32, i32, i32
  }
  func.func @transform_1(%arg0: i32) -> (i32, i32) {
    %c0_i32 = arith.constant 0 : i32
    %c0_i32_0 = arith.constant 0 : i32
    %c0_i32_1 = arith.constant 0 : i32
    return %c0_i32, %c0_i32_0 : i32, i32
  }
  func.func @transform_2(%arg0: i32) -> (i32, i32) {
    %c0_i32 = arith.constant 0 : i32
    %c0_i32_0 = arith.constant 0 : i32
    %c0_i32_1 = arith.constant 0 : i32
    return %c0_i32, %c0_i32_0 : i32, i32
  }
  func.func @transform_3(%arg0: i32) -> (i32, i32) {
    %c0_i32 = arith.constant 0 : i32
    %c0_i32_0 = arith.constant 0 : i32
    %c0_i32_1 = arith.constant 0 : i32
    return %c0_i32, %c0_i32_0 : i32, i32
  }
  func.func @transform_4(%arg0: i32) -> (i32, i32) {
    %c0_i32 = arith.constant 0 : i32
    %c0_i32_0 = arith.constant 0 : i32
    %c0_i32_1 = arith.constant 0 : i32
    return %c0_i32, %c0_i32_0 : i32, i32
  }
  func.func @transform_5(%arg0: i32) -> (i32, i32, i32) {
    %c0_i32 = arith.constant 0 : i32
    %c0_i32_0 = arith.constant 0 : i32
    %c0_i32_1 = arith.constant 0 : i32
    return %arg0, %c0_i32, %c0_i32_0 : i32, i32, i32
  }
}

module attributes {stable_mosaic.version = 11 : i64} {
  func.func @_mha_kernel(%arg0: i32, %arg1: memref<1x8x640xf32, #tpu.memory_space<vmem>>, %arg2: memref<640x1920xbf16, #tpu.memory_space<vmem>>, %arg3: memref<1x1920xf32, #tpu.memory_space<vmem>>, %arg4: memref<640x640xbf16, #tpu.memory_space<vmem>>, %arg5: memref<1x640xf32, #tpu.memory_space<vmem>>, %arg6: memref<1x8x640xf32, #tpu.memory_space<vmem>>) attributes {dimension_semantics = [#tpu.dimension_semantics<parallel>], iteration_bounds = array<i64: 1>, scalar_prefetch = 0 : i64, scratch_operands = 0 : i64, tpu.core_type = #tpu.core_type<tc>, window_params = [{transform_indices = @transform_0, window_bounds = array<i64: 1, 8, 640>}, {pipeline_mode = #tpu.pipeline_mode<synchronous>, transform_indices = @transform_1, window_bounds = array<i64: 640, 1920>}, {pipeline_mode = #tpu.pipeline_mode<synchronous>, transform_indices = @transform_2, window_bounds = array<i64: 1, 1920>}, {pipeline_mode = #tpu.pipeline_mode<synchronous>, transform_indices = @transform_3, window_bounds = array<i64: 640, 640>}, {pipeline_mode = #tpu.pipeline_mode<synchronous>, transform_indices = @transform_4, window_bounds = array<i64: 1, 640>}, {transform_indices = @transform_5, window_bounds = array<i64: 1, 8, 640>}]} {
    %c0 = arith.constant 0 : index
    %c0_0 = arith.constant 0 : index
    %c0_1 = arith.constant 0 : index
    %0 = vector.load %arg1[%c0, %c0_0, %c0_1] : memref<1x8x640xf32, #tpu.memory_space<vmem>>, vector<1x8x640xf32>
    %1 = vector.shape_cast %0 : vector<1x8x640xf32> to vector<8x640xf32>
    %2 = arith.truncf %1 : vector<8x640xf32> to vector<8x640xbf16>
    %c0_2 = arith.constant 0 : index
    %c0_3 = arith.constant 0 : index
    %3 = vector.load %arg2[%c0_2, %c0_3] : memref<640x1920xbf16, #tpu.memory_space<vmem>>, vector<640x1920xbf16>
    %cst = arith.constant dense<0.000000e+00> : vector<8x1920xf32>
    %4 = tpu.matmul %2, %3, %cst {dimension_numbers = #tpu.dot_dimension_numbers<[1], [0], [0], [1], [0, 0, 1, 1], [], []>} : vector<8x640xbf16>, vector<640x1920xbf16>, vector<8x1920xf32> -> vector<8x1920xf32>
    %c0_4 = arith.constant 0 : index
    %c0_5 = arith.constant 0 : index
    %5 = vector.load %arg3[%c0_4, %c0_5] : memref<1x1920xf32, #tpu.memory_space<vmem>>, vector<1x1920xf32>
    %6 = vector.broadcast %5 : vector<1x1920xf32> to vector<8x1920xf32>
    %7 = arith.addf %4, %6 : vector<8x1920xf32>
    %8 = vector.extract_strided_slice %7 {offsets = [0, 0], sizes = [8, 160], strides = [1, 1]} : vector<8x1920xf32> to vector<8x160xf32>
    %9 = arith.truncf %8 : vector<8x160xf32> to vector<8x160xbf16>
    %10 = vector.extract_strided_slice %7 {offsets = [0, 640], sizes = [8, 160], strides = [1, 1]} : vector<8x1920xf32> to vector<8x160xf32>
    %11 = arith.truncf %10 : vector<8x160xf32> to vector<8x160xbf16>
    %12 = vector.extract_strided_slice %7 {offsets = [0, 1280], sizes = [8, 160], strides = [1, 1]} : vector<8x1920xf32> to vector<8x160xf32>
    %13 = arith.truncf %12 : vector<8x160xf32> to vector<8x160xbf16>
    %cst_6 = arith.constant dense<0.000000e+00> : vector<8x8xf32>
    %14 = tpu.matmul %9, %11, %cst_6 {dimension_numbers = #tpu.dot_dimension_numbers<[1], [1], [0], [0], [0, 0, 1, 0], [], []>} : vector<8x160xbf16>, vector<8x160xbf16>, vector<8x8xf32> -> vector<8x8xf32>
    %cst_7 = arith.constant dense<0xFF800000> : vector<8xf32>
    %15 = vector.multi_reduction <maximumf>, %14, %cst_7 [1] : vector<8x8xf32> to vector<8xf32>
    %16 = vector.shape_cast %15 : vector<8xf32> to vector<8x1xf32>
    %17 = vector.broadcast %16 : vector<8x1xf32> to vector<8x8xf32>
    %18 = arith.subf %14, %17 : vector<8x8xf32>
    %19 = math.exp %18 : vector<8x8xf32>
    %cst_8 = arith.constant dense<0.000000e+00> : vector<8xf32>
    %20 = vector.multi_reduction <add>, %19, %cst_8 [1] : vector<8x8xf32> to vector<8xf32>
    %21 = vector.shape_cast %20 : vector<8xf32> to vector<8x1xf32>
    %22 = tpu.reciprocal %21 : vector<8x1xf32> -> vector<8x1xf32>
    %23 = vector.broadcast %22 : vector<8x1xf32> to vector<8x8xf32>
    %24 = arith.mulf %19, %23 : vector<8x8xf32>
    %25 = arith.truncf %24 : vector<8x8xf32> to vector<8x8xbf16>
    %cst_9 = arith.constant dense<0.000000e+00> : vector<8x160xf32>
    %26 = tpu.matmul %25, %13, %cst_9 {dimension_numbers = #tpu.dot_dimension_numbers<[1], [0], [0], [1], [0, 0, 1, 1], [], []>} : vector<8x8xbf16>, vector<8x160xbf16>, vector<8x160xf32> -> vector<8x160xf32>
    %27 = arith.truncf %26 : vector<8x160xf32> to vector<8x160xbf16>
    %28 = vector.extract_strided_slice %7 {offsets = [0, 160], sizes = [8, 160], strides = [1, 1]} : vector<8x1920xf32> to vector<8x160xf32>
    %29 = arith.truncf %28 : vector<8x160xf32> to vector<8x160xbf16>
    %30 = vector.extract_strided_slice %7 {offsets = [0, 800], sizes = [8, 160], strides = [1, 1]} : vector<8x1920xf32> to vector<8x160xf32>
    %31 = arith.truncf %30 : vector<8x160xf32> to vector<8x160xbf16>
    %32 = vector.extract_strided_slice %7 {offsets = [0, 1440], sizes = [8, 160], strides = [1, 1]} : vector<8x1920xf32> to vector<8x160xf32>
    %33 = arith.truncf %32 : vector<8x160xf32> to vector<8x160xbf16>
    %cst_10 = arith.constant dense<0.000000e+00> : vector<8x8xf32>
    %34 = tpu.matmul %29, %31, %cst_10 {dimension_numbers = #tpu.dot_dimension_numbers<[1], [1], [0], [0], [0, 0, 1, 0], [], []>} : vector<8x160xbf16>, vector<8x160xbf16>, vector<8x8xf32> -> vector<8x8xf32>
    %cst_11 = arith.constant dense<0xFF800000> : vector<8xf32>
    %35 = vector.multi_reduction <maximumf>, %34, %cst_11 [1] : vector<8x8xf32> to vector<8xf32>
    %36 = vector.shape_cast %35 : vector<8xf32> to vector<8x1xf32>
    %37 = vector.broadcast %36 : vector<8x1xf32> to vector<8x8xf32>
    %38 = arith.subf %34, %37 : vector<8x8xf32>
    %39 = math.exp %38 : vector<8x8xf32>
    %cst_12 = arith.constant dense<0.000000e+00> : vector<8xf32>
    %40 = vector.multi_reduction <add>, %39, %cst_12 [1] : vector<8x8xf32> to vector<8xf32>
    %41 = vector.shape_cast %40 : vector<8xf32> to vector<8x1xf32>
    %42 = tpu.reciprocal %41 : vector<8x1xf32> -> vector<8x1xf32>
    %43 = vector.broadcast %42 : vector<8x1xf32> to vector<8x8xf32>
    %44 = arith.mulf %39, %43 : vector<8x8xf32>
    %45 = arith.truncf %44 : vector<8x8xf32> to vector<8x8xbf16>
    %cst_13 = arith.constant dense<0.000000e+00> : vector<8x160xf32>
    %46 = tpu.matmul %45, %33, %cst_13 {dimension_numbers = #tpu.dot_dimension_numbers<[1], [0], [0], [1], [0, 0, 1, 1], [], []>} : vector<8x8xbf16>, vector<8x160xbf16>, vector<8x160xf32> -> vector<8x160xf32>
    %47 = arith.truncf %46 : vector<8x160xf32> to vector<8x160xbf16>
    %48 = vector.extract_strided_slice %7 {offsets = [0, 320], sizes = [8, 160], strides = [1, 1]} : vector<8x1920xf32> to vector<8x160xf32>
    %49 = arith.truncf %48 : vector<8x160xf32> to vector<8x160xbf16>
    %50 = vector.extract_strided_slice %7 {offsets = [0, 960], sizes = [8, 160], strides = [1, 1]} : vector<8x1920xf32> to vector<8x160xf32>
    %51 = arith.truncf %50 : vector<8x160xf32> to vector<8x160xbf16>
    %52 = vector.extract_strided_slice %7 {offsets = [0, 1600], sizes = [8, 160], strides = [1, 1]} : vector<8x1920xf32> to vector<8x160xf32>
    %53 = arith.truncf %52 : vector<8x160xf32> to vector<8x160xbf16>
    %cst_14 = arith.constant dense<0.000000e+00> : vector<8x8xf32>
    %54 = tpu.matmul %49, %51, %cst_14 {dimension_numbers = #tpu.dot_dimension_numbers<[1], [1], [0], [0], [0, 0, 1, 0], [], []>} : vector<8x160xbf16>, vector<8x160xbf16>, vector<8x8xf32> -> vector<8x8xf32>
    %cst_15 = arith.constant dense<0xFF800000> : vector<8xf32>
    %55 = vector.multi_reduction <maximumf>, %54, %cst_15 [1] : vector<8x8xf32> to vector<8xf32>
    %56 = vector.shape_cast %55 : vector<8xf32> to vector<8x1xf32>
    %57 = vector.broadcast %56 : vector<8x1xf32> to vector<8x8xf32>
    %58 = arith.subf %54, %57 : vector<8x8xf32>
    %59 = math.exp %58 : vector<8x8xf32>
    %cst_16 = arith.constant dense<0.000000e+00> : vector<8xf32>
    %60 = vector.multi_reduction <add>, %59, %cst_16 [1] : vector<8x8xf32> to vector<8xf32>
    %61 = vector.shape_cast %60 : vector<8xf32> to vector<8x1xf32>
    %62 = tpu.reciprocal %61 : vector<8x1xf32> -> vector<8x1xf32>
    %63 = vector.broadcast %62 : vector<8x1xf32> to vector<8x8xf32>
    %64 = arith.mulf %59, %63 : vector<8x8xf32>
    %65 = arith.truncf %64 : vector<8x8xf32> to vector<8x8xbf16>
    %cst_17 = arith.constant dense<0.000000e+00> : vector<8x160xf32>
    %66 = tpu.matmul %65, %53, %cst_17 {dimension_numbers = #tpu.dot_dimension_numbers<[1], [0], [0], [1], [0, 0, 1, 1], [], []>} : vector<8x8xbf16>, vector<8x160xbf16>, vector<8x160xf32> -> vector<8x160xf32>
    %67 = arith.truncf %66 : vector<8x160xf32> to vector<8x160xbf16>
    %68 = vector.extract_strided_slice %7 {offsets = [0, 480], sizes = [8, 160], strides = [1, 1]} : vector<8x1920xf32> to vector<8x160xf32>
    %69 = arith.truncf %68 : vector<8x160xf32> to vector<8x160xbf16>
    %70 = vector.extract_strided_slice %7 {offsets = [0, 1120], sizes = [8, 160], strides = [1, 1]} : vector<8x1920xf32> to vector<8x160xf32>
    %71 = arith.truncf %70 : vector<8x160xf32> to vector<8x160xbf16>
    %72 = vector.extract_strided_slice %7 {offsets = [0, 1760], sizes = [8, 160], strides = [1, 1]} : vector<8x1920xf32> to vector<8x160xf32>
    %73 = arith.truncf %72 : vector<8x160xf32> to vector<8x160xbf16>
    %cst_18 = arith.constant dense<0.000000e+00> : vector<8x8xf32>
    %74 = tpu.matmul %69, %71, %cst_18 {dimension_numbers = #tpu.dot_dimension_numbers<[1], [1], [0], [0], [0, 0, 1, 0], [], []>} : vector<8x160xbf16>, vector<8x160xbf16>, vector<8x8xf32> -> vector<8x8xf32>
    %cst_19 = arith.constant dense<0xFF800000> : vector<8xf32>
    %75 = vector.multi_reduction <maximumf>, %74, %cst_19 [1] : vector<8x8xf32> to vector<8xf32>
    %76 = vector.shape_cast %75 : vector<8xf32> to vector<8x1xf32>
    %77 = vector.broadcast %76 : vector<8x1xf32> to vector<8x8xf32>
    %78 = arith.subf %74, %77 : vector<8x8xf32>
    %79 = math.exp %78 : vector<8x8xf32>
    %cst_20 = arith.constant dense<0.000000e+00> : vector<8xf32>
    %80 = vector.multi_reduction <add>, %79, %cst_20 [1] : vector<8x8xf32> to vector<8xf32>
    %81 = vector.shape_cast %80 : vector<8xf32> to vector<8x1xf32>
    %82 = tpu.reciprocal %81 : vector<8x1xf32> -> vector<8x1xf32>
    %83 = vector.broadcast %82 : vector<8x1xf32> to vector<8x8xf32>
    %84 = arith.mulf %79, %83 : vector<8x8xf32>
    %85 = arith.truncf %84 : vector<8x8xf32> to vector<8x8xbf16>
    %cst_21 = arith.constant dense<0.000000e+00> : vector<8x160xf32>
    %86 = tpu.matmul %85, %73, %cst_21 {dimension_numbers = #tpu.dot_dimension_numbers<[1], [0], [0], [1], [0, 0, 1, 1], [], []>} : vector<8x8xbf16>, vector<8x160xbf16>, vector<8x160xf32> -> vector<8x160xf32>
    %87 = arith.truncf %86 : vector<8x160xf32> to vector<8x160xbf16>
    %88 = tpu.concatenate %27, %47, %67, %87 in 1 : vector<8x160xbf16>, vector<8x160xbf16>, vector<8x160xbf16>, vector<8x160xbf16> -> vector<8x640xbf16>
    %c0_22 = arith.constant 0 : index
    %c0_23 = arith.constant 0 : index
    %89 = vector.load %arg4[%c0_22, %c0_23] : memref<640x640xbf16, #tpu.memory_space<vmem>>, vector<640x640xbf16>
    %cst_24 = arith.constant dense<0.000000e+00> : vector<8x640xf32>
    %90 = tpu.matmul %88, %89, %cst_24 {dimension_numbers = #tpu.dot_dimension_numbers<[1], [0], [0], [1], [0, 0, 1, 1], [], []>} : vector<8x640xbf16>, vector<640x640xbf16>, vector<8x640xf32> -> vector<8x640xf32>
    %c0_25 = arith.constant 0 : index
    %c0_26 = arith.constant 0 : index
    %91 = vector.load %arg5[%c0_25, %c0_26] : memref<1x640xf32, #tpu.memory_space<vmem>>, vector<1x640xf32>
    %92 = vector.broadcast %91 : vector<1x640xf32> to vector<8x640xf32>
    %93 = arith.addf %90, %92 : vector<8x640xf32>
    %94 = vector.shape_cast %93 : vector<8x640xf32> to vector<1x8x640xf32>
    %c0_27 = arith.constant 0 : index
    %c0_28 = arith.constant 0 : index
    %c0_29 = arith.constant 0 : index
    %95 = vector.load %arg6[%c0_27, %c0_28, %c0_29] : memref<1x8x640xf32, #tpu.memory_space<vmem>>, vector<1x8x640xf32>
    tpu.vector_store %arg6[%c0_27, %c0_28, %c0_29], %94 {strides = array<i32>} : memref<1x8x640xf32, #tpu.memory_space<vmem>>, vector<1x8x640xf32>,
    return
  }
  func.func @transform_0(%arg0: i32) -> (i32, i32, i32) {
    %c0_i32 = arith.constant 0 : i32
    %c0_i32_0 = arith.constant 0 : i32
    %c0_i32_1 = arith.constant 0 : i32
    return %arg0, %c0_i32, %c0_i32_0 : i32, i32, i32
  }
  func.func @transform_1(%arg0: i32) -> (i32, i32) {
    %c0_i32 = arith.constant 0 : i32
    %c0_i32_0 = arith.constant 0 : i32
    %c0_i32_1 = arith.constant 0 : i32
    return %c0_i32, %c0_i32_0 : i32, i32
  }
  func.func @transform_2(%arg0: i32) -> (i32, i32) {
    %c0_i32 = arith.constant 0 : i32
    %c0_i32_0 = arith.constant 0 : i32
    %c0_i32_1 = arith.constant 0 : i32
    return %c0_i32, %c0_i32_0 : i32, i32
  }
  func.func @transform_3(%arg0: i32) -> (i32, i32) {
    %c0_i32 = arith.constant 0 : i32
    %c0_i32_0 = arith.constant 0 : i32
    %c0_i32_1 = arith.constant 0 : i32
    return %c0_i32, %c0_i32_0 : i32, i32
  }
  func.func @transform_4(%arg0: i32) -> (i32, i32) {
    %c0_i32 = arith.constant 0 : i32
    %c0_i32_0 = arith.constant 0 : i32
    %c0_i32_1 = arith.constant 0 : i32
    return %c0_i32, %c0_i32_0 : i32, i32
  }
  func.func @transform_5(%arg0: i32) -> (i32, i32, i32) {
    %c0_i32 = arith.constant 0 : i32
    %c0_i32_0 = arith.constant 0 : i32
    %c0_i32_1 = arith.constant 0 : i32
    return %arg0, %c0_i32, %c0_i32_0 : i32, i32, i32
  }
}

</mosaic_0001>

<llo_original>
// kernel: tpu_custom_call.1
$region0: #{tpu_custom_call.1}
  #allocation0 [shape = 'u32[]', space=smem, size = 0x4, offset = 0x4, fixed_abs, tag = 'smem constant byte address 0x4 - core index']
  #allocation1 [shape = 'u32[144,128]{1,0:T(1,128)}', space=vmem, size = 0x12000, scoped, tag = 'internal scratch']
  %s0 = inlined_call_operand.hbm [shape: f32[1,8,640], index: 0, kind: input, shape index: {}]
  %s1 = inlined_call_operand.hbm [shape: bf16[640,1920], index: 1, kind: input, shape index: {}]
  %s2 = inlined_call_operand.hbm [shape: f32[1,1920], index: 2, kind: input, shape index: {}]
  %s3 = inlined_call_operand.hbm [shape: bf16[640,640], index: 3, kind: input, shape index: {}]
  %s4 = inlined_call_operand.hbm [shape: f32[1,640], index: 4, kind: input, shape index: {}]
  %s5 = inlined_call_operand.hbm [shape: f32[1,8,640], index: 5, kind: output, shape index: {}]
  %s6 = sld [smem:[#allocation0]]
  $region50: #{tpu_custom_call.1} parent=0
    _
  %s8 = ssub.s32 1, %s6
  %s9 = scalar_select 0, %s8, %s6
  $region1: #{tpu_custom_call.1} parent=0
    #allocation2 [shape = 'u8[20480]{0}', space=vmem, size = 0x5000, scoped, tag = 'input window, operand 0, single buffered']
    #allocation3 [shape = 's32[1]{0}', space=sflag, size = 0x4, scoped, tag = 'scoped memory for tpu_custom_call.1']
    #allocation4 [shape = 's32[1]{0}', space=sflag, size = 0x4, scoped, tag = 'scoped memory for tpu_custom_call.1']
    #allocation5 [shape = 'u8[2457600]{0}', space=vmem, size = 0x258000, scoped, tag = 'input window, operand 1, single buffered']
    #allocation6 [shape = 's32[1]{0}', space=sflag, size = 0x4, scoped, tag = 'scoped memory for tpu_custom_call.1']
    #allocation7 [shape = 'u8[7680]{0}', space=vmem, size = 0x2000, scoped, tag = 'input window, operand 2, single buffered']
    #allocation8 [shape = 'u8[819200]{0}', space=vmem, size = 0xc8000, scoped, tag = 'input window, operand 3, single buffered']
    #allocation9 [shape = 's32[1]{0}', space=sflag, size = 0x4, scoped, tag = 'scoped memory for tpu_custom_call.1']
    #allocation10 [shape = 'u8[2560]{0}', space=vmem, size = 0xc00, scoped, tag = 'input window, operand 4, single buffered']
    #allocation11 [shape = 'u8[20480]{0}', space=vmem, size = 0x5000, scoped, tag = 'output window, operand 0, single buffered']
    %10 = vsyncpa [#allocation3], 0
    %11 = vsyncpa [#allocation6], 0
    %12 = vsyncpa [#allocation9], 0
    %13 = vsyncpa [#allocation4], 0
    // Predicated region
    $region2: #{tpu_custom_call.1} parent=1 // pred_check
      _
    $region3: #{tpu_custom_call.1} parent=1 // pred_check_branch
      %15 = sbr.rel (0) target = $region5
    $region4: #{tpu_custom_call.1} parent=1 // pred_region
      %s17 = ssub.s32 640, 640
      %18 = vsyncadd [#allocation3], %s17
      %s20 = sshll.u32 [#allocation2], 4
      %s21 = int_to_ptr.vmem [resolvable:$true] %s20
      %23 = dma.hbm_to_vmem [thread:$0]  %s0, 640, %s21, [#allocation3]
    $region5: #{tpu_custom_call.1} parent=1 // pred_fallthru
      _
    // Predicated region
    $region6: #{tpu_custom_call.1} parent=1 // pred_check
      _
    $region7: #{tpu_custom_call.1} parent=1 // pred_check_branch
      %25 = sbr.rel (0) target = $region9
    $region8: #{tpu_custom_call.1} parent=1 // pred_region
      %s27 = ssub.s32 76800, 76800
      %28 = vsyncadd [#allocation6], %s27
      %s29 = sshll.u32 [#allocation5], 4
      %s30 = int_to_ptr.vmem [resolvable:$true] %s29
      %35 = dma.hbm_to_vmem [thread:$0]  %s1, 76800, %s30, [#allocation6], 960, 960, 60
    $region9: #{tpu_custom_call.1} parent=1 // pred_fallthru
      _
    // Predicated region
    $region10: #{tpu_custom_call.1} parent=1 // pred_check
      _
    $region11: #{tpu_custom_call.1} parent=1 // pred_check_branch
      %37 = sbr.rel (0) target = $region13
    $region12: #{tpu_custom_call.1} parent=1 // pred_region
      %s39 = ssub.s32 240, 240
      %40 = vsyncadd [#allocation6], %s39
      %s42 = sshll.u32 [#allocation7], 4
      %s43 = int_to_ptr.vmem [resolvable:$true] %s42
      %45 = dma.hbm_to_vmem [thread:$0]  %s2, 240, %s43, [#allocation6]
    $region13: #{tpu_custom_call.1} parent=1 // pred_fallthru
      _
    // Predicated region
    $region14: #{tpu_custom_call.1} parent=1 // pred_check
      _
    $region15: #{tpu_custom_call.1} parent=1 // pred_check_branch
      %47 = sbr.rel (0) target = $region17
    $region16: #{tpu_custom_call.1} parent=1 // pred_region
      %s49 = ssub.s32 25600, 25600
      %50 = vsyncadd [#allocation9], %s49
      %s51 = sshll.u32 [#allocation8], 4
      %s52 = int_to_ptr.vmem [resolvable:$true] %s51
      %57 = dma.hbm_to_vmem [thread:$0]  %s3, 25600, %s52, [#allocation9], 320, 320, 20
    $region17: #{tpu_custom_call.1} parent=1 // pred_fallthru
      _
    // Predicated region
    $region18: #{tpu_custom_call.1} parent=1 // pred_check
      _
    $region19: #{tpu_custom_call.1} parent=1 // pred_check_branch
      %59 = sbr.rel (0) target = $region21
    $region20: #{tpu_custom_call.1} parent=1 // pred_region
      %s61 = ssub.s32 80, 80
      %62 = vsyncadd [#allocation9], %s61
      %s64 = sshll.u32 [#allocation10], 4
      %s65 = int_to_ptr.vmem [resolvable:$true] %s64
      %67 = dma.hbm_to_vmem [thread:$0]  %s4, 80, %s65, [#allocation9]
    $region21: #{tpu_custom_call.1} parent=1 // pred_fallthru
      _
    // Predicated region
    $region22: #{tpu_custom_call.1} parent=1 // pred_check
      _
    $region23: #{tpu_custom_call.1} parent=1 // pred_check_branch
      %69 = sbr.rel (0) target = $region25
    $region24: #{tpu_custom_call.1} parent=1 // pred_region
      %70 = dma.done [#allocation3], 640
    $region25: #{tpu_custom_call.1} parent=1 // pred_fallthru
      _
    // Predicated region
    $region26: #{tpu_custom_call.1} parent=1 // pred_check
      _
    $region27: #{tpu_custom_call.1} parent=1 // pred_check_branch
      %72 = sbr.rel (0) target = $region29
    $region28: #{tpu_custom_call.1} parent=1 // pred_region
      %73 = dma.done [#allocation6], 76800
    $region29: #{tpu_custom_call.1} parent=1 // pred_fallthru
      _
    // Predicated region
    $region30: #{tpu_custom_call.1} parent=1 // pred_check
      _
    $region31: #{tpu_custom_call.1} parent=1 // pred_check_branch
      %75 = sbr.rel (0) target = $region33
    $region32: #{tpu_custom_call.1} parent=1 // pred_region
      %76 = dma.done [#allocation6], 240
    $region33: #{tpu_custom_call.1} parent=1 // pred_fallthru
      _
    // Predicated region
    $region34: #{tpu_custom_call.1} parent=1 // pred_check
      _
    $region35: #{tpu_custom_call.1} parent=1 // pred_check_branch
      %78 = sbr.rel (0) target = $region37
    $region36: #{tpu_custom_call.1} parent=1 // pred_region
      %79 = dma.done [#allocation9], 25600
    $region37: #{tpu_custom_call.1} parent=1 // pred_fallthru
      _
    // Predicated region
    $region38: #{tpu_custom_call.1} parent=1 // pred_check
      _
    $region39: #{tpu_custom_call.1} parent=1 // pred_check_branch
      %81 = sbr.rel (0) target = $region41
    $region40: #{tpu_custom_call.1} parent=1 // pred_region
      %82 = dma.done [#allocation9], 80
    $region41: #{tpu_custom_call.1} parent=1 // pred_fallthru
      _
    %v84 = vld [vmem:[#allocation2] sm:$0xff]
    %v85 = vld [vmem:[#allocation2 + $0x8] sm:$0xff]
    %v86 = vld [vmem:[#allocation2 + $0x10] sm:$0xff]
    %v87 = vld [vmem:[#allocation2 + $0x18] sm:$0xff]
    %v88 = vld [vmem:[#allocation2 + $0x20] sm:$0xff]
    %v89 = vpack.c.bf16 %v84, %v84
    %v90 = vpack.c.bf16 %v85, %v85
    %v91 = vpack.c.bf16 %v86, %v86
    %v92 = vpack.c.bf16 %v87, %v87
    %v93 = vpack.c.bf16 %v88, %v88
    %v94 = vld [vmem:[#allocation5] sm:$0xff]
    %v95 = vld [vmem:[#allocation5 + $0x8] sm:$0xff]
    %v96 = vld [vmem:[#allocation5 + $0x10] sm:$0xff]
    %v97 = vld [vmem:[#allocation5 + $0x18] sm:$0xff]
    %v98 = vld [vmem:[#allocation5 + $0x20] sm:$0xff]
    %v99 = vld [vmem:[#allocation5 + $0x28] sm:$0xff]
    %v100 = vld [vmem:[#allocation5 + $0x30] sm:$0xff]
    %v101 = vld [vmem:[#allocation5 + $0x38] sm:$0xf]
    %v102 = vld [vmem:[#allocation5 + $0x3c] sm:$0xff]
    %v103 = vld [vmem:[#allocation5 + $0x44] sm:$0xff]
    %v104 = vld [vmem:[#allocation5 + $0x4c] sm:$0xff]
    %v105 = vld [vmem:[#allocation5 + $0x54] sm:$0xff]
    %v106 = vld [vmem:[#allocation5 + $0x5c] sm:$0xff]
    %v107 = vld [vmem:[#allocation5 + $0x64] sm:$0xff]
    %v108 = vld [vmem:[#allocation5 + $0x6c] sm:$0xff]
    %v109 = vld [vmem:[#allocation5 + $0x74] sm:$0xf]
    %v110 = vld [vmem:[#allocation5 + $0x78] sm:$0xff]
    %v111 = vld [vmem:[#allocation5 + $0x80] sm:$0xff]
    %v112 = vld [vmem:[#allocation5 + $0x88] sm:$0xff]
    %v113 = vld [vmem:[#allocation5 + $0x90] sm:$0xff]
    %v114 = vld [vmem:[#allocation5 + $0x98] sm:$0xff]
    %v115 = vld [vmem:[#allocation5 + $0xa0] sm:$0xff]
    %v116 = vld [vmem:[#allocation5 + $0xa8] sm:$0xff]
    %v117 = vld [vmem:[#allocation5 + $0xb0] sm:$0xf]
    %v118 = vld [vmem:[#allocation5 + $0xb4] sm:$0xff]
    %v119 = vld [vmem:[#allocation5 + $0xbc] sm:$0xff]
    %v120 = vld [vmem:[#allocation5 + $0xc4] sm:$0xff]
    %v121 = vld [vmem:[#allocation5 + $0xcc] sm:$0xff]
    %v122 = vld [vmem:[#allocation5 + $0xd4] sm:$0xff]
    %v123 = vld [vmem:[#allocation5 + $0xdc] sm:$0xff]
    %v124 = vld [vmem:[#allocation5 + $0xe4] sm:$0xff]
    %v125 = vld [vmem:[#allocation5 + $0xec] sm:$0xf]
    %v126 = vld [vmem:[#allocation5 + $0xf0] sm:$0xff]
    %v127 = vld [vmem:[#allocation5 + $0xf8] sm:$0xff]
    %v128 = vld [vmem:[#allocation5 + $0x100] sm:$0xff]
    %v129 = vld [vmem:[#allocation5 + $0x108] sm:$0xff]
    %v130 = vld [vmem:[#allocation5 + $0x110] sm:$0xff]
    %v131 = vld [vmem:[#allocation5 + $0x118] sm:$0xff]
    %v132 = vld [vmem:[#allocation5 + $0x120] sm:$0xff]
    %v133 = vld [vmem:[#allocation5 + $0x128] sm:$0xf]
    %v134 = vld [vmem:[#allocation5 + $0x12c] sm:$0xff]
    %v135 = vld [vmem:[#allocation5 + $0x134] sm:$0xff]
    %v136 = vld [vmem:[#allocation5 + $0x13c] sm:$0xff]
    %v137 = vld [vmem:[#allocation5 + $0x144] sm:$0xff]
    %v138 = vld [vmem:[#allocation5 + $0x14c] sm:$0xff]
    %v139 = vld [vmem:[#allocation5 + $0x154] sm:$0xff]
    %v140 = vld [vmem:[#allocation5 + $0x15c] sm:$0xff]
    %v141 = vld [vmem:[#allocation5 + $0x164] sm:$0xf]
    %v142 = vld [vmem:[#allocation5 + $0x168] sm:$0xff]
    %v143 = vld [vmem:[#allocation5 + $0x170] sm:$0xff]
    %v144 = vld [vmem:[#allocation5 + $0x178] sm:$0xff]
    %v145 = vld [vmem:[#allocation5 + $0x180] sm:$0xff]
    %v146 = vld [vmem:[#allocation5 + $0x188] sm:$0xff]
    %v147 = vld [vmem:[#allocation5 + $0x190] sm:$0xff]
    %v148 = vld [vmem:[#allocation5 + $0x198] sm:$0xff]
    %v149 = vld [vmem:[#allocation5 + $0x1a0] sm:$0xf]
    %v150 = vld [vmem:[#allocation5 + $0x1a4] sm:$0xff]
    %v151 = vld [vmem:[#allocation5 + $0x1ac] sm:$0xff]
    %v152 = vld [vmem:[#allocation5 + $0x1b4] sm:$0xff]
    %v153 = vld [vmem:[#allocation5 + $0x1bc] sm:$0xff]
    %v154 = vld [vmem:[#allocation5 + $0x1c4] sm:$0xff]
    %v155 = vld [vmem:[#allocation5 + $0x1cc] sm:$0xff]
    %v156 = vld [vmem:[#allocation5 + $0x1d4] sm:$0xff]
    %v157 = vld [vmem:[#allocation5 + $0x1dc] sm:$0xf]
    %v158 = vld [vmem:[#allocation5 + $0x1e0] sm:$0xff]
    %v159 = vld [vmem:[#allocation5 + $0x1e8] sm:$0xff]
    %v160 = vld [vmem:[#allocation5 + $0x1f0] sm:$0xff]
    %v161 = vld [vmem:[#allocation5 + $0x1f8] sm:$0xff]
    %v162 = vld [vmem:[#allocation5 + $0x200] sm:$0xff]
    %v163 = vld [vmem:[#allocation5 + $0x208] sm:$0xff]
    %v164 = vld [vmem:[#allocation5 + $0x210] sm:$0xff]
    %v165 = vld [vmem:[#allocation5 + $0x218] sm:$0xf]
    %v166 = vld [vmem:[#allocation5 + $0x21c] sm:$0xff]
    %v167 = vld [vmem:[#allocation5 + $0x224] sm:$0xff]
    %v168 = vld [vmem:[#allocation5 + $0x22c] sm:$0xff]
    %v169 = vld [vmem:[#allocation5 + $0x234] sm:$0xff]
    %v170 = vld [vmem:[#allocation5 + $0x23c] sm:$0xff]
    %v171 = vld [vmem:[#allocation5 + $0x244] sm:$0xff]
    %v172 = vld [vmem:[#allocation5 + $0x24c] sm:$0xff]
    %v173 = vld [vmem:[#allocation5 + $0x254] sm:$0xf]
    %v174 = vld [vmem:[#allocation5 + $0x258] sm:$0xff]
    %v175 = vld [vmem:[#allocation5 + $0x260] sm:$0xff]
    %v176 = vld [vmem:[#allocation5 + $0x268] sm:$0xff]
    %v177 = vld [vmem:[#allocation5 + $0x270] sm:$0xff]
    %v178 = vld [vmem:[#allocation5 + $0x278] sm:$0xff]
    %v179 = vld [vmem:[#allocation5 + $0x280] sm:$0xff]
    %v180 = vld [vmem:[#allocation5 + $0x288] sm:$0xff]
    %v181 = vld [vmem:[#allocation5 + $0x290] sm:$0xf]
    %v182 = vld [vmem:[#allocation5 + $0x294] sm:$0xff]
    %v183 = vld [vmem:[#allocation5 + $0x29c] sm:$0xff]
    %v184 = vld [vmem:[#allocation5 + $0x2a4] sm:$0xff]
    %v185 = vld [vmem:[#allocation5 + $0x2ac] sm:$0xff]
    %v186 = vld [vmem:[#allocation5 + $0x2b4] sm:$0xff]
    %v187 = vld [vmem:[#allocation5 + $0x2bc] sm:$0xff]
    %v188 = vld [vmem:[#allocation5 + $0x2c4] sm:$0xff]
    %v189 = vld [vmem:[#allocation5 + $0x2cc] sm:$0xf]
    %v190 = vld [vmem:[#allocation5 + $0x2d0] sm:$0xff]
    %v191 = vld [vmem:[#allocation5 + $0x2d8] sm:$0xff]
    %v192 = vld [vmem:[#allocation5 + $0x2e0] sm:$0xff]
    %v193 = vld [vmem:[#allocation5 + $0x2e8] sm:$0xff]
    %v194 = vld [vmem:[#allocation5 + $0x2f0] sm:$0xff]
    %v195 = vld [vmem:[#allocation5 + $0x2f8] sm:$0xff]
    %v196 = vld [vmem:[#allocation5 + $0x300] sm:$0xff]
    %v197 = vld [vmem:[#allocation5 + $0x308] sm:$0xf]
    %v198 = vld [vmem:[#allocation5 + $0x30c] sm:$0xff]
    %v199 = vld [vmem:[#allocation5 + $0x314] sm:$0xff]
    %v200 = vld [vmem:[#allocation5 + $0x31c] sm:$0xff]
    %v201 = vld [vmem:[#allocation5 + $0x324] sm:$0xff]
    %v202 = vld [vmem:[#allocation5 + $0x32c] sm:$0xff]
    %v203 = vld [vmem:[#allocation5 + $0x334] sm:$0xff]
    %v204 = vld [vmem:[#allocation5 + $0x33c] sm:$0xff]
    %v205 = vld [vmem:[#allocation5 + $0x344] sm:$0xf]
    %v206 = vld [vmem:[#allocation5 + $0x348] sm:$0xff]
    %v207 = vld [vmem:[#allocation5 + $0x350] sm:$0xff]
    %v208 = vld [vmem:[#allocation5 + $0x358] sm:$0xff]
    %v209 = vld [vmem:[#allocation5 + $0x360] sm:$0xff]
    %v210 = vld [vmem:[#allocation5 + $0x368] sm:$0xff]
    %v211 = vld [vmem:[#allocation5 + $0x370] sm:$0xff]
    %v212 = vld [vmem:[#allocation5 + $0x378] sm:$0xff]
    %v213 = vld [vmem:[#allocation5 + $0x380] sm:$0xf]
    %v214 = vld [vmem:[#allocation5 + $0x384] sm:$0xff]
    %v215 = vld [vmem:[#allocation5 + $0x38c] sm:$0xff]
    %v216 = vld [vmem:[#allocation5 + $0x394] sm:$0xff]
    %v217 = vld [vmem:[#allocation5 + $0x39c] sm:$0xff]
    %v218 = vld [vmem:[#allocation5 + $0x3a4] sm:$0xff]
    %v219 = vld [vmem:[#allocation5 + $0x3ac] sm:$0xff]
    %v220 = vld [vmem:[#allocation5 + $0x3b4] sm:$0xff]
    %v221 = vld [vmem:[#allocation5 + $0x3bc] sm:$0xf]
    %v222 = vld [vmem:[#allocation5 + $0x3c0] sm:$0xff]
    %v223 = vld [vmem:[#allocation5 + $0x3c8] sm:$0xff]
    %v224 = vld [vmem:[#allocation5 + $0x3d0] sm:$0xff]
    %v225 = vld [vmem:[#allocation5 + $0x3d8] sm:$0xff]
    %v226 = vld [vmem:[#allocation5 + $0x3e0] sm:$0xff]
    %v227 = vld [vmem:[#allocation5 + $0x3e8] sm:$0xff]
    %v228 = vld [vmem:[#allocation5 + $0x3f0] sm:$0xff]
    %v229 = vld [vmem:[#allocation5 + $0x3f8] sm:$0xf]
    %v230 = vld [vmem:[#allocation5 + $0x3fc] sm:$0xff]
    %v231 = vld [vmem:[#allocation5 + $0x404] sm:$0xff]
    %v232 = vld [vmem:[#allocation5 + $0x40c] sm:$0xff]
    %v233 = vld [vmem:[#allocation5 + $0x414] sm:$0xff]
    %v234 = vld [vmem:[#allocation5 + $0x41c] sm:$0xff]
    %v235 = vld [vmem:[#allocation5 + $0x424] sm:$0xff]
    %v236 = vld [vmem:[#allocation5 + $0x42c] sm:$0xff]
    %v237 = vld [vmem:[#allocation5 + $0x434] sm:$0xf]
    %v238 = vld [vmem:[#allocation5 + $0x438] sm:$0xff]
    %v239 = vld [vmem:[#allocation5 + $0x440] sm:$0xff]
    %v240 = vld [vmem:[#allocation5 + $0x448] sm:$0xff]
    %v241 = vld [vmem:[#allocation5 + $0x450] sm:$0xff]
    %v242 = vld [vmem:[#allocation5 + $0x458] sm:$0xff]
    %v243 = vld [vmem:[#allocation5 + $0x460] sm:$0xff]
    %v244 = vld [vmem:[#allocation5 + $0x468] sm:$0xff]
    %v245 = vld [vmem:[#allocation5 + $0x470] sm:$0xf]
    %v246 = vld [vmem:[#allocation5 + $0x474] sm:$0xff]
    %v247 = vld [vmem:[#allocation5 + $0x47c] sm:$0xff]
    %v248 = vld [vmem:[#allocation5 + $0x484] sm:$0xff]
    %v249 = vld [vmem:[#allocation5 + $0x48c] sm:$0xff]
    %v250 = vld [vmem:[#allocation5 + $0x494] sm:$0xff]
    %v251 = vld [vmem:[#allocation5 + $0x49c] sm:$0xff]
    %v252 = vld [vmem:[#allocation5 + $0x4a4] sm:$0xff]
    %v253 = vld [vmem:[#allocation5 + $0x4ac] sm:$0xf]
    %v254 = vld [vmem:[#allocation5 + $0x4b0] sm:$0xff]
    %v255 = vld [vmem:[#allocation5 + $0x4b8] sm:$0xff]
    %v256 = vld [vmem:[#allocation5 + $0x4c0] sm:$0xff]
    %v257 = vld [vmem:[#allocation5 + $0x4c8] sm:$0xff]
    %v258 = vld [vmem:[#allocation5 + $0x4d0] sm:$0xff]
    %v259 = vld [vmem:[#allocation5 + $0x4d8] sm:$0xff]
    %v260 = vld [vmem:[#allocation5 + $0x4e0] sm:$0xff]
    %v261 = vld [vmem:[#allocation5 + $0x4e8] sm:$0xf]
    %v262 = vld [vmem:[#allocation5 + $0x4ec] sm:$0xff]
    %v263 = vld [vmem:[#allocation5 + $0x4f4] sm:$0xff]
    %v264 = vld [vmem:[#allocation5 + $0x4fc] sm:$0xff]
    %v265 = vld [vmem:[#allocation5 + $0x504] sm:$0xff]
    %v266 = vld [vmem:[#allocation5 + $0x50c] sm:$0xff]
    %v267 = vld [vmem:[#allocation5 + $0x514] sm:$0xff]
    %v268 = vld [vmem:[#allocation5 + $0x51c] sm:$0xff]
    %v269 = vld [vmem:[#allocation5 + $0x524] sm:$0xf]
    %v270 = vld [vmem:[#allocation5 + $0x528] sm:$0xff]
    %v271 = vld [vmem:[#allocation5 + $0x530] sm:$0xff]
    %v272 = vld [vmem:[#allocation5 + $0x538] sm:$0xff]
    %v273 = vld [vmem:[#allocation5 + $0x540] sm:$0xff]
    %v274 = vld [vmem:[#allocation5 + $0x548] sm:$0xff]
    %v275 = vld [vmem:[#allocation5 + $0x550] sm:$0xff]
    %v276 = vld [vmem:[#allocation5 + $0x558] sm:$0xff]
    %v277 = vld [vmem:[#allocation5 + $0x560] sm:$0xf]
    %v278 = vld [vmem:[#allocation5 + $0x564] sm:$0xff]
    %v279 = vld [vmem:[#allocation5 + $0x56c] sm:$0xff]
    %v280 = vld [vmem:[#allocation5 + $0x574] sm:$0xff]
    %v281 = vld [vmem:[#allocation5 + $0x57c] sm:$0xff]
    %v282 = vld [vmem:[#allocation5 + $0x584] sm:$0xff]
    %v283 = vld [vmem:[#allocation5 + $0x58c] sm:$0xff]
    %v284 = vld [vmem:[#allocation5 + $0x594] sm:$0xff]
    %v285 = vld [vmem:[#allocation5 + $0x59c] sm:$0xf]
    %v286 = vld [vmem:[#allocation5 + $0x5a0] sm:$0xff]
    %v287 = vld [vmem:[#allocation5 + $0x5a8] sm:$0xff]
    %v288 = vld [vmem:[#allocation5 + $0x5b0] sm:$0xff]
    %v289 = vld [vmem:[#allocation5 + $0x5b8] sm:$0xff]
    %v290 = vld [vmem:[#allocation5 + $0x5c0] sm:$0xff]
    %v291 = vld [vmem:[#allocation5 + $0x5c8] sm:$0xff]
    %v292 = vld [vmem:[#allocation5 + $0x5d0] sm:$0xff]
    %v293 = vld [vmem:[#allocation5 + $0x5d8] sm:$0xf]
    %v294 = vld [vmem:[#allocation5 + $0x5dc] sm:$0xff]
    %v295 = vld [vmem:[#allocation5 + $0x5e4] sm:$0xff]
    %v296 = vld [vmem:[#allocation5 + $0x5ec] sm:$0xff]
    %v297 = vld [vmem:[#allocation5 + $0x5f4] sm:$0xff]
    %v298 = vld [vmem:[#allocation5 + $0x5fc] sm:$0xff]
    %v299 = vld [vmem:[#allocation5 + $0x604] sm:$0xff]
    %v300 = vld [vmem:[#allocation5 + $0x60c] sm:$0xff]
    %v301 = vld [vmem:[#allocation5 + $0x614] sm:$0xf]
    %v302 = vld [vmem:[#allocation5 + $0x618] sm:$0xff]
    %v303 = vld [vmem:[#allocation5 + $0x620] sm:$0xff]
    %v304 = vld [vmem:[#allocation5 + $0x628] sm:$0xff]
    %v305 = vld [vmem:[#allocation5 + $0x630] sm:$0xff]
    %v306 = vld [vmem:[#allocation5 + $0x638] sm:$0xff]
    %v307 = vld [vmem:[#allocation5 + $0x640] sm:$0xff]
    %v308 = vld [vmem:[#allocation5 + $0x648] sm:$0xff]
    %v309 = vld [vmem:[#allocation5 + $0x650] sm:$0xf]
    %v310 = vld [vmem:[#allocation5 + $0x654] sm:$0xff]
    %v311 = vld [vmem:[#allocation5 + $0x65c] sm:$0xff]
    %v312 = vld [vmem:[#allocation5 + $0x664] sm:$0xff]
    %v313 = vld [vmem:[#allocation5 + $0x66c] sm:$0xff]
    %v314 = vld [vmem:[#allocation5 + $0x674] sm:$0xff]
    %v315 = vld [vmem:[#allocation5 + $0x67c] sm:$0xff]
    %v316 = vld [vmem:[#allocation5 + $0x684] sm:$0xff]
    %v317 = vld [vmem:[#allocation5 + $0x68c] sm:$0xf]
    %v318 = vld [vmem:[#allocation5 + $0x690] sm:$0xff]
    %v319 = vld [vmem:[#allocation5 + $0x698] sm:$0xff]
    %v320 = vld [vmem:[#allocation5 + $0x6a0] sm:$0xff]
    %v321 = vld [vmem:[#allocation5 + $0x6a8] sm:$0xff]
    %v322 = vld [vmem:[#allocation5 + $0x6b0] sm:$0xff]
    %v323 = vld [vmem:[#allocation5 + $0x6b8] sm:$0xff]
    %v324 = vld [vmem:[#allocation5 + $0x6c0] sm:$0xff]
    %v325 = vld [vmem:[#allocation5 + $0x6c8] sm:$0xf]
    %v326 = vld [vmem:[#allocation5 + $0x6cc] sm:$0xff]
    %v327 = vld [vmem:[#allocation5 + $0x6d4] sm:$0xff]
    %v328 = vld [vmem:[#allocation5 + $0x6dc] sm:$0xff]
    %v329 = vld [vmem:[#allocation5 + $0x6e4] sm:$0xff]
    %v330 = vld [vmem:[#allocation5 + $0x6ec] sm:$0xff]
    %v331 = vld [vmem:[#allocation5 + $0x6f4] sm:$0xff]
    %v332 = vld [vmem:[#allocation5 + $0x6fc] sm:$0xff]
    %v333 = vld [vmem:[#allocation5 + $0x704] sm:$0xf]
    %v334 = vld [vmem:[#allocation5 + $0x708] sm:$0xff]
    %v335 = vld [vmem:[#allocation5 + $0x710] sm:$0xff]
    %v336 = vld [vmem:[#allocation5 + $0x718] sm:$0xff]
    %v337 = vld [vmem:[#allocation5 + $0x720] sm:$0xff]
    %v338 = vld [vmem:[#allocation5 + $0x728] sm:$0xff]
    %v339 = vld [vmem:[#allocation5 + $0x730] sm:$0xff]
    %v340 = vld [vmem:[#allocation5 + $0x738] sm:$0xff]
    %v341 = vld [vmem:[#allocation5 + $0x740] sm:$0xf]
    %v342 = vld [vmem:[#allocation5 + $0x744] sm:$0xff]
    %v343 = vld [vmem:[#allocation5 + $0x74c] sm:$0xff]
    %v344 = vld [vmem:[#allocation5 + $0x754] sm:$0xff]
    %v345 = vld [vmem:[#allocation5 + $0x75c] sm:$0xff]
    %v346 = vld [vmem:[#allocation5 + $0x764] sm:$0xff]
    %v347 = vld [vmem:[#allocation5 + $0x76c] sm:$0xff]
    %v348 = vld [vmem:[#allocation5 + $0x774] sm:$0xff]
    %v349 = vld [vmem:[#allocation5 + $0x77c] sm:$0xf]
    %v350 = vld [vmem:[#allocation5 + $0x780] sm:$0xff]
    %v351 = vld [vmem:[#allocation5 + $0x788] sm:$0xff]
    %v352 = vld [vmem:[#allocation5 + $0x790] sm:$0xff]
    %v353 = vld [vmem:[#allocation5 + $0x798] sm:$0xff]
    %v354 = vld [vmem:[#allocation5 + $0x7a0] sm:$0xff]
    %v355 = vld [vmem:[#allocation5 + $0x7a8] sm:$0xff]
    %v356 = vld [vmem:[#allocation5 + $0x7b0] sm:$0xff]
    %v357 = vld [vmem:[#allocation5 + $0x7b8] sm:$0xf]
    %v358 = vld [vmem:[#allocation5 + $0x7bc] sm:$0xff]
    %v359 = vld [vmem:[#allocation5 + $0x7c4] sm:$0xff]
    %v360 = vld [vmem:[#allocation5 + $0x7cc] sm:$0xff]
    %v361 = vld [vmem:[#allocation5 + $0x7d4] sm:$0xff]
    %v362 = vld [vmem:[#allocation5 + $0x7dc] sm:$0xff]
    %v363 = vld [vmem:[#allocation5 + $0x7e4] sm:$0xff]
    %v364 = vld [vmem:[#allocation5 + $0x7ec] sm:$0xff]
    %v365 = vld [vmem:[#allocation5 + $0x7f4] sm:$0xf]
    %v366 = vld [vmem:[#allocation5 + $0x7f8] sm:$0xff]
    %v367 = vld [vmem:[#allocation5 + $0x800] sm:$0xff]
    %v368 = vld [vmem:[#allocation5 + $0x808] sm:$0xff]
    %v369 = vld [vmem:[#allocation5 + $0x810] sm:$0xff]
    %v370 = vld [vmem:[#allocation5 + $0x818] sm:$0xff]
    %v371 = vld [vmem:[#allocation5 + $0x820] sm:$0xff]
    %v372 = vld [vmem:[#allocation5 + $0x828] sm:$0xff]
    %v373 = vld [vmem:[#allocation5 + $0x830] sm:$0xf]
    %v374 = vld [vmem:[#allocation5 + $0x834] sm:$0xff]
    %v375 = vld [vmem:[#allocation5 + $0x83c] sm:$0xff]
    %v376 = vld [vmem:[#allocation5 + $0x844] sm:$0xff]
    %v377 = vld [vmem:[#allocation5 + $0x84c] sm:$0xff]
    %v378 = vld [vmem:[#allocation5 + $0x854] sm:$0xff]
    %v379 = vld [vmem:[#allocation5 + $0x85c] sm:$0xff]
    %v380 = vld [vmem:[#allocation5 + $0x864] sm:$0xff]
    %v381 = vld [vmem:[#allocation5 + $0x86c] sm:$0xf]
    %v382 = vld [vmem:[#allocation5 + $0x870] sm:$0xff]
    %v383 = vld [vmem:[#allocation5 + $0x878] sm:$0xff]
    %v384 = vld [vmem:[#allocation5 + $0x880] sm:$0xff]
    %v385 = vld [vmem:[#allocation5 + $0x888] sm:$0xff]
    %v386 = vld [vmem:[#allocation5 + $0x890] sm:$0xff]
    %v387 = vld [vmem:[#allocation5 + $0x898] sm:$0xff]
    %v388 = vld [vmem:[#allocation5 + $0x8a0] sm:$0xff]
    %v389 = vld [vmem:[#allocation5 + $0x8a8] sm:$0xf]
    %v390 = vld [vmem:[#allocation5 + $0x8ac] sm:$0xff]
    %v391 = vld [vmem:[#allocation5 + $0x8b4] sm:$0xff]
    %v392 = vld [vmem:[#allocation5 + $0x8bc] sm:$0xff]
    %v393 = vld [vmem:[#allocation5 + $0x8c4] sm:$0xff]
    %v394 = vld [vmem:[#allocation5 + $0x8cc] sm:$0xff]
    %v395 = vld [vmem:[#allocation5 + $0x8d4] sm:$0xff]
    %v396 = vld [vmem:[#allocation5 + $0x8dc] sm:$0xff]
    %v397 = vld [vmem:[#allocation5 + $0x8e4] sm:$0xf]
    %v398 = vld [vmem:[#allocation5 + $0x8e8] sm:$0xff]
    %v399 = vld [vmem:[#allocation5 + $0x8f0] sm:$0xff]
    %v400 = vld [vmem:[#allocation5 + $0x8f8] sm:$0xff]
    %v401 = vld [vmem:[#allocation5 + $0x900] sm:$0xff]
    %v402 = vld [vmem:[#allocation5 + $0x908] sm:$0xff]
    %v403 = vld [vmem:[#allocation5 + $0x910] sm:$0xff]
    %v404 = vld [vmem:[#allocation5 + $0x918] sm:$0xff]
    %v405 = vld [vmem:[#allocation5 + $0x920] sm:$0xf]
    %v406 = vld [vmem:[#allocation5 + $0x924] sm:$0xff]
    %v407 = vld [vmem:[#allocation5 + $0x92c] sm:$0xff]
    %v408 = vld [vmem:[#allocation5 + $0x934] sm:$0xff]
    %v409 = vld [vmem:[#allocation5 + $0x93c] sm:$0xff]
    %v410 = vld [vmem:[#allocation5 + $0x944] sm:$0xff]
    %v411 = vld [vmem:[#allocation5 + $0x94c] sm:$0xff]
    %v412 = vld [vmem:[#allocation5 + $0x954] sm:$0xff]
    %v413 = vld [vmem:[#allocation5 + $0x95c] sm:$0xf]
    %v414 = vld [vmem:[#allocation5 + $0x960] sm:$0xff]
    %v415 = vld [vmem:[#allocation5 + $0x968] sm:$0xff]
    %v416 = vld [vmem:[#allocation5 + $0x970] sm:$0xff]
    %v417 = vld [vmem:[#allocation5 + $0x978] sm:$0xff]
    %v418 = vld [vmem:[#allocation5 + $0x980] sm:$0xff]
    %v419 = vld [vmem:[#allocation5 + $0x988] sm:$0xff]
    %v420 = vld [vmem:[#allocation5 + $0x990] sm:$0xff]
    %v421 = vld [vmem:[#allocation5 + $0x998] sm:$0xf]
    %v422 = vld [vmem:[#allocation5 + $0x99c] sm:$0xff]
    %v423 = vld [vmem:[#allocation5 + $0x9a4] sm:$0xff]
    %v424 = vld [vmem:[#allocation5 + $0x9ac] sm:$0xff]
    %v425 = vld [vmem:[#allocation5 + $0x9b4] sm:$0xff]
    %v426 = vld [vmem:[#allocation5 + $0x9bc] sm:$0xff]
    %v427 = vld [vmem:[#allocation5 + $0x9c4] sm:$0xff]
    %v428 = vld [vmem:[#allocation5 + $0x9cc] sm:$0xff]
    %v429 = vld [vmem:[#allocation5 + $0x9d4] sm:$0xf]
    %v430 = vld [vmem:[#allocation5 + $0x9d8] sm:$0xff]
    %v431 = vld [vmem:[#allocation5 + $0x9e0] sm:$0xff]
    %v432 = vld [vmem:[#allocation5 + $0x9e8] sm:$0xff]
    %v433 = vld [vmem:[#allocation5 + $0x9f0] sm:$0xff]
    %v434 = vld [vmem:[#allocation5 + $0x9f8] sm:$0xff]
    %v435 = vld [vmem:[#allocation5 + $0xa00] sm:$0xff]
    %v436 = vld [vmem:[#allocation5 + $0xa08] sm:$0xff]
    %v437 = vld [vmem:[#allocation5 + $0xa10] sm:$0xf]
    %v438 = vld [vmem:[#allocation5 + $0xa14] sm:$0xff]
    %v439 = vld [vmem:[#allocation5 + $0xa1c] sm:$0xff]
    %v440 = vld [vmem:[#allocation5 + $0xa24] sm:$0xff]
    %v441 = vld [vmem:[#allocation5 + $0xa2c] sm:$0xff]
    %v442 = vld [vmem:[#allocation5 + $0xa34] sm:$0xff]
    %v443 = vld [vmem:[#allocation5 + $0xa3c] sm:$0xff]
    %v444 = vld [vmem:[#allocation5 + $0xa44] sm:$0xff]
    %v445 = vld [vmem:[#allocation5 + $0xa4c] sm:$0xf]
    %v446 = vld [vmem:[#allocation5 + $0xa50] sm:$0xff]
    %v447 = vld [vmem:[#allocation5 + $0xa58] sm:$0xff]
    %v448 = vld [vmem:[#allocation5 + $0xa60] sm:$0xff]
    %v449 = vld [vmem:[#allocation5 + $0xa68] sm:$0xff]
    %v450 = vld [vmem:[#allocation5 + $0xa70] sm:$0xff]
    %v451 = vld [vmem:[#allocation5 + $0xa78] sm:$0xff]
    %v452 = vld [vmem:[#allocation5 + $0xa80] sm:$0xff]
    %v453 = vld [vmem:[#allocation5 + $0xa88] sm:$0xf]
    %v454 = vld [vmem:[#allocation5 + $0xa8c] sm:$0xff]
    %v455 = vld [vmem:[#allocation5 + $0xa94] sm:$0xff]
    %v456 = vld [vmem:[#allocation5 + $0xa9c] sm:$0xff]
    %v457 = vld [vmem:[#allocation5 + $0xaa4] sm:$0xff]
    %v458 = vld [vmem:[#allocation5 + $0xaac] sm:$0xff]
    %v459 = vld [vmem:[#allocation5 + $0xab4] sm:$0xff]
    %v460 = vld [vmem:[#allocation5 + $0xabc] sm:$0xff]
    %v461 = vld [vmem:[#allocation5 + $0xac4] sm:$0xf]
    %v462 = vld [vmem:[#allocation5 + $0xac8] sm:$0xff]
    %v463 = vld [vmem:[#allocation5 + $0xad0] sm:$0xff]
    %v464 = vld [vmem:[#allocation5 + $0xad8] sm:$0xff]
    %v465 = vld [vmem:[#allocation5 + $0xae0] sm:$0xff]
    %v466 = vld [vmem:[#allocation5 + $0xae8] sm:$0xff]
    %v467 = vld [vmem:[#allocation5 + $0xaf0] sm:$0xff]
    %v468 = vld [vmem:[#allocation5 + $0xaf8] sm:$0xff]
    %v469 = vld [vmem:[#allocation5 + $0xb00] sm:$0xf]
    %v470 = vld [vmem:[#allocation5 + $0xb04] sm:$0xff]
    %v471 = vld [vmem:[#allocation5 + $0xb0c] sm:$0xff]
    %v472 = vld [vmem:[#allocation5 + $0xb14] sm:$0xff]
    %v473 = vld [vmem:[#allocation5 + $0xb1c] sm:$0xff]
    %v474 = vld [vmem:[#allocation5 + $0xb24] sm:$0xff]
    %v475 = vld [vmem:[#allocation5 + $0xb2c] sm:$0xff]
    %v476 = vld [vmem:[#allocation5 + $0xb34] sm:$0xff]
    %v477 = vld [vmem:[#allocation5 + $0xb3c] sm:$0xf]
    %v478 = vld [vmem:[#allocation5 + $0xb40] sm:$0xff]
    %v479 = vld [vmem:[#allocation5 + $0xb48] sm:$0xff]
    %v480 = vld [vmem:[#allocation5 + $0xb50] sm:$0xff]
    %v481 = vld [vmem:[#allocation5 + $0xb58] sm:$0xff]
    %v482 = vld [vmem:[#allocation5 + $0xb60] sm:$0xff]
    %v483 = vld [vmem:[#allocation5 + $0xb68] sm:$0xff]
    %v484 = vld [vmem:[#allocation5 + $0xb70] sm:$0xff]
    %v485 = vld [vmem:[#allocation5 + $0xb78] sm:$0xf]
    %v486 = vld [vmem:[#allocation5 + $0xb7c] sm:$0xff]
    %v487 = vld [vmem:[#allocation5 + $0xb84] sm:$0xff]
    %v488 = vld [vmem:[#allocation5 + $0xb8c] sm:$0xff]
    %v489 = vld [vmem:[#allocation5 + $0xb94] sm:$0xff]
    %v490 = vld [vmem:[#allocation5 + $0xb9c] sm:$0xff]
    %v491 = vld [vmem:[#allocation5 + $0xba4] sm:$0xff]
    %v492 = vld [vmem:[#allocation5 + $0xbac] sm:$0xff]
    %v493 = vld [vmem:[#allocation5 + $0xbb4] sm:$0xf]
    %v494 = vld [vmem:[#allocation5 + $0xbb8] sm:$0xff]
    %v495 = vld [vmem:[#allocation5 + $0xbc0] sm:$0xff]
    %v496 = vld [vmem:[#allocation5 + $0xbc8] sm:$0xff]
    %v497 = vld [vmem:[#allocation5 + $0xbd0] sm:$0xff]
    %v498 = vld [vmem:[#allocation5 + $0xbd8] sm:$0xff]
    %v499 = vld [vmem:[#allocation5 + $0xbe0] sm:$0xff]
    %v500 = vld [vmem:[#allocation5 + $0xbe8] sm:$0xff]
    %v501 = vld [vmem:[#allocation5 + $0xbf0] sm:$0xf]
    %v502 = vld [vmem:[#allocation5 + $0xbf4] sm:$0xff]
    %v503 = vld [vmem:[#allocation5 + $0xbfc] sm:$0xff]
    %v504 = vld [vmem:[#allocation5 + $0xc04] sm:$0xff]
    %v505 = vld [vmem:[#allocation5 + $0xc0c] sm:$0xff]
    %v506 = vld [vmem:[#allocation5 + $0xc14] sm:$0xff]
    %v507 = vld [vmem:[#allocation5 + $0xc1c] sm:$0xff]
    %v508 = vld [vmem:[#allocation5 + $0xc24] sm:$0xff]
    %v509 = vld [vmem:[#allocation5 + $0xc2c] sm:$0xf]
    %v510 = vld [vmem:[#allocation5 + $0xc30] sm:$0xff]
    %v511 = vld [vmem:[#allocation5 + $0xc38] sm:$0xff]
    %v512 = vld [vmem:[#allocation5 + $0xc40] sm:$0xff]
    %v513 = vld [vmem:[#allocation5 + $0xc48] sm:$0xff]
    %v514 = vld [vmem:[#allocation5 + $0xc50] sm:$0xff]
    %v515 = vld [vmem:[#allocation5 + $0xc58] sm:$0xff]
    %v516 = vld [vmem:[#allocation5 + $0xc60] sm:$0xff]
    %v517 = vld [vmem:[#allocation5 + $0xc68] sm:$0xf]
    %v518 = vld [vmem:[#allocation5 + $0xc6c] sm:$0xff]
    %v519 = vld [vmem:[#allocation5 + $0xc74] sm:$0xff]
    %v520 = vld [vmem:[#allocation5 + $0xc7c] sm:$0xff]
    %v521 = vld [vmem:[#allocation5 + $0xc84] sm:$0xff]
    %v522 = vld [vmem:[#allocation5 + $0xc8c] sm:$0xff]
    %v523 = vld [vmem:[#allocation5 + $0xc94] sm:$0xff]
    %v524 = vld [vmem:[#allocation5 + $0xc9c] sm:$0xff]
    %v525 = vld [vmem:[#allocation5 + $0xca4] sm:$0xf]
    %v526 = vld [vmem:[#allocation5 + $0xca8] sm:$0xff]
    %v527 = vld [vmem:[#allocation5 + $0xcb0] sm:$0xff]
    %v528 = vld [vmem:[#allocation5 + $0xcb8] sm:$0xff]
    %v529 = vld [vmem:[#allocation5 + $0xcc0] sm:$0xff]
    %v530 = vld [vmem:[#allocation5 + $0xcc8] sm:$0xff]
    %v531 = vld [vmem:[#allocation5 + $0xcd0] sm:$0xff]
    %v532 = vld [vmem:[#allocation5 + $0xcd8] sm:$0xff]
    %v533 = vld [vmem:[#allocation5 + $0xce0] sm:$0xf]
    %v534 = vld [vmem:[#allocation5 + $0xce4] sm:$0xff]
    %v535 = vld [vmem:[#allocation5 + $0xcec] sm:$0xff]
    %v536 = vld [vmem:[#allocation5 + $0xcf4] sm:$0xff]
    %v537 = vld [vmem:[#allocation5 + $0xcfc] sm:$0xff]
    %v538 = vld [vmem:[#allocation5 + $0xd04] sm:$0xff]
    %v539 = vld [vmem:[#allocation5 + $0xd0c] sm:$0xff]
    %v540 = vld [vmem:[#allocation5 + $0xd14] sm:$0xff]
    %v541 = vld [vmem:[#allocation5 + $0xd1c] sm:$0xf]
    %v542 = vld [vmem:[#allocation5 + $0xd20] sm:$0xff]
    %v543 = vld [vmem:[#allocation5 + $0xd28] sm:$0xff]
    %v544 = vld [vmem:[#allocation5 + $0xd30] sm:$0xff]
    %v545 = vld [vmem:[#allocation5 + $0xd38] sm:$0xff]
    %v546 = vld [vmem:[#allocation5 + $0xd40] sm:$0xff]
    %v547 = vld [vmem:[#allocation5 + $0xd48] sm:$0xff]
    %v548 = vld [vmem:[#allocation5 + $0xd50] sm:$0xff]
    %v549 = vld [vmem:[#allocation5 + $0xd58] sm:$0xf]
    %v550 = vld [vmem:[#allocation5 + $0xd5c] sm:$0xff]
    %v551 = vld [vmem:[#allocation5 + $0xd64] sm:$0xff]
    %v552 = vld [vmem:[#allocation5 + $0xd6c] sm:$0xff]
    %v553 = vld [vmem:[#allocation5 + $0xd74] sm:$0xff]
    %v554 = vld [vmem:[#allocation5 + $0xd7c] sm:$0xff]
    %v555 = vld [vmem:[#allocation5 + $0xd84] sm:$0xff]
    %v556 = vld [vmem:[#allocation5 + $0xd8c] sm:$0xff]
    %v557 = vld [vmem:[#allocation5 + $0xd94] sm:$0xf]
    %v558 = vld [vmem:[#allocation5 + $0xd98] sm:$0xff]
    %v559 = vld [vmem:[#allocation5 + $0xda0] sm:$0xff]
    %v560 = vld [vmem:[#allocation5 + $0xda8] sm:$0xff]
    %v561 = vld [vmem:[#allocation5 + $0xdb0] sm:$0xff]
    %v562 = vld [vmem:[#allocation5 + $0xdb8] sm:$0xff]
    %v563 = vld [vmem:[#allocation5 + $0xdc0] sm:$0xff]
    %v564 = vld [vmem:[#allocation5 + $0xdc8] sm:$0xff]
    %v565 = vld [vmem:[#allocation5 + $0xdd0] sm:$0xf]
    %v566 = vld [vmem:[#allocation5 + $0xdd4] sm:$0xff]
    %v567 = vld [vmem:[#allocation5 + $0xddc] sm:$0xff]
    %v568 = vld [vmem:[#allocation5 + $0xde4] sm:$0xff]
    %v569 = vld [vmem:[#allocation5 + $0xdec] sm:$0xff]
    %v570 = vld [vmem:[#allocation5 + $0xdf4] sm:$0xff]
    %v571 = vld [vmem:[#allocation5 + $0xdfc] sm:$0xff]
    %v572 = vld [vmem:[#allocation5 + $0xe04] sm:$0xff]
    %v573 = vld [vmem:[#allocation5 + $0xe0c] sm:$0xf]
    %v574 = vld [vmem:[#allocation5 + $0xe10] sm:$0xff]
    %v575 = vld [vmem:[#allocation5 + $0xe18] sm:$0xff]
    %v576 = vld [vmem:[#allocation5 + $0xe20] sm:$0xff]
    %v577 = vld [vmem:[#allocation5 + $0xe28] sm:$0xff]
    %v578 = vld [vmem:[#allocation5 + $0xe30] sm:$0xff]
    %v579 = vld [vmem:[#allocation5 + $0xe38] sm:$0xff]
    %v580 = vld [vmem:[#allocation5 + $0xe40] sm:$0xff]
    %v581 = vld [vmem:[#allocation5 + $0xe48] sm:$0xf]
    %v582 = vld [vmem:[#allocation5 + $0xe4c] sm:$0xff]
    %v583 = vld [vmem:[#allocation5 + $0xe54] sm:$0xff]
    %v584 = vld [vmem:[#allocation5 + $0xe5c] sm:$0xff]
    %v585 = vld [vmem:[#allocation5 + $0xe64] sm:$0xff]
    %v586 = vld [vmem:[#allocation5 + $0xe6c] sm:$0xff]
    %v587 = vld [vmem:[#allocation5 + $0xe74] sm:$0xff]
    %v588 = vld [vmem:[#allocation5 + $0xe7c] sm:$0xff]
    %v589 = vld [vmem:[#allocation5 + $0xe84] sm:$0xf]
    %v590 = vld [vmem:[#allocation5 + $0xe88] sm:$0xff]
    %v591 = vld [vmem:[#allocation5 + $0xe90] sm:$0xff]
    %v592 = vld [vmem:[#allocation5 + $0xe98] sm:$0xff]
    %v593 = vld [vmem:[#allocation5 + $0xea0] sm:$0xff]
    %v594 = vld [vmem:[#allocation5 + $0xea8] sm:$0xff]
    %v595 = vld [vmem:[#allocation5 + $0xeb0] sm:$0xff]
    %v596 = vld [vmem:[#allocation5 + $0xeb8] sm:$0xff]
    %v597 = vld [vmem:[#allocation5 + $0xec0] sm:$0xf]
    %v598 = vld [vmem:[#allocation5 + $0xec4] sm:$0xff]
    %v599 = vld [vmem:[#allocation5 + $0xecc] sm:$0xff]
    %v600 = vld [vmem:[#allocation5 + $0xed4] sm:$0xff]
    %v601 = vld [vmem:[#allocation5 + $0xedc] sm:$0xff]
    %v602 = vld [vmem:[#allocation5 + $0xee4] sm:$0xff]
    %v603 = vld [vmem:[#allocation5 + $0xeec] sm:$0xff]
    %v604 = vld [vmem:[#allocation5 + $0xef4] sm:$0xff]
    %v605 = vld [vmem:[#allocation5 + $0xefc] sm:$0xf]
    %v606 = vld [vmem:[#allocation5 + $0xf00] sm:$0xff]
    %v607 = vld [vmem:[#allocation5 + $0xf08] sm:$0xff]
    %v608 = vld [vmem:[#allocation5 + $0xf10] sm:$0xff]
    %v609 = vld [vmem:[#allocation5 + $0xf18] sm:$0xff]
    %v610 = vld [vmem:[#allocation5 + $0xf20] sm:$0xff]
    %v611 = vld [vmem:[#allocation5 + $0xf28] sm:$0xff]
    %v612 = vld [vmem:[#allocation5 + $0xf30] sm:$0xff]
    %v613 = vld [vmem:[#allocation5 + $0xf38] sm:$0xf]
    %v614 = vld [vmem:[#allocation5 + $0xf3c] sm:$0xff]
    %v615 = vld [vmem:[#allocation5 + $0xf44] sm:$0xff]
    %v616 = vld [vmem:[#allocation5 + $0xf4c] sm:$0xff]
    %v617 = vld [vmem:[#allocation5 + $0xf54] sm:$0xff]
    %v618 = vld [vmem:[#allocation5 + $0xf5c] sm:$0xff]
    %v619 = vld [vmem:[#allocation5 + $0xf64] sm:$0xff]
    %v620 = vld [vmem:[#allocation5 + $0xf6c] sm:$0xff]
    %v621 = vld [vmem:[#allocation5 + $0xf74] sm:$0xf]
    %v622 = vld [vmem:[#allocation5 + $0xf78] sm:$0xff]
    %v623 = vld [vmem:[#allocation5 + $0xf80] sm:$0xff]
    %v624 = vld [vmem:[#allocation5 + $0xf88] sm:$0xff]
    %v625 = vld [vmem:[#allocation5 + $0xf90] sm:$0xff]
    %v626 = vld [vmem:[#allocation5 + $0xf98] sm:$0xff]
    %v627 = vld [vmem:[#allocation5 + $0xfa0] sm:$0xff]
    %v628 = vld [vmem:[#allocation5 + $0xfa8] sm:$0xff]
    %v629 = vld [vmem:[#allocation5 + $0xfb0] sm:$0xf]
    %v630 = vld [vmem:[#allocation5 + $0xfb4] sm:$0xff]
    %v631 = vld [vmem:[#allocation5 + $0xfbc] sm:$0xff]
    %v632 = vld [vmem:[#allocation5 + $0xfc4] sm:$0xff]
    %v633 = vld [vmem:[#allocation5 + $0xfcc] sm:$0xff]
    %v634 = vld [vmem:[#allocation5 + $0xfd4] sm:$0xff]
    %v635 = vld [vmem:[#allocation5 + $0xfdc] sm:$0xff]
    %v636 = vld [vmem:[#allocation5 + $0xfe4] sm:$0xff]
    %v637 = vld [vmem:[#allocation5 + $0xfec] sm:$0xf]
    %v638 = vld [vmem:[#allocation5 + $0xff0] sm:$0xff]
    %v639 = vld [vmem:[#allocation5 + $0xff8] sm:$0xff]
    %v640 = vld [vmem:[#allocation5 + $0x1000] sm:$0xff]
    %v641 = vld [vmem:[#allocation5 + $0x1008] sm:$0xff]
    %v642 = vld [vmem:[#allocation5 + $0x1010] sm:$0xff]
    %v643 = vld [vmem:[#allocation5 + $0x1018] sm:$0xff]
    %v644 = vld [vmem:[#allocation5 + $0x1020] sm:$0xff]
    %v645 = vld [vmem:[#allocation5 + $0x1028] sm:$0xf]
    %v646 = vld [vmem:[#allocation5 + $0x102c] sm:$0xff]
    %v647 = vld [vmem:[#allocation5 + $0x1034] sm:$0xff]
    %v648 = vld [vmem:[#allocation5 + $0x103c] sm:$0xff]
    %v649 = vld [vmem:[#allocation5 + $0x1044] sm:$0xff]
    %v650 = vld [vmem:[#allocation5 + $0x104c] sm:$0xff]
    %v651 = vld [vmem:[#allocation5 + $0x1054] sm:$0xff]
    %v652 = vld [vmem:[#allocation5 + $0x105c] sm:$0xff]
    %v653 = vld [vmem:[#allocation5 + $0x1064] sm:$0xf]
    %v654 = vld [vmem:[#allocation5 + $0x1068] sm:$0xff]
    %v655 = vld [vmem:[#allocation5 + $0x1070] sm:$0xff]
    %v656 = vld [vmem:[#allocation5 + $0x1078] sm:$0xff]
    %v657 = vld [vmem:[#allocation5 + $0x1080] sm:$0xff]
    %v658 = vld [vmem:[#allocation5 + $0x1088] sm:$0xff]
    %v659 = vld [vmem:[#allocation5 + $0x1090] sm:$0xff]
    %v660 = vld [vmem:[#allocation5 + $0x1098] sm:$0xff]
    %v661 = vld [vmem:[#allocation5 + $0x10a0] sm:$0xf]
    %v662 = vld [vmem:[#allocation5 + $0x10a4] sm:$0xff]
    %v663 = vld [vmem:[#allocation5 + $0x10ac] sm:$0xff]
    %v664 = vld [vmem:[#allocation5 + $0x10b4] sm:$0xff]
    %v665 = vld [vmem:[#allocation5 + $0x10bc] sm:$0xff]
    %v666 = vld [vmem:[#allocation5 + $0x10c4] sm:$0xff]
    %v667 = vld [vmem:[#allocation5 + $0x10cc] sm:$0xff]
    %v668 = vld [vmem:[#allocation5 + $0x10d4] sm:$0xff]
    %v669 = vld [vmem:[#allocation5 + $0x10dc] sm:$0xf]
    %v670 = vld [vmem:[#allocation5 + $0x10e0] sm:$0xff]
    %v671 = vld [vmem:[#allocation5 + $0x10e8] sm:$0xff]
    %v672 = vld [vmem:[#allocation5 + $0x10f0] sm:$0xff]
    %v673 = vld [vmem:[#allocation5 + $0x10f8] sm:$0xff]
    %v674 = vld [vmem:[#allocation5 + $0x1100] sm:$0xff]
    %v675 = vld [vmem:[#allocation5 + $0x1108] sm:$0xff]
    %v676 = vld [vmem:[#allocation5 + $0x1110] sm:$0xff]
    %v677 = vld [vmem:[#allocation5 + $0x1118] sm:$0xf]
    %v678 = vld [vmem:[#allocation5 + $0x111c] sm:$0xff]
    %v679 = vld [vmem:[#allocation5 + $0x1124] sm:$0xff]
    %v680 = vld [vmem:[#allocation5 + $0x112c] sm:$0xff]
    %v681 = vld [vmem:[#allocation5 + $0x1134] sm:$0xff]
    %v682 = vld [vmem:[#allocation5 + $0x113c] sm:$0xff]
    %v683 = vld [vmem:[#allocation5 + $0x1144] sm:$0xff]
    %v684 = vld [vmem:[#allocation5 + $0x114c] sm:$0xff]
    %v685 = vld [vmem:[#allocation5 + $0x1154] sm:$0xf]
    %v686 = vld [vmem:[#allocation5 + $0x1158] sm:$0xff]
    %v687 = vld [vmem:[#allocation5 + $0x1160] sm:$0xff]
    %v688 = vld [vmem:[#allocation5 + $0x1168] sm:$0xff]
    %v689 = vld [vmem:[#allocation5 + $0x1170] sm:$0xff]
    %v690 = vld [vmem:[#allocation5 + $0x1178] sm:$0xff]
    %v691 = vld [vmem:[#allocation5 + $0x1180] sm:$0xff]
    %v692 = vld [vmem:[#allocation5 + $0x1188] sm:$0xff]
    %v693 = vld [vmem:[#allocation5 + $0x1190] sm:$0xf]
    %v694 = vld [vmem:[#allocation5 + $0x1194] sm:$0xff]
    %v695 = vld [vmem:[#allocation5 + $0x119c] sm:$0xff]
    %v696 = vld [vmem:[#allocation5 + $0x11a4] sm:$0xff]
    %v697 = vld [vmem:[#allocation5 + $0x11ac] sm:$0xff]
    %v698 = vld [vmem:[#allocation5 + $0x11b4] sm:$0xff]
    %v699 = vld [vmem:[#allocation5 + $0x11bc] sm:$0xff]
    %v700 = vld [vmem:[#allocation5 + $0x11c4] sm:$0xff]
    %v701 = vld [vmem:[#allocation5 + $0x11cc] sm:$0xf]
    %v702 = vld [vmem:[#allocation5 + $0x11d0] sm:$0xff]
    %v703 = vld [vmem:[#allocation5 + $0x11d8] sm:$0xff]
    %v704 = vld [vmem:[#allocation5 + $0x11e0] sm:$0xff]
    %v705 = vld [vmem:[#allocation5 + $0x11e8] sm:$0xff]
    %v706 = vld [vmem:[#allocation5 + $0x11f0] sm:$0xff]
    %v707 = vld [vmem:[#allocation5 + $0x11f8] sm:$0xff]
    %v708 = vld [vmem:[#allocation5 + $0x1200] sm:$0xff]
    %v709 = vld [vmem:[#allocation5 + $0x1208] sm:$0xf]
    %v710 = vld [vmem:[#allocation5 + $0x120c] sm:$0xff]
    %v711 = vld [vmem:[#allocation5 + $0x1214] sm:$0xff]
    %v712 = vld [vmem:[#allocation5 + $0x121c] sm:$0xff]
    %v713 = vld [vmem:[#allocation5 + $0x1224] sm:$0xff]
    %v714 = vld [vmem:[#allocation5 + $0x122c] sm:$0xff]
    %v715 = vld [vmem:[#allocation5 + $0x1234] sm:$0xff]
    %v716 = vld [vmem:[#allocation5 + $0x123c] sm:$0xff]
    %v717 = vld [vmem:[#allocation5 + $0x1244] sm:$0xf]
    %v718 = vld [vmem:[#allocation5 + $0x1248] sm:$0xff]
    %v719 = vld [vmem:[#allocation5 + $0x1250] sm:$0xff]
    %v720 = vld [vmem:[#allocation5 + $0x1258] sm:$0xff]
    %v721 = vld [vmem:[#allocation5 + $0x1260] sm:$0xff]
    %v722 = vld [vmem:[#allocation5 + $0x1268] sm:$0xff]
    %v723 = vld [vmem:[#allocation5 + $0x1270] sm:$0xff]
    %v724 = vld [vmem:[#allocation5 + $0x1278] sm:$0xff]
    %v725 = vld [vmem:[#allocation5 + $0x1280] sm:$0xf]
    %v726 = vld [vmem:[#allocation5 + $0x1284] sm:$0xff]
    %v727 = vld [vmem:[#allocation5 + $0x128c] sm:$0xff]
    %v728 = vld [vmem:[#allocation5 + $0x1294] sm:$0xff]
    %v729 = vld [vmem:[#allocation5 + $0x129c] sm:$0xff]
    %v730 = vld [vmem:[#allocation5 + $0x12a4] sm:$0xff]
    %v731 = vld [vmem:[#allocation5 + $0x12ac] sm:$0xff]
    %v732 = vld [vmem:[#allocation5 + $0x12b4] sm:$0xff]
    %v733 = vld [vmem:[#allocation5 + $0x12bc] sm:$0xf]
    %v734 = vld [vmem:[#allocation7] sm:$0xff]
    %v735 = vld [vmem:[#allocation7 + $0x8] sm:$0xff]
    %v738 = vlaneseq
    %v739 = vshrl.u32 %v738, 7
    %v740 = vsub.s32 0, %v739
    %v741 = vrot.slane %v734, %v740
    %v742 = vlaneseq
    %v743 = vshrl.u32 %v742, 7
    %v744 = vsub.s32 1, %v743
    %v745 = vrot.slane %v734, %v744
    %v746 = vlaneseq
    %v747 = vshrl.u32 %v746, 7
    %v748 = vsub.s32 2, %v747
    %v749 = vrot.slane %v734, %v748
    %v750 = vlaneseq
    %v751 = vshrl.u32 %v750, 7
    %v752 = vsub.s32 3, %v751
    %v753 = vrot.slane %v734, %v752
    %v754 = vlaneseq
    %v755 = vshrl.u32 %v754, 7
    %v756 = vsub.s32 4, %v755
    %v757 = vrot.slane %v734, %v756
    %v758 = vlaneseq
    %v759 = vshrl.u32 %v758, 7
    %v760 = vsub.s32 5, %v759
    %v761 = vrot.slane %v734, %v760
    %v762 = vlaneseq
    %v763 = vshrl.u32 %v762, 7
    %v764 = vsub.s32 6, %v763
    %v765 = vrot.slane %v734, %v764
    %v766 = vlaneseq
    %v767 = vshrl.u32 %v766, 7
    %v768 = vsub.s32 7, %v767
    %v769 = vrot.slane %v734, %v768
    %v770 = vlaneseq
    %v771 = vshrl.u32 %v770, 7
    %v772 = vsub.s32 0, %v771
    %v773 = vrot.slane %v735, %v772
    %v774 = vlaneseq
    %v775 = vshrl.u32 %v774, 7
    %v776 = vsub.s32 1, %v775
    %v777 = vrot.slane %v735, %v776
    %v778 = vlaneseq
    %v779 = vshrl.u32 %v778, 7
    %v780 = vsub.s32 2, %v779
    %v781 = vrot.slane %v735, %v780
    %v782 = vlaneseq
    %v783 = vshrl.u32 %v782, 7
    %v784 = vsub.s32 3, %v783
    %v785 = vrot.slane %v735, %v784
    %v786 = vlaneseq
    %v787 = vshrl.u32 %v786, 7
    %v788 = vsub.s32 4, %v787
    %v789 = vrot.slane %v735, %v788
    %v790 = vlaneseq
    %v791 = vshrl.u32 %v790, 7
    %v792 = vsub.s32 5, %v791
    %v793 = vrot.slane %v735, %v792
    %v794 = vlaneseq
    %v795 = vshrl.u32 %v794, 7
    %v796 = vsub.s32 6, %v795
    %v797 = vrot.slane %v735, %v796
    %v1453 = vunpack.c.l.b16 %v94
    %v1454 = vunpack.c.h.b16 %v94
    %v1455 = vunpack.c.l.b16 %v95
    %v1456 = vunpack.c.h.b16 %v95
    %v1457 = vunpack.c.l.b16 %v96
    %v1458 = vunpack.c.h.b16 %v96
    %v1459 = vunpack.c.l.b16 %v97
    %v1460 = vunpack.c.h.b16 %v97
    %v1461 = vunpack.c.l.b16 %v98
    %v1462 = vunpack.c.h.b16 %v98
    %v1463 = vunpack.c.l.b16 %v99
    %v1464 = vunpack.c.h.b16 %v99
    %v1465 = vunpack.c.l.b16 %v100
    %v1466 = vunpack.c.h.b16 %v100
    %v1467 = vunpack.c.l.b16 %v101
    %v1468 = vunpack.c.l.b16 %v102
    %v1469 = vunpack.c.h.b16 %v102
    %v1470 = vunpack.c.l.b16 %v103
    %v1471 = vunpack.c.h.b16 %v103
    %v1472 = vunpack.c.l.b16 %v104
    %v1473 = vunpack.c.h.b16 %v104
    %v1474 = vunpack.c.l.b16 %v105
    %v1475 = vunpack.c.h.b16 %v105
    %v1476 = vunpack.c.l.b16 %v106
    %v1477 = vunpack.c.h.b16 %v106
    %v1478 = vunpack.c.l.b16 %v107
    %v1479 = vunpack.c.h.b16 %v107
    %v1480 = vunpack.c.l.b16 %v108
    %v1481 = vunpack.c.h.b16 %v108
    %v1482 = vunpack.c.l.b16 %v109
    %v1483 = vunpack.c.l.b16 %v110
    %v1484 = vunpack.c.h.b16 %v110
    %v1485 = vunpack.c.l.b16 %v111
    %v1486 = vunpack.c.h.b16 %v111
    %v1487 = vunpack.c.l.b16 %v112
    %v1488 = vunpack.c.h.b16 %v112
    %v1489 = vunpack.c.l.b16 %v113
    %v1490 = vunpack.c.h.b16 %v113
    %v1491 = vunpack.c.l.b16 %v114
    %v1492 = vunpack.c.h.b16 %v114
    %v1493 = vunpack.c.l.b16 %v115
    %v1494 = vunpack.c.h.b16 %v115
    %v1495 = vunpack.c.l.b16 %v116
    %v1496 = vunpack.c.h.b16 %v116
    %v1497 = vunpack.c.l.b16 %v117
    %v1498 = vunpack.c.l.b16 %v118
    %v1499 = vunpack.c.h.b16 %v118
    %v1500 = vunpack.c.l.b16 %v119
    %v1501 = vunpack.c.h.b16 %v119
    %v1502 = vunpack.c.l.b16 %v120
    %v1503 = vunpack.c.h.b16 %v120
    %v1504 = vunpack.c.l.b16 %v121
    %v1505 = vunpack.c.h.b16 %v121
    %v1506 = vunpack.c.l.b16 %v122
    %v1507 = vunpack.c.h.b16 %v122
    %v1508 = vunpack.c.l.b16 %v123
    %v1509 = vunpack.c.h.b16 %v123
    %v1510 = vunpack.c.l.b16 %v124
    %v1511 = vunpack.c.h.b16 %v124
    %v1512 = vunpack.c.l.b16 %v125
    %v1513 = vunpack.c.l.b16 %v126
    %v1514 = vunpack.c.h.b16 %v126
    %v1515 = vunpack.c.l.b16 %v127
    %v1516 = vunpack.c.h.b16 %v127
    %v1517 = vunpack.c.l.b16 %v128
    %v1518 = vunpack.c.h.b16 %v128
    %v1519 = vunpack.c.l.b16 %v129
    %v1520 = vunpack.c.h.b16 %v129
    %v1521 = vunpack.c.l.b16 %v130
    %v1522 = vunpack.c.h.b16 %v130
    %v1523 = vunpack.c.l.b16 %v131
    %v1524 = vunpack.c.h.b16 %v131
    %v1525 = vunpack.c.l.b16 %v132
    %v1526 = vunpack.c.h.b16 %v132
    %v1527 = vunpack.c.l.b16 %v133
    %v1528 = vunpack.c.l.b16 %v134
    %v1529 = vunpack.c.h.b16 %v134
    %v1530 = vunpack.c.l.b16 %v135
    %v1531 = vunpack.c.h.b16 %v135
    %v1532 = vunpack.c.l.b16 %v136
    %v1533 = vunpack.c.h.b16 %v136
    %v1534 = vunpack.c.l.b16 %v137
    %v1535 = vunpack.c.h.b16 %v137
    %v1536 = vunpack.c.l.b16 %v138
    %v1537 = vunpack.c.h.b16 %v138
    %v1538 = vunpack.c.l.b16 %v139
    %v1539 = vunpack.c.h.b16 %v139
    %v1540 = vunpack.c.l.b16 %v140
    %v1541 = vunpack.c.h.b16 %v140
    %v1542 = vunpack.c.l.b16 %v141
    %v1543 = vunpack.c.l.b16 %v142
    %v1544 = vunpack.c.h.b16 %v142
    %v1545 = vunpack.c.l.b16 %v143
    %v1546 = vunpack.c.h.b16 %v143
    %v1547 = vunpack.c.l.b16 %v144
    %v1548 = vunpack.c.h.b16 %v144
    %v1549 = vunpack.c.l.b16 %v145
    %v1550 = vunpack.c.h.b16 %v145
    %v1551 = vunpack.c.l.b16 %v146
    %v1552 = vunpack.c.h.b16 %v146
    %v1553 = vunpack.c.l.b16 %v147
    %v1554 = vunpack.c.h.b16 %v147
    %v1555 = vunpack.c.l.b16 %v148
    %v1556 = vunpack.c.h.b16 %v148
    %v1557 = vunpack.c.l.b16 %v149
    %v1558 = vunpack.c.l.b16 %v150
    %v1559 = vunpack.c.h.b16 %v150
    %v1560 = vunpack.c.l.b16 %v151
    %v1561 = vunpack.c.h.b16 %v151
    %v1562 = vunpack.c.l.b16 %v152
    %v1563 = vunpack.c.h.b16 %v152
    %v1564 = vunpack.c.l.b16 %v153
    %v1565 = vunpack.c.h.b16 %v153
    %v1566 = vunpack.c.l.b16 %v154
    %v1567 = vunpack.c.h.b16 %v154
    %v1568 = vunpack.c.l.b16 %v155
    %v1569 = vunpack.c.h.b16 %v155
    %v1570 = vunpack.c.l.b16 %v156
    %v1571 = vunpack.c.h.b16 %v156
    %v1572 = vunpack.c.l.b16 %v157
    %v1573 = vunpack.c.l.b16 %v158
    %v1574 = vunpack.c.h.b16 %v158
    %v1575 = vunpack.c.l.b16 %v159
    %v1576 = vunpack.c.h.b16 %v159
    %v1577 = vunpack.c.l.b16 %v160
    %v1578 = vunpack.c.h.b16 %v160
    %v1579 = vunpack.c.l.b16 %v161
    %v1580 = vunpack.c.h.b16 %v161
    %v1581 = vunpack.c.l.b16 %v162
    %v1582 = vunpack.c.h.b16 %v162
    %v1583 = vunpack.c.l.b16 %v163
    %v1584 = vunpack.c.h.b16 %v163
    %v1585 = vunpack.c.l.b16 %v164
    %v1586 = vunpack.c.h.b16 %v164
    %v1587 = vunpack.c.l.b16 %v165
    %v1588 = vunpack.c.l.b16 %v166
    %v1589 = vunpack.c.h.b16 %v166
    %v1590 = vunpack.c.l.b16 %v167
    %v1591 = vunpack.c.h.b16 %v167
    %v1592 = vunpack.c.l.b16 %v168
    %v1593 = vunpack.c.h.b16 %v168
    %v1594 = vunpack.c.l.b16 %v169
    %v1595 = vunpack.c.h.b16 %v169
    %v1596 = vunpack.c.l.b16 %v170
    %v1597 = vunpack.c.h.b16 %v170
    %v1598 = vunpack.c.l.b16 %v171
    %v1599 = vunpack.c.h.b16 %v171
    %v1600 = vunpack.c.l.b16 %v172
    %v1601 = vunpack.c.h.b16 %v172
    %v1602 = vunpack.c.l.b16 %v173
    %v1603 = vunpack.c.l.b16 %v174
    %v1604 = vunpack.c.h.b16 %v174
    %v1605 = vunpack.c.l.b16 %v175
    %v1606 = vunpack.c.h.b16 %v175
    %v1607 = vunpack.c.l.b16 %v176
    %v1608 = vunpack.c.h.b16 %v176
    %v1609 = vunpack.c.l.b16 %v177
    %v1610 = vunpack.c.h.b16 %v177
    %v1611 = vunpack.c.l.b16 %v178
    %v1612 = vunpack.c.h.b16 %v178
    %v1613 = vunpack.c.l.b16 %v179
    %v1614 = vunpack.c.h.b16 %v179
    %v1615 = vunpack.c.l.b16 %v180
    %v1616 = vunpack.c.h.b16 %v180
    %v1617 = vunpack.c.l.b16 %v181
    %v1618 = vunpack.c.l.b16 %v182
    %v1619 = vunpack.c.h.b16 %v182
    %v1620 = vunpack.c.l.b16 %v183
    %v1621 = vunpack.c.h.b16 %v183
    %v1622 = vunpack.c.l.b16 %v184
    %v1623 = vunpack.c.h.b16 %v184
    %v1624 = vunpack.c.l.b16 %v185
    %v1625 = vunpack.c.h.b16 %v185
    %v1626 = vunpack.c.l.b16 %v186
    %v1627 = vunpack.c.h.b16 %v186
    %v1628 = vunpack.c.l.b16 %v187
    %v1629 = vunpack.c.h.b16 %v187
    %v1630 = vunpack.c.l.b16 %v188
    %v1631 = vunpack.c.h.b16 %v188
    %v1632 = vunpack.c.l.b16 %v189
    %v1633 = vunpack.c.l.b16 %v190
    %v1634 = vunpack.c.h.b16 %v190
    %v1635 = vunpack.c.l.b16 %v191
    %v1636 = vunpack.c.h.b16 %v191
    %v1637 = vunpack.c.l.b16 %v192
    %v1638 = vunpack.c.h.b16 %v192
    %v1639 = vunpack.c.l.b16 %v193
    %v1640 = vunpack.c.h.b16 %v193
    %v1641 = vunpack.c.l.b16 %v194
    %v1642 = vunpack.c.h.b16 %v194
    %v1643 = vunpack.c.l.b16 %v195
    %v1644 = vunpack.c.h.b16 %v195
    %v1645 = vunpack.c.l.b16 %v196
    %v1646 = vunpack.c.h.b16 %v196
    %v1647 = vunpack.c.l.b16 %v197
    %v1648 = vunpack.c.l.b16 %v198
    %v1649 = vunpack.c.h.b16 %v198
    %v1650 = vunpack.c.l.b16 %v199
    %v1651 = vunpack.c.h.b16 %v199
    %v1652 = vunpack.c.l.b16 %v200
    %v1653 = vunpack.c.h.b16 %v200
    %v1654 = vunpack.c.l.b16 %v201
    %v1655 = vunpack.c.h.b16 %v201
    %v1656 = vunpack.c.l.b16 %v202
    %v1657 = vunpack.c.h.b16 %v202
    %v1658 = vunpack.c.l.b16 %v203
    %v1659 = vunpack.c.h.b16 %v203
    %v1660 = vunpack.c.l.b16 %v204
    %v1661 = vunpack.c.h.b16 %v204
    %v1662 = vunpack.c.l.b16 %v205
    %v1663 = vunpack.c.l.b16 %v206
    %v1664 = vunpack.c.h.b16 %v206
    %v1665 = vunpack.c.l.b16 %v207
    %v1666 = vunpack.c.h.b16 %v207
    %v1667 = vunpack.c.l.b16 %v208
    %v1668 = vunpack.c.h.b16 %v208
    %v1669 = vunpack.c.l.b16 %v209
    %v1670 = vunpack.c.h.b16 %v209
    %v1671 = vunpack.c.l.b16 %v210
    %v1672 = vunpack.c.h.b16 %v210
    %v1673 = vunpack.c.l.b16 %v211
    %v1674 = vunpack.c.h.b16 %v211
    %v1675 = vunpack.c.l.b16 %v212
    %v1676 = vunpack.c.h.b16 %v212
    %v1677 = vunpack.c.l.b16 %v213
    %v1678 = vunpack.c.l.b16 %v214
    %v1679 = vunpack.c.h.b16 %v214
    %v1680 = vunpack.c.l.b16 %v215
    %v1681 = vunpack.c.h.b16 %v215
    %v1682 = vunpack.c.l.b16 %v216
    %v1683 = vunpack.c.h.b16 %v216
    %v1684 = vunpack.c.l.b16 %v217
    %v1685 = vunpack.c.h.b16 %v217
    %v1686 = vunpack.c.l.b16 %v218
    %v1687 = vunpack.c.h.b16 %v218
    %v1688 = vunpack.c.l.b16 %v219
    %v1689 = vunpack.c.h.b16 %v219
    %v1690 = vunpack.c.l.b16 %v220
    %v1691 = vunpack.c.h.b16 %v220
    %v1692 = vunpack.c.l.b16 %v221
    %v1693 = vunpack.c.l.b16 %v222
    %v1694 = vunpack.c.h.b16 %v222
    %v1695 = vunpack.c.l.b16 %v223
    %v1696 = vunpack.c.h.b16 %v223
    %v1697 = vunpack.c.l.b16 %v224
    %v1698 = vunpack.c.h.b16 %v224
    %v1699 = vunpack.c.l.b16 %v225
    %v1700 = vunpack.c.h.b16 %v225
    %v1701 = vunpack.c.l.b16 %v226
    %v1702 = vunpack.c.h.b16 %v226
    %v1703 = vunpack.c.l.b16 %v227
    %v1704 = vunpack.c.h.b16 %v227
    %v1705 = vunpack.c.l.b16 %v228
    %v1706 = vunpack.c.h.b16 %v228
    %v1707 = vunpack.c.l.b16 %v229
    %v1708 = vunpack.c.l.b16 %v230
    %v1709 = vunpack.c.h.b16 %v230
    %v1710 = vunpack.c.l.b16 %v231
    %v1711 = vunpack.c.h.b16 %v231
    %v1712 = vunpack.c.l.b16 %v232
    %v1713 = vunpack.c.h.b16 %v232
    %v1714 = vunpack.c.l.b16 %v233
    %v1715 = vunpack.c.h.b16 %v233
    %v1716 = vunpack.c.l.b16 %v234
    %v1717 = vunpack.c.h.b16 %v234
    %v1718 = vunpack.c.l.b16 %v235
    %v1719 = vunpack.c.h.b16 %v235
    %v1720 = vunpack.c.l.b16 %v236
    %v1721 = vunpack.c.h.b16 %v236
    %v1722 = vunpack.c.l.b16 %v237
    %v1723 = vunpack.c.l.b16 %v238
    %v1724 = vunpack.c.h.b16 %v238
    %v1725 = vunpack.c.l.b16 %v239
    %v1726 = vunpack.c.h.b16 %v239
    %v1727 = vunpack.c.l.b16 %v240
    %v1728 = vunpack.c.h.b16 %v240
    %v1729 = vunpack.c.l.b16 %v241
    %v1730 = vunpack.c.h.b16 %v241
    %v1731 = vunpack.c.l.b16 %v242
    %v1732 = vunpack.c.h.b16 %v242
    %v1733 = vunpack.c.l.b16 %v243
    %v1734 = vunpack.c.h.b16 %v243
    %v1735 = vunpack.c.l.b16 %v244
    %v1736 = vunpack.c.h.b16 %v244
    %v1737 = vunpack.c.l.b16 %v245
    %v1738 = vunpack.c.l.b16 %v246
    %v1739 = vunpack.c.h.b16 %v246
    %v1740 = vunpack.c.l.b16 %v247
    %v1741 = vunpack.c.h.b16 %v247
    %v1742 = vunpack.c.l.b16 %v248
    %v1743 = vunpack.c.h.b16 %v248
    %v1744 = vunpack.c.l.b16 %v249
    %v1745 = vunpack.c.h.b16 %v249
    %v1746 = vunpack.c.l.b16 %v250
    %v1747 = vunpack.c.h.b16 %v250
    %v1748 = vunpack.c.l.b16 %v251
    %v1749 = vunpack.c.h.b16 %v251
    %v1750 = vunpack.c.l.b16 %v252
    %v1751 = vunpack.c.h.b16 %v252
    %v1752 = vunpack.c.l.b16 %v253
    %v1753 = vunpack.c.l.b16 %v254
    %v1754 = vunpack.c.h.b16 %v254
    %v1755 = vunpack.c.l.b16 %v255
    %v1756 = vunpack.c.h.b16 %v255
    %v1757 = vunpack.c.l.b16 %v256
    %v1758 = vunpack.c.h.b16 %v256
    %v1759 = vunpack.c.l.b16 %v257
    %v1760 = vunpack.c.h.b16 %v257
    %v1761 = vunpack.c.l.b16 %v258
    %v1762 = vunpack.c.h.b16 %v258
    %v1763 = vunpack.c.l.b16 %v259
    %v1764 = vunpack.c.h.b16 %v259
    %v1765 = vunpack.c.l.b16 %v260
    %v1766 = vunpack.c.h.b16 %v260
    %v1767 = vunpack.c.l.b16 %v261
    %v1768 = vunpack.c.l.b16 %v262
    %v1769 = vunpack.c.h.b16 %v262
    %v1770 = vunpack.c.l.b16 %v263
    %v1771 = vunpack.c.h.b16 %v263
    %v1772 = vunpack.c.l.b16 %v264
    %v1773 = vunpack.c.h.b16 %v264
    %v1774 = vunpack.c.l.b16 %v265
    %v1775 = vunpack.c.h.b16 %v265
    %v1776 = vunpack.c.l.b16 %v266
    %v1777 = vunpack.c.h.b16 %v266
    %v1778 = vunpack.c.l.b16 %v267
    %v1779 = vunpack.c.h.b16 %v267
    %v1780 = vunpack.c.l.b16 %v268
    %v1781 = vunpack.c.h.b16 %v268
    %v1782 = vunpack.c.l.b16 %v269
    %v1783 = vunpack.c.l.b16 %v270
    %v1784 = vunpack.c.h.b16 %v270
    %v1785 = vunpack.c.l.b16 %v271
    %v1786 = vunpack.c.h.b16 %v271
    %v1787 = vunpack.c.l.b16 %v272
    %v1788 = vunpack.c.h.b16 %v272
    %v1789 = vunpack.c.l.b16 %v273
    %v1790 = vunpack.c.h.b16 %v273
    %v1791 = vunpack.c.l.b16 %v274
    %v1792 = vunpack.c.h.b16 %v274
    %v1793 = vunpack.c.l.b16 %v275
    %v1794 = vunpack.c.h.b16 %v275
    %v1795 = vunpack.c.l.b16 %v276
    %v1796 = vunpack.c.h.b16 %v276
    %v1797 = vunpack.c.l.b16 %v277
    %v1798 = vunpack.c.l.b16 %v278
    %v1799 = vunpack.c.h.b16 %v278
    %v1800 = vunpack.c.l.b16 %v279
    %v1801 = vunpack.c.h.b16 %v279
    %v1802 = vunpack.c.l.b16 %v280
    %v1803 = vunpack.c.h.b16 %v280
    %v1804 = vunpack.c.l.b16 %v281
    %v1805 = vunpack.c.h.b16 %v281
    %v1806 = vunpack.c.l.b16 %v282
    %v1807 = vunpack.c.h.b16 %v282
    %v1808 = vunpack.c.l.b16 %v283
    %v1809 = vunpack.c.h.b16 %v283
    %v1810 = vunpack.c.l.b16 %v284
    %v1811 = vunpack.c.h.b16 %v284
    %v1812 = vunpack.c.l.b16 %v285
    %v1813 = vunpack.c.l.b16 %v286
    %v1814 = vunpack.c.h.b16 %v286
    %v1815 = vunpack.c.l.b16 %v287
    %v1816 = vunpack.c.h.b16 %v287
    %v1817 = vunpack.c.l.b16 %v288
    %v1818 = vunpack.c.h.b16 %v288
    %v1819 = vunpack.c.l.b16 %v289
    %v1820 = vunpack.c.h.b16 %v289
    %v1821 = vunpack.c.l.b16 %v290
    %v1822 = vunpack.c.h.b16 %v290
    %v1823 = vunpack.c.l.b16 %v291
    %v1824 = vunpack.c.h.b16 %v291
    %v1825 = vunpack.c.l.b16 %v292
    %v1826 = vunpack.c.h.b16 %v292
    %v1827 = vunpack.c.l.b16 %v293
    %v1828 = vunpack.c.l.b16 %v294
    %v1829 = vunpack.c.h.b16 %v294
    %v1830 = vunpack.c.l.b16 %v295
    %v1831 = vunpack.c.h.b16 %v295
    %v1832 = vunpack.c.l.b16 %v296
    %v1833 = vunpack.c.h.b16 %v296
    %v1834 = vunpack.c.l.b16 %v297
    %v1835 = vunpack.c.h.b16 %v297
    %v1836 = vunpack.c.l.b16 %v298
    %v1837 = vunpack.c.h.b16 %v298
    %v1838 = vunpack.c.l.b16 %v299
    %v1839 = vunpack.c.h.b16 %v299
    %v1840 = vunpack.c.l.b16 %v300
    %v1841 = vunpack.c.h.b16 %v300
    %v1842 = vunpack.c.l.b16 %v301
    %v1843 = vunpack.c.l.b16 %v302
    %v1844 = vunpack.c.h.b16 %v302
    %v1845 = vunpack.c.l.b16 %v303
    %v1846 = vunpack.c.h.b16 %v303
    %v1847 = vunpack.c.l.b16 %v304
    %v1848 = vunpack.c.h.b16 %v304
    %v1849 = vunpack.c.l.b16 %v305
    %v1850 = vunpack.c.h.b16 %v305
    %v1851 = vunpack.c.l.b16 %v306
    %v1852 = vunpack.c.h.b16 %v306
    %v1853 = vunpack.c.l.b16 %v307
    %v1854 = vunpack.c.h.b16 %v307
    %v1855 = vunpack.c.l.b16 %v308
    %v1856 = vunpack.c.h.b16 %v308
    %v1857 = vunpack.c.l.b16 %v309
    %v1858 = vunpack.c.l.b16 %v310
    %v1859 = vunpack.c.h.b16 %v310
    %v1860 = vunpack.c.l.b16 %v311
    %v1861 = vunpack.c.h.b16 %v311
    %v1862 = vunpack.c.l.b16 %v312
    %v1863 = vunpack.c.h.b16 %v312
    %v1864 = vunpack.c.l.b16 %v313
    %v1865 = vunpack.c.h.b16 %v313
    %v1866 = vunpack.c.l.b16 %v314
    %v1867 = vunpack.c.h.b16 %v314
    %v1868 = vunpack.c.l.b16 %v315
    %v1869 = vunpack.c.h.b16 %v315
    %v1870 = vunpack.c.l.b16 %v316
    %v1871 = vunpack.c.h.b16 %v316
    %v1872 = vunpack.c.l.b16 %v317
    %v1873 = vunpack.c.l.b16 %v318
    %v1874 = vunpack.c.h.b16 %v318
    %v1875 = vunpack.c.l.b16 %v319
    %v1876 = vunpack.c.h.b16 %v319
    %v1877 = vunpack.c.l.b16 %v320
    %v1878 = vunpack.c.h.b16 %v320
    %v1879 = vunpack.c.l.b16 %v321
    %v1880 = vunpack.c.h.b16 %v321
    %v1881 = vunpack.c.l.b16 %v322
    %v1882 = vunpack.c.h.b16 %v322
    %v1883 = vunpack.c.l.b16 %v323
    %v1884 = vunpack.c.h.b16 %v323
    %v1885 = vunpack.c.l.b16 %v324
    %v1886 = vunpack.c.h.b16 %v324
    %v1887 = vunpack.c.l.b16 %v325
    %v1888 = vunpack.c.l.b16 %v326
    %v1889 = vunpack.c.h.b16 %v326
    %v1890 = vunpack.c.l.b16 %v327
    %v1891 = vunpack.c.h.b16 %v327
    %v1892 = vunpack.c.l.b16 %v328
    %v1893 = vunpack.c.h.b16 %v328
    %v1894 = vunpack.c.l.b16 %v329
    %v1895 = vunpack.c.h.b16 %v329
    %v1896 = vunpack.c.l.b16 %v330
    %v1897 = vunpack.c.h.b16 %v330
    %v1898 = vunpack.c.l.b16 %v331
    %v1899 = vunpack.c.h.b16 %v331
    %v1900 = vunpack.c.l.b16 %v332
    %v1901 = vunpack.c.h.b16 %v332
    %v1902 = vunpack.c.l.b16 %v333
    %v1903 = vunpack.c.l.b16 %v334
    %v1904 = vunpack.c.h.b16 %v334
    %v1905 = vunpack.c.l.b16 %v335
    %v1906 = vunpack.c.h.b16 %v335
    %v1907 = vunpack.c.l.b16 %v336
    %v1908 = vunpack.c.h.b16 %v336
    %v1909 = vunpack.c.l.b16 %v337
    %v1910 = vunpack.c.h.b16 %v337
    %v1911 = vunpack.c.l.b16 %v338
    %v1912 = vunpack.c.h.b16 %v338
    %v1913 = vunpack.c.l.b16 %v339
    %v1914 = vunpack.c.h.b16 %v339
    %v1915 = vunpack.c.l.b16 %v340
    %v1916 = vunpack.c.h.b16 %v340
    %v1917 = vunpack.c.l.b16 %v341
    %v1918 = vunpack.c.l.b16 %v342
    %v1919 = vunpack.c.h.b16 %v342
    %v1920 = vunpack.c.l.b16 %v343
    %v1921 = vunpack.c.h.b16 %v343
    %v1922 = vunpack.c.l.b16 %v344
    %v1923 = vunpack.c.h.b16 %v344
    %v1924 = vunpack.c.l.b16 %v345
    %v1925 = vunpack.c.h.b16 %v345
    %v1926 = vunpack.c.l.b16 %v346
    %v1927 = vunpack.c.h.b16 %v346
    %v1928 = vunpack.c.l.b16 %v347
    %v1929 = vunpack.c.h.b16 %v347
    %v1930 = vunpack.c.l.b16 %v348
    %v1931 = vunpack.c.h.b16 %v348
    %v1932 = vunpack.c.l.b16 %v349
    %v1933 = vunpack.c.l.b16 %v350
    %v1934 = vunpack.c.h.b16 %v350
    %v1935 = vunpack.c.l.b16 %v351
    %v1936 = vunpack.c.h.b16 %v351
    %v1937 = vunpack.c.l.b16 %v352
    %v1938 = vunpack.c.h.b16 %v352
    %v1939 = vunpack.c.l.b16 %v353
    %v1940 = vunpack.c.h.b16 %v353
    %v1941 = vunpack.c.l.b16 %v354
    %v1942 = vunpack.c.h.b16 %v354
    %v1943 = vunpack.c.l.b16 %v355
    %v1944 = vunpack.c.h.b16 %v355
    %v1945 = vunpack.c.l.b16 %v356
    %v1946 = vunpack.c.h.b16 %v356
    %v1947 = vunpack.c.l.b16 %v357
    %v1948 = vunpack.c.l.b16 %v358
    %v1949 = vunpack.c.h.b16 %v358
    %v1950 = vunpack.c.l.b16 %v359
    %v1951 = vunpack.c.h.b16 %v359
    %v1952 = vunpack.c.l.b16 %v360
    %v1953 = vunpack.c.h.b16 %v360
    %v1954 = vunpack.c.l.b16 %v361
    %v1955 = vunpack.c.h.b16 %v361
    %v1956 = vunpack.c.l.b16 %v362
    %v1957 = vunpack.c.h.b16 %v362
    %v1958 = vunpack.c.l.b16 %v363
    %v1959 = vunpack.c.h.b16 %v363
    %v1960 = vunpack.c.l.b16 %v364
    %v1961 = vunpack.c.h.b16 %v364
    %v1962 = vunpack.c.l.b16 %v365
    %v1963 = vunpack.c.l.b16 %v366
    %v1964 = vunpack.c.h.b16 %v366
    %v1965 = vunpack.c.l.b16 %v367
    %v1966 = vunpack.c.h.b16 %v367
    %v1967 = vunpack.c.l.b16 %v368
    %v1968 = vunpack.c.h.b16 %v368
    %v1969 = vunpack.c.l.b16 %v369
    %v1970 = vunpack.c.h.b16 %v369
    %v1971 = vunpack.c.l.b16 %v370
    %v1972 = vunpack.c.h.b16 %v370
    %v1973 = vunpack.c.l.b16 %v371
    %v1974 = vunpack.c.h.b16 %v371
    %v1975 = vunpack.c.l.b16 %v372
    %v1976 = vunpack.c.h.b16 %v372
    %v1977 = vunpack.c.l.b16 %v373
    %v1978 = vunpack.c.l.b16 %v374
    %v1979 = vunpack.c.h.b16 %v374
    %v1980 = vunpack.c.l.b16 %v375
    %v1981 = vunpack.c.h.b16 %v375
    %v1982 = vunpack.c.l.b16 %v376
    %v1983 = vunpack.c.h.b16 %v376
    %v1984 = vunpack.c.l.b16 %v377
    %v1985 = vunpack.c.h.b16 %v377
    %v1986 = vunpack.c.l.b16 %v378
    %v1987 = vunpack.c.h.b16 %v378
    %v1988 = vunpack.c.l.b16 %v379
    %v1989 = vunpack.c.h.b16 %v379
    %v1990 = vunpack.c.l.b16 %v380
    %v1991 = vunpack.c.h.b16 %v380
    %v1992 = vunpack.c.l.b16 %v381
    %v1993 = vunpack.c.l.b16 %v382
    %v1994 = vunpack.c.h.b16 %v382
    %v1995 = vunpack.c.l.b16 %v383
    %v1996 = vunpack.c.h.b16 %v383
    %v1997 = vunpack.c.l.b16 %v384
    %v1998 = vunpack.c.h.b16 %v384
    %v1999 = vunpack.c.l.b16 %v385
    %v2000 = vunpack.c.h.b16 %v385
    %v2001 = vunpack.c.l.b16 %v386
    %v2002 = vunpack.c.h.b16 %v386
    %v2003 = vunpack.c.l.b16 %v387
    %v2004 = vunpack.c.h.b16 %v387
    %v2005 = vunpack.c.l.b16 %v388
    %v2006 = vunpack.c.h.b16 %v388
    %v2007 = vunpack.c.l.b16 %v389
    %v2008 = vunpack.c.l.b16 %v390
    %v2009 = vunpack.c.h.b16 %v390
    %v2010 = vunpack.c.l.b16 %v391
    %v2011 = vunpack.c.h.b16 %v391
    %v2012 = vunpack.c.l.b16 %v392
    %v2013 = vunpack.c.h.b16 %v392
    %v2014 = vunpack.c.l.b16 %v393
    %v2015 = vunpack.c.h.b16 %v393
    %v2016 = vunpack.c.l.b16 %v394
    %v2017 = vunpack.c.h.b16 %v394
    %v2018 = vunpack.c.l.b16 %v395
    %v2019 = vunpack.c.h.b16 %v395
    %v2020 = vunpack.c.l.b16 %v396
    %v2021 = vunpack.c.h.b16 %v396
    %v2022 = vunpack.c.l.b16 %v397
    %v2023 = vunpack.c.l.b16 %v398
    %v2024 = vunpack.c.h.b16 %v398
    %v2025 = vunpack.c.l.b16 %v399
    %v2026 = vunpack.c.h.b16 %v399
    %v2027 = vunpack.c.l.b16 %v400
    %v2028 = vunpack.c.h.b16 %v400
    %v2029 = vunpack.c.l.b16 %v401
    %v2030 = vunpack.c.h.b16 %v401
    %v2031 = vunpack.c.l.b16 %v402
    %v2032 = vunpack.c.h.b16 %v402
    %v2033 = vunpack.c.l.b16 %v403
    %v2034 = vunpack.c.h.b16 %v403
    %v2035 = vunpack.c.l.b16 %v404
    %v2036 = vunpack.c.h.b16 %v404
    %v2037 = vunpack.c.l.b16 %v405
    %v2038 = vunpack.c.l.b16 %v406
    %v2039 = vunpack.c.h.b16 %v406
    %v2040 = vunpack.c.l.b16 %v407
    %v2041 = vunpack.c.h.b16 %v407
    %v2042 = vunpack.c.l.b16 %v408
    %v2043 = vunpack.c.h.b16 %v408
    %v2044 = vunpack.c.l.b16 %v409
    %v2045 = vunpack.c.h.b16 %v409
    %v2046 = vunpack.c.l.b16 %v410
    %v2047 = vunpack.c.h.b16 %v410
    %v2048 = vunpack.c.l.b16 %v411
    %v2049 = vunpack.c.h.b16 %v411
    %v2050 = vunpack.c.l.b16 %v412
    %v2051 = vunpack.c.h.b16 %v412
    %v2052 = vunpack.c.l.b16 %v413
    %v2053 = vunpack.c.l.b16 %v414
    %v2054 = vunpack.c.h.b16 %v414
    %v2055 = vunpack.c.l.b16 %v415
    %v2056 = vunpack.c.h.b16 %v415
    %v2057 = vunpack.c.l.b16 %v416
    %v2058 = vunpack.c.h.b16 %v416
    %v2059 = vunpack.c.l.b16 %v417
    %v2060 = vunpack.c.h.b16 %v417
    %v2061 = vunpack.c.l.b16 %v418
    %v2062 = vunpack.c.h.b16 %v418
    %v2063 = vunpack.c.l.b16 %v419
    %v2064 = vunpack.c.h.b16 %v419
    %v2065 = vunpack.c.l.b16 %v420
    %v2066 = vunpack.c.h.b16 %v420
    %v2067 = vunpack.c.l.b16 %v421
    %v2068 = vunpack.c.l.b16 %v422
    %v2069 = vunpack.c.h.b16 %v422
    %v2070 = vunpack.c.l.b16 %v423
    %v2071 = vunpack.c.h.b16 %v423
    %v2072 = vunpack.c.l.b16 %v424
    %v2073 = vunpack.c.h.b16 %v424
    %v2074 = vunpack.c.l.b16 %v425
    %v2075 = vunpack.c.h.b16 %v425
    %v2076 = vunpack.c.l.b16 %v426
    %v2077 = vunpack.c.h.b16 %v426
    %v2078 = vunpack.c.l.b16 %v427
    %v2079 = vunpack.c.h.b16 %v427
    %v2080 = vunpack.c.l.b16 %v428
    %v2081 = vunpack.c.h.b16 %v428
    %v2082 = vunpack.c.l.b16 %v429
    %v2083 = vunpack.c.l.b16 %v430
    %v2084 = vunpack.c.h.b16 %v430
    %v2085 = vunpack.c.l.b16 %v431
    %v2086 = vunpack.c.h.b16 %v431
    %v2087 = vunpack.c.l.b16 %v432
    %v2088 = vunpack.c.h.b16 %v432
    %v2089 = vunpack.c.l.b16 %v433
    %v2090 = vunpack.c.h.b16 %v433
    %v2091 = vunpack.c.l.b16 %v434
    %v2092 = vunpack.c.h.b16 %v434
    %v2093 = vunpack.c.l.b16 %v435
    %v2094 = vunpack.c.h.b16 %v435
    %v2095 = vunpack.c.l.b16 %v436
    %v2096 = vunpack.c.h.b16 %v436
    %v2097 = vunpack.c.l.b16 %v437
    %v2098 = vunpack.c.l.b16 %v438
    %v2099 = vunpack.c.h.b16 %v438
    %v2100 = vunpack.c.l.b16 %v439
    %v2101 = vunpack.c.h.b16 %v439
    %v2102 = vunpack.c.l.b16 %v440
    %v2103 = vunpack.c.h.b16 %v440
    %v2104 = vunpack.c.l.b16 %v441
    %v2105 = vunpack.c.h.b16 %v441
    %v2106 = vunpack.c.l.b16 %v442
    %v2107 = vunpack.c.h.b16 %v442
    %v2108 = vunpack.c.l.b16 %v443
    %v2109 = vunpack.c.h.b16 %v443
    %v2110 = vunpack.c.l.b16 %v444
    %v2111 = vunpack.c.h.b16 %v444
    %v2112 = vunpack.c.l.b16 %v445
    %v2113 = vunpack.c.l.b16 %v446
    %v2114 = vunpack.c.h.b16 %v446
    %v2115 = vunpack.c.l.b16 %v447
    %v2116 = vunpack.c.h.b16 %v447
    %v2117 = vunpack.c.l.b16 %v448
    %v2118 = vunpack.c.h.b16 %v448
    %v2119 = vunpack.c.l.b16 %v449
    %v2120 = vunpack.c.h.b16 %v449
    %v2121 = vunpack.c.l.b16 %v450
    %v2122 = vunpack.c.h.b16 %v450
    %v2123 = vunpack.c.l.b16 %v451
    %v2124 = vunpack.c.h.b16 %v451
    %v2125 = vunpack.c.l.b16 %v452
    %v2126 = vunpack.c.h.b16 %v452
    %v2127 = vunpack.c.l.b16 %v453
    %v2128 = vunpack.c.l.b16 %v454
    %v2129 = vunpack.c.h.b16 %v454
    %v2130 = vunpack.c.l.b16 %v455
    %v2131 = vunpack.c.h.b16 %v455
    %v2132 = vunpack.c.l.b16 %v456
    %v2133 = vunpack.c.h.b16 %v456
    %v2134 = vunpack.c.l.b16 %v457
    %v2135 = vunpack.c.h.b16 %v457
    %v2136 = vunpack.c.l.b16 %v458
    %v2137 = vunpack.c.h.b16 %v458
    %v2138 = vunpack.c.l.b16 %v459
    %v2139 = vunpack.c.h.b16 %v459
    %v2140 = vunpack.c.l.b16 %v460
    %v2141 = vunpack.c.h.b16 %v460
    %v2142 = vunpack.c.l.b16 %v461
    %v2143 = vunpack.c.l.b16 %v462
    %v2144 = vunpack.c.h.b16 %v462
    %v2145 = vunpack.c.l.b16 %v463
    %v2146 = vunpack.c.h.b16 %v463
    %v2147 = vunpack.c.l.b16 %v464
    %v2148 = vunpack.c.h.b16 %v464
    %v2149 = vunpack.c.l.b16 %v465
    %v2150 = vunpack.c.h.b16 %v465
    %v2151 = vunpack.c.l.b16 %v466
    %v2152 = vunpack.c.h.b16 %v466
    %v2153 = vunpack.c.l.b16 %v467
    %v2154 = vunpack.c.h.b16 %v467
    %v2155 = vunpack.c.l.b16 %v468
    %v2156 = vunpack.c.h.b16 %v468
    %v2157 = vunpack.c.l.b16 %v469
    %v2158 = vunpack.c.l.b16 %v470
    %v2159 = vunpack.c.h.b16 %v470
    %v2160 = vunpack.c.l.b16 %v471
    %v2161 = vunpack.c.h.b16 %v471
    %v2162 = vunpack.c.l.b16 %v472
    %v2163 = vunpack.c.h.b16 %v472
    %v2164 = vunpack.c.l.b16 %v473
    %v2165 = vunpack.c.h.b16 %v473
    %v2166 = vunpack.c.l.b16 %v474
    %v2167 = vunpack.c.h.b16 %v474
    %v2168 = vunpack.c.l.b16 %v475
    %v2169 = vunpack.c.h.b16 %v475
    %v2170 = vunpack.c.l.b16 %v476
    %v2171 = vunpack.c.h.b16 %v476
    %v2172 = vunpack.c.l.b16 %v477
    %v2173 = vunpack.c.l.b16 %v478
    %v2174 = vunpack.c.h.b16 %v478
    %v2175 = vunpack.c.l.b16 %v479
    %v2176 = vunpack.c.h.b16 %v479
    %v2177 = vunpack.c.l.b16 %v480
    %v2178 = vunpack.c.h.b16 %v480
    %v2179 = vunpack.c.l.b16 %v481
    %v2180 = vunpack.c.h.b16 %v481
    %v2181 = vunpack.c.l.b16 %v482
    %v2182 = vunpack.c.h.b16 %v482
    %v2183 = vunpack.c.l.b16 %v483
    %v2184 = vunpack.c.h.b16 %v483
    %v2185 = vunpack.c.l.b16 %v484
    %v2186 = vunpack.c.h.b16 %v484
    %v2187 = vunpack.c.l.b16 %v485
    %v2188 = vunpack.c.l.b16 %v486
    %v2189 = vunpack.c.h.b16 %v486
    %v2190 = vunpack.c.l.b16 %v487
    %v2191 = vunpack.c.h.b16 %v487
    %v2192 = vunpack.c.l.b16 %v488
    %v2193 = vunpack.c.h.b16 %v488
    %v2194 = vunpack.c.l.b16 %v489
    %v2195 = vunpack.c.h.b16 %v489
    %v2196 = vunpack.c.l.b16 %v490
    %v2197 = vunpack.c.h.b16 %v490
    %v2198 = vunpack.c.l.b16 %v491
    %v2199 = vunpack.c.h.b16 %v491
    %v2200 = vunpack.c.l.b16 %v492
    %v2201 = vunpack.c.h.b16 %v492
    %v2202 = vunpack.c.l.b16 %v493
    %v2203 = vunpack.c.l.b16 %v494
    %v2204 = vunpack.c.h.b16 %v494
    %v2205 = vunpack.c.l.b16 %v495
    %v2206 = vunpack.c.h.b16 %v495
    %v2207 = vunpack.c.l.b16 %v496
    %v2208 = vunpack.c.h.b16 %v496
    %v2209 = vunpack.c.l.b16 %v497
    %v2210 = vunpack.c.h.b16 %v497
    %v2211 = vunpack.c.l.b16 %v498
    %v2212 = vunpack.c.h.b16 %v498
    %v2213 = vunpack.c.l.b16 %v499
    %v2214 = vunpack.c.h.b16 %v499
    %v2215 = vunpack.c.l.b16 %v500
    %v2216 = vunpack.c.h.b16 %v500
    %v2217 = vunpack.c.l.b16 %v501
    %v2218 = vunpack.c.l.b16 %v502
    %v2219 = vunpack.c.h.b16 %v502
    %v2220 = vunpack.c.l.b16 %v503
    %v2221 = vunpack.c.h.b16 %v503
    %v2222 = vunpack.c.l.b16 %v504
    %v2223 = vunpack.c.h.b16 %v504
    %v2224 = vunpack.c.l.b16 %v505
    %v2225 = vunpack.c.h.b16 %v505
    %v2226 = vunpack.c.l.b16 %v506
    %v2227 = vunpack.c.h.b16 %v506
    %v2228 = vunpack.c.l.b16 %v507
    %v2229 = vunpack.c.h.b16 %v507
    %v2230 = vunpack.c.l.b16 %v508
    %v2231 = vunpack.c.h.b16 %v508
    %v2232 = vunpack.c.l.b16 %v509
    %v2233 = vunpack.c.l.b16 %v510
    %v2234 = vunpack.c.h.b16 %v510
    %v2235 = vunpack.c.l.b16 %v511
    %v2236 = vunpack.c.h.b16 %v511
    %v2237 = vunpack.c.l.b16 %v512
    %v2238 = vunpack.c.h.b16 %v512
    %v2239 = vunpack.c.l.b16 %v513
    %v2240 = vunpack.c.h.b16 %v513
    %v2241 = vunpack.c.l.b16 %v514
    %v2242 = vunpack.c.h.b16 %v514
    %v2243 = vunpack.c.l.b16 %v515
    %v2244 = vunpack.c.h.b16 %v515
    %v2245 = vunpack.c.l.b16 %v516
    %v2246 = vunpack.c.h.b16 %v516
    %v2247 = vunpack.c.l.b16 %v517
    %v2248 = vunpack.c.l.b16 %v518
    %v2249 = vunpack.c.h.b16 %v518
    %v2250 = vunpack.c.l.b16 %v519
    %v2251 = vunpack.c.h.b16 %v519
    %v2252 = vunpack.c.l.b16 %v520
    %v2253 = vunpack.c.h.b16 %v520
    %v2254 = vunpack.c.l.b16 %v521
    %v2255 = vunpack.c.h.b16 %v521
    %v2256 = vunpack.c.l.b16 %v522
    %v2257 = vunpack.c.h.b16 %v522
    %v2258 = vunpack.c.l.b16 %v523
    %v2259 = vunpack.c.h.b16 %v523
    %v2260 = vunpack.c.l.b16 %v524
    %v2261 = vunpack.c.h.b16 %v524
    %v2262 = vunpack.c.l.b16 %v525
    %v2263 = vunpack.c.l.b16 %v526
    %v2264 = vunpack.c.h.b16 %v526
    %v2265 = vunpack.c.l.b16 %v527
    %v2266 = vunpack.c.h.b16 %v527
    %v2267 = vunpack.c.l.b16 %v528
    %v2268 = vunpack.c.h.b16 %v528
    %v2269 = vunpack.c.l.b16 %v529
    %v2270 = vunpack.c.h.b16 %v529
    %v2271 = vunpack.c.l.b16 %v530
    %v2272 = vunpack.c.h.b16 %v530
    %v2273 = vunpack.c.l.b16 %v531
    %v2274 = vunpack.c.h.b16 %v531
    %v2275 = vunpack.c.l.b16 %v532
    %v2276 = vunpack.c.h.b16 %v532
    %v2277 = vunpack.c.l.b16 %v533
    %v2278 = vunpack.c.l.b16 %v534
    %v2279 = vunpack.c.h.b16 %v534
    %v2280 = vunpack.c.l.b16 %v535
    %v2281 = vunpack.c.h.b16 %v535
    %v2282 = vunpack.c.l.b16 %v536
    %v2283 = vunpack.c.h.b16 %v536
    %v2284 = vunpack.c.l.b16 %v537
    %v2285 = vunpack.c.h.b16 %v537
    %v2286 = vunpack.c.l.b16 %v538
    %v2287 = vunpack.c.h.b16 %v538
    %v2288 = vunpack.c.l.b16 %v539
    %v2289 = vunpack.c.h.b16 %v539
    %v2290 = vunpack.c.l.b16 %v540
    %v2291 = vunpack.c.h.b16 %v540
    %v2292 = vunpack.c.l.b16 %v541
    %v2293 = vunpack.c.l.b16 %v542
    %v2294 = vunpack.c.h.b16 %v542
    %v2295 = vunpack.c.l.b16 %v543
    %v2296 = vunpack.c.h.b16 %v543
    %v2297 = vunpack.c.l.b16 %v544
    %v2298 = vunpack.c.h.b16 %v544
    %v2299 = vunpack.c.l.b16 %v545
    %v2300 = vunpack.c.h.b16 %v545
    %v2301 = vunpack.c.l.b16 %v546
    %v2302 = vunpack.c.h.b16 %v546
    %v2303 = vunpack.c.l.b16 %v547
    %v2304 = vunpack.c.h.b16 %v547
    %v2305 = vunpack.c.l.b16 %v548
    %v2306 = vunpack.c.h.b16 %v548
    %v2307 = vunpack.c.l.b16 %v549
    %v2308 = vunpack.c.l.b16 %v550
    %v2309 = vunpack.c.h.b16 %v550
    %v2310 = vunpack.c.l.b16 %v551
    %v2311 = vunpack.c.h.b16 %v551
    %v2312 = vunpack.c.l.b16 %v552
    %v2313 = vunpack.c.h.b16 %v552
    %v2314 = vunpack.c.l.b16 %v553
    %v2315 = vunpack.c.h.b16 %v553
    %v2316 = vunpack.c.l.b16 %v554
    %v2317 = vunpack.c.h.b16 %v554
    %v2318 = vunpack.c.l.b16 %v555
    %v2319 = vunpack.c.h.b16 %v555
    %v2320 = vunpack.c.l.b16 %v556
    %v2321 = vunpack.c.h.b16 %v556
    %v2322 = vunpack.c.l.b16 %v557
    %v2323 = vunpack.c.l.b16 %v558
    %v2324 = vunpack.c.h.b16 %v558
    %v2325 = vunpack.c.l.b16 %v559
    %v2326 = vunpack.c.h.b16 %v559
    %v2327 = vunpack.c.l.b16 %v560
    %v2328 = vunpack.c.h.b16 %v560
    %v2329 = vunpack.c.l.b16 %v561
    %v2330 = vunpack.c.h.b16 %v561
    %v2331 = vunpack.c.l.b16 %v562
    %v2332 = vunpack.c.h.b16 %v562
    %v2333 = vunpack.c.l.b16 %v563
    %v2334 = vunpack.c.h.b16 %v563
    %v2335 = vunpack.c.l.b16 %v564
    %v2336 = vunpack.c.h.b16 %v564
    %v2337 = vunpack.c.l.b16 %v565
    %v2338 = vunpack.c.l.b16 %v566
    %v2339 = vunpack.c.h.b16 %v566
    %v2340 = vunpack.c.l.b16 %v567
    %v2341 = vunpack.c.h.b16 %v567
    %v2342 = vunpack.c.l.b16 %v568
    %v2343 = vunpack.c.h.b16 %v568
    %v2344 = vunpack.c.l.b16 %v569
    %v2345 = vunpack.c.h.b16 %v569
    %v2346 = vunpack.c.l.b16 %v570
    %v2347 = vunpack.c.h.b16 %v570
    %v2348 = vunpack.c.l.b16 %v571
    %v2349 = vunpack.c.h.b16 %v571
    %v2350 = vunpack.c.l.b16 %v572
    %v2351 = vunpack.c.h.b16 %v572
    %v2352 = vunpack.c.l.b16 %v573
    %v2353 = vunpack.c.l.b16 %v574
    %v2354 = vunpack.c.h.b16 %v574
    %v2355 = vunpack.c.l.b16 %v575
    %v2356 = vunpack.c.h.b16 %v575
    %v2357 = vunpack.c.l.b16 %v576
    %v2358 = vunpack.c.h.b16 %v576
    %v2359 = vunpack.c.l.b16 %v577
    %v2360 = vunpack.c.h.b16 %v577
    %v2361 = vunpack.c.l.b16 %v578
    %v2362 = vunpack.c.h.b16 %v578
    %v2363 = vunpack.c.l.b16 %v579
    %v2364 = vunpack.c.h.b16 %v579
    %v2365 = vunpack.c.l.b16 %v580
    %v2366 = vunpack.c.h.b16 %v580
    %v2367 = vunpack.c.l.b16 %v581
    %v2368 = vunpack.c.l.b16 %v582
    %v2369 = vunpack.c.h.b16 %v582
    %v2370 = vunpack.c.l.b16 %v583
    %v2371 = vunpack.c.h.b16 %v583
    %v2372 = vunpack.c.l.b16 %v584
    %v2373 = vunpack.c.h.b16 %v584
    %v2374 = vunpack.c.l.b16 %v585
    %v2375 = vunpack.c.h.b16 %v585
    %v2376 = vunpack.c.l.b16 %v586
    %v2377 = vunpack.c.h.b16 %v586
    %v2378 = vunpack.c.l.b16 %v587
    %v2379 = vunpack.c.h.b16 %v587
    %v2380 = vunpack.c.l.b16 %v588
    %v2381 = vunpack.c.h.b16 %v588
    %v2382 = vunpack.c.l.b16 %v589
    %v2383 = vunpack.c.l.b16 %v590
    %v2384 = vunpack.c.h.b16 %v590
    %v2385 = vunpack.c.l.b16 %v591
    %v2386 = vunpack.c.h.b16 %v591
    %v2387 = vunpack.c.l.b16 %v592
    %v2388 = vunpack.c.h.b16 %v592
    %v2389 = vunpack.c.l.b16 %v593
    %v2390 = vunpack.c.h.b16 %v593
    %v2391 = vunpack.c.l.b16 %v594
    %v2392 = vunpack.c.h.b16 %v594
    %v2393 = vunpack.c.l.b16 %v595
    %v2394 = vunpack.c.h.b16 %v595
    %v2395 = vunpack.c.l.b16 %v596
    %v2396 = vunpack.c.h.b16 %v596
    %v2397 = vunpack.c.l.b16 %v597
    %v2398 = vunpack.c.l.b16 %v598
    %v2399 = vunpack.c.h.b16 %v598
    %v2400 = vunpack.c.l.b16 %v599
    %v2401 = vunpack.c.h.b16 %v599
    %v2402 = vunpack.c.l.b16 %v600
    %v2403 = vunpack.c.h.b16 %v600
    %v2404 = vunpack.c.l.b16 %v601
    %v2405 = vunpack.c.h.b16 %v601
    %v2406 = vunpack.c.l.b16 %v602
    %v2407 = vunpack.c.h.b16 %v602
    %v2408 = vunpack.c.l.b16 %v603
    %v2409 = vunpack.c.h.b16 %v603
    %v2410 = vunpack.c.l.b16 %v604
    %v2411 = vunpack.c.h.b16 %v604
    %v2412 = vunpack.c.l.b16 %v605
    %v2413 = vunpack.c.l.b16 %v606
    %v2414 = vunpack.c.h.b16 %v606
    %v2415 = vunpack.c.l.b16 %v607
    %v2416 = vunpack.c.h.b16 %v607
    %v2417 = vunpack.c.l.b16 %v608
    %v2418 = vunpack.c.h.b16 %v608
    %v2419 = vunpack.c.l.b16 %v609
    %v2420 = vunpack.c.h.b16 %v609
    %v2421 = vunpack.c.l.b16 %v610
    %v2422 = vunpack.c.h.b16 %v610
    %v2423 = vunpack.c.l.b16 %v611
    %v2424 = vunpack.c.h.b16 %v611
    %v2425 = vunpack.c.l.b16 %v612
    %v2426 = vunpack.c.h.b16 %v612
    %v2427 = vunpack.c.l.b16 %v613
    %v2428 = vunpack.c.l.b16 %v614
    %v2429 = vunpack.c.h.b16 %v614
    %v2430 = vunpack.c.l.b16 %v615
    %v2431 = vunpack.c.h.b16 %v615
    %v2432 = vunpack.c.l.b16 %v616
    %v2433 = vunpack.c.h.b16 %v616
    %v2434 = vunpack.c.l.b16 %v617
    %v2435 = vunpack.c.h.b16 %v617
    %v2436 = vunpack.c.l.b16 %v618
    %v2437 = vunpack.c.h.b16 %v618
    %v2438 = vunpack.c.l.b16 %v619
    %v2439 = vunpack.c.h.b16 %v619
    %v2440 = vunpack.c.l.b16 %v620
    %v2441 = vunpack.c.h.b16 %v620
    %v2442 = vunpack.c.l.b16 %v621
    %v2443 = vunpack.c.l.b16 %v622
    %v2444 = vunpack.c.h.b16 %v622
    %v2445 = vunpack.c.l.b16 %v623
    %v2446 = vunpack.c.h.b16 %v623
    %v2447 = vunpack.c.l.b16 %v624
    %v2448 = vunpack.c.h.b16 %v624
    %v2449 = vunpack.c.l.b16 %v625
    %v2450 = vunpack.c.h.b16 %v625
    %v2451 = vunpack.c.l.b16 %v626
    %v2452 = vunpack.c.h.b16 %v626
    %v2453 = vunpack.c.l.b16 %v627
    %v2454 = vunpack.c.h.b16 %v627
    %v2455 = vunpack.c.l.b16 %v628
    %v2456 = vunpack.c.h.b16 %v628
    %v2457 = vunpack.c.l.b16 %v629
    %v2458 = vunpack.c.l.b16 %v630
    %v2459 = vunpack.c.h.b16 %v630
    %v2460 = vunpack.c.l.b16 %v631
    %v2461 = vunpack.c.h.b16 %v631
    %v2462 = vunpack.c.l.b16 %v632
    %v2463 = vunpack.c.h.b16 %v632
    %v2464 = vunpack.c.l.b16 %v633
    %v2465 = vunpack.c.h.b16 %v633
    %v2466 = vunpack.c.l.b16 %v634
    %v2467 = vunpack.c.h.b16 %v634
    %v2468 = vunpack.c.l.b16 %v635
    %v2469 = vunpack.c.h.b16 %v635
    %v2470 = vunpack.c.l.b16 %v636
    %v2471 = vunpack.c.h.b16 %v636
    %v2472 = vunpack.c.l.b16 %v637
    %v2473 = vunpack.c.l.b16 %v638
    %v2474 = vunpack.c.h.b16 %v638
    %v2475 = vunpack.c.l.b16 %v639
    %v2476 = vunpack.c.h.b16 %v639
    %v2477 = vunpack.c.l.b16 %v640
    %v2478 = vunpack.c.h.b16 %v640
    %v2479 = vunpack.c.l.b16 %v641
    %v2480 = vunpack.c.h.b16 %v641
    %v2481 = vunpack.c.l.b16 %v642
    %v2482 = vunpack.c.h.b16 %v642
    %v2483 = vunpack.c.l.b16 %v643
    %v2484 = vunpack.c.h.b16 %v643
    %v2485 = vunpack.c.l.b16 %v644
    %v2486 = vunpack.c.h.b16 %v644
    %v2487 = vunpack.c.l.b16 %v645
    %v2488 = vunpack.c.l.b16 %v646
    %v2489 = vunpack.c.h.b16 %v646
    %v2490 = vunpack.c.l.b16 %v647
    %v2491 = vunpack.c.h.b16 %v647
    %v2492 = vunpack.c.l.b16 %v648
    %v2493 = vunpack.c.h.b16 %v648
    %v2494 = vunpack.c.l.b16 %v649
    %v2495 = vunpack.c.h.b16 %v649
    %v2496 = vunpack.c.l.b16 %v650
    %v2497 = vunpack.c.h.b16 %v650
    %v2498 = vunpack.c.l.b16 %v651
    %v2499 = vunpack.c.h.b16 %v651
    %v2500 = vunpack.c.l.b16 %v652
    %v2501 = vunpack.c.h.b16 %v652
    %v2502 = vunpack.c.l.b16 %v653
    %v2503 = vunpack.c.l.b16 %v654
    %v2504 = vunpack.c.h.b16 %v654
    %v2505 = vunpack.c.l.b16 %v655
    %v2506 = vunpack.c.h.b16 %v655
    %v2507 = vunpack.c.l.b16 %v656
    %v2508 = vunpack.c.h.b16 %v656
    %v2509 = vunpack.c.l.b16 %v657
    %v2510 = vunpack.c.h.b16 %v657
    %v2511 = vunpack.c.l.b16 %v658
    %v2512 = vunpack.c.h.b16 %v658
    %v2513 = vunpack.c.l.b16 %v659
    %v2514 = vunpack.c.h.b16 %v659
    %v2515 = vunpack.c.l.b16 %v660
    %v2516 = vunpack.c.h.b16 %v660
    %v2517 = vunpack.c.l.b16 %v661
    %v2518 = vunpack.c.l.b16 %v662
    %v2519 = vunpack.c.h.b16 %v662
    %v2520 = vunpack.c.l.b16 %v663
    %v2521 = vunpack.c.h.b16 %v663
    %v2522 = vunpack.c.l.b16 %v664
    %v2523 = vunpack.c.h.b16 %v664
    %v2524 = vunpack.c.l.b16 %v665
    %v2525 = vunpack.c.h.b16 %v665
    %v2526 = vunpack.c.l.b16 %v666
    %v2527 = vunpack.c.h.b16 %v666
    %v2528 = vunpack.c.l.b16 %v667
    %v2529 = vunpack.c.h.b16 %v667
    %v2530 = vunpack.c.l.b16 %v668
    %v2531 = vunpack.c.h.b16 %v668
    %v2532 = vunpack.c.l.b16 %v669
    %v2533 = vunpack.c.l.b16 %v670
    %v2534 = vunpack.c.h.b16 %v670
    %v2535 = vunpack.c.l.b16 %v671
    %v2536 = vunpack.c.h.b16 %v671
    %v2537 = vunpack.c.l.b16 %v672
    %v2538 = vunpack.c.h.b16 %v672
    %v2539 = vunpack.c.l.b16 %v673
    %v2540 = vunpack.c.h.b16 %v673
    %v2541 = vunpack.c.l.b16 %v674
    %v2542 = vunpack.c.h.b16 %v674
    %v2543 = vunpack.c.l.b16 %v675
    %v2544 = vunpack.c.h.b16 %v675
    %v2545 = vunpack.c.l.b16 %v676
    %v2546 = vunpack.c.h.b16 %v676
    %v2547 = vunpack.c.l.b16 %v677
    %v2548 = vunpack.c.l.b16 %v678
    %v2549 = vunpack.c.h.b16 %v678
    %v2550 = vunpack.c.l.b16 %v679
    %v2551 = vunpack.c.h.b16 %v679
    %v2552 = vunpack.c.l.b16 %v680
    %v2553 = vunpack.c.h.b16 %v680
    %v2554 = vunpack.c.l.b16 %v681
    %v2555 = vunpack.c.h.b16 %v681
    %v2556 = vunpack.c.l.b16 %v682
    %v2557 = vunpack.c.h.b16 %v682
    %v2558 = vunpack.c.l.b16 %v683
    %v2559 = vunpack.c.h.b16 %v683
    %v2560 = vunpack.c.l.b16 %v684
    %v2561 = vunpack.c.h.b16 %v684
    %v2562 = vunpack.c.l.b16 %v685
    %v2563 = vunpack.c.l.b16 %v686
    %v2564 = vunpack.c.h.b16 %v686
    %v2565 = vunpack.c.l.b16 %v687
    %v2566 = vunpack.c.h.b16 %v687
    %v2567 = vunpack.c.l.b16 %v688
    %v2568 = vunpack.c.h.b16 %v688
    %v2569 = vunpack.c.l.b16 %v689
    %v2570 = vunpack.c.h.b16 %v689
    %v2571 = vunpack.c.l.b16 %v690
    %v2572 = vunpack.c.h.b16 %v690
    %v2573 = vunpack.c.l.b16 %v691
    %v2574 = vunpack.c.h.b16 %v691
    %v2575 = vunpack.c.l.b16 %v692
    %v2576 = vunpack.c.h.b16 %v692
    %v2577 = vunpack.c.l.b16 %v693
    %v2578 = vunpack.c.l.b16 %v694
    %v2579 = vunpack.c.h.b16 %v694
    %v2580 = vunpack.c.l.b16 %v695
    %v2581 = vunpack.c.h.b16 %v695
    %v2582 = vunpack.c.l.b16 %v696
    %v2583 = vunpack.c.h.b16 %v696
    %v2584 = vunpack.c.l.b16 %v697
    %v2585 = vunpack.c.h.b16 %v697
    %v2586 = vunpack.c.l.b16 %v698
    %v2587 = vunpack.c.h.b16 %v698
    %v2588 = vunpack.c.l.b16 %v699
    %v2589 = vunpack.c.h.b16 %v699
    %v2590 = vunpack.c.l.b16 %v700
    %v2591 = vunpack.c.h.b16 %v700
    %v2592 = vunpack.c.l.b16 %v701
    %v2593 = vunpack.c.l.b16 %v702
    %v2594 = vunpack.c.h.b16 %v702
    %v2595 = vunpack.c.l.b16 %v703
    %v2596 = vunpack.c.h.b16 %v703
    %v2597 = vunpack.c.l.b16 %v704
    %v2598 = vunpack.c.h.b16 %v704
    %v2599 = vunpack.c.l.b16 %v705
    %v2600 = vunpack.c.h.b16 %v705
    %v2601 = vunpack.c.l.b16 %v706
    %v2602 = vunpack.c.h.b16 %v706
    %v2603 = vunpack.c.l.b16 %v707
    %v2604 = vunpack.c.h.b16 %v707
    %v2605 = vunpack.c.l.b16 %v708
    %v2606 = vunpack.c.h.b16 %v708
    %v2607 = vunpack.c.l.b16 %v709
    %v2608 = vunpack.c.l.b16 %v710
    %v2609 = vunpack.c.h.b16 %v710
    %v2610 = vunpack.c.l.b16 %v711
    %v2611 = vunpack.c.h.b16 %v711
    %v2612 = vunpack.c.l.b16 %v712
    %v2613 = vunpack.c.h.b16 %v712
    %v2614 = vunpack.c.l.b16 %v713
    %v2615 = vunpack.c.h.b16 %v713
    %v2616 = vunpack.c.l.b16 %v714
    %v2617 = vunpack.c.h.b16 %v714
    %v2618 = vunpack.c.l.b16 %v715
    %v2619 = vunpack.c.h.b16 %v715
    %v2620 = vunpack.c.l.b16 %v716
    %v2621 = vunpack.c.h.b16 %v716
    %v2622 = vunpack.c.l.b16 %v717
    %v2623 = vunpack.c.l.b16 %v718
    %v2624 = vunpack.c.h.b16 %v718
    %v2625 = vunpack.c.l.b16 %v719
    %v2626 = vunpack.c.h.b16 %v719
    %v2627 = vunpack.c.l.b16 %v720
    %v2628 = vunpack.c.h.b16 %v720
    %v2629 = vunpack.c.l.b16 %v721
    %v2630 = vunpack.c.h.b16 %v721
    %v2631 = vunpack.c.l.b16 %v722
    %v2632 = vunpack.c.h.b16 %v722
    %v2633 = vunpack.c.l.b16 %v723
    %v2634 = vunpack.c.h.b16 %v723
    %v2635 = vunpack.c.l.b16 %v724
    %v2636 = vunpack.c.h.b16 %v724
    %v2637 = vunpack.c.l.b16 %v725
    %v2638 = vunpack.c.l.b16 %v726
    %v2639 = vunpack.c.h.b16 %v726
    %v2640 = vunpack.c.l.b16 %v727
    %v2641 = vunpack.c.h.b16 %v727
    %v2642 = vunpack.c.l.b16 %v728
    %v2643 = vunpack.c.h.b16 %v728
    %v2644 = vunpack.c.l.b16 %v729
    %v2645 = vunpack.c.h.b16 %v729
    %v2646 = vunpack.c.l.b16 %v730
    %v2647 = vunpack.c.h.b16 %v730
    %v2648 = vunpack.c.l.b16 %v731
    %v2649 = vunpack.c.h.b16 %v731
    %v2650 = vunpack.c.l.b16 %v732
    %v2651 = vunpack.c.h.b16 %v732
    %v2652 = vunpack.c.l.b16 %v733
    %v2653 = vpack.c.b16 %v1468, %v1453
    %v2654 = vpack.c.b16 %v1469, %v1454
    %v2655 = vpack.c.b16 %v1470, %v1455
    %v2656 = vpack.c.b16 %v1471, %v1456
    %v2657 = vpack.c.b16 %v1472, %v1457
    %v2658 = vpack.c.b16 %v1473, %v1458
    %v2659 = vpack.c.b16 %v1474, %v1459
    %v2660 = vpack.c.b16 %v1475, %v1460
    %v2661 = vpack.c.b16 %v1476, %v1461
    %v2662 = vpack.c.b16 %v1477, %v1462
    %v2663 = vpack.c.b16 %v1478, %v1463
    %v2664 = vpack.c.b16 %v1479, %v1464
    %v2665 = vpack.c.b16 %v1480, %v1465
    %v2666 = vpack.c.b16 %v1481, %v1466
    %v2667 = vpack.c.b16 %v1482, %v1467
    %v2668 = vpack.c.b16 %v1498, %v1483
    %v2669 = vpack.c.b16 %v1499, %v1484
    %v2670 = vpack.c.b16 %v1500, %v1485
    %v2671 = vpack.c.b16 %v1501, %v1486
    %v2672 = vpack.c.b16 %v1502, %v1487
    %v2673 = vpack.c.b16 %v1503, %v1488
    %v2674 = vpack.c.b16 %v1504, %v1489
    %v2675 = vpack.c.b16 %v1505, %v1490
    %v2676 = vpack.c.b16 %v1506, %v1491
    %v2677 = vpack.c.b16 %v1507, %v1492
    %v2678 = vpack.c.b16 %v1508, %v1493
    %v2679 = vpack.c.b16 %v1509, %v1494
    %v2680 = vpack.c.b16 %v1510, %v1495
    %v2681 = vpack.c.b16 %v1511, %v1496
    %v2682 = vpack.c.b16 %v1512, %v1497
    %v2683 = vpack.c.b16 %v1528, %v1513
    %v2684 = vpack.c.b16 %v1529, %v1514
    %v2685 = vpack.c.b16 %v1530, %v1515
    %v2686 = vpack.c.b16 %v1531, %v1516
    %v2687 = vpack.c.b16 %v1532, %v1517
    %v2688 = vpack.c.b16 %v1533, %v1518
    %v2689 = vpack.c.b16 %v1534, %v1519
    %v2690 = vpack.c.b16 %v1535, %v1520
    %v2691 = vpack.c.b16 %v1536, %v1521
    %v2692 = vpack.c.b16 %v1537, %v1522
    %v2693 = vpack.c.b16 %v1538, %v1523
    %v2694 = vpack.c.b16 %v1539, %v1524
    %v2695 = vpack.c.b16 %v1540, %v1525
    %v2696 = vpack.c.b16 %v1541, %v1526
    %v2697 = vpack.c.b16 %v1542, %v1527
    %v2698 = vpack.c.b16 %v1558, %v1543
    %v2699 = vpack.c.b16 %v1559, %v1544
    %v2700 = vpack.c.b16 %v1560, %v1545
    %v2701 = vpack.c.b16 %v1561, %v1546
    %v2702 = vpack.c.b16 %v1562, %v1547
    %v2703 = vpack.c.b16 %v1563, %v1548
    %v2704 = vpack.c.b16 %v1564, %v1549
    %v2705 = vpack.c.b16 %v1565, %v1550
    %v2706 = vpack.c.b16 %v1566, %v1551
    %v2707 = vpack.c.b16 %v1567, %v1552
    %v2708 = vpack.c.b16 %v1568, %v1553
    %v2709 = vpack.c.b16 %v1569, %v1554
    %v2710 = vpack.c.b16 %v1570, %v1555
    %v2711 = vpack.c.b16 %v1571, %v1556
    %v2712 = vpack.c.b16 %v1572, %v1557
    %v2713 = vpack.c.b16 %v1588, %v1573
    %v2714 = vpack.c.b16 %v1589, %v1574
    %v2715 = vpack.c.b16 %v1590, %v1575
    %v2716 = vpack.c.b16 %v1591, %v1576
    %v2717 = vpack.c.b16 %v1592, %v1577
    %v2718 = vpack.c.b16 %v1593, %v1578
    %v2719 = vpack.c.b16 %v1594, %v1579
    %v2720 = vpack.c.b16 %v1595, %v1580
    %v2721 = vpack.c.b16 %v1596, %v1581
    %v2722 = vpack.c.b16 %v1597, %v1582
    %v2723 = vpack.c.b16 %v1598, %v1583
    %v2724 = vpack.c.b16 %v1599, %v1584
    %v2725 = vpack.c.b16 %v1600, %v1585
    %v2726 = vpack.c.b16 %v1601, %v1586
    %v2727 = vpack.c.b16 %v1602, %v1587
    %v2728 = vpack.c.b16 %v1618, %v1603
    %v2729 = vpack.c.b16 %v1619, %v1604
    %v2730 = vpack.c.b16 %v1620, %v1605
    %v2731 = vpack.c.b16 %v1621, %v1606
    %v2732 = vpack.c.b16 %v1622, %v1607
    %v2733 = vpack.c.b16 %v1623, %v1608
    %v2734 = vpack.c.b16 %v1624, %v1609
    %v2735 = vpack.c.b16 %v1625, %v1610
    %v2736 = vpack.c.b16 %v1626, %v1611
    %v2737 = vpack.c.b16 %v1627, %v1612
    %v2738 = vpack.c.b16 %v1628, %v1613
    %v2739 = vpack.c.b16 %v1629, %v1614
    %v2740 = vpack.c.b16 %v1630, %v1615
    %v2741 = vpack.c.b16 %v1631, %v1616
    %v2742 = vpack.c.b16 %v1632, %v1617
    %v2743 = vpack.c.b16 %v1648, %v1633
    %v2744 = vpack.c.b16 %v1649, %v1634
    %v2745 = vpack.c.b16 %v1650, %v1635
    %v2746 = vpack.c.b16 %v1651, %v1636
    %v2747 = vpack.c.b16 %v1652, %v1637
    %v2748 = vpack.c.b16 %v1653, %v1638
    %v2749 = vpack.c.b16 %v1654, %v1639
    %v2750 = vpack.c.b16 %v1655, %v1640
    %v2751 = vpack.c.b16 %v1656, %v1641
    %v2752 = vpack.c.b16 %v1657, %v1642
    %v2753 = vpack.c.b16 %v1658, %v1643
    %v2754 = vpack.c.b16 %v1659, %v1644
    %v2755 = vpack.c.b16 %v1660, %v1645
    %v2756 = vpack.c.b16 %v1661, %v1646
    %v2757 = vpack.c.b16 %v1662, %v1647
    %v2758 = vpack.c.b16 %v1678, %v1663
    %v2759 = vpack.c.b16 %v1679, %v1664
    %v2760 = vpack.c.b16 %v1680, %v1665
    %v2761 = vpack.c.b16 %v1681, %v1666
    %v2762 = vpack.c.b16 %v1682, %v1667
    %v2763 = vpack.c.b16 %v1683, %v1668
    %v2764 = vpack.c.b16 %v1684, %v1669
    %v2765 = vpack.c.b16 %v1685, %v1670
    %v2766 = vpack.c.b16 %v1686, %v1671
    %v2767 = vpack.c.b16 %v1687, %v1672
    %v2768 = vpack.c.b16 %v1688, %v1673
    %v2769 = vpack.c.b16 %v1689, %v1674
    %v2770 = vpack.c.b16 %v1690, %v1675
    %v2771 = vpack.c.b16 %v1691, %v1676
    %v2772 = vpack.c.b16 %v1692, %v1677
    %v2773 = vpack.c.b16 %v1708, %v1693
    %v2774 = vpack.c.b16 %v1709, %v1694
    %v2775 = vpack.c.b16 %v1710, %v1695
    %v2776 = vpack.c.b16 %v1711, %v1696
    %v2777 = vpack.c.b16 %v1712, %v1697
    %v2778 = vpack.c.b16 %v1713, %v1698
    %v2779 = vpack.c.b16 %v1714, %v1699
    %v2780 = vpack.c.b16 %v1715, %v1700
    %v2781 = vpack.c.b16 %v1716, %v1701
    %v2782 = vpack.c.b16 %v1717, %v1702
    %v2783 = vpack.c.b16 %v1718, %v1703
    %v2784 = vpack.c.b16 %v1719, %v1704
    %v2785 = vpack.c.b16 %v1720, %v1705
    %v2786 = vpack.c.b16 %v1721, %v1706
    %v2787 = vpack.c.b16 %v1722, %v1707
    %v2788 = vpack.c.b16 %v1738, %v1723
    %v2789 = vpack.c.b16 %v1739, %v1724
    %v2790 = vpack.c.b16 %v1740, %v1725
    %v2791 = vpack.c.b16 %v1741, %v1726
    %v2792 = vpack.c.b16 %v1742, %v1727
    %v2793 = vpack.c.b16 %v1743, %v1728
    %v2794 = vpack.c.b16 %v1744, %v1729
    %v2795 = vpack.c.b16 %v1745, %v1730
    %v2796 = vpack.c.b16 %v1746, %v1731
    %v2797 = vpack.c.b16 %v1747, %v1732
    %v2798 = vpack.c.b16 %v1748, %v1733
    %v2799 = vpack.c.b16 %v1749, %v1734
    %v2800 = vpack.c.b16 %v1750, %v1735
    %v2801 = vpack.c.b16 %v1751, %v1736
    %v2802 = vpack.c.b16 %v1752, %v1737
    %v2803 = vpack.c.b16 %v1768, %v1753
    %v2804 = vpack.c.b16 %v1769, %v1754
    %v2805 = vpack.c.b16 %v1770, %v1755
    %v2806 = vpack.c.b16 %v1771, %v1756
    %v2807 = vpack.c.b16 %v1772, %v1757
    %v2808 = vpack.c.b16 %v1773, %v1758
    %v2809 = vpack.c.b16 %v1774, %v1759
    %v2810 = vpack.c.b16 %v1775, %v1760
    %v2811 = vpack.c.b16 %v1776, %v1761
    %v2812 = vpack.c.b16 %v1777, %v1762
    %v2813 = vpack.c.b16 %v1778, %v1763
    %v2814 = vpack.c.b16 %v1779, %v1764
    %v2815 = vpack.c.b16 %v1780, %v1765
    %v2816 = vpack.c.b16 %v1781, %v1766
    %v2817 = vpack.c.b16 %v1782, %v1767
    %v2818 = vpack.c.b16 %v1798, %v1783
    %v2819 = vpack.c.b16 %v1799, %v1784
    %v2820 = vpack.c.b16 %v1800, %v1785
    %v2821 = vpack.c.b16 %v1801, %v1786
    %v2822 = vpack.c.b16 %v1802, %v1787
    %v2823 = vpack.c.b16 %v1803, %v1788
    %v2824 = vpack.c.b16 %v1804, %v1789
    %v2825 = vpack.c.b16 %v1805, %v1790
    %v2826 = vpack.c.b16 %v1806, %v1791
    %v2827 = vpack.c.b16 %v1807, %v1792
    %v2828 = vpack.c.b16 %v1808, %v1793
    %v2829 = vpack.c.b16 %v1809, %v1794
    %v2830 = vpack.c.b16 %v1810, %v1795
    %v2831 = vpack.c.b16 %v1811, %v1796
    %v2832 = vpack.c.b16 %v1812, %v1797
    %v2833 = vpack.c.b16 %v1828, %v1813
    %v2834 = vpack.c.b16 %v1829, %v1814
    %v2835 = vpack.c.b16 %v1830, %v1815
    %v2836 = vpack.c.b16 %v1831, %v1816
    %v2837 = vpack.c.b16 %v1832, %v1817
    %v2838 = vpack.c.b16 %v1833, %v1818
    %v2839 = vpack.c.b16 %v1834, %v1819
    %v2840 = vpack.c.b16 %v1835, %v1820
    %v2841 = vpack.c.b16 %v1836, %v1821
    %v2842 = vpack.c.b16 %v1837, %v1822
    %v2843 = vpack.c.b16 %v1838, %v1823
    %v2844 = vpack.c.b16 %v1839, %v1824
    %v2845 = vpack.c.b16 %v1840, %v1825
    %v2846 = vpack.c.b16 %v1841, %v1826
    %v2847 = vpack.c.b16 %v1842, %v1827
    %v2848 = vpack.c.b16 %v1858, %v1843
    %v2849 = vpack.c.b16 %v1859, %v1844
    %v2850 = vpack.c.b16 %v1860, %v1845
    %v2851 = vpack.c.b16 %v1861, %v1846
    %v2852 = vpack.c.b16 %v1862, %v1847
    %v2853 = vpack.c.b16 %v1863, %v1848
    %v2854 = vpack.c.b16 %v1864, %v1849
    %v2855 = vpack.c.b16 %v1865, %v1850
    %v2856 = vpack.c.b16 %v1866, %v1851
    %v2857 = vpack.c.b16 %v1867, %v1852
    %v2858 = vpack.c.b16 %v1868, %v1853
    %v2859 = vpack.c.b16 %v1869, %v1854
    %v2860 = vpack.c.b16 %v1870, %v1855
    %v2861 = vpack.c.b16 %v1871, %v1856
    %v2862 = vpack.c.b16 %v1872, %v1857
    %v2863 = vpack.c.b16 %v1888, %v1873
    %v2864 = vpack.c.b16 %v1889, %v1874
    %v2865 = vpack.c.b16 %v1890, %v1875
    %v2866 = vpack.c.b16 %v1891, %v1876
    %v2867 = vpack.c.b16 %v1892, %v1877
    %v2868 = vpack.c.b16 %v1893, %v1878
    %v2869 = vpack.c.b16 %v1894, %v1879
    %v2870 = vpack.c.b16 %v1895, %v1880
    %v2871 = vpack.c.b16 %v1896, %v1881
    %v2872 = vpack.c.b16 %v1897, %v1882
    %v2873 = vpack.c.b16 %v1898, %v1883
    %v2874 = vpack.c.b16 %v1899, %v1884
    %v2875 = vpack.c.b16 %v1900, %v1885
    %v2876 = vpack.c.b16 %v1901, %v1886
    %v2877 = vpack.c.b16 %v1902, %v1887
    %v2878 = vpack.c.b16 %v1918, %v1903
    %v2879 = vpack.c.b16 %v1919, %v1904
    %v2880 = vpack.c.b16 %v1920, %v1905
    %v2881 = vpack.c.b16 %v1921, %v1906
    %v2882 = vpack.c.b16 %v1922, %v1907
    %v2883 = vpack.c.b16 %v1923, %v1908
    %v2884 = vpack.c.b16 %v1924, %v1909
    %v2885 = vpack.c.b16 %v1925, %v1910
    %v2886 = vpack.c.b16 %v1926, %v1911
    %v2887 = vpack.c.b16 %v1927, %v1912
    %v2888 = vpack.c.b16 %v1928, %v1913
    %v2889 = vpack.c.b16 %v1929, %v1914
    %v2890 = vpack.c.b16 %v1930, %v1915
    %v2891 = vpack.c.b16 %v1931, %v1916
    %v2892 = vpack.c.b16 %v1932, %v1917
    %v2893 = vpack.c.b16 %v1948, %v1933
    %v2894 = vpack.c.b16 %v1949, %v1934
    %v2895 = vpack.c.b16 %v1950, %v1935
    %v2896 = vpack.c.b16 %v1951, %v1936
    %v2897 = vpack.c.b16 %v1952, %v1937
    %v2898 = vpack.c.b16 %v1953, %v1938
    %v2899 = vpack.c.b16 %v1954, %v1939
    %v2900 = vpack.c.b16 %v1955, %v1940
    %v2901 = vpack.c.b16 %v1956, %v1941
    %v2902 = vpack.c.b16 %v1957, %v1942
    %v2903 = vpack.c.b16 %v1958, %v1943
    %v2904 = vpack.c.b16 %v1959, %v1944
    %v2905 = vpack.c.b16 %v1960, %v1945
    %v2906 = vpack.c.b16 %v1961, %v1946
    %v2907 = vpack.c.b16 %v1962, %v1947
    %v2908 = vpack.c.b16 %v1978, %v1963
    %v2909 = vpack.c.b16 %v1979, %v1964
    %v2910 = vpack.c.b16 %v1980, %v1965
    %v2911 = vpack.c.b16 %v1981, %v1966
    %v2912 = vpack.c.b16 %v1982, %v1967
    %v2913 = vpack.c.b16 %v1983, %v1968
    %v2914 = vpack.c.b16 %v1984, %v1969
    %v2915 = vpack.c.b16 %v1985, %v1970
    %v2916 = vpack.c.b16 %v1986, %v1971
    %v2917 = vpack.c.b16 %v1987, %v1972
    %v2918 = vpack.c.b16 %v1988, %v1973
    %v2919 = vpack.c.b16 %v1989, %v1974
    %v2920 = vpack.c.b16 %v1990, %v1975
    %v2921 = vpack.c.b16 %v1991, %v1976
    %v2922 = vpack.c.b16 %v1992, %v1977
    %v2923 = vpack.c.b16 %v2008, %v1993
    %v2924 = vpack.c.b16 %v2009, %v1994
    %v2925 = vpack.c.b16 %v2010, %v1995
    %v2926 = vpack.c.b16 %v2011, %v1996
    %v2927 = vpack.c.b16 %v2012, %v1997
    %v2928 = vpack.c.b16 %v2013, %v1998
    %v2929 = vpack.c.b16 %v2014, %v1999
    %v2930 = vpack.c.b16 %v2015, %v2000
    %v2931 = vpack.c.b16 %v2016, %v2001
    %v2932 = vpack.c.b16 %v2017, %v2002
    %v2933 = vpack.c.b16 %v2018, %v2003
    %v2934 = vpack.c.b16 %v2019, %v2004
    %v2935 = vpack.c.b16 %v2020, %v2005
    %v2936 = vpack.c.b16 %v2021, %v2006
    %v2937 = vpack.c.b16 %v2022, %v2007
    %v2938 = vpack.c.b16 %v2038, %v2023
    %v2939 = vpack.c.b16 %v2039, %v2024
    %v2940 = vpack.c.b16 %v2040, %v2025
    %v2941 = vpack.c.b16 %v2041, %v2026
    %v2942 = vpack.c.b16 %v2042, %v2027
    %v2943 = vpack.c.b16 %v2043, %v2028
    %v2944 = vpack.c.b16 %v2044, %v2029
    %v2945 = vpack.c.b16 %v2045, %v2030
    %v2946 = vpack.c.b16 %v2046, %v2031
    %v2947 = vpack.c.b16 %v2047, %v2032
    %v2948 = vpack.c.b16 %v2048, %v2033
    %v2949 = vpack.c.b16 %v2049, %v2034
    %v2950 = vpack.c.b16 %v2050, %v2035
    %v2951 = vpack.c.b16 %v2051, %v2036
    %v2952 = vpack.c.b16 %v2052, %v2037
    %v2953 = vpack.c.b16 %v2068, %v2053
    %v2954 = vpack.c.b16 %v2069, %v2054
    %v2955 = vpack.c.b16 %v2070, %v2055
    %v2956 = vpack.c.b16 %v2071, %v2056
    %v2957 = vpack.c.b16 %v2072, %v2057
    %v2958 = vpack.c.b16 %v2073, %v2058
    %v2959 = vpack.c.b16 %v2074, %v2059
    %v2960 = vpack.c.b16 %v2075, %v2060
    %v2961 = vpack.c.b16 %v2076, %v2061
    %v2962 = vpack.c.b16 %v2077, %v2062
    %v2963 = vpack.c.b16 %v2078, %v2063
    %v2964 = vpack.c.b16 %v2079, %v2064
    %v2965 = vpack.c.b16 %v2080, %v2065
    %v2966 = vpack.c.b16 %v2081, %v2066
    %v2967 = vpack.c.b16 %v2082, %v2067
    %v2968 = vpack.c.b16 %v2098, %v2083
    %v2969 = vpack.c.b16 %v2099, %v2084
    %v2970 = vpack.c.b16 %v2100, %v2085
    %v2971 = vpack.c.b16 %v2101, %v2086
    %v2972 = vpack.c.b16 %v2102, %v2087
    %v2973 = vpack.c.b16 %v2103, %v2088
    %v2974 = vpack.c.b16 %v2104, %v2089
    %v2975 = vpack.c.b16 %v2105, %v2090
    %v2976 = vpack.c.b16 %v2106, %v2091
    %v2977 = vpack.c.b16 %v2107, %v2092
    %v2978 = vpack.c.b16 %v2108, %v2093
    %v2979 = vpack.c.b16 %v2109, %v2094
    %v2980 = vpack.c.b16 %v2110, %v2095
    %v2981 = vpack.c.b16 %v2111, %v2096
    %v2982 = vpack.c.b16 %v2112, %v2097
    %v2983 = vpack.c.b16 %v2128, %v2113
    %v2984 = vpack.c.b16 %v2129, %v2114
    %v2985 = vpack.c.b16 %v2130, %v2115
    %v2986 = vpack.c.b16 %v2131, %v2116
    %v2987 = vpack.c.b16 %v2132, %v2117
    %v2988 = vpack.c.b16 %v2133, %v2118
    %v2989 = vpack.c.b16 %v2134, %v2119
    %v2990 = vpack.c.b16 %v2135, %v2120
    %v2991 = vpack.c.b16 %v2136, %v2121
    %v2992 = vpack.c.b16 %v2137, %v2122
    %v2993 = vpack.c.b16 %v2138, %v2123
    %v2994 = vpack.c.b16 %v2139, %v2124
    %v2995 = vpack.c.b16 %v2140, %v2125
    %v2996 = vpack.c.b16 %v2141, %v2126
    %v2997 = vpack.c.b16 %v2142, %v2127
    %v2998 = vpack.c.b16 %v2158, %v2143
    %v2999 = vpack.c.b16 %v2159, %v2144
    %v3000 = vpack.c.b16 %v2160, %v2145
    %v3001 = vpack.c.b16 %v2161, %v2146
    %v3002 = vpack.c.b16 %v2162, %v2147
    %v3003 = vpack.c.b16 %v2163, %v2148
    %v3004 = vpack.c.b16 %v2164, %v2149
    %v3005 = vpack.c.b16 %v2165, %v2150
    %v3006 = vpack.c.b16 %v2166, %v2151
    %v3007 = vpack.c.b16 %v2167, %v2152
    %v3008 = vpack.c.b16 %v2168, %v2153
    %v3009 = vpack.c.b16 %v2169, %v2154
    %v3010 = vpack.c.b16 %v2170, %v2155
    %v3011 = vpack.c.b16 %v2171, %v2156
    %v3012 = vpack.c.b16 %v2172, %v2157
    %v3013 = vpack.c.b16 %v2188, %v2173
    %v3014 = vpack.c.b16 %v2189, %v2174
    %v3015 = vpack.c.b16 %v2190, %v2175
    %v3016 = vpack.c.b16 %v2191, %v2176
    %v3017 = vpack.c.b16 %v2192, %v2177
    %v3018 = vpack.c.b16 %v2193, %v2178
    %v3019 = vpack.c.b16 %v2194, %v2179
    %v3020 = vpack.c.b16 %v2195, %v2180
    %v3021 = vpack.c.b16 %v2196, %v2181
    %v3022 = vpack.c.b16 %v2197, %v2182
    %v3023 = vpack.c.b16 %v2198, %v2183
    %v3024 = vpack.c.b16 %v2199, %v2184
    %v3025 = vpack.c.b16 %v2200, %v2185
    %v3026 = vpack.c.b16 %v2201, %v2186
    %v3027 = vpack.c.b16 %v2202, %v2187
    %v3028 = vpack.c.b16 %v2218, %v2203
    %v3029 = vpack.c.b16 %v2219, %v2204
    %v3030 = vpack.c.b16 %v2220, %v2205
    %v3031 = vpack.c.b16 %v2221, %v2206
    %v3032 = vpack.c.b16 %v2222, %v2207
    %v3033 = vpack.c.b16 %v2223, %v2208
    %v3034 = vpack.c.b16 %v2224, %v2209
    %v3035 = vpack.c.b16 %v2225, %v2210
    %v3036 = vpack.c.b16 %v2226, %v2211
    %v3037 = vpack.c.b16 %v2227, %v2212
    %v3038 = vpack.c.b16 %v2228, %v2213
    %v3039 = vpack.c.b16 %v2229, %v2214
    %v3040 = vpack.c.b16 %v2230, %v2215
    %v3041 = vpack.c.b16 %v2231, %v2216
    %v3042 = vpack.c.b16 %v2232, %v2217
    %v3043 = vpack.c.b16 %v2248, %v2233
    %v3044 = vpack.c.b16 %v2249, %v2234
    %v3045 = vpack.c.b16 %v2250, %v2235
    %v3046 = vpack.c.b16 %v2251, %v2236
    %v3047 = vpack.c.b16 %v2252, %v2237
    %v3048 = vpack.c.b16 %v2253, %v2238
    %v3049 = vpack.c.b16 %v2254, %v2239
    %v3050 = vpack.c.b16 %v2255, %v2240
    %v3051 = vpack.c.b16 %v2256, %v2241
    %v3052 = vpack.c.b16 %v2257, %v2242
    %v3053 = vpack.c.b16 %v2258, %v2243
    %v3054 = vpack.c.b16 %v2259, %v2244
    %v3055 = vpack.c.b16 %v2260, %v2245
    %v3056 = vpack.c.b16 %v2261, %v2246
    %v3057 = vpack.c.b16 %v2262, %v2247
    %v3058 = vpack.c.b16 %v2278, %v2263
    %v3059 = vpack.c.b16 %v2279, %v2264
    %v3060 = vpack.c.b16 %v2280, %v2265
    %v3061 = vpack.c.b16 %v2281, %v2266
    %v3062 = vpack.c.b16 %v2282, %v2267
    %v3063 = vpack.c.b16 %v2283, %v2268
    %v3064 = vpack.c.b16 %v2284, %v2269
    %v3065 = vpack.c.b16 %v2285, %v2270
    %v3066 = vpack.c.b16 %v2286, %v2271
    %v3067 = vpack.c.b16 %v2287, %v2272
    %v3068 = vpack.c.b16 %v2288, %v2273
    %v3069 = vpack.c.b16 %v2289, %v2274
    %v3070 = vpack.c.b16 %v2290, %v2275
    %v3071 = vpack.c.b16 %v2291, %v2276
    %v3072 = vpack.c.b16 %v2292, %v2277
    %v3073 = vpack.c.b16 %v2308, %v2293
    %v3074 = vpack.c.b16 %v2309, %v2294
    %v3075 = vpack.c.b16 %v2310, %v2295
    %v3076 = vpack.c.b16 %v2311, %v2296
    %v3077 = vpack.c.b16 %v2312, %v2297
    %v3078 = vpack.c.b16 %v2313, %v2298
    %v3079 = vpack.c.b16 %v2314, %v2299
    %v3080 = vpack.c.b16 %v2315, %v2300
    %v3081 = vpack.c.b16 %v2316, %v2301
    %v3082 = vpack.c.b16 %v2317, %v2302
    %v3083 = vpack.c.b16 %v2318, %v2303
    %v3084 = vpack.c.b16 %v2319, %v2304
    %v3085 = vpack.c.b16 %v2320, %v2305
    %v3086 = vpack.c.b16 %v2321, %v2306
    %v3087 = vpack.c.b16 %v2322, %v2307
    %v3088 = vpack.c.b16 %v2338, %v2323
    %v3089 = vpack.c.b16 %v2339, %v2324
    %v3090 = vpack.c.b16 %v2340, %v2325
    %v3091 = vpack.c.b16 %v2341, %v2326
    %v3092 = vpack.c.b16 %v2342, %v2327
    %v3093 = vpack.c.b16 %v2343, %v2328
    %v3094 = vpack.c.b16 %v2344, %v2329
    %v3095 = vpack.c.b16 %v2345, %v2330
    %v3096 = vpack.c.b16 %v2346, %v2331
    %v3097 = vpack.c.b16 %v2347, %v2332
    %v3098 = vpack.c.b16 %v2348, %v2333
    %v3099 = vpack.c.b16 %v2349, %v2334
    %v3100 = vpack.c.b16 %v2350, %v2335
    %v3101 = vpack.c.b16 %v2351, %v2336
    %v3102 = vpack.c.b16 %v2352, %v2337
    %v3103 = vpack.c.b16 %v2368, %v2353
    %v3104 = vpack.c.b16 %v2369, %v2354
    %v3105 = vpack.c.b16 %v2370, %v2355
    %v3106 = vpack.c.b16 %v2371, %v2356
    %v3107 = vpack.c.b16 %v2372, %v2357
    %v3108 = vpack.c.b16 %v2373, %v2358
    %v3109 = vpack.c.b16 %v2374, %v2359
    %v3110 = vpack.c.b16 %v2375, %v2360
    %v3111 = vpack.c.b16 %v2376, %v2361
    %v3112 = vpack.c.b16 %v2377, %v2362
    %v3113 = vpack.c.b16 %v2378, %v2363
    %v3114 = vpack.c.b16 %v2379, %v2364
    %v3115 = vpack.c.b16 %v2380, %v2365
    %v3116 = vpack.c.b16 %v2381, %v2366
    %v3117 = vpack.c.b16 %v2382, %v2367
    %v3118 = vpack.c.b16 %v2398, %v2383
    %v3119 = vpack.c.b16 %v2399, %v2384
    %v3120 = vpack.c.b16 %v2400, %v2385
    %v3121 = vpack.c.b16 %v2401, %v2386
    %v3122 = vpack.c.b16 %v2402, %v2387
    %v3123 = vpack.c.b16 %v2403, %v2388
    %v3124 = vpack.c.b16 %v2404, %v2389
    %v3125 = vpack.c.b16 %v2405, %v2390
    %v3126 = vpack.c.b16 %v2406, %v2391
    %v3127 = vpack.c.b16 %v2407, %v2392
    %v3128 = vpack.c.b16 %v2408, %v2393
    %v3129 = vpack.c.b16 %v2409, %v2394
    %v3130 = vpack.c.b16 %v2410, %v2395
    %v3131 = vpack.c.b16 %v2411, %v2396
    %v3132 = vpack.c.b16 %v2412, %v2397
    %v3133 = vpack.c.b16 %v2428, %v2413
    %v3134 = vpack.c.b16 %v2429, %v2414
    %v3135 = vpack.c.b16 %v2430, %v2415
    %v3136 = vpack.c.b16 %v2431, %v2416
    %v3137 = vpack.c.b16 %v2432, %v2417
    %v3138 = vpack.c.b16 %v2433, %v2418
    %v3139 = vpack.c.b16 %v2434, %v2419
    %v3140 = vpack.c.b16 %v2435, %v2420
    %v3141 = vpack.c.b16 %v2436, %v2421
    %v3142 = vpack.c.b16 %v2437, %v2422
    %v3143 = vpack.c.b16 %v2438, %v2423
    %v3144 = vpack.c.b16 %v2439, %v2424
    %v3145 = vpack.c.b16 %v2440, %v2425
    %v3146 = vpack.c.b16 %v2441, %v2426
    %v3147 = vpack.c.b16 %v2442, %v2427
    %v3148 = vpack.c.b16 %v2458, %v2443
    %v3149 = vpack.c.b16 %v2459, %v2444
    %v3150 = vpack.c.b16 %v2460, %v2445
    %v3151 = vpack.c.b16 %v2461, %v2446
    %v3152 = vpack.c.b16 %v2462, %v2447
    %v3153 = vpack.c.b16 %v2463, %v2448
    %v3154 = vpack.c.b16 %v2464, %v2449
    %v3155 = vpack.c.b16 %v2465, %v2450
    %v3156 = vpack.c.b16 %v2466, %v2451
    %v3157 = vpack.c.b16 %v2467, %v2452
    %v3158 = vpack.c.b16 %v2468, %v2453
    %v3159 = vpack.c.b16 %v2469, %v2454
    %v3160 = vpack.c.b16 %v2470, %v2455
    %v3161 = vpack.c.b16 %v2471, %v2456
    %v3162 = vpack.c.b16 %v2472, %v2457
    %v3163 = vpack.c.b16 %v2488, %v2473
    %v3164 = vpack.c.b16 %v2489, %v2474
    %v3165 = vpack.c.b16 %v2490, %v2475
    %v3166 = vpack.c.b16 %v2491, %v2476
    %v3167 = vpack.c.b16 %v2492, %v2477
    %v3168 = vpack.c.b16 %v2493, %v2478
    %v3169 = vpack.c.b16 %v2494, %v2479
    %v3170 = vpack.c.b16 %v2495, %v2480
    %v3171 = vpack.c.b16 %v2496, %v2481
    %v3172 = vpack.c.b16 %v2497, %v2482
    %v3173 = vpack.c.b16 %v2498, %v2483
    %v3174 = vpack.c.b16 %v2499, %v2484
    %v3175 = vpack.c.b16 %v2500, %v2485
    %v3176 = vpack.c.b16 %v2501, %v2486
    %v3177 = vpack.c.b16 %v2502, %v2487
    %v3178 = vpack.c.b16 %v2518, %v2503
    %v3179 = vpack.c.b16 %v2519, %v2504
    %v3180 = vpack.c.b16 %v2520, %v2505
    %v3181 = vpack.c.b16 %v2521, %v2506
    %v3182 = vpack.c.b16 %v2522, %v2507
    %v3183 = vpack.c.b16 %v2523, %v2508
    %v3184 = vpack.c.b16 %v2524, %v2509
    %v3185 = vpack.c.b16 %v2525, %v2510
    %v3186 = vpack.c.b16 %v2526, %v2511
    %v3187 = vpack.c.b16 %v2527, %v2512
    %v3188 = vpack.c.b16 %v2528, %v2513
    %v3189 = vpack.c.b16 %v2529, %v2514
    %v3190 = vpack.c.b16 %v2530, %v2515
    %v3191 = vpack.c.b16 %v2531, %v2516
    %v3192 = vpack.c.b16 %v2532, %v2517
    %v3193 = vpack.c.b16 %v2548, %v2533
    %v3194 = vpack.c.b16 %v2549, %v2534
    %v3195 = vpack.c.b16 %v2550, %v2535
    %v3196 = vpack.c.b16 %v2551, %v2536
    %v3197 = vpack.c.b16 %v2552, %v2537
    %v3198 = vpack.c.b16 %v2553, %v2538
    %v3199 = vpack.c.b16 %v2554, %v2539
    %v3200 = vpack.c.b16 %v2555, %v2540
    %v3201 = vpack.c.b16 %v2556, %v2541
    %v3202 = vpack.c.b16 %v2557, %v2542
    %v3203 = vpack.c.b16 %v2558, %v2543
    %v3204 = vpack.c.b16 %v2559, %v2544
    %v3205 = vpack.c.b16 %v2560, %v2545
    %v3206 = vpack.c.b16 %v2561, %v2546
    %v3207 = vpack.c.b16 %v2562, %v2547
    %v3208 = vpack.c.b16 %v2578, %v2563
    %v3209 = vpack.c.b16 %v2579, %v2564
    %v3210 = vpack.c.b16 %v2580, %v2565
    %v3211 = vpack.c.b16 %v2581, %v2566
    %v3212 = vpack.c.b16 %v2582, %v2567
    %v3213 = vpack.c.b16 %v2583, %v2568
    %v3214 = vpack.c.b16 %v2584, %v2569
    %v3215 = vpack.c.b16 %v2585, %v2570
    %v3216 = vpack.c.b16 %v2586, %v2571
    %v3217 = vpack.c.b16 %v2587, %v2572
    %v3218 = vpack.c.b16 %v2588, %v2573
    %v3219 = vpack.c.b16 %v2589, %v2574
    %v3220 = vpack.c.b16 %v2590, %v2575
    %v3221 = vpack.c.b16 %v2591, %v2576
    %v3222 = vpack.c.b16 %v2592, %v2577
    %v3223 = vpack.c.b16 %v2608, %v2593
    %v3224 = vpack.c.b16 %v2609, %v2594
    %v3225 = vpack.c.b16 %v2610, %v2595
    %v3226 = vpack.c.b16 %v2611, %v2596
    %v3227 = vpack.c.b16 %v2612, %v2597
    %v3228 = vpack.c.b16 %v2613, %v2598
    %v3229 = vpack.c.b16 %v2614, %v2599
    %v3230 = vpack.c.b16 %v2615, %v2600
    %v3231 = vpack.c.b16 %v2616, %v2601
    %v3232 = vpack.c.b16 %v2617, %v2602
    %v3233 = vpack.c.b16 %v2618, %v2603
    %v3234 = vpack.c.b16 %v2619, %v2604
    %v3235 = vpack.c.b16 %v2620, %v2605
    %v3236 = vpack.c.b16 %v2621, %v2606
    %v3237 = vpack.c.b16 %v2622, %v2607
    %v3238 = vpack.c.b16 %v2638, %v2623
    %v3239 = vpack.c.b16 %v2639, %v2624
    %v3240 = vpack.c.b16 %v2640, %v2625
    %v3241 = vpack.c.b16 %v2641, %v2626
    %v3242 = vpack.c.b16 %v2642, %v2627
    %v3243 = vpack.c.b16 %v2643, %v2628
    %v3244 = vpack.c.b16 %v2644, %v2629
    %v3245 = vpack.c.b16 %v2645, %v2630
    %v3246 = vpack.c.b16 %v2646, %v2631
    %v3247 = vpack.c.b16 %v2647, %v2632
    %v3248 = vpack.c.b16 %v2648, %v2633
    %v3249 = vpack.c.b16 %v2649, %v2634
    %v3250 = vpack.c.b16 %v2650, %v2635
    %v3251 = vpack.c.b16 %v2651, %v2636
    %v3252 = vpack.c.b16 %v2652, %v2637
    %3853 = vmatprep.subr.bf16.mxu0 %v2759
    %3854 = vmatpush1.bf16.msra.mxu0 %v2758
    %3855 = vmatprep.subr.bf16.mxu0 %v2744
    %3856 = vmatpush1.bf16.msra.mxu0 %v2743
    %3857 = vmatprep.subr.bf16.mxu0 %v2729
    %3858 = vmatpush1.bf16.msra.mxu0 %v2728
    %3859 = vmatprep.subr.bf16.mxu0 %v2714
    %3860 = vmatpush1.bf16.msra.mxu0 %v2713
    %3861 = vmatprep.subr.bf16.mxu0 %v2699
    %3862 = vmatpush1.bf16.msra.mxu0 %v2698
    %3863 = vmatprep.subr.bf16.mxu0 %v2684
    %3864 = vmatpush1.bf16.msra.mxu0 %v2683
    %3865 = vmatprep.subr.bf16.mxu0 %v2669
    %3866 = vmatpush1.bf16.msra.mxu0 %v2668
    %3867 = vmatprep.subr.bf16.mxu0 %v2654
    %3868 = vmatpush1.bf16.msra.mxu0 %v2653
    %3869 = vmatprep.subr.bf16.mxu0 %v2879
    %3870 = vmatpush2.bf16.msra.mxu0 %v2878
    %3871 = vmatprep.subr.bf16.mxu0 %v2864
    %3872 = vmatpush2.bf16.msra.mxu0 %v2863
    %3873 = vmatprep.subr.bf16.mxu0 %v2849
    %3874 = vmatpush2.bf16.msra.mxu0 %v2848
    %3875 = vmatprep.subr.bf16.mxu0 %v2834
    %3876 = vmatpush2.bf16.msra.mxu0 %v2833
    %3877 = vmatprep.subr.bf16.mxu0 %v2819
    %3878 = vmatpush2.bf16.msra.mxu0 %v2818
    %3879 = vmatprep.subr.bf16.mxu0 %v2804
    %3880 = vmatpush2.bf16.msra.mxu0 %v2803
    %3881 = vmatprep.subr.bf16.mxu0 %v2789
    %3882 = vmatpush2.bf16.msra.mxu0 %v2788
    %3883 = vmatprep.subr.bf16.mxu0 %v2774
    %3884 = vmatpush2.bf16.msra.mxu0 %v2773
    %3885 = vmatprep.mubr.bf16.mxu0 %v90
    %3886 = vmatmul.mubr.bf16.gmra.mxu0 %v89
    %v3887 = vpop.f32.mrf.mxu0
    %v3888 = vadd.f32 %v741, %v3887
    %v3889 = vpop.f32.mrf.mxu0
    %v3890 = vadd.f32 %v745, %v3889
    %v3891 = vpop.f32.mrf.mxu0
    %v3892 = vpop.f32.mrf.mxu0
    %3893 = vdwg.mxu0
    %3894 = vmatprep.subr.bf16.mxu0 %v2999
    %3895 = vmatpush1.bf16.msra.mxu0 %v2998
    %3896 = vmatprep.subr.bf16.mxu0 %v2984
    %3897 = vmatpush1.bf16.msra.mxu0 %v2983
    %3898 = vmatprep.subr.bf16.mxu0 %v2969
    %3899 = vmatpush1.bf16.msra.mxu0 %v2968
    %3900 = vmatprep.subr.bf16.mxu0 %v2954
    %3901 = vmatpush1.bf16.msra.mxu0 %v2953
    %3902 = vmatprep.subr.bf16.mxu0 %v2939
    %3903 = vmatpush1.bf16.msra.mxu0 %v2938
    %3904 = vmatprep.subr.bf16.mxu0 %v2924
    %3905 = vmatpush1.bf16.msra.mxu0 %v2923
    %3906 = vmatprep.subr.bf16.mxu0 %v2909
    %3907 = vmatpush1.bf16.msra.mxu0 %v2908
    %3908 = vmatprep.subr.bf16.mxu0 %v2894
    %3909 = vmatpush1.bf16.msra.mxu0 %v2893
    %3910 = vmatprep.subr.bf16.mxu0 %v3119
    %3911 = vmatpush2.bf16.msra.mxu0 %v3118
    %3912 = vmatprep.subr.bf16.mxu0 %v3104
    %3913 = vmatpush2.bf16.msra.mxu0 %v3103
    %3914 = vmatprep.subr.bf16.mxu0 %v3089
    %3915 = vmatpush2.bf16.msra.mxu0 %v3088
    %3916 = vmatprep.subr.bf16.mxu0 %v3074
    %3917 = vmatpush2.bf16.msra.mxu0 %v3073
    %3918 = vmatprep.subr.bf16.mxu0 %v3059
    %3919 = vmatpush2.bf16.msra.mxu0 %v3058
    %3920 = vmatprep.subr.bf16.mxu0 %v3044
    %3921 = vmatpush2.bf16.msra.mxu0 %v3043
    %3922 = vmatprep.subr.bf16.mxu0 %v3029
    %3923 = vmatpush2.bf16.msra.mxu0 %v3028
    %3924 = vmatprep.subr.bf16.mxu0 %v3014
    %3925 = vmatpush2.bf16.msra.mxu0 %v3013
    %3926 = vmatprep.mubr.bf16.mxu0 %v92
    %3927 = vmatmul.mubr.bf16.gmra.mxu0 %v91
    %v3928 = vpop.f32.mrf.mxu0
    %v3929 = vadd.f32 %v3888, %v3928
    %v3930 = vpop.f32.mrf.mxu0
    %v3931 = vadd.f32 %v3890, %v3930
    %v3932 = vpop.f32.mrf.mxu0
    %v3933 = vpop.f32.mrf.mxu0
    %3934 = vdwg.mxu0
    %3935 = vmatprep.subr.bf16.mxu0 %v3239
    %3936 = vmatpush1.bf16.msra.mxu0 %v3238
    %3937 = vmatprep.subr.bf16.mxu0 %v3224
    %3938 = vmatpush1.bf16.msra.mxu0 %v3223
    %3939 = vmatprep.subr.bf16.mxu0 %v3209
    %3940 = vmatpush1.bf16.msra.mxu0 %v3208
    %3941 = vmatprep.subr.bf16.mxu0 %v3194
    %3942 = vmatpush1.bf16.msra.mxu0 %v3193
    %3943 = vmatprep.subr.bf16.mxu0 %v3179
    %3944 = vmatpush1.bf16.msra.mxu0 %v3178
    %3945 = vmatprep.subr.bf16.mxu0 %v3164
    %3946 = vmatpush1.bf16.msra.mxu0 %v3163
    %3947 = vmatprep.subr.bf16.mxu0 %v3149
    %3948 = vmatpush1.bf16.msra.mxu0 %v3148
    %3949 = vmatprep.subr.bf16.mxu0 %v3134
    %3950 = vmatpush1.bf16.msra.mxu0 %v3133
    %3951 = vmatprep.subr.bf16.mxu0 0
    %3952 = vmatpush2.bf16.msra.mxu0 0
    %3953 = vmatprep.subr.bf16.mxu0 0
    %3954 = vmatpush2.bf16.msra.mxu0 0
    %3955 = vmatprep.subr.bf16.mxu0 0
    %3956 = vmatpush2.bf16.msra.mxu0 0
    %3957 = vmatprep.subr.bf16.mxu0 0
    %3958 = vmatpush2.bf16.msra.mxu0 0
    %3959 = vmatprep.subr.bf16.mxu0 0
    %3960 = vmatpush2.bf16.msra.mxu0 0
    %3961 = vmatprep.subr.bf16.mxu0 0
    %3962 = vmatpush2.bf16.msra.mxu0 0
    %3963 = vmatprep.subr.bf16.mxu0 0
    %3964 = vmatpush2.bf16.msra.mxu0 0
    %3965 = vmatprep.subr.bf16.mxu0 0
    %3966 = vmatpush2.bf16.msra.mxu0 0
    %3967 = vmatprep.mubr.bf16.mxu0 0
    %3968 = vmatmul.mubr.bf16.gmra.mxu0 %v93
    %v3969 = vpop.f32.mrf.mxu0
    %v3970 = vadd.f32 %v3929, %v3969
    %v3971 = vpop.f32.mrf.mxu0
    %v3972 = vadd.f32 %v3931, %v3971
    %v3973 = vpop.f32.mrf.mxu0
    %v3974 = vpop.f32.mrf.mxu0
    %3975 = vdwg.mxu0
    %3976 = vmatprep.subr.bf16.mxu0 %v2761
    %3977 = vmatpush1.bf16.msra.mxu0 %v2760
    %3978 = vmatprep.subr.bf16.mxu0 %v2746
    %3979 = vmatpush1.bf16.msra.mxu0 %v2745
    %3980 = vmatprep.subr.bf16.mxu0 %v2731
    %3981 = vmatpush1.bf16.msra.mxu0 %v2730
    %3982 = vmatprep.subr.bf16.mxu0 %v2716
    %3983 = vmatpush1.bf16.msra.mxu0 %v2715
    %3984 = vmatprep.subr.bf16.mxu0 %v2701
    %3985 = vmatpush1.bf16.msra.mxu0 %v2700
    %3986 = vmatprep.subr.bf16.mxu0 %v2686
    %3987 = vmatpush1.bf16.msra.mxu0 %v2685
    %3988 = vmatprep.subr.bf16.mxu0 %v2671
    %3989 = vmatpush1.bf16.msra.mxu0 %v2670
    %3990 = vmatprep.subr.bf16.mxu0 %v2656
    %3991 = vmatpush1.bf16.msra.mxu0 %v2655
    %3992 = vmatprep.subr.bf16.mxu0 %v2881
    %3993 = vmatpush2.bf16.msra.mxu0 %v2880
    %3994 = vmatprep.subr.bf16.mxu0 %v2866
    %3995 = vmatpush2.bf16.msra.mxu0 %v2865
    %3996 = vmatprep.subr.bf16.mxu0 %v2851
    %3997 = vmatpush2.bf16.msra.mxu0 %v2850
    %3998 = vmatprep.subr.bf16.mxu0 %v2836
    %3999 = vmatpush2.bf16.msra.mxu0 %v2835
    %4000 = vmatprep.subr.bf16.mxu0 %v2821
    %4001 = vmatpush2.bf16.msra.mxu0 %v2820
    %4002 = vmatprep.subr.bf16.mxu0 %v2806
    %4003 = vmatpush2.bf16.msra.mxu0 %v2805
    %4004 = vmatprep.subr.bf16.mxu0 %v2791
    %4005 = vmatpush2.bf16.msra.mxu0 %v2790
    %4006 = vmatprep.subr.bf16.mxu0 %v2776
    %4007 = vmatpush2.bf16.msra.mxu0 %v2775
    %4008 = vmatprep.mubr.bf16.mxu0 %v90
    %4009 = vmatmul.mubr.bf16.gmra.mxu0 %v89
    %v4010 = vpop.f32.mrf.mxu0
    %v4011 = vadd.f32 %v749, %v4010
    %v4012 = vpop.f32.mrf.mxu0
    %v4013 = vadd.f32 %v753, %v4012
    %v4014 = vpop.f32.mrf.mxu0
    %v4015 = vpop.f32.mrf.mxu0
    %4016 = vdwg.mxu0
    %4017 = vmatprep.subr.bf16.mxu0 %v3001
    %4018 = vmatpush1.bf16.msra.mxu0 %v3000
    %4019 = vmatprep.subr.bf16.mxu0 %v2986
    %4020 = vmatpush1.bf16.msra.mxu0 %v2985
    %4021 = vmatprep.subr.bf16.mxu0 %v2971
    %4022 = vmatpush1.bf16.msra.mxu0 %v2970
    %4023 = vmatprep.subr.bf16.mxu0 %v2956
    %4024 = vmatpush1.bf16.msra.mxu0 %v2955
    %4025 = vmatprep.subr.bf16.mxu0 %v2941
    %4026 = vmatpush1.bf16.msra.mxu0 %v2940
    %4027 = vmatprep.subr.bf16.mxu0 %v2926
    %4028 = vmatpush1.bf16.msra.mxu0 %v2925
    %4029 = vmatprep.subr.bf16.mxu0 %v2911
    %4030 = vmatpush1.bf16.msra.mxu0 %v2910
    %4031 = vmatprep.subr.bf16.mxu0 %v2896
    %4032 = vmatpush1.bf16.msra.mxu0 %v2895
    %4033 = vmatprep.subr.bf16.mxu0 %v3121
    %4034 = vmatpush2.bf16.msra.mxu0 %v3120
    %4035 = vmatprep.subr.bf16.mxu0 %v3106
    %4036 = vmatpush2.bf16.msra.mxu0 %v3105
    %4037 = vmatprep.subr.bf16.mxu0 %v3091
    %4038 = vmatpush2.bf16.msra.mxu0 %v3090
    %4039 = vmatprep.subr.bf16.mxu0 %v3076
    %4040 = vmatpush2.bf16.msra.mxu0 %v3075
    %4041 = vmatprep.subr.bf16.mxu0 %v3061
    %4042 = vmatpush2.bf16.msra.mxu0 %v3060
    %4043 = vmatprep.subr.bf16.mxu0 %v3046
    %4044 = vmatpush2.bf16.msra.mxu0 %v3045
    %4045 = vmatprep.subr.bf16.mxu0 %v3031
    %4046 = vmatpush2.bf16.msra.mxu0 %v3030
    %4047 = vmatprep.subr.bf16.mxu0 %v3016
    %4048 = vmatpush2.bf16.msra.mxu0 %v3015
    %4049 = vmatprep.mubr.bf16.mxu0 %v92
    %4050 = vmatmul.mubr.bf16.gmra.mxu0 %v91
    %v4051 = vpop.f32.mrf.mxu0
    %v4052 = vadd.f32 %v4011, %v4051
    %v4053 = vpop.f32.mrf.mxu0
    %v4054 = vadd.f32 %v4013, %v4053
    %v4055 = vpop.f32.mrf.mxu0
    %v4056 = vpop.f32.mrf.mxu0
    %4057 = vdwg.mxu0
    %4058 = vmatprep.subr.bf16.mxu0 %v3241
    %4059 = vmatpush1.bf16.msra.mxu0 %v3240
    %4060 = vmatprep.subr.bf16.mxu0 %v3226
    %4061 = vmatpush1.bf16.msra.mxu0 %v3225
    %4062 = vmatprep.subr.bf16.mxu0 %v3211
    %4063 = vmatpush1.bf16.msra.mxu0 %v3210
    %4064 = vmatprep.subr.bf16.mxu0 %v3196
    %4065 = vmatpush1.bf16.msra.mxu0 %v3195
    %4066 = vmatprep.subr.bf16.mxu0 %v3181
    %4067 = vmatpush1.bf16.msra.mxu0 %v3180
    %4068 = vmatprep.subr.bf16.mxu0 %v3166
    %4069 = vmatpush1.bf16.msra.mxu0 %v3165
    %4070 = vmatprep.subr.bf16.mxu0 %v3151
    %4071 = vmatpush1.bf16.msra.mxu0 %v3150
    %4072 = vmatprep.subr.bf16.mxu0 %v3136
    %4073 = vmatpush1.bf16.msra.mxu0 %v3135
    %4074 = vmatprep.subr.bf16.mxu0 0
    %4075 = vmatpush2.bf16.msra.mxu0 0
    %4076 = vmatprep.subr.bf16.mxu0 0
    %4077 = vmatpush2.bf16.msra.mxu0 0
    %4078 = vmatprep.subr.bf16.mxu0 0
    %4079 = vmatpush2.bf16.msra.mxu0 0
    %4080 = vmatprep.subr.bf16.mxu0 0
    %4081 = vmatpush2.bf16.msra.mxu0 0
    %4082 = vmatprep.subr.bf16.mxu0 0
    %4083 = vmatpush2.bf16.msra.mxu0 0
    %4084 = vmatprep.subr.bf16.mxu0 0
    %4085 = vmatpush2.bf16.msra.mxu0 0
    %4086 = vmatprep.subr.bf16.mxu0 0
    %4087 = vmatpush2.bf16.msra.mxu0 0
    %4088 = vmatprep.subr.bf16.mxu0 0
    %4089 = vmatpush2.bf16.msra.mxu0 0
    %4090 = vmatprep.mubr.bf16.mxu0 0
    %4091 = vmatmul.mubr.bf16.gmra.mxu0 %v93
    %v4092 = vpop.f32.mrf.mxu0
    %v4093 = vadd.f32 %v4052, %v4092
    %v4094 = vpop.f32.mrf.mxu0
    %v4095 = vadd.f32 %v4054, %v4094
    %v4096 = vpop.f32.mrf.mxu0
    %v4097 = vpop.f32.mrf.mxu0
    %4098 = vdwg.mxu0
    %4099 = vmatprep.subr.bf16.mxu0 %v2763
    %4100 = vmatpush1.bf16.msra.mxu0 %v2762
    %4101 = vmatprep.subr.bf16.mxu0 %v2748
    %4102 = vmatpush1.bf16.msra.mxu0 %v2747
    %4103 = vmatprep.subr.bf16.mxu0 %v2733
    %4104 = vmatpush1.bf16.msra.mxu0 %v2732
    %4105 = vmatprep.subr.bf16.mxu0 %v2718
    %4106 = vmatpush1.bf16.msra.mxu0 %v2717
    %4107 = vmatprep.subr.bf16.mxu0 %v2703
    %4108 = vmatpush1.bf16.msra.mxu0 %v2702
    %4109 = vmatprep.subr.bf16.mxu0 %v2688
    %4110 = vmatpush1.bf16.msra.mxu0 %v2687
    %4111 = vmatprep.subr.bf16.mxu0 %v2673
    %4112 = vmatpush1.bf16.msra.mxu0 %v2672
    %4113 = vmatprep.subr.bf16.mxu0 %v2658
    %4114 = vmatpush1.bf16.msra.mxu0 %v2657
    %4115 = vmatprep.subr.bf16.mxu0 %v2883
    %4116 = vmatpush2.bf16.msra.mxu0 %v2882
    %4117 = vmatprep.subr.bf16.mxu0 %v2868
    %4118 = vmatpush2.bf16.msra.mxu0 %v2867
    %4119 = vmatprep.subr.bf16.mxu0 %v2853
    %4120 = vmatpush2.bf16.msra.mxu0 %v2852
    %4121 = vmatprep.subr.bf16.mxu0 %v2838
    %4122 = vmatpush2.bf16.msra.mxu0 %v2837
    %4123 = vmatprep.subr.bf16.mxu0 %v2823
    %4124 = vmatpush2.bf16.msra.mxu0 %v2822
    %4125 = vmatprep.subr.bf16.mxu0 %v2808
    %4126 = vmatpush2.bf16.msra.mxu0 %v2807
    %4127 = vmatprep.subr.bf16.mxu0 %v2793
    %4128 = vmatpush2.bf16.msra.mxu0 %v2792
    %4129 = vmatprep.subr.bf16.mxu0 %v2778
    %4130 = vmatpush2.bf16.msra.mxu0 %v2777
    %4131 = vmatprep.mubr.bf16.mxu0 %v90
    %4132 = vmatmul.mubr.bf16.gmra.mxu0 %v89
    %v4133 = vpop.f32.mrf.mxu0
    %v4134 = vadd.f32 %v757, %v4133
    %v4135 = vpop.f32.mrf.mxu0
    %v4136 = vadd.f32 %v761, %v4135
    %v4137 = vpop.f32.mrf.mxu0
    %v4138 = vpop.f32.mrf.mxu0
    %4139 = vdwg.mxu0
    %4140 = vmatprep.subr.bf16.mxu0 %v3003
    %4141 = vmatpush1.bf16.msra.mxu0 %v3002
    %4142 = vmatprep.subr.bf16.mxu0 %v2988
    %4143 = vmatpush1.bf16.msra.mxu0 %v2987
    %4144 = vmatprep.subr.bf16.mxu0 %v2973
    %4145 = vmatpush1.bf16.msra.mxu0 %v2972
    %4146 = vmatprep.subr.bf16.mxu0 %v2958
    %4147 = vmatpush1.bf16.msra.mxu0 %v2957
    %4148 = vmatprep.subr.bf16.mxu0 %v2943
    %4149 = vmatpush1.bf16.msra.mxu0 %v2942
    %4150 = vmatprep.subr.bf16.mxu0 %v2928
    %4151 = vmatpush1.bf16.msra.mxu0 %v2927
    %4152 = vmatprep.subr.bf16.mxu0 %v2913
    %4153 = vmatpush1.bf16.msra.mxu0 %v2912
    %4154 = vmatprep.subr.bf16.mxu0 %v2898
    %4155 = vmatpush1.bf16.msra.mxu0 %v2897
    %4156 = vmatprep.subr.bf16.mxu0 %v3123
    %4157 = vmatpush2.bf16.msra.mxu0 %v3122
    %4158 = vmatprep.subr.bf16.mxu0 %v3108
    %4159 = vmatpush2.bf16.msra.mxu0 %v3107
    %4160 = vmatprep.subr.bf16.mxu0 %v3093
    %4161 = vmatpush2.bf16.msra.mxu0 %v3092
    %4162 = vmatprep.subr.bf16.mxu0 %v3078
    %4163 = vmatpush2.bf16.msra.mxu0 %v3077
    %4164 = vmatprep.subr.bf16.mxu0 %v3063
    %4165 = vmatpush2.bf16.msra.mxu0 %v3062
    %4166 = vmatprep.subr.bf16.mxu0 %v3048
    %4167 = vmatpush2.bf16.msra.mxu0 %v3047
    %4168 = vmatprep.subr.bf16.mxu0 %v3033
    %4169 = vmatpush2.bf16.msra.mxu0 %v3032
    %4170 = vmatprep.subr.bf16.mxu0 %v3018
    %4171 = vmatpush2.bf16.msra.mxu0 %v3017
    %4172 = vmatprep.mubr.bf16.mxu0 %v92
    %4173 = vmatmul.mubr.bf16.gmra.mxu0 %v91
    %v4174 = vpop.f32.mrf.mxu0
    %v4175 = vadd.f32 %v4134, %v4174
    %v4176 = vpop.f32.mrf.mxu0
    %v4177 = vadd.f32 %v4136, %v4176
    %v4178 = vpop.f32.mrf.mxu0
    %v4179 = vpop.f32.mrf.mxu0
    %4180 = vdwg.mxu0
    %4181 = vmatprep.subr.bf16.mxu0 %v3243
    %4182 = vmatpush1.bf16.msra.mxu0 %v3242
    %4183 = vmatprep.subr.bf16.mxu0 %v3228
    %4184 = vmatpush1.bf16.msra.mxu0 %v3227
    %4185 = vmatprep.subr.bf16.mxu0 %v3213
    %4186 = vmatpush1.bf16.msra.mxu0 %v3212
    %4187 = vmatprep.subr.bf16.mxu0 %v3198
    %4188 = vmatpush1.bf16.msra.mxu0 %v3197
    %4189 = vmatprep.subr.bf16.mxu0 %v3183
    %4190 = vmatpush1.bf16.msra.mxu0 %v3182
    %4191 = vmatprep.subr.bf16.mxu0 %v3168
    %4192 = vmatpush1.bf16.msra.mxu0 %v3167
    %4193 = vmatprep.subr.bf16.mxu0 %v3153
    %4194 = vmatpush1.bf16.msra.mxu0 %v3152
    %4195 = vmatprep.subr.bf16.mxu0 %v3138
    %4196 = vmatpush1.bf16.msra.mxu0 %v3137
    %4197 = vmatprep.subr.bf16.mxu0 0
    %4198 = vmatpush2.bf16.msra.mxu0 0
    %4199 = vmatprep.subr.bf16.mxu0 0
    %4200 = vmatpush2.bf16.msra.mxu0 0
    %4201 = vmatprep.subr.bf16.mxu0 0
    %4202 = vmatpush2.bf16.msra.mxu0 0
    %4203 = vmatprep.subr.bf16.mxu0 0
    %4204 = vmatpush2.bf16.msra.mxu0 0
    %4205 = vmatprep.subr.bf16.mxu0 0
    %4206 = vmatpush2.bf16.msra.mxu0 0
    %4207 = vmatprep.subr.bf16.mxu0 0
    %4208 = vmatpush2.bf16.msra.mxu0 0
    %4209 = vmatprep.subr.bf16.mxu0 0
    %4210 = vmatpush2.bf16.msra.mxu0 0
    %4211 = vmatprep.subr.bf16.mxu0 0
    %4212 = vmatpush2.bf16.msra.mxu0 0
    %4213 = vmatprep.mubr.bf16.mxu0 0
    %4214 = vmatmul.mubr.bf16.gmra.mxu0 %v93
    %v4215 = vpop.f32.mrf.mxu0
    %v4216 = vadd.f32 %v4175, %v4215
    %v4217 = vpop.f32.mrf.mxu0
    %v4218 = vadd.f32 %v4177, %v4217
    %v4219 = vpop.f32.mrf.mxu0
    %v4220 = vpop.f32.mrf.mxu0
    %4221 = vdwg.mxu0
    %4222 = vmatprep.subr.bf16.mxu0 %v2765
    %4223 = vmatpush1.bf16.msra.mxu0 %v2764
    %4224 = vmatprep.subr.bf16.mxu0 %v2750
    %4225 = vmatpush1.bf16.msra.mxu0 %v2749
    %4226 = vmatprep.subr.bf16.mxu0 %v2735
    %4227 = vmatpush1.bf16.msra.mxu0 %v2734
    %4228 = vmatprep.subr.bf16.mxu0 %v2720
    %4229 = vmatpush1.bf16.msra.mxu0 %v2719
    %4230 = vmatprep.subr.bf16.mxu0 %v2705
    %4231 = vmatpush1.bf16.msra.mxu0 %v2704
    %4232 = vmatprep.subr.bf16.mxu0 %v2690
    %4233 = vmatpush1.bf16.msra.mxu0 %v2689
    %4234 = vmatprep.subr.bf16.mxu0 %v2675
    %4235 = vmatpush1.bf16.msra.mxu0 %v2674
    %4236 = vmatprep.subr.bf16.mxu0 %v2660
    %4237 = vmatpush1.bf16.msra.mxu0 %v2659
    %4238 = vmatprep.subr.bf16.mxu0 %v2885
    %4239 = vmatpush2.bf16.msra.mxu0 %v2884
    %4240 = vmatprep.subr.bf16.mxu0 %v2870
    %4241 = vmatpush2.bf16.msra.mxu0 %v2869
    %4242 = vmatprep.subr.bf16.mxu0 %v2855
    %4243 = vmatpush2.bf16.msra.mxu0 %v2854
    %4244 = vmatprep.subr.bf16.mxu0 %v2840
    %4245 = vmatpush2.bf16.msra.mxu0 %v2839
    %4246 = vmatprep.subr.bf16.mxu0 %v2825
    %4247 = vmatpush2.bf16.msra.mxu0 %v2824
    %4248 = vmatprep.subr.bf16.mxu0 %v2810
    %4249 = vmatpush2.bf16.msra.mxu0 %v2809
    %4250 = vmatprep.subr.bf16.mxu0 %v2795
    %4251 = vmatpush2.bf16.msra.mxu0 %v2794
    %4252 = vmatprep.subr.bf16.mxu0 %v2780
    %4253 = vmatpush2.bf16.msra.mxu0 %v2779
    %4254 = vmatprep.mubr.bf16.mxu0 %v90
    %4255 = vmatmul.mubr.bf16.gmra.mxu0 %v89
    %v4256 = vpop.f32.mrf.mxu0
    %v4257 = vadd.f32 %v765, %v4256
    %v4258 = vpop.f32.mrf.mxu0
    %v4259 = vadd.f32 %v769, %v4258
    %v4260 = vpop.f32.mrf.mxu0
    %v4261 = vpop.f32.mrf.mxu0
    %4262 = vdwg.mxu0
    %4263 = vmatprep.subr.bf16.mxu0 %v3005
    %4264 = vmatpush1.bf16.msra.mxu0 %v3004
    %4265 = vmatprep.subr.bf16.mxu0 %v2990
    %4266 = vmatpush1.bf16.msra.mxu0 %v2989
    %4267 = vmatprep.subr.bf16.mxu0 %v2975
    %4268 = vmatpush1.bf16.msra.mxu0 %v2974
    %4269 = vmatprep.subr.bf16.mxu0 %v2960
    %4270 = vmatpush1.bf16.msra.mxu0 %v2959
    %4271 = vmatprep.subr.bf16.mxu0 %v2945
    %4272 = vmatpush1.bf16.msra.mxu0 %v2944
    %4273 = vmatprep.subr.bf16.mxu0 %v2930
    %4274 = vmatpush1.bf16.msra.mxu0 %v2929
    %4275 = vmatprep.subr.bf16.mxu0 %v2915
    %4276 = vmatpush1.bf16.msra.mxu0 %v2914
    %4277 = vmatprep.subr.bf16.mxu0 %v2900
    %4278 = vmatpush1.bf16.msra.mxu0 %v2899
    %4279 = vmatprep.subr.bf16.mxu0 %v3125
    %4280 = vmatpush2.bf16.msra.mxu0 %v3124
    %4281 = vmatprep.subr.bf16.mxu0 %v3110
    %4282 = vmatpush2.bf16.msra.mxu0 %v3109
    %4283 = vmatprep.subr.bf16.mxu0 %v3095
    %4284 = vmatpush2.bf16.msra.mxu0 %v3094
    %4285 = vmatprep.subr.bf16.mxu0 %v3080
    %4286 = vmatpush2.bf16.msra.mxu0 %v3079
    %4287 = vmatprep.subr.bf16.mxu0 %v3065
    %4288 = vmatpush2.bf16.msra.mxu0 %v3064
    %4289 = vmatprep.subr.bf16.mxu0 %v3050
    %4290 = vmatpush2.bf16.msra.mxu0 %v3049
    %4291 = vmatprep.subr.bf16.mxu0 %v3035
    %4292 = vmatpush2.bf16.msra.mxu0 %v3034
    %4293 = vmatprep.subr.bf16.mxu0 %v3020
    %4294 = vmatpush2.bf16.msra.mxu0 %v3019
    %4295 = vmatprep.mubr.bf16.mxu0 %v92
    %4296 = vmatmul.mubr.bf16.gmra.mxu0 %v91
    %v4297 = vpop.f32.mrf.mxu0
    %v4298 = vadd.f32 %v4257, %v4297
    %v4299 = vpop.f32.mrf.mxu0
    %v4300 = vadd.f32 %v4259, %v4299
    %v4301 = vpop.f32.mrf.mxu0
    %v4302 = vpop.f32.mrf.mxu0
    %4303 = vdwg.mxu0
    %4304 = vmatprep.subr.bf16.mxu0 %v3245
    %4305 = vmatpush1.bf16.msra.mxu0 %v3244
    %4306 = vmatprep.subr.bf16.mxu0 %v3230
    %4307 = vmatpush1.bf16.msra.mxu0 %v3229
    %4308 = vmatprep.subr.bf16.mxu0 %v3215
    %4309 = vmatpush1.bf16.msra.mxu0 %v3214
    %4310 = vmatprep.subr.bf16.mxu0 %v3200
    %4311 = vmatpush1.bf16.msra.mxu0 %v3199
    %4312 = vmatprep.subr.bf16.mxu0 %v3185
    %4313 = vmatpush1.bf16.msra.mxu0 %v3184
    %4314 = vmatprep.subr.bf16.mxu0 %v3170
    %4315 = vmatpush1.bf16.msra.mxu0 %v3169
    %4316 = vmatprep.subr.bf16.mxu0 %v3155
    %4317 = vmatpush1.bf16.msra.mxu0 %v3154
    %4318 = vmatprep.subr.bf16.mxu0 %v3140
    %4319 = vmatpush1.bf16.msra.mxu0 %v3139
    %4320 = vmatprep.subr.bf16.mxu0 0
    %4321 = vmatpush2.bf16.msra.mxu0 0
    %4322 = vmatprep.subr.bf16.mxu0 0
    %4323 = vmatpush2.bf16.msra.mxu0 0
    %4324 = vmatprep.subr.bf16.mxu0 0
    %4325 = vmatpush2.bf16.msra.mxu0 0
    %4326 = vmatprep.subr.bf16.mxu0 0
    %4327 = vmatpush2.bf16.msra.mxu0 0
    %4328 = vmatprep.subr.bf16.mxu0 0
    %4329 = vmatpush2.bf16.msra.mxu0 0
    %4330 = vmatprep.subr.bf16.mxu0 0
    %4331 = vmatpush2.bf16.msra.mxu0 0
    %4332 = vmatprep.subr.bf16.mxu0 0
    %4333 = vmatpush2.bf16.msra.mxu0 0
    %4334 = vmatprep.subr.bf16.mxu0 0
    %4335 = vmatpush2.bf16.msra.mxu0 0
    %4336 = vmatprep.mubr.bf16.mxu0 0
    %4337 = vmatmul.mubr.bf16.gmra.mxu0 %v93
    %v4338 = vpop.f32.mrf.mxu0
    %v4339 = vadd.f32 %v4298, %v4338
    %v4340 = vpop.f32.mrf.mxu0
    %v4341 = vadd.f32 %v4300, %v4340
    %v4342 = vpop.f32.mrf.mxu0
    %v4343 = vpop.f32.mrf.mxu0
    %4344 = vdwg.mxu0
    %4345 = vmatprep.subr.bf16.mxu0 %v2767
    %4346 = vmatpush1.bf16.msra.mxu0 %v2766
    %4347 = vmatprep.subr.bf16.mxu0 %v2752
    %4348 = vmatpush1.bf16.msra.mxu0 %v2751
    %4349 = vmatprep.subr.bf16.mxu0 %v2737
    %4350 = vmatpush1.bf16.msra.mxu0 %v2736
    %4351 = vmatprep.subr.bf16.mxu0 %v2722
    %4352 = vmatpush1.bf16.msra.mxu0 %v2721
    %4353 = vmatprep.subr.bf16.mxu0 %v2707
    %4354 = vmatpush1.bf16.msra.mxu0 %v2706
    %4355 = vmatprep.subr.bf16.mxu0 %v2692
    %4356 = vmatpush1.bf16.msra.mxu0 %v2691
    %4357 = vmatprep.subr.bf16.mxu0 %v2677
    %4358 = vmatpush1.bf16.msra.mxu0 %v2676
    %4359 = vmatprep.subr.bf16.mxu0 %v2662
    %4360 = vmatpush1.bf16.msra.mxu0 %v2661
    %4361 = vmatprep.subr.bf16.mxu0 %v2887
    %4362 = vmatpush2.bf16.msra.mxu0 %v2886
    %4363 = vmatprep.subr.bf16.mxu0 %v2872
    %4364 = vmatpush2.bf16.msra.mxu0 %v2871
    %4365 = vmatprep.subr.bf16.mxu0 %v2857
    %4366 = vmatpush2.bf16.msra.mxu0 %v2856
    %4367 = vmatprep.subr.bf16.mxu0 %v2842
    %4368 = vmatpush2.bf16.msra.mxu0 %v2841
    %4369 = vmatprep.subr.bf16.mxu0 %v2827
    %4370 = vmatpush2.bf16.msra.mxu0 %v2826
    %4371 = vmatprep.subr.bf16.mxu0 %v2812
    %4372 = vmatpush2.bf16.msra.mxu0 %v2811
    %4373 = vmatprep.subr.bf16.mxu0 %v2797
    %4374 = vmatpush2.bf16.msra.mxu0 %v2796
    %4375 = vmatprep.subr.bf16.mxu0 %v2782
    %4376 = vmatpush2.bf16.msra.mxu0 %v2781
    %4377 = vmatprep.mubr.bf16.mxu0 %v90
    %4378 = vmatmul.mubr.bf16.gmra.mxu0 %v89
    %v4379 = vpop.f32.mrf.mxu0
    %v4380 = vadd.f32 %v773, %v4379
    %v4381 = vpop.f32.mrf.mxu0
    %v4382 = vadd.f32 %v777, %v4381
    %v4383 = vpop.f32.mrf.mxu0
    %v4384 = vpop.f32.mrf.mxu0
    %4385 = vdwg.mxu0
    %4386 = vmatprep.subr.bf16.mxu0 %v3007
    %4387 = vmatpush1.bf16.msra.mxu0 %v3006
    %4388 = vmatprep.subr.bf16.mxu0 %v2992
    %4389 = vmatpush1.bf16.msra.mxu0 %v2991
    %4390 = vmatprep.subr.bf16.mxu0 %v2977
    %4391 = vmatpush1.bf16.msra.mxu0 %v2976
    %4392 = vmatprep.subr.bf16.mxu0 %v2962
    %4393 = vmatpush1.bf16.msra.mxu0 %v2961
    %4394 = vmatprep.subr.bf16.mxu0 %v2947
    %4395 = vmatpush1.bf16.msra.mxu0 %v2946
    %4396 = vmatprep.subr.bf16.mxu0 %v2932
    %4397 = vmatpush1.bf16.msra.mxu0 %v2931
    %4398 = vmatprep.subr.bf16.mxu0 %v2917
    %4399 = vmatpush1.bf16.msra.mxu0 %v2916
    %4400 = vmatprep.subr.bf16.mxu0 %v2902
    %4401 = vmatpush1.bf16.msra.mxu0 %v2901
    %4402 = vmatprep.subr.bf16.mxu0 %v3127
    %4403 = vmatpush2.bf16.msra.mxu0 %v3126
    %4404 = vmatprep.subr.bf16.mxu0 %v3112
    %4405 = vmatpush2.bf16.msra.mxu0 %v3111
    %4406 = vmatprep.subr.bf16.mxu0 %v3097
    %4407 = vmatpush2.bf16.msra.mxu0 %v3096
    %4408 = vmatprep.subr.bf16.mxu0 %v3082
    %4409 = vmatpush2.bf16.msra.mxu0 %v3081
    %4410 = vmatprep.subr.bf16.mxu0 %v3067
    %4411 = vmatpush2.bf16.msra.mxu0 %v3066
    %4412 = vmatprep.subr.bf16.mxu0 %v3052
    %4413 = vmatpush2.bf16.msra.mxu0 %v3051
    %4414 = vmatprep.subr.bf16.mxu0 %v3037
    %4415 = vmatpush2.bf16.msra.mxu0 %v3036
    %4416 = vmatprep.subr.bf16.mxu0 %v3022
    %4417 = vmatpush2.bf16.msra.mxu0 %v3021
    %4418 = vmatprep.mubr.bf16.mxu0 %v92
    %4419 = vmatmul.mubr.bf16.gmra.mxu0 %v91
    %v4420 = vpop.f32.mrf.mxu0
    %v4421 = vadd.f32 %v4380, %v4420
    %v4422 = vpop.f32.mrf.mxu0
    %v4423 = vadd.f32 %v4382, %v4422
    %v4424 = vpop.f32.mrf.mxu0
    %v4425 = vpop.f32.mrf.mxu0
    %4426 = vdwg.mxu0
    %4427 = vmatprep.subr.bf16.mxu0 %v3247
    %4428 = vmatpush1.bf16.msra.mxu0 %v3246
    %4429 = vmatprep.subr.bf16.mxu0 %v3232
    %4430 = vmatpush1.bf16.msra.mxu0 %v3231
    %4431 = vmatprep.subr.bf16.mxu0 %v3217
    %4432 = vmatpush1.bf16.msra.mxu0 %v3216
    %4433 = vmatprep.subr.bf16.mxu0 %v3202
    %4434 = vmatpush1.bf16.msra.mxu0 %v3201
    %4435 = vmatprep.subr.bf16.mxu0 %v3187
    %4436 = vmatpush1.bf16.msra.mxu0 %v3186
    %4437 = vmatprep.subr.bf16.mxu0 %v3172
    %4438 = vmatpush1.bf16.msra.mxu0 %v3171
    %4439 = vmatprep.subr.bf16.mxu0 %v3157
    %4440 = vmatpush1.bf16.msra.mxu0 %v3156
    %4441 = vmatprep.subr.bf16.mxu0 %v3142
    %4442 = vmatpush1.bf16.msra.mxu0 %v3141
    %4443 = vmatprep.subr.bf16.mxu0 0
    %4444 = vmatpush2.bf16.msra.mxu0 0
    %4445 = vmatprep.subr.bf16.mxu0 0
    %4446 = vmatpush2.bf16.msra.mxu0 0
    %4447 = vmatprep.subr.bf16.mxu0 0
    %4448 = vmatpush2.bf16.msra.mxu0 0
    %4449 = vmatprep.subr.bf16.mxu0 0
    %4450 = vmatpush2.bf16.msra.mxu0 0
    %4451 = vmatprep.subr.bf16.mxu0 0
    %4452 = vmatpush2.bf16.msra.mxu0 0
    %4453 = vmatprep.subr.bf16.mxu0 0
    %4454 = vmatpush2.bf16.msra.mxu0 0
    %4455 = vmatprep.subr.bf16.mxu0 0
    %4456 = vmatpush2.bf16.msra.mxu0 0
    %4457 = vmatprep.subr.bf16.mxu0 0
    %4458 = vmatpush2.bf16.msra.mxu0 0
    %4459 = vmatprep.mubr.bf16.mxu0 0
    %4460 = vmatmul.mubr.bf16.gmra.mxu0 %v93
    %v4461 = vpop.f32.mrf.mxu0
    %v4462 = vadd.f32 %v4421, %v4461
    %v4463 = vpop.f32.mrf.mxu0
    %v4464 = vadd.f32 %v4423, %v4463
    %v4465 = vpop.f32.mrf.mxu0
    %v4466 = vpop.f32.mrf.mxu0
    %4467 = vdwg.mxu0
    %4468 = vmatprep.subr.bf16.mxu0 %v2769
    %4469 = vmatpush1.bf16.msra.mxu0 %v2768
    %4470 = vmatprep.subr.bf16.mxu0 %v2754
    %4471 = vmatpush1.bf16.msra.mxu0 %v2753
    %4472 = vmatprep.subr.bf16.mxu0 %v2739
    %4473 = vmatpush1.bf16.msra.mxu0 %v2738
    %4474 = vmatprep.subr.bf16.mxu0 %v2724
    %4475 = vmatpush1.bf16.msra.mxu0 %v2723
    %4476 = vmatprep.subr.bf16.mxu0 %v2709
    %4477 = vmatpush1.bf16.msra.mxu0 %v2708
    %4478 = vmatprep.subr.bf16.mxu0 %v2694
    %4479 = vmatpush1.bf16.msra.mxu0 %v2693
    %4480 = vmatprep.subr.bf16.mxu0 %v2679
    %4481 = vmatpush1.bf16.msra.mxu0 %v2678
    %4482 = vmatprep.subr.bf16.mxu0 %v2664
    %4483 = vmatpush1.bf16.msra.mxu0 %v2663
    %4484 = vmatprep.subr.bf16.mxu0 %v2889
    %4485 = vmatpush2.bf16.msra.mxu0 %v2888
    %4486 = vmatprep.subr.bf16.mxu0 %v2874
    %4487 = vmatpush2.bf16.msra.mxu0 %v2873
    %4488 = vmatprep.subr.bf16.mxu0 %v2859
    %4489 = vmatpush2.bf16.msra.mxu0 %v2858
    %4490 = vmatprep.subr.bf16.mxu0 %v2844
    %4491 = vmatpush2.bf16.msra.mxu0 %v2843
    %4492 = vmatprep.subr.bf16.mxu0 %v2829
    %4493 = vmatpush2.bf16.msra.mxu0 %v2828
    %4494 = vmatprep.subr.bf16.mxu0 %v2814
    %4495 = vmatpush2.bf16.msra.mxu0 %v2813
    %4496 = vmatprep.subr.bf16.mxu0 %v2799
    %4497 = vmatpush2.bf16.msra.mxu0 %v2798
    %4498 = vmatprep.subr.bf16.mxu0 %v2784
    %4499 = vmatpush2.bf16.msra.mxu0 %v2783
    %4500 = vmatprep.mubr.bf16.mxu0 %v90
    %4501 = vmatmul.mubr.bf16.gmra.mxu0 %v89
    %v4502 = vpop.f32.mrf.mxu0
    %v4503 = vadd.f32 %v781, %v4502
    %v4504 = vpop.f32.mrf.mxu0
    %v4505 = vadd.f32 %v785, %v4504
    %v4506 = vpop.f32.mrf.mxu0
    %v4507 = vpop.f32.mrf.mxu0
    %4508 = vdwg.mxu0
    %4509 = vmatprep.subr.bf16.mxu0 %v3009
    %4510 = vmatpush1.bf16.msra.mxu0 %v3008
    %4511 = vmatprep.subr.bf16.mxu0 %v2994
    %4512 = vmatpush1.bf16.msra.mxu0 %v2993
    %4513 = vmatprep.subr.bf16.mxu0 %v2979
    %4514 = vmatpush1.bf16.msra.mxu0 %v2978
    %4515 = vmatprep.subr.bf16.mxu0 %v2964
    %4516 = vmatpush1.bf16.msra.mxu0 %v2963
    %4517 = vmatprep.subr.bf16.mxu0 %v2949
    %4518 = vmatpush1.bf16.msra.mxu0 %v2948
    %4519 = vmatprep.subr.bf16.mxu0 %v2934
    %4520 = vmatpush1.bf16.msra.mxu0 %v2933
    %4521 = vmatprep.subr.bf16.mxu0 %v2919
    %4522 = vmatpush1.bf16.msra.mxu0 %v2918
    %4523 = vmatprep.subr.bf16.mxu0 %v2904
    %4524 = vmatpush1.bf16.msra.mxu0 %v2903
    %4525 = vmatprep.subr.bf16.mxu0 %v3129
    %4526 = vmatpush2.bf16.msra.mxu0 %v3128
    %4527 = vmatprep.subr.bf16.mxu0 %v3114
    %4528 = vmatpush2.bf16.msra.mxu0 %v3113
    %4529 = vmatprep.subr.bf16.mxu0 %v3099
    %4530 = vmatpush2.bf16.msra.mxu0 %v3098
    %4531 = vmatprep.subr.bf16.mxu0 %v3084
    %4532 = vmatpush2.bf16.msra.mxu0 %v3083
    %4533 = vmatprep.subr.bf16.mxu0 %v3069
    %4534 = vmatpush2.bf16.msra.mxu0 %v3068
    %4535 = vmatprep.subr.bf16.mxu0 %v3054
    %4536 = vmatpush2.bf16.msra.mxu0 %v3053
    %4537 = vmatprep.subr.bf16.mxu0 %v3039
    %4538 = vmatpush2.bf16.msra.mxu0 %v3038
    %4539 = vmatprep.subr.bf16.mxu0 %v3024
    %4540 = vmatpush2.bf16.msra.mxu0 %v3023
    %4541 = vmatprep.mubr.bf16.mxu0 %v92
    %4542 = vmatmul.mubr.bf16.gmra.mxu0 %v91
    %v4543 = vpop.f32.mrf.mxu0
    %v4544 = vadd.f32 %v4503, %v4543
    %v4545 = vpop.f32.mrf.mxu0
    %v4546 = vadd.f32 %v4505, %v4545
    %v4547 = vpop.f32.mrf.mxu0
    %v4548 = vpop.f32.mrf.mxu0
    %4549 = vdwg.mxu0
    %4550 = vmatprep.subr.bf16.mxu0 %v3249
    %4551 = vmatpush1.bf16.msra.mxu0 %v3248
    %4552 = vmatprep.subr.bf16.mxu0 %v3234
    %4553 = vmatpush1.bf16.msra.mxu0 %v3233
    %4554 = vmatprep.subr.bf16.mxu0 %v3219
    %4555 = vmatpush1.bf16.msra.mxu0 %v3218
    %4556 = vmatprep.subr.bf16.mxu0 %v3204
    %4557 = vmatpush1.bf16.msra.mxu0 %v3203
    %4558 = vmatprep.subr.bf16.mxu0 %v3189
    %4559 = vmatpush1.bf16.msra.mxu0 %v3188
    %4560 = vmatprep.subr.bf16.mxu0 %v3174
    %4561 = vmatpush1.bf16.msra.mxu0 %v3173
    %4562 = vmatprep.subr.bf16.mxu0 %v3159
    %4563 = vmatpush1.bf16.msra.mxu0 %v3158
    %4564 = vmatprep.subr.bf16.mxu0 %v3144
    %4565 = vmatpush1.bf16.msra.mxu0 %v3143
    %4566 = vmatprep.subr.bf16.mxu0 0
    %4567 = vmatpush2.bf16.msra.mxu0 0
    %4568 = vmatprep.subr.bf16.mxu0 0
    %4569 = vmatpush2.bf16.msra.mxu0 0
    %4570 = vmatprep.subr.bf16.mxu0 0
    %4571 = vmatpush2.bf16.msra.mxu0 0
    %4572 = vmatprep.subr.bf16.mxu0 0
    %4573 = vmatpush2.bf16.msra.mxu0 0
    %4574 = vmatprep.subr.bf16.mxu0 0
    %4575 = vmatpush2.bf16.msra.mxu0 0
    %4576 = vmatprep.subr.bf16.mxu0 0
    %4577 = vmatpush2.bf16.msra.mxu0 0
    %4578 = vmatprep.subr.bf16.mxu0 0
    %4579 = vmatpush2.bf16.msra.mxu0 0
    %4580 = vmatprep.subr.bf16.mxu0 0
    %4581 = vmatpush2.bf16.msra.mxu0 0
    %4582 = vmatprep.mubr.bf16.mxu0 0
    %4583 = vmatmul.mubr.bf16.gmra.mxu0 %v93
    %v4584 = vpop.f32.mrf.mxu0
    %v4585 = vadd.f32 %v4544, %v4584
    %v4586 = vpop.f32.mrf.mxu0
    %v4587 = vadd.f32 %v4546, %v4586
    %v4588 = vpop.f32.mrf.mxu0
    %v4589 = vpop.f32.mrf.mxu0
    %4590 = vdwg.mxu0
    %4591 = vmatprep.subr.bf16.mxu0 %v2771
    %4592 = vmatpush1.bf16.msra.mxu0 %v2770
    %4593 = vmatprep.subr.bf16.mxu0 %v2756
    %4594 = vmatpush1.bf16.msra.mxu0 %v2755
    %4595 = vmatprep.subr.bf16.mxu0 %v2741
    %4596 = vmatpush1.bf16.msra.mxu0 %v2740
    %4597 = vmatprep.subr.bf16.mxu0 %v2726
    %4598 = vmatpush1.bf16.msra.mxu0 %v2725
    %4599 = vmatprep.subr.bf16.mxu0 %v2711
    %4600 = vmatpush1.bf16.msra.mxu0 %v2710
    %4601 = vmatprep.subr.bf16.mxu0 %v2696
    %4602 = vmatpush1.bf16.msra.mxu0 %v2695
    %4603 = vmatprep.subr.bf16.mxu0 %v2681
    %4604 = vmatpush1.bf16.msra.mxu0 %v2680
    %4605 = vmatprep.subr.bf16.mxu0 %v2666
    %4606 = vmatpush1.bf16.msra.mxu0 %v2665
    %4607 = vmatprep.subr.bf16.mxu0 %v2891
    %4608 = vmatpush2.bf16.msra.mxu0 %v2890
    %4609 = vmatprep.subr.bf16.mxu0 %v2876
    %4610 = vmatpush2.bf16.msra.mxu0 %v2875
    %4611 = vmatprep.subr.bf16.mxu0 %v2861
    %4612 = vmatpush2.bf16.msra.mxu0 %v2860
    %4613 = vmatprep.subr.bf16.mxu0 %v2846
    %4614 = vmatpush2.bf16.msra.mxu0 %v2845
    %4615 = vmatprep.subr.bf16.mxu0 %v2831
    %4616 = vmatpush2.bf16.msra.mxu0 %v2830
    %4617 = vmatprep.subr.bf16.mxu0 %v2816
    %4618 = vmatpush2.bf16.msra.mxu0 %v2815
    %4619 = vmatprep.subr.bf16.mxu0 %v2801
    %4620 = vmatpush2.bf16.msra.mxu0 %v2800
    %4621 = vmatprep.subr.bf16.mxu0 %v2786
    %4622 = vmatpush2.bf16.msra.mxu0 %v2785
    %4623 = vmatprep.mubr.bf16.mxu0 %v90
    %4624 = vmatmul.mubr.bf16.gmra.mxu0 %v89
    %v4625 = vpop.f32.mrf.mxu0
    %v4626 = vadd.f32 %v789, %v4625
    %v4627 = vpop.f32.mrf.mxu0
    %v4628 = vadd.f32 %v793, %v4627
    %v4629 = vpop.f32.mrf.mxu0
    %v4630 = vpop.f32.mrf.mxu0
    %4631 = vdwg.mxu0
    %4632 = vmatprep.subr.bf16.mxu0 %v3011
    %4633 = vmatpush1.bf16.msra.mxu0 %v3010
    %4634 = vmatprep.subr.bf16.mxu0 %v2996
    %4635 = vmatpush1.bf16.msra.mxu0 %v2995
    %4636 = vmatprep.subr.bf16.mxu0 %v2981
    %4637 = vmatpush1.bf16.msra.mxu0 %v2980
    %4638 = vmatprep.subr.bf16.mxu0 %v2966
    %4639 = vmatpush1.bf16.msra.mxu0 %v2965
    %4640 = vmatprep.subr.bf16.mxu0 %v2951
    %4641 = vmatpush1.bf16.msra.mxu0 %v2950
    %4642 = vmatprep.subr.bf16.mxu0 %v2936
    %4643 = vmatpush1.bf16.msra.mxu0 %v2935
    %4644 = vmatprep.subr.bf16.mxu0 %v2921
    %4645 = vmatpush1.bf16.msra.mxu0 %v2920
    %4646 = vmatprep.subr.bf16.mxu0 %v2906
    %4647 = vmatpush1.bf16.msra.mxu0 %v2905
    %4648 = vmatprep.subr.bf16.mxu0 %v3131
    %4649 = vmatpush2.bf16.msra.mxu0 %v3130
    %4650 = vmatprep.subr.bf16.mxu0 %v3116
    %4651 = vmatpush2.bf16.msra.mxu0 %v3115
    %4652 = vmatprep.subr.bf16.mxu0 %v3101
    %4653 = vmatpush2.bf16.msra.mxu0 %v3100
    %4654 = vmatprep.subr.bf16.mxu0 %v3086
    %4655 = vmatpush2.bf16.msra.mxu0 %v3085
    %4656 = vmatprep.subr.bf16.mxu0 %v3071
    %4657 = vmatpush2.bf16.msra.mxu0 %v3070
    %4658 = vmatprep.subr.bf16.mxu0 %v3056
    %4659 = vmatpush2.bf16.msra.mxu0 %v3055
    %4660 = vmatprep.subr.bf16.mxu0 %v3041
    %4661 = vmatpush2.bf16.msra.mxu0 %v3040
    %4662 = vmatprep.subr.bf16.mxu0 %v3026
    %4663 = vmatpush2.bf16.msra.mxu0 %v3025
    %4664 = vmatprep.mubr.bf16.mxu0 %v92
    %4665 = vmatmul.mubr.bf16.gmra.mxu0 %v91
    %v4666 = vpop.f32.mrf.mxu0
    %v4667 = vadd.f32 %v4626, %v4666
    %v4668 = vpop.f32.mrf.mxu0
    %v4669 = vadd.f32 %v4628, %v4668
    %v4670 = vpop.f32.mrf.mxu0
    %v4671 = vpop.f32.mrf.mxu0
    %4672 = vdwg.mxu0
    %4673 = vmatprep.subr.bf16.mxu0 %v3251
    %4674 = vmatpush1.bf16.msra.mxu0 %v3250
    %4675 = vmatprep.subr.bf16.mxu0 %v3236
    %4676 = vmatpush1.bf16.msra.mxu0 %v3235
    %4677 = vmatprep.subr.bf16.mxu0 %v3221
    %4678 = vmatpush1.bf16.msra.mxu0 %v3220
    %4679 = vmatprep.subr.bf16.mxu0 %v3206
    %4680 = vmatpush1.bf16.msra.mxu0 %v3205
    %4681 = vmatprep.subr.bf16.mxu0 %v3191
    %4682 = vmatpush1.bf16.msra.mxu0 %v3190
    %4683 = vmatprep.subr.bf16.mxu0 %v3176
    %4684 = vmatpush1.bf16.msra.mxu0 %v3175
    %4685 = vmatprep.subr.bf16.mxu0 %v3161
    %4686 = vmatpush1.bf16.msra.mxu0 %v3160
    %4687 = vmatprep.subr.bf16.mxu0 %v3146
    %4688 = vmatpush1.bf16.msra.mxu0 %v3145
    %4689 = vmatprep.subr.bf16.mxu0 0
    %4690 = vmatpush2.bf16.msra.mxu0 0
    %4691 = vmatprep.subr.bf16.mxu0 0
    %4692 = vmatpush2.bf16.msra.mxu0 0
    %4693 = vmatprep.subr.bf16.mxu0 0
    %4694 = vmatpush2.bf16.msra.mxu0 0
    %4695 = vmatprep.subr.bf16.mxu0 0
    %4696 = vmatpush2.bf16.msra.mxu0 0
    %4697 = vmatprep.subr.bf16.mxu0 0
    %4698 = vmatpush2.bf16.msra.mxu0 0
    %4699 = vmatprep.subr.bf16.mxu0 0
    %4700 = vmatpush2.bf16.msra.mxu0 0
    %4701 = vmatprep.subr.bf16.mxu0 0
    %4702 = vmatpush2.bf16.msra.mxu0 0
    %4703 = vmatprep.subr.bf16.mxu0 0
    %4704 = vmatpush2.bf16.msra.mxu0 0
    %4705 = vmatprep.mubr.bf16.mxu0 0
    %4706 = vmatmul.mubr.bf16.gmra.mxu0 %v93
    %v4707 = vpop.f32.mrf.mxu0
    %v4708 = vadd.f32 %v4667, %v4707
    %v4709 = vpop.f32.mrf.mxu0
    %v4710 = vadd.f32 %v4669, %v4709
    %v4711 = vpop.f32.mrf.mxu0
    %v4712 = vpop.f32.mrf.mxu0
    %4713 = vdwg.mxu0
    %4714 = vmatprep.subr.bf16.mxu0 0
    %4715 = vmatpush1.bf16.msra.mxu0 %v2772
    %4716 = vmatprep.subr.bf16.mxu0 0
    %4717 = vmatpush1.bf16.msra.mxu0 %v2757
    %4718 = vmatprep.subr.bf16.mxu0 0
    %4719 = vmatpush1.bf16.msra.mxu0 %v2742
    %4720 = vmatprep.subr.bf16.mxu0 0
    %4721 = vmatpush1.bf16.msra.mxu0 %v2727
    %4722 = vmatprep.subr.bf16.mxu0 0
    %4723 = vmatpush1.bf16.msra.mxu0 %v2712
    %4724 = vmatprep.subr.bf16.mxu0 0
    %4725 = vmatpush1.bf16.msra.mxu0 %v2697
    %4726 = vmatprep.subr.bf16.mxu0 0
    %4727 = vmatpush1.bf16.msra.mxu0 %v2682
    %4728 = vmatprep.subr.bf16.mxu0 0
    %4729 = vmatpush1.bf16.msra.mxu0 %v2667
    %4730 = vmatprep.subr.bf16.mxu0 0
    %4731 = vmatpush2.bf16.msra.mxu0 %v2892
    %4732 = vmatprep.subr.bf16.mxu0 0
    %4733 = vmatpush2.bf16.msra.mxu0 %v2877
    %4734 = vmatprep.subr.bf16.mxu0 0
    %4735 = vmatpush2.bf16.msra.mxu0 %v2862
    %4736 = vmatprep.subr.bf16.mxu0 0
    %4737 = vmatpush2.bf16.msra.mxu0 %v2847
    %4738 = vmatprep.subr.bf16.mxu0 0
    %4739 = vmatpush2.bf16.msra.mxu0 %v2832
    %4740 = vmatprep.subr.bf16.mxu0 0
    %4741 = vmatpush2.bf16.msra.mxu0 %v2817
    %4742 = vmatprep.subr.bf16.mxu0 0
    %4743 = vmatpush2.bf16.msra.mxu0 %v2802
    %4744 = vmatprep.subr.bf16.mxu0 0
    %4745 = vmatpush2.bf16.msra.mxu0 %v2787
    %4746 = vmatprep.mubr.bf16.mxu0 %v90
    %4747 = vmatmul.mubr.bf16.gmra.mxu0 %v89
    %v4748 = vpop.f32.mrf.mxu0
    %v4749 = vadd.f32 %v797, %v4748
    %v4750 = vpop.f32.mrf.mxu0
    %v4751 = vpop.f32.mrf.mxu0
    %v4752 = vpop.f32.mrf.mxu0
    %4753 = vdwg.mxu0
    %4754 = vmatprep.subr.bf16.mxu0 0
    %4755 = vmatpush1.bf16.msra.mxu0 %v3012
    %4756 = vmatprep.subr.bf16.mxu0 0
    %4757 = vmatpush1.bf16.msra.mxu0 %v2997
    %4758 = vmatprep.subr.bf16.mxu0 0
    %4759 = vmatpush1.bf16.msra.mxu0 %v2982
    %4760 = vmatprep.subr.bf16.mxu0 0
    %4761 = vmatpush1.bf16.msra.mxu0 %v2967
    %4762 = vmatprep.subr.bf16.mxu0 0
    %4763 = vmatpush1.bf16.msra.mxu0 %v2952
    %4764 = vmatprep.subr.bf16.mxu0 0
    %4765 = vmatpush1.bf16.msra.mxu0 %v2937
    %4766 = vmatprep.subr.bf16.mxu0 0
    %4767 = vmatpush1.bf16.msra.mxu0 %v2922
    %4768 = vmatprep.subr.bf16.mxu0 0
    %4769 = vmatpush1.bf16.msra.mxu0 %v2907
    %4770 = vmatprep.subr.bf16.mxu0 0
    %4771 = vmatpush2.bf16.msra.mxu0 %v3132
    %4772 = vmatprep.subr.bf16.mxu0 0
    %4773 = vmatpush2.bf16.msra.mxu0 %v3117
    %4774 = vmatprep.subr.bf16.mxu0 0
    %4775 = vmatpush2.bf16.msra.mxu0 %v3102
    %4776 = vmatprep.subr.bf16.mxu0 0
    %4777 = vmatpush2.bf16.msra.mxu0 %v3087
    %4778 = vmatprep.subr.bf16.mxu0 0
    %4779 = vmatpush2.bf16.msra.mxu0 %v3072
    %4780 = vmatprep.subr.bf16.mxu0 0
    %4781 = vmatpush2.bf16.msra.mxu0 %v3057
    %4782 = vmatprep.subr.bf16.mxu0 0
    %4783 = vmatpush2.bf16.msra.mxu0 %v3042
    %4784 = vmatprep.subr.bf16.mxu0 0
    %4785 = vmatpush2.bf16.msra.mxu0 %v3027
    %4786 = vmatprep.mubr.bf16.mxu0 %v92
    %4787 = vmatmul.mubr.bf16.gmra.mxu0 %v91
    %v4788 = vpop.f32.mrf.mxu0
    %v4789 = vadd.f32 %v4749, %v4788
    %v4790 = vpop.f32.mrf.mxu0
    %v4791 = vpop.f32.mrf.mxu0
    %v4792 = vpop.f32.mrf.mxu0
    %4793 = vdwg.mxu0
    %4794 = vmatprep.subr.bf16.mxu0 0
    %4795 = vmatpush1.bf16.msra.mxu0 %v3252
    %4796 = vmatprep.subr.bf16.mxu0 0
    %4797 = vmatpush1.bf16.msra.mxu0 %v3237
    %4798 = vmatprep.subr.bf16.mxu0 0
    %4799 = vmatpush1.bf16.msra.mxu0 %v3222
    %4800 = vmatprep.subr.bf16.mxu0 0
    %4801 = vmatpush1.bf16.msra.mxu0 %v3207
    %4802 = vmatprep.subr.bf16.mxu0 0
    %4803 = vmatpush1.bf16.msra.mxu0 %v3192
    %4804 = vmatprep.subr.bf16.mxu0 0
    %4805 = vmatpush1.bf16.msra.mxu0 %v3177
    %4806 = vmatprep.subr.bf16.mxu0 0
    %4807 = vmatpush1.bf16.msra.mxu0 %v3162
    %4808 = vmatprep.subr.bf16.mxu0 0
    %4809 = vmatpush1.bf16.msra.mxu0 %v3147
    %4810 = vmatprep.subr.bf16.mxu0 0
    %4811 = vmatpush2.bf16.msra.mxu0 0
    %4812 = vmatprep.subr.bf16.mxu0 0
    %4813 = vmatpush2.bf16.msra.mxu0 0
    %4814 = vmatprep.subr.bf16.mxu0 0
    %4815 = vmatpush2.bf16.msra.mxu0 0
    %4816 = vmatprep.subr.bf16.mxu0 0
    %4817 = vmatpush2.bf16.msra.mxu0 0
    %4818 = vmatprep.subr.bf16.mxu0 0
    %4819 = vmatpush2.bf16.msra.mxu0 0
    %4820 = vmatprep.subr.bf16.mxu0 0
    %4821 = vmatpush2.bf16.msra.mxu0 0
    %4822 = vmatprep.subr.bf16.mxu0 0
    %4823 = vmatpush2.bf16.msra.mxu0 0
    %4824 = vmatprep.subr.bf16.mxu0 0
    %4825 = vmatpush2.bf16.msra.mxu0 0
    %4826 = vmatprep.mubr.bf16.mxu0 0
    %4827 = vmatmul.mubr.bf16.gmra.mxu0 %v93
    %v4828 = vpop.f32.mrf.mxu0
    %v4829 = vadd.f32 %v4789, %v4828
    %v4830 = vpop.f32.mrf.mxu0
    %v4831 = vpop.f32.mrf.mxu0
    %v4832 = vpop.f32.mrf.mxu0
    %4833 = vdwg.mxu0
    %v4834 = vpack.c.bf16 %v3970, %v3970
    %v4835 = vpack.c.bf16 %v3972, %v3972
    %v4836 = vpack.c.bf16 %v4218, %v4218
    %v4837 = vpack.c.bf16 %v4339, %v4339
    %v4838 = vpack.c.bf16 %v4585, %v4585
    %v4839 = vpack.c.bf16 %v4587, %v4587
    %vm4840 = vcmask 261120
    %v4842 = vsel %vm4840, %v4835, 0
    %v4845 = vsel %vm4840, %v4837, 0
    %4847 = vmatprep.subr.bf16.mxu0 0
    %4848 = vmatpush1.bf16.xpose.msra.mxu0 0
    %4849 = vmatprep.subr.bf16.mxu0 0
    %4850 = vmatpush1.bf16.xpose.msra.mxu0 0
    %4851 = vmatprep.subr.bf16.mxu0 0
    %4852 = vmatpush1.bf16.xpose.msra.mxu0 0
    %4853 = vmatprep.subr.bf16.mxu0 0
    %4854 = vmatpush1.bf16.xpose.msra.mxu0 0
    %4855 = vmatprep.subr.bf16.mxu0 0
    %4856 = vmatpush1.bf16.xpose.msra.mxu0 0
    %4857 = vmatprep.subr.bf16.mxu0 0
    %4858 = vmatpush1.bf16.xpose.msra.mxu0 0
    %4859 = vmatprep.subr.bf16.mxu0 0
    %4860 = vmatpush1.bf16.xpose.msra.mxu0 0
    %4861 = vmatprep.subr.bf16.mxu0 %v4845
    %4862 = vmatpush1.bf16.xpose.msra.mxu0 %v4836
    %4863 = vmatprep.subr.bf16.mxu0 0
    %4864 = vmatpush2.bf16.xpose.msra.mxu0 0
    %4865 = vmatprep.subr.bf16.mxu0 0
    %4866 = vmatpush2.bf16.xpose.msra.mxu0 0
    %4867 = vmatprep.subr.bf16.mxu0 0
    %4868 = vmatpush2.bf16.xpose.msra.mxu0 0
    %4869 = vmatprep.subr.bf16.mxu0 0
    %4870 = vmatpush2.bf16.xpose.msra.mxu0 0
    %4871 = vmatprep.subr.bf16.mxu0 0
    %4872 = vmatpush2.bf16.xpose.msra.mxu0 0
    %4873 = vmatprep.subr.bf16.mxu0 0
    %4874 = vmatpush2.bf16.xpose.msra.mxu0 0
    %4875 = vmatprep.subr.bf16.mxu0 0
    %4876 = vmatpush2.bf16.xpose.msra.mxu0 0
    %4877 = vmatprep.subr.bf16.mxu0 0
    %4878 = vmatpush2.bf16.xpose.msra.mxu0 0
    %4879 = vmatprep.mubr.bf16.mxu0 %v4842
    %4880 = vmatmul.mubr.bf16.gmra.mxu0 %v4834
    %v4881 = vpop.f32.mrf.mxu0
    %v4882 = vadd.f32 0.0, %v4881
    %v4883 = vpop.f32.mrf.mxu0
    %v4884 = vpop.f32.mrf.mxu0
    %v4885 = vpop.f32.mrf.mxu0
    %4886 = vdwg.mxu0
    %vm4887 = vcmask 64512
    %v4888 = vsel %vm4887, %v4882, -inf
    %4889 = vmax.xlane.f32.xlu0 %v4888
    %v4890 = vpop.xlane.xlu0 %4889
    %v4891 = vsub.f32 %v4882, %v4890
    %v4892 = vmul.f32 %v4891, 1.442695
    %v4893 = vpow.pop %v4892
    %v4894 = vsel %vm4887, %v4893, 0.0
    %4895 = vadd.xlane.f32.xlu0 %v4894
    %v4896 = vpop.xlane.xlu0 %4895
    %v4897 = vrcp.pop %v4896
    %v4898 = vmul.f32 %v4893, %v4897
    %v4899 = vpack.c.bf16 %v4898, %v4898
    %v4901 = vsel %vm4887, %v4899, 0
    %vm4903 = vcmask 1043456
    %v4905 = vsel %vm4903, %v4838, 0
    %v4908 = vsel %vm4903, %v4839, 0
    %4910 = vmatprep.subr.bf16.mxu0 0
    %4911 = vmatpush1.bf16.msra.mxu0 0
    %4912 = vmatprep.subr.bf16.mxu0 0
    %4913 = vmatpush1.bf16.msra.mxu0 0
    %4914 = vmatprep.subr.bf16.mxu0 0
    %4915 = vmatpush1.bf16.msra.mxu0 0
    %4916 = vmatprep.subr.bf16.mxu0 0
    %4917 = vmatpush1.bf16.msra.mxu0 0
    %4918 = vmatprep.subr.bf16.mxu0 0
    %4919 = vmatpush1.bf16.msra.mxu0 0
    %4920 = vmatprep.subr.bf16.mxu0 0
    %4921 = vmatpush1.bf16.msra.mxu0 0
    %4922 = vmatprep.subr.bf16.mxu0 0
    %4923 = vmatpush1.bf16.msra.mxu0 0
    %4924 = vmatprep.subr.bf16.mxu0 %v4908
    %4925 = vmatpush1.bf16.msra.mxu0 %v4905
    %4926 = vmatprep.subr.bf16.mxu0 0
    %4927 = vmatpush2.bf16.msra.mxu0 0
    %4928 = vmatprep.subr.bf16.mxu0 0
    %4929 = vmatpush2.bf16.msra.mxu0 0
    %4930 = vmatprep.subr.bf16.mxu0 0
    %4931 = vmatpush2.bf16.msra.mxu0 0
    %4932 = vmatprep.subr.bf16.mxu0 0
    %4933 = vmatpush2.bf16.msra.mxu0 0
    %4934 = vmatprep.subr.bf16.mxu0 0
    %4935 = vmatpush2.bf16.msra.mxu0 0
    %4936 = vmatprep.subr.bf16.mxu0 0
    %4937 = vmatpush2.bf16.msra.mxu0 0
    %4938 = vmatprep.subr.bf16.mxu0 0
    %4939 = vmatpush2.bf16.msra.mxu0 0
    %4940 = vmatprep.subr.bf16.mxu0 0
    %4941 = vmatpush2.bf16.msra.mxu0 0
    %4942 = vmatprep.mubr.bf16.mxu0 0
    %4943 = vmatmul.mubr.bf16.gmra.mxu0 %v4901
    %v4944 = vpop.f32.mrf.mxu0
    %v4945 = vadd.f32 0.0, %v4944
    %v4946 = vpop.f32.mrf.mxu0
    %v4947 = vadd.f32 0.0, %v4946
    %v4948 = vpop.f32.mrf.mxu0
    %v4949 = vpop.f32.mrf.mxu0
    %4950 = vdwg.mxu0
    %v4951 = vpack.c.bf16 %v4945, %v4945
    %v4952 = vpack.c.bf16 %v4947, %v4947
    %v4953 = vpack.c.bf16 %v4093, %v4093
    %v4954 = vpack.c.bf16 %v4341, %v4341
    %v4955 = vpack.c.bf16 %v4708, %v4708
    %4958 = vrot.lane.b32.xlu0 %v4835, 96
    %v4959 = vpop.permute.xlu0 %4958
    %4960 = vrot.lane.b32.xlu0 %v4953, 96
    %v4961 = vpop.permute.xlu0 %4960
    %vm4962 = vcmask 785408
    %v4963 = vsel %vm4962, %v4959, %v4961
    %4967 = vrot.lane.b32.xlu0 %v4837, 96
    %v4968 = vpop.permute.xlu0 %4967
    %4969 = vrot.lane.b32.xlu0 %v4954, 96
    %v4970 = vpop.permute.xlu0 %4969
    %v4971 = vsel %vm4962, %v4968, %v4970
    %v4974 = vsel %vm4840, %v4961, 0
    %v4977 = vsel %vm4840, %v4970, 0
    %4979 = vmatprep.subr.bf16.mxu0 0
    %4980 = vmatpush1.bf16.xpose.msra.mxu0 0
    %4981 = vmatprep.subr.bf16.mxu0 0
    %4982 = vmatpush1.bf16.xpose.msra.mxu0 0
    %4983 = vmatprep.subr.bf16.mxu0 0
    %4984 = vmatpush1.bf16.xpose.msra.mxu0 0
    %4985 = vmatprep.subr.bf16.mxu0 0
    %4986 = vmatpush1.bf16.xpose.msra.mxu0 0
    %4987 = vmatprep.subr.bf16.mxu0 0
    %4988 = vmatpush1.bf16.xpose.msra.mxu0 0
    %4989 = vmatprep.subr.bf16.mxu0 0
    %4990 = vmatpush1.bf16.xpose.msra.mxu0 0
    %4991 = vmatprep.subr.bf16.mxu0 0
    %4992 = vmatpush1.bf16.xpose.msra.mxu0 0
    %4993 = vmatprep.subr.bf16.mxu0 %v4977
    %4994 = vmatpush1.bf16.xpose.msra.mxu0 %v4971
    %4995 = vmatprep.subr.bf16.mxu0 0
    %4996 = vmatpush2.bf16.xpose.msra.mxu0 0
    %4997 = vmatprep.subr.bf16.mxu0 0
    %4998 = vmatpush2.bf16.xpose.msra.mxu0 0
    %4999 = vmatprep.subr.bf16.mxu0 0
    %5000 = vmatpush2.bf16.xpose.msra.mxu0 0
    %5001 = vmatprep.subr.bf16.mxu0 0
    %5002 = vmatpush2.bf16.xpose.msra.mxu0 0
    %5003 = vmatprep.subr.bf16.mxu0 0
    %5004 = vmatpush2.bf16.xpose.msra.mxu0 0
    %5005 = vmatprep.subr.bf16.mxu0 0
    %5006 = vmatpush2.bf16.xpose.msra.mxu0 0
    %5007 = vmatprep.subr.bf16.mxu0 0
    %5008 = vmatpush2.bf16.xpose.msra.mxu0 0
    %5009 = vmatprep.subr.bf16.mxu0 0
    %5010 = vmatpush2.bf16.xpose.msra.mxu0 0
    %5011 = vmatprep.mubr.bf16.mxu0 %v4974
    %5012 = vmatmul.mubr.bf16.gmra.mxu0 %v4963
    %v5013 = vpop.f32.mrf.mxu0
    %v5014 = vadd.f32 0.0, %v5013
    %v5015 = vpop.f32.mrf.mxu0
    %v5016 = vpop.f32.mrf.mxu0
    %v5017 = vpop.f32.mrf.mxu0
    %5018 = vdwg.mxu0
    %v5019 = vsel %vm4887, %v5014, -inf
    %5020 = vmax.xlane.f32.xlu0 %v5019
    %v5021 = vpop.xlane.xlu0 %5020
    %v5022 = vsub.f32 %v5014, %v5021
    %v5023 = vmul.f32 %v5022, 1.442695
    %v5024 = vpow.pop %v5023
    %v5025 = vsel %vm4887, %v5024, 0.0
    %5026 = vadd.xlane.f32.xlu0 %v5025
    %v5027 = vpop.xlane.xlu0 %5026
    %v5028 = vrcp.pop %v5027
    %v5029 = vmul.f32 %v5024, %v5028
    %v5030 = vpack.c.bf16 %v5029, %v5029
    %5033 = vrot.lane.b32.xlu0 %v4839, 96
    %v5034 = vpop.permute.xlu0 %5033
    %5035 = vrot.lane.b32.xlu0 %v4955, 96
    %v5036 = vpop.permute.xlu0 %5035
    %v5037 = vsel %vm4962, %v5034, %v5036
    %v5039 = vsel %vm4887, %v5030, 0
    %v5042 = vsel %vm4903, %v5037, 0
    %v5045 = vsel %vm4903, %v5036, 0
    %5047 = vmatprep.subr.bf16.mxu0 0
    %5048 = vmatpush1.bf16.msra.mxu0 0
    %5049 = vmatprep.subr.bf16.mxu0 0
    %5050 = vmatpush1.bf16.msra.mxu0 0
    %5051 = vmatprep.subr.bf16.mxu0 0
    %5052 = vmatpush1.bf16.msra.mxu0 0
    %5053 = vmatprep.subr.bf16.mxu0 0
    %5054 = vmatpush1.bf16.msra.mxu0 0
    %5055 = vmatprep.subr.bf16.mxu0 0
    %5056 = vmatpush1.bf16.msra.mxu0 0
    %5057 = vmatprep.subr.bf16.mxu0 0
    %5058 = vmatpush1.bf16.msra.mxu0 0
    %5059 = vmatprep.subr.bf16.mxu0 0
    %5060 = vmatpush1.bf16.msra.mxu0 0
    %5061 = vmatprep.subr.bf16.mxu0 %v5045
    %5062 = vmatpush1.bf16.msra.mxu0 %v5042
    %5063 = vmatprep.subr.bf16.mxu0 0
    %5064 = vmatpush2.bf16.msra.mxu0 0
    %5065 = vmatprep.subr.bf16.mxu0 0
    %5066 = vmatpush2.bf16.msra.mxu0 0
    %5067 = vmatprep.subr.bf16.mxu0 0
    %5068 = vmatpush2.bf16.msra.mxu0 0
    %5069 = vmatprep.subr.bf16.mxu0 0
    %5070 = vmatpush2.bf16.msra.mxu0 0
    %5071 = vmatprep.subr.bf16.mxu0 0
    %5072 = vmatpush2.bf16.msra.mxu0 0
    %5073 = vmatprep.subr.bf16.mxu0 0
    %5074 = vmatpush2.bf16.msra.mxu0 0
    %5075 = vmatprep.subr.bf16.mxu0 0
    %5076 = vmatpush2.bf16.msra.mxu0 0
    %5077 = vmatprep.subr.bf16.mxu0 0
    %5078 = vmatpush2.bf16.msra.mxu0 0
    %5079 = vmatprep.mubr.bf16.mxu0 0
    %5080 = vmatmul.mubr.bf16.gmra.mxu0 %v5039
    %v5081 = vpop.f32.mrf.mxu0
    %v5082 = vadd.f32 0.0, %v5081
    %v5083 = vpop.f32.mrf.mxu0
    %v5084 = vadd.f32 0.0, %v5083
    %v5085 = vpop.f32.mrf.mxu0
    %v5086 = vpop.f32.mrf.mxu0
    %5087 = vdwg.mxu0
    %v5088 = vpack.c.bf16 %v5082, %v5082
    %v5089 = vpack.c.bf16 %v5084, %v5084
    %v5090 = vpack.c.bf16 %v4095, %v4095
    %v5091 = vpack.c.bf16 %v4462, %v4462
    %v5092 = vpack.c.bf16 %v4710, %v4710
    %5094 = vrot.lane.b32.xlu0 %v4953, 64
    %v5095 = vpop.permute.xlu0 %5094
    %5096 = vrot.lane.b32.xlu0 %v5090, 64
    %v5097 = vpop.permute.xlu0 %5096
    %vm5098 = vcmask 523264
    %v5099 = vsel %vm5098, %v5095, %v5097
    %5102 = vrot.lane.b32.xlu0 %v4954, 64
    %v5103 = vpop.permute.xlu0 %5102
    %5104 = vrot.lane.b32.xlu0 %v5091, 64
    %v5105 = vpop.permute.xlu0 %5104
    %v5106 = vsel %vm5098, %v5103, %v5105
    %v5109 = vsel %vm4840, %v5097, 0
    %v5112 = vsel %vm4840, %v5105, 0
    %5114 = vmatprep.subr.bf16.mxu0 0
    %5115 = vmatpush1.bf16.xpose.msra.mxu0 0
    %5116 = vmatprep.subr.bf16.mxu0 0
    %5117 = vmatpush1.bf16.xpose.msra.mxu0 0
    %5118 = vmatprep.subr.bf16.mxu0 0
    %5119 = vmatpush1.bf16.xpose.msra.mxu0 0
    %5120 = vmatprep.subr.bf16.mxu0 0
    %5121 = vmatpush1.bf16.xpose.msra.mxu0 0
    %5122 = vmatprep.subr.bf16.mxu0 0
    %5123 = vmatpush1.bf16.xpose.msra.mxu0 0
    %5124 = vmatprep.subr.bf16.mxu0 0
    %5125 = vmatpush1.bf16.xpose.msra.mxu0 0
    %5126 = vmatprep.subr.bf16.mxu0 0
    %5127 = vmatpush1.bf16.xpose.msra.mxu0 0
    %5128 = vmatprep.subr.bf16.mxu0 %v5112
    %5129 = vmatpush1.bf16.xpose.msra.mxu0 %v5106
    %5130 = vmatprep.subr.bf16.mxu0 0
    %5131 = vmatpush2.bf16.xpose.msra.mxu0 0
    %5132 = vmatprep.subr.bf16.mxu0 0
    %5133 = vmatpush2.bf16.xpose.msra.mxu0 0
    %5134 = vmatprep.subr.bf16.mxu0 0
    %5135 = vmatpush2.bf16.xpose.msra.mxu0 0
    %5136 = vmatprep.subr.bf16.mxu0 0
    %5137 = vmatpush2.bf16.xpose.msra.mxu0 0
    %5138 = vmatprep.subr.bf16.mxu0 0
    %5139 = vmatpush2.bf16.xpose.msra.mxu0 0
    %5140 = vmatprep.subr.bf16.mxu0 0
    %5141 = vmatpush2.bf16.xpose.msra.mxu0 0
    %5142 = vmatprep.subr.bf16.mxu0 0
    %5143 = vmatpush2.bf16.xpose.msra.mxu0 0
    %5144 = vmatprep.subr.bf16.mxu0 0
    %5145 = vmatpush2.bf16.xpose.msra.mxu0 0
    %5146 = vmatprep.mubr.bf16.mxu0 %v5109
    %5147 = vmatmul.mubr.bf16.gmra.mxu0 %v5099
    %v5148 = vpop.f32.mrf.mxu0
    %v5149 = vadd.f32 0.0, %v5148
    %v5150 = vpop.f32.mrf.mxu0
    %v5151 = vpop.f32.mrf.mxu0
    %v5152 = vpop.f32.mrf.mxu0
    %5153 = vdwg.mxu0
    %v5154 = vsel %vm4887, %v5149, -inf
    %5155 = vmax.xlane.f32.xlu0 %v5154
    %v5156 = vpop.xlane.xlu0 %5155
    %v5157 = vsub.f32 %v5149, %v5156
    %v5158 = vmul.f32 %v5157, 1.442695
    %v5159 = vpow.pop %v5158
    %v5160 = vsel %vm4887, %v5159, 0.0
    %5161 = vadd.xlane.f32.xlu0 %v5160
    %v5162 = vpop.xlane.xlu0 %5161
    %v5163 = vrcp.pop %v5162
    %v5164 = vmul.f32 %v5159, %v5163
    %v5165 = vpack.c.bf16 %v5164, %v5164
    %5167 = vrot.lane.b32.xlu0 %v4955, 64
    %v5168 = vpop.permute.xlu0 %5167
    %5169 = vrot.lane.b32.xlu0 %v5092, 64
    %v5170 = vpop.permute.xlu0 %5169
    %v5171 = vsel %vm5098, %v5168, %v5170
    %v5173 = vsel %vm4887, %v5165, 0
    %v5176 = vsel %vm4903, %v5171, 0
    %v5179 = vsel %vm4903, %v5170, 0
    %5181 = vmatprep.subr.bf16.mxu0 0
    %5182 = vmatpush1.bf16.msra.mxu0 0
    %5183 = vmatprep.subr.bf16.mxu0 0
    %5184 = vmatpush1.bf16.msra.mxu0 0
    %5185 = vmatprep.subr.bf16.mxu0 0
    %5186 = vmatpush1.bf16.msra.mxu0 0
    %5187 = vmatprep.subr.bf16.mxu0 0
    %5188 = vmatpush1.bf16.msra.mxu0 0
    %5189 = vmatprep.subr.bf16.mxu0 0
    %5190 = vmatpush1.bf16.msra.mxu0 0
    %5191 = vmatprep.subr.bf16.mxu0 0
    %5192 = vmatpush1.bf16.msra.mxu0 0
    %5193 = vmatprep.subr.bf16.mxu0 0
    %5194 = vmatpush1.bf16.msra.mxu0 0
    %5195 = vmatprep.subr.bf16.mxu0 %v5179
    %5196 = vmatpush1.bf16.msra.mxu0 %v5176
    %5197 = vmatprep.subr.bf16.mxu0 0
    %5198 = vmatpush2.bf16.msra.mxu0 0
    %5199 = vmatprep.subr.bf16.mxu0 0
    %5200 = vmatpush2.bf16.msra.mxu0 0
    %5201 = vmatprep.subr.bf16.mxu0 0
    %5202 = vmatpush2.bf16.msra.mxu0 0
    %5203 = vmatprep.subr.bf16.mxu0 0
    %5204 = vmatpush2.bf16.msra.mxu0 0
    %5205 = vmatprep.subr.bf16.mxu0 0
    %5206 = vmatpush2.bf16.msra.mxu0 0
    %5207 = vmatprep.subr.bf16.mxu0 0
    %5208 = vmatpush2.bf16.msra.mxu0 0
    %5209 = vmatprep.subr.bf16.mxu0 0
    %5210 = vmatpush2.bf16.msra.mxu0 0
    %5211 = vmatprep.subr.bf16.mxu0 0
    %5212 = vmatpush2.bf16.msra.mxu0 0
    %5213 = vmatprep.mubr.bf16.mxu0 0
    %5214 = vmatmul.mubr.bf16.gmra.mxu0 %v5173
    %v5215 = vpop.f32.mrf.mxu0
    %v5216 = vadd.f32 0.0, %v5215
    %v5217 = vpop.f32.mrf.mxu0
    %v5218 = vadd.f32 0.0, %v5217
    %v5219 = vpop.f32.mrf.mxu0
    %v5220 = vpop.f32.mrf.mxu0
    %5221 = vdwg.mxu0
    %v5222 = vpack.c.bf16 %v5216, %v5216
    %v5223 = vpack.c.bf16 %v5218, %v5218
    %v5224 = vpack.c.bf16 %v4216, %v4216
    %v5225 = vpack.c.bf16 %v4464, %v4464
    %v5226 = vpack.c.bf16 %v4829, %v4829
    %5228 = vrot.lane.b32.xlu0 %v5090, 32
    %v5229 = vpop.permute.xlu0 %5228
    %5230 = vrot.lane.b32.xlu0 %v5224, 32
    %v5231 = vpop.permute.xlu0 %5230
    %vm5232 = vcmask 261120
    %v5233 = vsel %vm5232, %v5229, %v5231
    %5236 = vrot.lane.b32.xlu0 %v5091, 32
    %v5237 = vpop.permute.xlu0 %5236
    %5238 = vrot.lane.b32.xlu0 %v5225, 32
    %v5239 = vpop.permute.xlu0 %5238
    %v5240 = vsel %vm5232, %v5237, %v5239
    %v5243 = vsel %vm4840, %v5231, 0
    %v5246 = vsel %vm4840, %v5239, 0
    %5248 = vmatprep.subr.bf16.mxu0 0
    %5249 = vmatpush1.bf16.xpose.msra.mxu0 0
    %5250 = vmatprep.subr.bf16.mxu0 0
    %5251 = vmatpush1.bf16.xpose.msra.mxu0 0
    %5252 = vmatprep.subr.bf16.mxu0 0
    %5253 = vmatpush1.bf16.xpose.msra.mxu0 0
    %5254 = vmatprep.subr.bf16.mxu0 0
    %5255 = vmatpush1.bf16.xpose.msra.mxu0 0
    %5256 = vmatprep.subr.bf16.mxu0 0
    %5257 = vmatpush1.bf16.xpose.msra.mxu0 0
    %5258 = vmatprep.subr.bf16.mxu0 0
    %5259 = vmatpush1.bf16.xpose.msra.mxu0 0
    %5260 = vmatprep.subr.bf16.mxu0 0
    %5261 = vmatpush1.bf16.xpose.msra.mxu0 0
    %5262 = vmatprep.subr.bf16.mxu0 %v5246
    %5263 = vmatpush1.bf16.xpose.msra.mxu0 %v5240
    %5264 = vmatprep.subr.bf16.mxu0 0
    %5265 = vmatpush2.bf16.xpose.msra.mxu0 0
    %5266 = vmatprep.subr.bf16.mxu0 0
    %5267 = vmatpush2.bf16.xpose.msra.mxu0 0
    %5268 = vmatprep.subr.bf16.mxu0 0
    %5269 = vmatpush2.bf16.xpose.msra.mxu0 0
    %5270 = vmatprep.subr.bf16.mxu0 0
    %5271 = vmatpush2.bf16.xpose.msra.mxu0 0
    %5272 = vmatprep.subr.bf16.mxu0 0
    %5273 = vmatpush2.bf16.xpose.msra.mxu0 0
    %5274 = vmatprep.subr.bf16.mxu0 0
    %5275 = vmatpush2.bf16.xpose.msra.mxu0 0
    %5276 = vmatprep.subr.bf16.mxu0 0
    %5277 = vmatpush2.bf16.xpose.msra.mxu0 0
    %5278 = vmatprep.subr.bf16.mxu0 0
    %5279 = vmatpush2.bf16.xpose.msra.mxu0 0
    %5280 = vmatprep.mubr.bf16.mxu0 %v5243
    %5281 = vmatmul.mubr.bf16.gmra.mxu0 %v5233
    %v5282 = vpop.f32.mrf.mxu0
    %v5283 = vadd.f32 0.0, %v5282
    %v5284 = vpop.f32.mrf.mxu0
    %v5285 = vpop.f32.mrf.mxu0
    %v5286 = vpop.f32.mrf.mxu0
    %5287 = vdwg.mxu0
    %v5288 = vsel %vm4887, %v5283, -inf
    %5289 = vmax.xlane.f32.xlu0 %v5288
    %v5290 = vpop.xlane.xlu0 %5289
    %v5291 = vsub.f32 %v5283, %v5290
    %v5292 = vmul.f32 %v5291, 1.442695
    %v5293 = vpow.pop %v5292
    %v5294 = vsel %vm4887, %v5293, 0.0
    %5295 = vadd.xlane.f32.xlu0 %v5294
    %v5296 = vpop.xlane.xlu0 %5295
    %v5297 = vrcp.pop %v5296
    %v5298 = vmul.f32 %v5293, %v5297
    %v5299 = vpack.c.bf16 %v5298, %v5298
    %5301 = vrot.lane.b32.xlu0 %v5092, 32
    %v5302 = vpop.permute.xlu0 %5301
    %5303 = vrot.lane.b32.xlu0 %v5226, 32
    %v5304 = vpop.permute.xlu0 %5303
    %v5305 = vsel %vm5232, %v5302, %v5304
    %v5307 = vsel %vm4887, %v5299, 0
    %v5310 = vsel %vm4903, %v5305, 0
    %v5313 = vsel %vm4903, %v5304, 0
    %5315 = vmatprep.subr.bf16.mxu0 0
    %5316 = vmatpush1.bf16.msra.mxu0 0
    %5317 = vmatprep.subr.bf16.mxu0 0
    %5318 = vmatpush1.bf16.msra.mxu0 0
    %5319 = vmatprep.subr.bf16.mxu0 0
    %5320 = vmatpush1.bf16.msra.mxu0 0
    %5321 = vmatprep.subr.bf16.mxu0 0
    %5322 = vmatpush1.bf16.msra.mxu0 0
    %5323 = vmatprep.subr.bf16.mxu0 0
    %5324 = vmatpush1.bf16.msra.mxu0 0
    %5325 = vmatprep.subr.bf16.mxu0 0
    %5326 = vmatpush1.bf16.msra.mxu0 0
    %5327 = vmatprep.subr.bf16.mxu0 0
    %5328 = vmatpush1.bf16.msra.mxu0 0
    %5329 = vmatprep.subr.bf16.mxu0 %v5313
    %5330 = vmatpush1.bf16.msra.mxu0 %v5310
    %5331 = vmatprep.subr.bf16.mxu0 0
    %5332 = vmatpush2.bf16.msra.mxu0 0
    %5333 = vmatprep.subr.bf16.mxu0 0
    %5334 = vmatpush2.bf16.msra.mxu0 0
    %5335 = vmatprep.subr.bf16.mxu0 0
    %5336 = vmatpush2.bf16.msra.mxu0 0
    %5337 = vmatprep.subr.bf16.mxu0 0
    %5338 = vmatpush2.bf16.msra.mxu0 0
    %5339 = vmatprep.subr.bf16.mxu0 0
    %5340 = vmatpush2.bf16.msra.mxu0 0
    %5341 = vmatprep.subr.bf16.mxu0 0
    %5342 = vmatpush2.bf16.msra.mxu0 0
    %5343 = vmatprep.subr.bf16.mxu0 0
    %5344 = vmatpush2.bf16.msra.mxu0 0
    %5345 = vmatprep.subr.bf16.mxu0 0
    %5346 = vmatpush2.bf16.msra.mxu0 0
    %5347 = vmatprep.mubr.bf16.mxu0 0
    %5348 = vmatmul.mubr.bf16.gmra.mxu0 %v5307
    %v5349 = vpop.f32.mrf.mxu0
    %v5350 = vadd.f32 0.0, %v5349
    %v5351 = vpop.f32.mrf.mxu0
    %v5352 = vadd.f32 0.0, %v5351
    %v5353 = vpop.f32.mrf.mxu0
    %v5354 = vpop.f32.mrf.mxu0
    %5355 = vdwg.mxu0
    %v5356 = vpack.c.bf16 %v5350, %v5350
    %v5357 = vpack.c.bf16 %v5352, %v5352
    %5360 = vrot.lane.b32.xlu0 %v5088, 32
    %v5361 = vpop.permute.xlu0 %5360
    %5362 = vrot.lane.b32.xlu0 %v5089, 32
    %v5363 = vpop.permute.xlu0 %5362
    %v5364 = vsel %vm5232, %v5361, %v5363
    %5367 = vrot.lane.b32.xlu0 %v5222, 64
    %v5368 = vpop.permute.xlu0 %5367
    %5369 = vrot.lane.b32.xlu0 %v5223, 64
    %v5370 = vpop.permute.xlu0 %5369
    %v5371 = vsel %vm5098, %v5368, %v5370
    %5374 = vrot.lane.b32.xlu0 %v5356, 96
    %v5375 = vpop.permute.xlu0 %5374
    %5376 = vrot.lane.b32.xlu0 %v5357, 96
    %v5377 = vpop.permute.xlu0 %5376
    %v5378 = vsel %vm4962, %v5375, %v5377
    %v5382 = vsel %vm4840, %v4952, %v5361
    %vm5384 = vcmask 523264
    %v5387 = vsel %vm5384, %v5364, %v5368
    %vm5389 = vcmask 785408
    %v5392 = vsel %vm5389, %v5371, %v5375
    %v5394 = vld [vmem:[#allocation8] sm:$0xff]
    %v5395 = vld [vmem:[#allocation8 + $0x8] sm:$0xff]
    %v5396 = vld [vmem:[#allocation8 + $0x10] sm:$0xf]
    %v5397 = vld [vmem:[#allocation8 + $0x14] sm:$0xff]
    %v5398 = vld [vmem:[#allocation8 + $0x1c] sm:$0xff]
    %v5399 = vld [vmem:[#allocation8 + $0x24] sm:$0xf]
    %v5400 = vld [vmem:[#allocation8 + $0x28] sm:$0xff]
    %v5401 = vld [vmem:[#allocation8 + $0x30] sm:$0xff]
    %v5402 = vld [vmem:[#allocation8 + $0x38] sm:$0xf]
    %v5403 = vld [vmem:[#allocation8 + $0x3c] sm:$0xff]
    %v5404 = vld [vmem:[#allocation8 + $0x44] sm:$0xff]
    %v5405 = vld [vmem:[#allocation8 + $0x4c] sm:$0xf]
    %v5406 = vld [vmem:[#allocation8 + $0x50] sm:$0xff]
    %v5407 = vld [vmem:[#allocation8 + $0x58] sm:$0xff]
    %v5408 = vld [vmem:[#allocation8 + $0x60] sm:$0xf]
    %v5409 = vld [vmem:[#allocation8 + $0x64] sm:$0xff]
    %v5410 = vld [vmem:[#allocation8 + $0x6c] sm:$0xff]
    %v5411 = vld [vmem:[#allocation8 + $0x74] sm:$0xf]
    %v5412 = vld [vmem:[#allocation8 + $0x78] sm:$0xff]
    %v5413 = vld [vmem:[#allocation8 + $0x80] sm:$0xff]
    %v5414 = vld [vmem:[#allocation8 + $0x88] sm:$0xf]
    %v5415 = vld [vmem:[#allocation8 + $0x8c] sm:$0xff]
    %v5416 = vld [vmem:[#allocation8 + $0x94] sm:$0xff]
    %v5417 = vld [vmem:[#allocation8 + $0x9c] sm:$0xf]
    %v5418 = vld [vmem:[#allocation8 + $0xa0] sm:$0xff]
    %v5419 = vld [vmem:[#allocation8 + $0xa8] sm:$0xff]
    %v5420 = vld [vmem:[#allocation8 + $0xb0] sm:$0xf]
    %v5421 = vld [vmem:[#allocation8 + $0xb4] sm:$0xff]
    %v5422 = vld [vmem:[#allocation8 + $0xbc] sm:$0xff]
    %v5423 = vld [vmem:[#allocation8 + $0xc4] sm:$0xf]
    %v5424 = vld [vmem:[#allocation8 + $0xc8] sm:$0xff]
    %v5425 = vld [vmem:[#allocation8 + $0xd0] sm:$0xff]
    %v5426 = vld [vmem:[#allocation8 + $0xd8] sm:$0xf]
    %v5427 = vld [vmem:[#allocation8 + $0xdc] sm:$0xff]
    %v5428 = vld [vmem:[#allocation8 + $0xe4] sm:$0xff]
    %v5429 = vld [vmem:[#allocation8 + $0xec] sm:$0xf]
    %v5430 = vld [vmem:[#allocation8 + $0xf0] sm:$0xff]
    %v5431 = vld [vmem:[#allocation8 + $0xf8] sm:$0xff]
    %v5432 = vld [vmem:[#allocation8 + $0x100] sm:$0xf]
    %v5433 = vld [vmem:[#allocation8 + $0x104] sm:$0xff]
    %v5434 = vld [vmem:[#allocation8 + $0x10c] sm:$0xff]
    %v5435 = vld [vmem:[#allocation8 + $0x114] sm:$0xf]
    %v5436 = vld [vmem:[#allocation8 + $0x118] sm:$0xff]
    %v5437 = vld [vmem:[#allocation8 + $0x120] sm:$0xff]
    %v5438 = vld [vmem:[#allocation8 + $0x128] sm:$0xf]
    %v5439 = vld [vmem:[#allocation8 + $0x12c] sm:$0xff]
    %v5440 = vld [vmem:[#allocation8 + $0x134] sm:$0xff]
    %v5441 = vld [vmem:[#allocation8 + $0x13c] sm:$0xf]
    %v5442 = vld [vmem:[#allocation8 + $0x140] sm:$0xff]
    %v5443 = vld [vmem:[#allocation8 + $0x148] sm:$0xff]
    %v5444 = vld [vmem:[#allocation8 + $0x150] sm:$0xf]
    %v5445 = vld [vmem:[#allocation8 + $0x154] sm:$0xff]
    %v5446 = vld [vmem:[#allocation8 + $0x15c] sm:$0xff]
    %v5447 = vld [vmem:[#allocation8 + $0x164] sm:$0xf]
    %v5448 = vld [vmem:[#allocation8 + $0x168] sm:$0xff]
    %v5449 = vld [vmem:[#allocation8 + $0x170] sm:$0xff]
    %v5450 = vld [vmem:[#allocation8 + $0x178] sm:$0xf]
    %v5451 = vld [vmem:[#allocation8 + $0x17c] sm:$0xff]
    %v5452 = vld [vmem:[#allocation8 + $0x184] sm:$0xff]
    %v5453 = vld [vmem:[#allocation8 + $0x18c] sm:$0xf]
    %v5454 = vld [vmem:[#allocation8 + $0x190] sm:$0xff]
    %v5455 = vld [vmem:[#allocation8 + $0x198] sm:$0xff]
    %v5456 = vld [vmem:[#allocation8 + $0x1a0] sm:$0xf]
    %v5457 = vld [vmem:[#allocation8 + $0x1a4] sm:$0xff]
    %v5458 = vld [vmem:[#allocation8 + $0x1ac] sm:$0xff]
    %v5459 = vld [vmem:[#allocation8 + $0x1b4] sm:$0xf]
    %v5460 = vld [vmem:[#allocation8 + $0x1b8] sm:$0xff]
    %v5461 = vld [vmem:[#allocation8 + $0x1c0] sm:$0xff]
    %v5462 = vld [vmem:[#allocation8 + $0x1c8] sm:$0xf]
    %v5463 = vld [vmem:[#allocation8 + $0x1cc] sm:$0xff]
    %v5464 = vld [vmem:[#allocation8 + $0x1d4] sm:$0xff]
    %v5465 = vld [vmem:[#allocation8 + $0x1dc] sm:$0xf]
    %v5466 = vld [vmem:[#allocation8 + $0x1e0] sm:$0xff]
    %v5467 = vld [vmem:[#allocation8 + $0x1e8] sm:$0xff]
    %v5468 = vld [vmem:[#allocation8 + $0x1f0] sm:$0xf]
    %v5469 = vld [vmem:[#allocation8 + $0x1f4] sm:$0xff]
    %v5470 = vld [vmem:[#allocation8 + $0x1fc] sm:$0xff]
    %v5471 = vld [vmem:[#allocation8 + $0x204] sm:$0xf]
    %v5472 = vld [vmem:[#allocation8 + $0x208] sm:$0xff]
    %v5473 = vld [vmem:[#allocation8 + $0x210] sm:$0xff]
    %v5474 = vld [vmem:[#allocation8 + $0x218] sm:$0xf]
    %v5475 = vld [vmem:[#allocation8 + $0x21c] sm:$0xff]
    %v5476 = vld [vmem:[#allocation8 + $0x224] sm:$0xff]
    %v5477 = vld [vmem:[#allocation8 + $0x22c] sm:$0xf]
    %v5478 = vld [vmem:[#allocation8 + $0x230] sm:$0xff]
    %v5479 = vld [vmem:[#allocation8 + $0x238] sm:$0xff]
    %v5480 = vld [vmem:[#allocation8 + $0x240] sm:$0xf]
    %v5481 = vld [vmem:[#allocation8 + $0x244] sm:$0xff]
    %v5482 = vld [vmem:[#allocation8 + $0x24c] sm:$0xff]
    %v5483 = vld [vmem:[#allocation8 + $0x254] sm:$0xf]
    %v5484 = vld [vmem:[#allocation8 + $0x258] sm:$0xff]
    %v5485 = vld [vmem:[#allocation8 + $0x260] sm:$0xff]
    %v5486 = vld [vmem:[#allocation8 + $0x268] sm:$0xf]
    %v5487 = vld [vmem:[#allocation8 + $0x26c] sm:$0xff]
    %v5488 = vld [vmem:[#allocation8 + $0x274] sm:$0xff]
    %v5489 = vld [vmem:[#allocation8 + $0x27c] sm:$0xf]
    %v5490 = vld [vmem:[#allocation8 + $0x280] sm:$0xff]
    %v5491 = vld [vmem:[#allocation8 + $0x288] sm:$0xff]
    %v5492 = vld [vmem:[#allocation8 + $0x290] sm:$0xf]
    %v5493 = vld [vmem:[#allocation8 + $0x294] sm:$0xff]
    %v5494 = vld [vmem:[#allocation8 + $0x29c] sm:$0xff]
    %v5495 = vld [vmem:[#allocation8 + $0x2a4] sm:$0xf]
    %v5496 = vld [vmem:[#allocation8 + $0x2a8] sm:$0xff]
    %v5497 = vld [vmem:[#allocation8 + $0x2b0] sm:$0xff]
    %v5498 = vld [vmem:[#allocation8 + $0x2b8] sm:$0xf]
    %v5499 = vld [vmem:[#allocation8 + $0x2bc] sm:$0xff]
    %v5500 = vld [vmem:[#allocation8 + $0x2c4] sm:$0xff]
    %v5501 = vld [vmem:[#allocation8 + $0x2cc] sm:$0xf]
    %v5502 = vld [vmem:[#allocation8 + $0x2d0] sm:$0xff]
    %v5503 = vld [vmem:[#allocation8 + $0x2d8] sm:$0xff]
    %v5504 = vld [vmem:[#allocation8 + $0x2e0] sm:$0xf]
    %v5505 = vld [vmem:[#allocation8 + $0x2e4] sm:$0xff]
    %v5506 = vld [vmem:[#allocation8 + $0x2ec] sm:$0xff]
    %v5507 = vld [vmem:[#allocation8 + $0x2f4] sm:$0xf]
    %v5508 = vld [vmem:[#allocation8 + $0x2f8] sm:$0xff]
    %v5509 = vld [vmem:[#allocation8 + $0x300] sm:$0xff]
    %v5510 = vld [vmem:[#allocation8 + $0x308] sm:$0xf]
    %v5511 = vld [vmem:[#allocation8 + $0x30c] sm:$0xff]
    %v5512 = vld [vmem:[#allocation8 + $0x314] sm:$0xff]
    %v5513 = vld [vmem:[#allocation8 + $0x31c] sm:$0xf]
    %v5514 = vld [vmem:[#allocation8 + $0x320] sm:$0xff]
    %v5515 = vld [vmem:[#allocation8 + $0x328] sm:$0xff]
    %v5516 = vld [vmem:[#allocation8 + $0x330] sm:$0xf]
    %v5517 = vld [vmem:[#allocation8 + $0x334] sm:$0xff]
    %v5518 = vld [vmem:[#allocation8 + $0x33c] sm:$0xff]
    %v5519 = vld [vmem:[#allocation8 + $0x344] sm:$0xf]
    %v5520 = vld [vmem:[#allocation8 + $0x348] sm:$0xff]
    %v5521 = vld [vmem:[#allocation8 + $0x350] sm:$0xff]
    %v5522 = vld [vmem:[#allocation8 + $0x358] sm:$0xf]
    %v5523 = vld [vmem:[#allocation8 + $0x35c] sm:$0xff]
    %v5524 = vld [vmem:[#allocation8 + $0x364] sm:$0xff]
    %v5525 = vld [vmem:[#allocation8 + $0x36c] sm:$0xf]
    %v5526 = vld [vmem:[#allocation8 + $0x370] sm:$0xff]
    %v5527 = vld [vmem:[#allocation8 + $0x378] sm:$0xff]
    %v5528 = vld [vmem:[#allocation8 + $0x380] sm:$0xf]
    %v5529 = vld [vmem:[#allocation8 + $0x384] sm:$0xff]
    %v5530 = vld [vmem:[#allocation8 + $0x38c] sm:$0xff]
    %v5531 = vld [vmem:[#allocation8 + $0x394] sm:$0xf]
    %v5532 = vld [vmem:[#allocation8 + $0x398] sm:$0xff]
    %v5533 = vld [vmem:[#allocation8 + $0x3a0] sm:$0xff]
    %v5534 = vld [vmem:[#allocation8 + $0x3a8] sm:$0xf]
    %v5535 = vld [vmem:[#allocation8 + $0x3ac] sm:$0xff]
    %v5536 = vld [vmem:[#allocation8 + $0x3b4] sm:$0xff]
    %v5537 = vld [vmem:[#allocation8 + $0x3bc] sm:$0xf]
    %v5538 = vld [vmem:[#allocation8 + $0x3c0] sm:$0xff]
    %v5539 = vld [vmem:[#allocation8 + $0x3c8] sm:$0xff]
    %v5540 = vld [vmem:[#allocation8 + $0x3d0] sm:$0xf]
    %v5541 = vld [vmem:[#allocation8 + $0x3d4] sm:$0xff]
    %v5542 = vld [vmem:[#allocation8 + $0x3dc] sm:$0xff]
    %v5543 = vld [vmem:[#allocation8 + $0x3e4] sm:$0xf]
    %v5544 = vld [vmem:[#allocation8 + $0x3e8] sm:$0xff]
    %v5545 = vld [vmem:[#allocation8 + $0x3f0] sm:$0xff]
    %v5546 = vld [vmem:[#allocation8 + $0x3f8] sm:$0xf]
    %v5547 = vld [vmem:[#allocation8 + $0x3fc] sm:$0xff]
    %v5548 = vld [vmem:[#allocation8 + $0x404] sm:$0xff]
    %v5549 = vld [vmem:[#allocation8 + $0x40c] sm:$0xf]
    %v5550 = vld [vmem:[#allocation8 + $0x410] sm:$0xff]
    %v5551 = vld [vmem:[#allocation8 + $0x418] sm:$0xff]
    %v5552 = vld [vmem:[#allocation8 + $0x420] sm:$0xf]
    %v5553 = vld [vmem:[#allocation8 + $0x424] sm:$0xff]
    %v5554 = vld [vmem:[#allocation8 + $0x42c] sm:$0xff]
    %v5555 = vld [vmem:[#allocation8 + $0x434] sm:$0xf]
    %v5556 = vld [vmem:[#allocation8 + $0x438] sm:$0xff]
    %v5557 = vld [vmem:[#allocation8 + $0x440] sm:$0xff]
    %v5558 = vld [vmem:[#allocation8 + $0x448] sm:$0xf]
    %v5559 = vld [vmem:[#allocation8 + $0x44c] sm:$0xff]
    %v5560 = vld [vmem:[#allocation8 + $0x454] sm:$0xff]
    %v5561 = vld [vmem:[#allocation8 + $0x45c] sm:$0xf]
    %v5562 = vld [vmem:[#allocation8 + $0x460] sm:$0xff]
    %v5563 = vld [vmem:[#allocation8 + $0x468] sm:$0xff]
    %v5564 = vld [vmem:[#allocation8 + $0x470] sm:$0xf]
    %v5565 = vld [vmem:[#allocation8 + $0x474] sm:$0xff]
    %v5566 = vld [vmem:[#allocation8 + $0x47c] sm:$0xff]
    %v5567 = vld [vmem:[#allocation8 + $0x484] sm:$0xf]
    %v5568 = vld [vmem:[#allocation8 + $0x488] sm:$0xff]
    %v5569 = vld [vmem:[#allocation8 + $0x490] sm:$0xff]
    %v5570 = vld [vmem:[#allocation8 + $0x498] sm:$0xf]
    %v5571 = vld [vmem:[#allocation8 + $0x49c] sm:$0xff]
    %v5572 = vld [vmem:[#allocation8 + $0x4a4] sm:$0xff]
    %v5573 = vld [vmem:[#allocation8 + $0x4ac] sm:$0xf]
    %v5574 = vld [vmem:[#allocation8 + $0x4b0] sm:$0xff]
    %v5575 = vld [vmem:[#allocation8 + $0x4b8] sm:$0xff]
    %v5576 = vld [vmem:[#allocation8 + $0x4c0] sm:$0xf]
    %v5577 = vld [vmem:[#allocation8 + $0x4c4] sm:$0xff]
    %v5578 = vld [vmem:[#allocation8 + $0x4cc] sm:$0xff]
    %v5579 = vld [vmem:[#allocation8 + $0x4d4] sm:$0xf]
    %v5580 = vld [vmem:[#allocation8 + $0x4d8] sm:$0xff]
    %v5581 = vld [vmem:[#allocation8 + $0x4e0] sm:$0xff]
    %v5582 = vld [vmem:[#allocation8 + $0x4e8] sm:$0xf]
    %v5583 = vld [vmem:[#allocation8 + $0x4ec] sm:$0xff]
    %v5584 = vld [vmem:[#allocation8 + $0x4f4] sm:$0xff]
    %v5585 = vld [vmem:[#allocation8 + $0x4fc] sm:$0xf]
    %v5586 = vld [vmem:[#allocation8 + $0x500] sm:$0xff]
    %v5587 = vld [vmem:[#allocation8 + $0x508] sm:$0xff]
    %v5588 = vld [vmem:[#allocation8 + $0x510] sm:$0xf]
    %v5589 = vld [vmem:[#allocation8 + $0x514] sm:$0xff]
    %v5590 = vld [vmem:[#allocation8 + $0x51c] sm:$0xff]
    %v5591 = vld [vmem:[#allocation8 + $0x524] sm:$0xf]
    %v5592 = vld [vmem:[#allocation8 + $0x528] sm:$0xff]
    %v5593 = vld [vmem:[#allocation8 + $0x530] sm:$0xff]
    %v5594 = vld [vmem:[#allocation8 + $0x538] sm:$0xf]
    %v5595 = vld [vmem:[#allocation8 + $0x53c] sm:$0xff]
    %v5596 = vld [vmem:[#allocation8 + $0x544] sm:$0xff]
    %v5597 = vld [vmem:[#allocation8 + $0x54c] sm:$0xf]
    %v5598 = vld [vmem:[#allocation8 + $0x550] sm:$0xff]
    %v5599 = vld [vmem:[#allocation8 + $0x558] sm:$0xff]
    %v5600 = vld [vmem:[#allocation8 + $0x560] sm:$0xf]
    %v5601 = vld [vmem:[#allocation8 + $0x564] sm:$0xff]
    %v5602 = vld [vmem:[#allocation8 + $0x56c] sm:$0xff]
    %v5603 = vld [vmem:[#allocation8 + $0x574] sm:$0xf]
    %v5604 = vld [vmem:[#allocation8 + $0x578] sm:$0xff]
    %v5605 = vld [vmem:[#allocation8 + $0x580] sm:$0xff]
    %v5606 = vld [vmem:[#allocation8 + $0x588] sm:$0xf]
    %v5607 = vld [vmem:[#allocation8 + $0x58c] sm:$0xff]
    %v5608 = vld [vmem:[#allocation8 + $0x594] sm:$0xff]
    %v5609 = vld [vmem:[#allocation8 + $0x59c] sm:$0xf]
    %v5610 = vld [vmem:[#allocation8 + $0x5a0] sm:$0xff]
    %v5611 = vld [vmem:[#allocation8 + $0x5a8] sm:$0xff]
    %v5612 = vld [vmem:[#allocation8 + $0x5b0] sm:$0xf]
    %v5613 = vld [vmem:[#allocation8 + $0x5b4] sm:$0xff]
    %v5614 = vld [vmem:[#allocation8 + $0x5bc] sm:$0xff]
    %v5615 = vld [vmem:[#allocation8 + $0x5c4] sm:$0xf]
    %v5616 = vld [vmem:[#allocation8 + $0x5c8] sm:$0xff]
    %v5617 = vld [vmem:[#allocation8 + $0x5d0] sm:$0xff]
    %v5618 = vld [vmem:[#allocation8 + $0x5d8] sm:$0xf]
    %v5619 = vld [vmem:[#allocation8 + $0x5dc] sm:$0xff]
    %v5620 = vld [vmem:[#allocation8 + $0x5e4] sm:$0xff]
    %v5621 = vld [vmem:[#allocation8 + $0x5ec] sm:$0xf]
    %v5622 = vld [vmem:[#allocation8 + $0x5f0] sm:$0xff]
    %v5623 = vld [vmem:[#allocation8 + $0x5f8] sm:$0xff]
    %v5624 = vld [vmem:[#allocation8 + $0x600] sm:$0xf]
    %v5625 = vld [vmem:[#allocation8 + $0x604] sm:$0xff]
    %v5626 = vld [vmem:[#allocation8 + $0x60c] sm:$0xff]
    %v5627 = vld [vmem:[#allocation8 + $0x614] sm:$0xf]
    %v5628 = vld [vmem:[#allocation8 + $0x618] sm:$0xff]
    %v5629 = vld [vmem:[#allocation8 + $0x620] sm:$0xff]
    %v5630 = vld [vmem:[#allocation8 + $0x628] sm:$0xf]
    %v5631 = vld [vmem:[#allocation8 + $0x62c] sm:$0xff]
    %v5632 = vld [vmem:[#allocation8 + $0x634] sm:$0xff]
    %v5633 = vld [vmem:[#allocation8 + $0x63c] sm:$0xf]
    %v5634 = vld [vmem:[#allocation10] sm:$0x1f]
    %v5636 = vlaneseq
    %v5637 = vshrl.u32 %v5636, 7
    %v5638 = vsub.s32 0, %v5637
    %v5639 = vrot.slane %v5634, %v5638
    %v5640 = vlaneseq
    %v5641 = vshrl.u32 %v5640, 7
    %v5642 = vsub.s32 1, %v5641
    %v5643 = vrot.slane %v5634, %v5642
    %v5644 = vlaneseq
    %v5645 = vshrl.u32 %v5644, 7
    %v5646 = vsub.s32 2, %v5645
    %v5647 = vrot.slane %v5634, %v5646
    %v5648 = vlaneseq
    %v5649 = vshrl.u32 %v5648, 7
    %v5650 = vsub.s32 3, %v5649
    %v5651 = vrot.slane %v5634, %v5650
    %v5652 = vlaneseq
    %v5653 = vshrl.u32 %v5652, 7
    %v5654 = vsub.s32 4, %v5653
    %v5655 = vrot.slane %v5634, %v5654
    %v5901 = vunpack.c.l.b16 %v5394
    %v5902 = vunpack.c.h.b16 %v5394
    %v5903 = vunpack.c.l.b16 %v5395
    %v5904 = vunpack.c.h.b16 %v5395
    %v5905 = vunpack.c.l.b16 %v5396
    %v5906 = vunpack.c.l.b16 %v5397
    %v5907 = vunpack.c.h.b16 %v5397
    %v5908 = vunpack.c.l.b16 %v5398
    %v5909 = vunpack.c.h.b16 %v5398
    %v5910 = vunpack.c.l.b16 %v5399
    %v5911 = vunpack.c.l.b16 %v5400
    %v5912 = vunpack.c.h.b16 %v5400
    %v5913 = vunpack.c.l.b16 %v5401
    %v5914 = vunpack.c.h.b16 %v5401
    %v5915 = vunpack.c.l.b16 %v5402
    %v5916 = vunpack.c.l.b16 %v5403
    %v5917 = vunpack.c.h.b16 %v5403
    %v5918 = vunpack.c.l.b16 %v5404
    %v5919 = vunpack.c.h.b16 %v5404
    %v5920 = vunpack.c.l.b16 %v5405
    %v5921 = vunpack.c.l.b16 %v5406
    %v5922 = vunpack.c.h.b16 %v5406
    %v5923 = vunpack.c.l.b16 %v5407
    %v5924 = vunpack.c.h.b16 %v5407
    %v5925 = vunpack.c.l.b16 %v5408
    %v5926 = vunpack.c.l.b16 %v5409
    %v5927 = vunpack.c.h.b16 %v5409
    %v5928 = vunpack.c.l.b16 %v5410
    %v5929 = vunpack.c.h.b16 %v5410
    %v5930 = vunpack.c.l.b16 %v5411
    %v5931 = vunpack.c.l.b16 %v5412
    %v5932 = vunpack.c.h.b16 %v5412
    %v5933 = vunpack.c.l.b16 %v5413
    %v5934 = vunpack.c.h.b16 %v5413
    %v5935 = vunpack.c.l.b16 %v5414
    %v5936 = vunpack.c.l.b16 %v5415
    %v5937 = vunpack.c.h.b16 %v5415
    %v5938 = vunpack.c.l.b16 %v5416
    %v5939 = vunpack.c.h.b16 %v5416
    %v5940 = vunpack.c.l.b16 %v5417
    %v5941 = vunpack.c.l.b16 %v5418
    %v5942 = vunpack.c.h.b16 %v5418
    %v5943 = vunpack.c.l.b16 %v5419
    %v5944 = vunpack.c.h.b16 %v5419
    %v5945 = vunpack.c.l.b16 %v5420
    %v5946 = vunpack.c.l.b16 %v5421
    %v5947 = vunpack.c.h.b16 %v5421
    %v5948 = vunpack.c.l.b16 %v5422
    %v5949 = vunpack.c.h.b16 %v5422
    %v5950 = vunpack.c.l.b16 %v5423
    %v5951 = vunpack.c.l.b16 %v5424
    %v5952 = vunpack.c.h.b16 %v5424
    %v5953 = vunpack.c.l.b16 %v5425
    %v5954 = vunpack.c.h.b16 %v5425
    %v5955 = vunpack.c.l.b16 %v5426
    %v5956 = vunpack.c.l.b16 %v5427
    %v5957 = vunpack.c.h.b16 %v5427
    %v5958 = vunpack.c.l.b16 %v5428
    %v5959 = vunpack.c.h.b16 %v5428
    %v5960 = vunpack.c.l.b16 %v5429
    %v5961 = vunpack.c.l.b16 %v5430
    %v5962 = vunpack.c.h.b16 %v5430
    %v5963 = vunpack.c.l.b16 %v5431
    %v5964 = vunpack.c.h.b16 %v5431
    %v5965 = vunpack.c.l.b16 %v5432
    %v5966 = vunpack.c.l.b16 %v5433
    %v5967 = vunpack.c.h.b16 %v5433
    %v5968 = vunpack.c.l.b16 %v5434
    %v5969 = vunpack.c.h.b16 %v5434
    %v5970 = vunpack.c.l.b16 %v5435
    %v5971 = vunpack.c.l.b16 %v5436
    %v5972 = vunpack.c.h.b16 %v5436
    %v5973 = vunpack.c.l.b16 %v5437
    %v5974 = vunpack.c.h.b16 %v5437
    %v5975 = vunpack.c.l.b16 %v5438
    %v5976 = vunpack.c.l.b16 %v5439
    %v5977 = vunpack.c.h.b16 %v5439
    %v5978 = vunpack.c.l.b16 %v5440
    %v5979 = vunpack.c.h.b16 %v5440
    %v5980 = vunpack.c.l.b16 %v5441
    %v5981 = vunpack.c.l.b16 %v5442
    %v5982 = vunpack.c.h.b16 %v5442
    %v5983 = vunpack.c.l.b16 %v5443
    %v5984 = vunpack.c.h.b16 %v5443
    %v5985 = vunpack.c.l.b16 %v5444
    %v5986 = vunpack.c.l.b16 %v5445
    %v5987 = vunpack.c.h.b16 %v5445
    %v5988 = vunpack.c.l.b16 %v5446
    %v5989 = vunpack.c.h.b16 %v5446
    %v5990 = vunpack.c.l.b16 %v5447
    %v5991 = vunpack.c.l.b16 %v5448
    %v5992 = vunpack.c.h.b16 %v5448
    %v5993 = vunpack.c.l.b16 %v5449
    %v5994 = vunpack.c.h.b16 %v5449
    %v5995 = vunpack.c.l.b16 %v5450
    %v5996 = vunpack.c.l.b16 %v5451
    %v5997 = vunpack.c.h.b16 %v5451
    %v5998 = vunpack.c.l.b16 %v5452
    %v5999 = vunpack.c.h.b16 %v5452
    %v6000 = vunpack.c.l.b16 %v5453
    %v6001 = vunpack.c.l.b16 %v5454
    %v6002 = vunpack.c.h.b16 %v5454
    %v6003 = vunpack.c.l.b16 %v5455
    %v6004 = vunpack.c.h.b16 %v5455
    %v6005 = vunpack.c.l.b16 %v5456
    %v6006 = vunpack.c.l.b16 %v5457
    %v6007 = vunpack.c.h.b16 %v5457
    %v6008 = vunpack.c.l.b16 %v5458
    %v6009 = vunpack.c.h.b16 %v5458
    %v6010 = vunpack.c.l.b16 %v5459
    %v6011 = vunpack.c.l.b16 %v5460
    %v6012 = vunpack.c.h.b16 %v5460
    %v6013 = vunpack.c.l.b16 %v5461
    %v6014 = vunpack.c.h.b16 %v5461
    %v6015 = vunpack.c.l.b16 %v5462
    %v6016 = vunpack.c.l.b16 %v5463
    %v6017 = vunpack.c.h.b16 %v5463
    %v6018 = vunpack.c.l.b16 %v5464
    %v6019 = vunpack.c.h.b16 %v5464
    %v6020 = vunpack.c.l.b16 %v5465
    %v6021 = vunpack.c.l.b16 %v5466
    %v6022 = vunpack.c.h.b16 %v5466
    %v6023 = vunpack.c.l.b16 %v5467
    %v6024 = vunpack.c.h.b16 %v5467
    %v6025 = vunpack.c.l.b16 %v5468
    %v6026 = vunpack.c.l.b16 %v5469
    %v6027 = vunpack.c.h.b16 %v5469
    %v6028 = vunpack.c.l.b16 %v5470
    %v6029 = vunpack.c.h.b16 %v5470
    %v6030 = vunpack.c.l.b16 %v5471
    %v6031 = vunpack.c.l.b16 %v5472
    %v6032 = vunpack.c.h.b16 %v5472
    %v6033 = vunpack.c.l.b16 %v5473
    %v6034 = vunpack.c.h.b16 %v5473
    %v6035 = vunpack.c.l.b16 %v5474
    %v6036 = vunpack.c.l.b16 %v5475
    %v6037 = vunpack.c.h.b16 %v5475
    %v6038 = vunpack.c.l.b16 %v5476
    %v6039 = vunpack.c.h.b16 %v5476
    %v6040 = vunpack.c.l.b16 %v5477
    %v6041 = vunpack.c.l.b16 %v5478
    %v6042 = vunpack.c.h.b16 %v5478
    %v6043 = vunpack.c.l.b16 %v5479
    %v6044 = vunpack.c.h.b16 %v5479
    %v6045 = vunpack.c.l.b16 %v5480
    %v6046 = vunpack.c.l.b16 %v5481
    %v6047 = vunpack.c.h.b16 %v5481
    %v6048 = vunpack.c.l.b16 %v5482
    %v6049 = vunpack.c.h.b16 %v5482
    %v6050 = vunpack.c.l.b16 %v5483
    %v6051 = vunpack.c.l.b16 %v5484
    %v6052 = vunpack.c.h.b16 %v5484
    %v6053 = vunpack.c.l.b16 %v5485
    %v6054 = vunpack.c.h.b16 %v5485
    %v6055 = vunpack.c.l.b16 %v5486
    %v6056 = vunpack.c.l.b16 %v5487
    %v6057 = vunpack.c.h.b16 %v5487
    %v6058 = vunpack.c.l.b16 %v5488
    %v6059 = vunpack.c.h.b16 %v5488
    %v6060 = vunpack.c.l.b16 %v5489
    %v6061 = vunpack.c.l.b16 %v5490
    %v6062 = vunpack.c.h.b16 %v5490
    %v6063 = vunpack.c.l.b16 %v5491
    %v6064 = vunpack.c.h.b16 %v5491
    %v6065 = vunpack.c.l.b16 %v5492
    %v6066 = vunpack.c.l.b16 %v5493
    %v6067 = vunpack.c.h.b16 %v5493
    %v6068 = vunpack.c.l.b16 %v5494
    %v6069 = vunpack.c.h.b16 %v5494
    %v6070 = vunpack.c.l.b16 %v5495
    %v6071 = vunpack.c.l.b16 %v5496
    %v6072 = vunpack.c.h.b16 %v5496
    %v6073 = vunpack.c.l.b16 %v5497
    %v6074 = vunpack.c.h.b16 %v5497
    %v6075 = vunpack.c.l.b16 %v5498
    %v6076 = vunpack.c.l.b16 %v5499
    %v6077 = vunpack.c.h.b16 %v5499
    %v6078 = vunpack.c.l.b16 %v5500
    %v6079 = vunpack.c.h.b16 %v5500
    %v6080 = vunpack.c.l.b16 %v5501
    %v6081 = vunpack.c.l.b16 %v5502
    %v6082 = vunpack.c.h.b16 %v5502
    %v6083 = vunpack.c.l.b16 %v5503
    %v6084 = vunpack.c.h.b16 %v5503
    %v6085 = vunpack.c.l.b16 %v5504
    %v6086 = vunpack.c.l.b16 %v5505
    %v6087 = vunpack.c.h.b16 %v5505
    %v6088 = vunpack.c.l.b16 %v5506
    %v6089 = vunpack.c.h.b16 %v5506
    %v6090 = vunpack.c.l.b16 %v5507
    %v6091 = vunpack.c.l.b16 %v5508
    %v6092 = vunpack.c.h.b16 %v5508
    %v6093 = vunpack.c.l.b16 %v5509
    %v6094 = vunpack.c.h.b16 %v5509
    %v6095 = vunpack.c.l.b16 %v5510
    %v6096 = vunpack.c.l.b16 %v5511
    %v6097 = vunpack.c.h.b16 %v5511
    %v6098 = vunpack.c.l.b16 %v5512
    %v6099 = vunpack.c.h.b16 %v5512
    %v6100 = vunpack.c.l.b16 %v5513
    %v6101 = vunpack.c.l.b16 %v5514
    %v6102 = vunpack.c.h.b16 %v5514
    %v6103 = vunpack.c.l.b16 %v5515
    %v6104 = vunpack.c.h.b16 %v5515
    %v6105 = vunpack.c.l.b16 %v5516
    %v6106 = vunpack.c.l.b16 %v5517
    %v6107 = vunpack.c.h.b16 %v5517
    %v6108 = vunpack.c.l.b16 %v5518
    %v6109 = vunpack.c.h.b16 %v5518
    %v6110 = vunpack.c.l.b16 %v5519
    %v6111 = vunpack.c.l.b16 %v5520
    %v6112 = vunpack.c.h.b16 %v5520
    %v6113 = vunpack.c.l.b16 %v5521
    %v6114 = vunpack.c.h.b16 %v5521
    %v6115 = vunpack.c.l.b16 %v5522
    %v6116 = vunpack.c.l.b16 %v5523
    %v6117 = vunpack.c.h.b16 %v5523
    %v6118 = vunpack.c.l.b16 %v5524
    %v6119 = vunpack.c.h.b16 %v5524
    %v6120 = vunpack.c.l.b16 %v5525
    %v6121 = vunpack.c.l.b16 %v5526
    %v6122 = vunpack.c.h.b16 %v5526
    %v6123 = vunpack.c.l.b16 %v5527
    %v6124 = vunpack.c.h.b16 %v5527
    %v6125 = vunpack.c.l.b16 %v5528
    %v6126 = vunpack.c.l.b16 %v5529
    %v6127 = vunpack.c.h.b16 %v5529
    %v6128 = vunpack.c.l.b16 %v5530
    %v6129 = vunpack.c.h.b16 %v5530
    %v6130 = vunpack.c.l.b16 %v5531
    %v6131 = vunpack.c.l.b16 %v5532
    %v6132 = vunpack.c.h.b16 %v5532
    %v6133 = vunpack.c.l.b16 %v5533
    %v6134 = vunpack.c.h.b16 %v5533
    %v6135 = vunpack.c.l.b16 %v5534
    %v6136 = vunpack.c.l.b16 %v5535
    %v6137 = vunpack.c.h.b16 %v5535
    %v6138 = vunpack.c.l.b16 %v5536
    %v6139 = vunpack.c.h.b16 %v5536
    %v6140 = vunpack.c.l.b16 %v5537
    %v6141 = vunpack.c.l.b16 %v5538
    %v6142 = vunpack.c.h.b16 %v5538
    %v6143 = vunpack.c.l.b16 %v5539
    %v6144 = vunpack.c.h.b16 %v5539
    %v6145 = vunpack.c.l.b16 %v5540
    %v6146 = vunpack.c.l.b16 %v5541
    %v6147 = vunpack.c.h.b16 %v5541
    %v6148 = vunpack.c.l.b16 %v5542
    %v6149 = vunpack.c.h.b16 %v5542
    %v6150 = vunpack.c.l.b16 %v5543
    %v6151 = vunpack.c.l.b16 %v5544
    %v6152 = vunpack.c.h.b16 %v5544
    %v6153 = vunpack.c.l.b16 %v5545
    %v6154 = vunpack.c.h.b16 %v5545
    %v6155 = vunpack.c.l.b16 %v5546
    %v6156 = vunpack.c.l.b16 %v5547
    %v6157 = vunpack.c.h.b16 %v5547
    %v6158 = vunpack.c.l.b16 %v5548
    %v6159 = vunpack.c.h.b16 %v5548
    %v6160 = vunpack.c.l.b16 %v5549
    %v6161 = vunpack.c.l.b16 %v5550
    %v6162 = vunpack.c.h.b16 %v5550
    %v6163 = vunpack.c.l.b16 %v5551
    %v6164 = vunpack.c.h.b16 %v5551
    %v6165 = vunpack.c.l.b16 %v5552
    %v6166 = vunpack.c.l.b16 %v5553
    %v6167 = vunpack.c.h.b16 %v5553
    %v6168 = vunpack.c.l.b16 %v5554
    %v6169 = vunpack.c.h.b16 %v5554
    %v6170 = vunpack.c.l.b16 %v5555
    %v6171 = vunpack.c.l.b16 %v5556
    %v6172 = vunpack.c.h.b16 %v5556
    %v6173 = vunpack.c.l.b16 %v5557
    %v6174 = vunpack.c.h.b16 %v5557
    %v6175 = vunpack.c.l.b16 %v5558
    %v6176 = vunpack.c.l.b16 %v5559
    %v6177 = vunpack.c.h.b16 %v5559
    %v6178 = vunpack.c.l.b16 %v5560
    %v6179 = vunpack.c.h.b16 %v5560
    %v6180 = vunpack.c.l.b16 %v5561
    %v6181 = vunpack.c.l.b16 %v5562
    %v6182 = vunpack.c.h.b16 %v5562
    %v6183 = vunpack.c.l.b16 %v5563
    %v6184 = vunpack.c.h.b16 %v5563
    %v6185 = vunpack.c.l.b16 %v5564
    %v6186 = vunpack.c.l.b16 %v5565
    %v6187 = vunpack.c.h.b16 %v5565
    %v6188 = vunpack.c.l.b16 %v5566
    %v6189 = vunpack.c.h.b16 %v5566
    %v6190 = vunpack.c.l.b16 %v5567
    %v6191 = vunpack.c.l.b16 %v5568
    %v6192 = vunpack.c.h.b16 %v5568
    %v6193 = vunpack.c.l.b16 %v5569
    %v6194 = vunpack.c.h.b16 %v5569
    %v6195 = vunpack.c.l.b16 %v5570
    %v6196 = vunpack.c.l.b16 %v5571
    %v6197 = vunpack.c.h.b16 %v5571
    %v6198 = vunpack.c.l.b16 %v5572
    %v6199 = vunpack.c.h.b16 %v5572
    %v6200 = vunpack.c.l.b16 %v5573
    %v6201 = vunpack.c.l.b16 %v5574
    %v6202 = vunpack.c.h.b16 %v5574
    %v6203 = vunpack.c.l.b16 %v5575
    %v6204 = vunpack.c.h.b16 %v5575
    %v6205 = vunpack.c.l.b16 %v5576
    %v6206 = vunpack.c.l.b16 %v5577
    %v6207 = vunpack.c.h.b16 %v5577
    %v6208 = vunpack.c.l.b16 %v5578
    %v6209 = vunpack.c.h.b16 %v5578
    %v6210 = vunpack.c.l.b16 %v5579
    %v6211 = vunpack.c.l.b16 %v5580
    %v6212 = vunpack.c.h.b16 %v5580
    %v6213 = vunpack.c.l.b16 %v5581
    %v6214 = vunpack.c.h.b16 %v5581
    %v6215 = vunpack.c.l.b16 %v5582
    %v6216 = vunpack.c.l.b16 %v5583
    %v6217 = vunpack.c.h.b16 %v5583
    %v6218 = vunpack.c.l.b16 %v5584
    %v6219 = vunpack.c.h.b16 %v5584
    %v6220 = vunpack.c.l.b16 %v5585
    %v6221 = vunpack.c.l.b16 %v5586
    %v6222 = vunpack.c.h.b16 %v5586
    %v6223 = vunpack.c.l.b16 %v5587
    %v6224 = vunpack.c.h.b16 %v5587
    %v6225 = vunpack.c.l.b16 %v5588
    %v6226 = vunpack.c.l.b16 %v5589
    %v6227 = vunpack.c.h.b16 %v5589
    %v6228 = vunpack.c.l.b16 %v5590
    %v6229 = vunpack.c.h.b16 %v5590
    %v6230 = vunpack.c.l.b16 %v5591
    %v6231 = vunpack.c.l.b16 %v5592
    %v6232 = vunpack.c.h.b16 %v5592
    %v6233 = vunpack.c.l.b16 %v5593
    %v6234 = vunpack.c.h.b16 %v5593
    %v6235 = vunpack.c.l.b16 %v5594
    %v6236 = vunpack.c.l.b16 %v5595
    %v6237 = vunpack.c.h.b16 %v5595
    %v6238 = vunpack.c.l.b16 %v5596
    %v6239 = vunpack.c.h.b16 %v5596
    %v6240 = vunpack.c.l.b16 %v5597
    %v6241 = vunpack.c.l.b16 %v5598
    %v6242 = vunpack.c.h.b16 %v5598
    %v6243 = vunpack.c.l.b16 %v5599
    %v6244 = vunpack.c.h.b16 %v5599
    %v6245 = vunpack.c.l.b16 %v5600
    %v6246 = vunpack.c.l.b16 %v5601
    %v6247 = vunpack.c.h.b16 %v5601
    %v6248 = vunpack.c.l.b16 %v5602
    %v6249 = vunpack.c.h.b16 %v5602
    %v6250 = vunpack.c.l.b16 %v5603
    %v6251 = vunpack.c.l.b16 %v5604
    %v6252 = vunpack.c.h.b16 %v5604
    %v6253 = vunpack.c.l.b16 %v5605
    %v6254 = vunpack.c.h.b16 %v5605
    %v6255 = vunpack.c.l.b16 %v5606
    %v6256 = vunpack.c.l.b16 %v5607
    %v6257 = vunpack.c.h.b16 %v5607
    %v6258 = vunpack.c.l.b16 %v5608
    %v6259 = vunpack.c.h.b16 %v5608
    %v6260 = vunpack.c.l.b16 %v5609
    %v6261 = vunpack.c.l.b16 %v5610
    %v6262 = vunpack.c.h.b16 %v5610
    %v6263 = vunpack.c.l.b16 %v5611
    %v6264 = vunpack.c.h.b16 %v5611
    %v6265 = vunpack.c.l.b16 %v5612
    %v6266 = vunpack.c.l.b16 %v5613
    %v6267 = vunpack.c.h.b16 %v5613
    %v6268 = vunpack.c.l.b16 %v5614
    %v6269 = vunpack.c.h.b16 %v5614
    %v6270 = vunpack.c.l.b16 %v5615
    %v6271 = vunpack.c.l.b16 %v5616
    %v6272 = vunpack.c.h.b16 %v5616
    %v6273 = vunpack.c.l.b16 %v5617
    %v6274 = vunpack.c.h.b16 %v5617
    %v6275 = vunpack.c.l.b16 %v5618
    %v6276 = vunpack.c.l.b16 %v5619
    %v6277 = vunpack.c.h.b16 %v5619
    %v6278 = vunpack.c.l.b16 %v5620
    %v6279 = vunpack.c.h.b16 %v5620
    %v6280 = vunpack.c.l.b16 %v5621
    %v6281 = vunpack.c.l.b16 %v5622
    %v6282 = vunpack.c.h.b16 %v5622
    %v6283 = vunpack.c.l.b16 %v5623
    %v6284 = vunpack.c.h.b16 %v5623
    %v6285 = vunpack.c.l.b16 %v5624
    %v6286 = vunpack.c.l.b16 %v5625
    %v6287 = vunpack.c.h.b16 %v5625
    %v6288 = vunpack.c.l.b16 %v5626
    %v6289 = vunpack.c.h.b16 %v5626
    %v6290 = vunpack.c.l.b16 %v5627
    %v6291 = vunpack.c.l.b16 %v5628
    %v6292 = vunpack.c.h.b16 %v5628
    %v6293 = vunpack.c.l.b16 %v5629
    %v6294 = vunpack.c.h.b16 %v5629
    %v6295 = vunpack.c.l.b16 %v5630
    %v6296 = vunpack.c.l.b16 %v5631
    %v6297 = vunpack.c.h.b16 %v5631
    %v6298 = vunpack.c.l.b16 %v5632
    %v6299 = vunpack.c.h.b16 %v5632
    %v6300 = vunpack.c.l.b16 %v5633
    %v6301 = vpack.c.b16 %v5906, %v5901
    %v6302 = vpack.c.b16 %v5907, %v5902
    %v6303 = vpack.c.b16 %v5908, %v5903
    %v6304 = vpack.c.b16 %v5909, %v5904
    %v6305 = vpack.c.b16 %v5910, %v5905
    %v6306 = vpack.c.b16 %v5916, %v5911
    %v6307 = vpack.c.b16 %v5917, %v5912
    %v6308 = vpack.c.b16 %v5918, %v5913
    %v6309 = vpack.c.b16 %v5919, %v5914
    %v6310 = vpack.c.b16 %v5920, %v5915
    %v6311 = vpack.c.b16 %v5926, %v5921
    %v6312 = vpack.c.b16 %v5927, %v5922
    %v6313 = vpack.c.b16 %v5928, %v5923
    %v6314 = vpack.c.b16 %v5929, %v5924
    %v6315 = vpack.c.b16 %v5930, %v5925
    %v6316 = vpack.c.b16 %v5936, %v5931
    %v6317 = vpack.c.b16 %v5937, %v5932
    %v6318 = vpack.c.b16 %v5938, %v5933
    %v6319 = vpack.c.b16 %v5939, %v5934
    %v6320 = vpack.c.b16 %v5940, %v5935
    %v6321 = vpack.c.b16 %v5946, %v5941
    %v6322 = vpack.c.b16 %v5947, %v5942
    %v6323 = vpack.c.b16 %v5948, %v5943
    %v6324 = vpack.c.b16 %v5949, %v5944
    %v6325 = vpack.c.b16 %v5950, %v5945
    %v6326 = vpack.c.b16 %v5956, %v5951
    %v6327 = vpack.c.b16 %v5957, %v5952
    %v6328 = vpack.c.b16 %v5958, %v5953
    %v6329 = vpack.c.b16 %v5959, %v5954
    %v6330 = vpack.c.b16 %v5960, %v5955
    %v6331 = vpack.c.b16 %v5966, %v5961
    %v6332 = vpack.c.b16 %v5967, %v5962
    %v6333 = vpack.c.b16 %v5968, %v5963
    %v6334 = vpack.c.b16 %v5969, %v5964
    %v6335 = vpack.c.b16 %v5970, %v5965
    %v6336 = vpack.c.b16 %v5976, %v5971
    %v6337 = vpack.c.b16 %v5977, %v5972
    %v6338 = vpack.c.b16 %v5978, %v5973
    %v6339 = vpack.c.b16 %v5979, %v5974
    %v6340 = vpack.c.b16 %v5980, %v5975
    %v6341 = vpack.c.b16 %v5986, %v5981
    %v6342 = vpack.c.b16 %v5987, %v5982
    %v6343 = vpack.c.b16 %v5988, %v5983
    %v6344 = vpack.c.b16 %v5989, %v5984
    %v6345 = vpack.c.b16 %v5990, %v5985
    %v6346 = vpack.c.b16 %v5996, %v5991
    %v6347 = vpack.c.b16 %v5997, %v5992
    %v6348 = vpack.c.b16 %v5998, %v5993
    %v6349 = vpack.c.b16 %v5999, %v5994
    %v6350 = vpack.c.b16 %v6000, %v5995
    %v6351 = vpack.c.b16 %v6006, %v6001
    %v6352 = vpack.c.b16 %v6007, %v6002
    %v6353 = vpack.c.b16 %v6008, %v6003
    %v6354 = vpack.c.b16 %v6009, %v6004
    %v6355 = vpack.c.b16 %v6010, %v6005
    %v6356 = vpack.c.b16 %v6016, %v6011
    %v6357 = vpack.c.b16 %v6017, %v6012
    %v6358 = vpack.c.b16 %v6018, %v6013
    %v6359 = vpack.c.b16 %v6019, %v6014
    %v6360 = vpack.c.b16 %v6020, %v6015
    %v6361 = vpack.c.b16 %v6026, %v6021
    %v6362 = vpack.c.b16 %v6027, %v6022
    %v6363 = vpack.c.b16 %v6028, %v6023
    %v6364 = vpack.c.b16 %v6029, %v6024
    %v6365 = vpack.c.b16 %v6030, %v6025
    %v6366 = vpack.c.b16 %v6036, %v6031
    %v6367 = vpack.c.b16 %v6037, %v6032
    %v6368 = vpack.c.b16 %v6038, %v6033
    %v6369 = vpack.c.b16 %v6039, %v6034
    %v6370 = vpack.c.b16 %v6040, %v6035
    %v6371 = vpack.c.b16 %v6046, %v6041
    %v6372 = vpack.c.b16 %v6047, %v6042
    %v6373 = vpack.c.b16 %v6048, %v6043
    %v6374 = vpack.c.b16 %v6049, %v6044
    %v6375 = vpack.c.b16 %v6050, %v6045
    %v6376 = vpack.c.b16 %v6056, %v6051
    %v6377 = vpack.c.b16 %v6057, %v6052
    %v6378 = vpack.c.b16 %v6058, %v6053
    %v6379 = vpack.c.b16 %v6059, %v6054
    %v6380 = vpack.c.b16 %v6060, %v6055
    %v6381 = vpack.c.b16 %v6066, %v6061
    %v6382 = vpack.c.b16 %v6067, %v6062
    %v6383 = vpack.c.b16 %v6068, %v6063
    %v6384 = vpack.c.b16 %v6069, %v6064
    %v6385 = vpack.c.b16 %v6070, %v6065
    %v6386 = vpack.c.b16 %v6076, %v6071
    %v6387 = vpack.c.b16 %v6077, %v6072
    %v6388 = vpack.c.b16 %v6078, %v6073
    %v6389 = vpack.c.b16 %v6079, %v6074
    %v6390 = vpack.c.b16 %v6080, %v6075
    %v6391 = vpack.c.b16 %v6086, %v6081
    %v6392 = vpack.c.b16 %v6087, %v6082
    %v6393 = vpack.c.b16 %v6088, %v6083
    %v6394 = vpack.c.b16 %v6089, %v6084
    %v6395 = vpack.c.b16 %v6090, %v6085
    %v6396 = vpack.c.b16 %v6096, %v6091
    %v6397 = vpack.c.b16 %v6097, %v6092
    %v6398 = vpack.c.b16 %v6098, %v6093
    %v6399 = vpack.c.b16 %v6099, %v6094
    %v6400 = vpack.c.b16 %v6100, %v6095
    %v6401 = vpack.c.b16 %v6106, %v6101
    %v6402 = vpack.c.b16 %v6107, %v6102
    %v6403 = vpack.c.b16 %v6108, %v6103
    %v6404 = vpack.c.b16 %v6109, %v6104
    %v6405 = vpack.c.b16 %v6110, %v6105
    %v6406 = vpack.c.b16 %v6116, %v6111
    %v6407 = vpack.c.b16 %v6117, %v6112
    %v6408 = vpack.c.b16 %v6118, %v6113
    %v6409 = vpack.c.b16 %v6119, %v6114
    %v6410 = vpack.c.b16 %v6120, %v6115
    %v6411 = vpack.c.b16 %v6126, %v6121
    %v6412 = vpack.c.b16 %v6127, %v6122
    %v6413 = vpack.c.b16 %v6128, %v6123
    %v6414 = vpack.c.b16 %v6129, %v6124
    %v6415 = vpack.c.b16 %v6130, %v6125
    %v6416 = vpack.c.b16 %v6136, %v6131
    %v6417 = vpack.c.b16 %v6137, %v6132
    %v6418 = vpack.c.b16 %v6138, %v6133
    %v6419 = vpack.c.b16 %v6139, %v6134
    %v6420 = vpack.c.b16 %v6140, %v6135
    %v6421 = vpack.c.b16 %v6146, %v6141
    %v6422 = vpack.c.b16 %v6147, %v6142
    %v6423 = vpack.c.b16 %v6148, %v6143
    %v6424 = vpack.c.b16 %v6149, %v6144
    %v6425 = vpack.c.b16 %v6150, %v6145
    %v6426 = vpack.c.b16 %v6156, %v6151
    %v6427 = vpack.c.b16 %v6157, %v6152
    %v6428 = vpack.c.b16 %v6158, %v6153
    %v6429 = vpack.c.b16 %v6159, %v6154
    %v6430 = vpack.c.b16 %v6160, %v6155
    %v6431 = vpack.c.b16 %v6166, %v6161
    %v6432 = vpack.c.b16 %v6167, %v6162
    %v6433 = vpack.c.b16 %v6168, %v6163
    %v6434 = vpack.c.b16 %v6169, %v6164
    %v6435 = vpack.c.b16 %v6170, %v6165
    %v6436 = vpack.c.b16 %v6176, %v6171
    %v6437 = vpack.c.b16 %v6177, %v6172
    %v6438 = vpack.c.b16 %v6178, %v6173
    %v6439 = vpack.c.b16 %v6179, %v6174
    %v6440 = vpack.c.b16 %v6180, %v6175
    %v6441 = vpack.c.b16 %v6186, %v6181
    %v6442 = vpack.c.b16 %v6187, %v6182
    %v6443 = vpack.c.b16 %v6188, %v6183
    %v6444 = vpack.c.b16 %v6189, %v6184
    %v6445 = vpack.c.b16 %v6190, %v6185
    %v6446 = vpack.c.b16 %v6196, %v6191
    %v6447 = vpack.c.b16 %v6197, %v6192
    %v6448 = vpack.c.b16 %v6198, %v6193
    %v6449 = vpack.c.b16 %v6199, %v6194
    %v6450 = vpack.c.b16 %v6200, %v6195
    %v6451 = vpack.c.b16 %v6206, %v6201
    %v6452 = vpack.c.b16 %v6207, %v6202
    %v6453 = vpack.c.b16 %v6208, %v6203
    %v6454 = vpack.c.b16 %v6209, %v6204
    %v6455 = vpack.c.b16 %v6210, %v6205
    %v6456 = vpack.c.b16 %v6216, %v6211
    %v6457 = vpack.c.b16 %v6217, %v6212
    %v6458 = vpack.c.b16 %v6218, %v6213
    %v6459 = vpack.c.b16 %v6219, %v6214
    %v6460 = vpack.c.b16 %v6220, %v6215
    %v6461 = vpack.c.b16 %v6226, %v6221
    %v6462 = vpack.c.b16 %v6227, %v6222
    %v6463 = vpack.c.b16 %v6228, %v6223
    %v6464 = vpack.c.b16 %v6229, %v6224
    %v6465 = vpack.c.b16 %v6230, %v6225
    %v6466 = vpack.c.b16 %v6236, %v6231
    %v6467 = vpack.c.b16 %v6237, %v6232
    %v6468 = vpack.c.b16 %v6238, %v6233
    %v6469 = vpack.c.b16 %v6239, %v6234
    %v6470 = vpack.c.b16 %v6240, %v6235
    %v6471 = vpack.c.b16 %v6246, %v6241
    %v6472 = vpack.c.b16 %v6247, %v6242
    %v6473 = vpack.c.b16 %v6248, %v6243
    %v6474 = vpack.c.b16 %v6249, %v6244
    %v6475 = vpack.c.b16 %v6250, %v6245
    %v6476 = vpack.c.b16 %v6256, %v6251
    %v6477 = vpack.c.b16 %v6257, %v6252
    %v6478 = vpack.c.b16 %v6258, %v6253
    %v6479 = vpack.c.b16 %v6259, %v6254
    %v6480 = vpack.c.b16 %v6260, %v6255
    %v6481 = vpack.c.b16 %v6266, %v6261
    %v6482 = vpack.c.b16 %v6267, %v6262
    %v6483 = vpack.c.b16 %v6268, %v6263
    %v6484 = vpack.c.b16 %v6269, %v6264
    %v6485 = vpack.c.b16 %v6270, %v6265
    %v6486 = vpack.c.b16 %v6276, %v6271
    %v6487 = vpack.c.b16 %v6277, %v6272
    %v6488 = vpack.c.b16 %v6278, %v6273
    %v6489 = vpack.c.b16 %v6279, %v6274
    %v6490 = vpack.c.b16 %v6280, %v6275
    %v6491 = vpack.c.b16 %v6286, %v6281
    %v6492 = vpack.c.b16 %v6287, %v6282
    %v6493 = vpack.c.b16 %v6288, %v6283
    %v6494 = vpack.c.b16 %v6289, %v6284
    %v6495 = vpack.c.b16 %v6290, %v6285
    %v6496 = vpack.c.b16 %v6296, %v6291
    %v6497 = vpack.c.b16 %v6297, %v6292
    %v6498 = vpack.c.b16 %v6298, %v6293
    %v6499 = vpack.c.b16 %v6299, %v6294
    %v6500 = vpack.c.b16 %v6300, %v6295
    %6701 = vmatprep.subr.bf16.mxu0 %v6337
    %6702 = vmatpush1.bf16.msra.mxu0 %v6336
    %6703 = vmatprep.subr.bf16.mxu0 %v6332
    %6704 = vmatpush1.bf16.msra.mxu0 %v6331
    %6705 = vmatprep.subr.bf16.mxu0 %v6327
    %6706 = vmatpush1.bf16.msra.mxu0 %v6326
    %6707 = vmatprep.subr.bf16.mxu0 %v6322
    %6708 = vmatpush1.bf16.msra.mxu0 %v6321
    %6709 = vmatprep.subr.bf16.mxu0 %v6317
    %6710 = vmatpush1.bf16.msra.mxu0 %v6316
    %6711 = vmatprep.subr.bf16.mxu0 %v6312
    %6712 = vmatpush1.bf16.msra.mxu0 %v6311
    %6713 = vmatprep.subr.bf16.mxu0 %v6307
    %6714 = vmatpush1.bf16.msra.mxu0 %v6306
    %6715 = vmatprep.subr.bf16.mxu0 %v6302
    %6716 = vmatpush1.bf16.msra.mxu0 %v6301
    %6717 = vmatprep.subr.bf16.mxu0 %v6377
    %6718 = vmatpush2.bf16.msra.mxu0 %v6376
    %6719 = vmatprep.subr.bf16.mxu0 %v6372
    %6720 = vmatpush2.bf16.msra.mxu0 %v6371
    %6721 = vmatprep.subr.bf16.mxu0 %v6367
    %6722 = vmatpush2.bf16.msra.mxu0 %v6366
    %6723 = vmatprep.subr.bf16.mxu0 %v6362
    %6724 = vmatpush2.bf16.msra.mxu0 %v6361
    %6725 = vmatprep.subr.bf16.mxu0 %v6357
    %6726 = vmatpush2.bf16.msra.mxu0 %v6356
    %6727 = vmatprep.subr.bf16.mxu0 %v6352
    %6728 = vmatpush2.bf16.msra.mxu0 %v6351
    %6729 = vmatprep.subr.bf16.mxu0 %v6347
    %6730 = vmatpush2.bf16.msra.mxu0 %v6346
    %6731 = vmatprep.subr.bf16.mxu0 %v6342
    %6732 = vmatpush2.bf16.msra.mxu0 %v6341
    %6733 = vmatprep.mubr.bf16.mxu0 %v5382
    %6734 = vmatmul.mubr.bf16.gmra.mxu0 %v4951
    %v6735 = vpop.f32.mrf.mxu0
    %v6736 = vadd.f32 %v5639, %v6735
    %v6737 = vpop.f32.mrf.mxu0
    %v6738 = vadd.f32 %v5643, %v6737
    %v6739 = vpop.f32.mrf.mxu0
    %v6740 = vpop.f32.mrf.mxu0
    %6741 = vdwg.mxu0
    %6742 = vmatprep.subr.bf16.mxu0 %v6417
    %6743 = vmatpush1.bf16.msra.mxu0 %v6416
    %6744 = vmatprep.subr.bf16.mxu0 %v6412
    %6745 = vmatpush1.bf16.msra.mxu0 %v6411
    %6746 = vmatprep.subr.bf16.mxu0 %v6407
    %6747 = vmatpush1.bf16.msra.mxu0 %v6406
    %6748 = vmatprep.subr.bf16.mxu0 %v6402
    %6749 = vmatpush1.bf16.msra.mxu0 %v6401
    %6750 = vmatprep.subr.bf16.mxu0 %v6397
    %6751 = vmatpush1.bf16.msra.mxu0 %v6396
    %6752 = vmatprep.subr.bf16.mxu0 %v6392
    %6753 = vmatpush1.bf16.msra.mxu0 %v6391
    %6754 = vmatprep.subr.bf16.mxu0 %v6387
    %6755 = vmatpush1.bf16.msra.mxu0 %v6386
    %6756 = vmatprep.subr.bf16.mxu0 %v6382
    %6757 = vmatpush1.bf16.msra.mxu0 %v6381
    %6758 = vmatprep.subr.bf16.mxu0 %v6457
    %6759 = vmatpush2.bf16.msra.mxu0 %v6456
    %6760 = vmatprep.subr.bf16.mxu0 %v6452
    %6761 = vmatpush2.bf16.msra.mxu0 %v6451
    %6762 = vmatprep.subr.bf16.mxu0 %v6447
    %6763 = vmatpush2.bf16.msra.mxu0 %v6446
    %6764 = vmatprep.subr.bf16.mxu0 %v6442
    %6765 = vmatpush2.bf16.msra.mxu0 %v6441
    %6766 = vmatprep.subr.bf16.mxu0 %v6437
    %6767 = vmatpush2.bf16.msra.mxu0 %v6436
    %6768 = vmatprep.subr.bf16.mxu0 %v6432
    %6769 = vmatpush2.bf16.msra.mxu0 %v6431
    %6770 = vmatprep.subr.bf16.mxu0 %v6427
    %6771 = vmatpush2.bf16.msra.mxu0 %v6426
    %6772 = vmatprep.subr.bf16.mxu0 %v6422
    %6773 = vmatpush2.bf16.msra.mxu0 %v6421
    %6774 = vmatprep.mubr.bf16.mxu0 %v5392
    %6775 = vmatmul.mubr.bf16.gmra.mxu0 %v5387
    %v6776 = vpop.f32.mrf.mxu0
    %v6777 = vadd.f32 %v6736, %v6776
    %v6778 = vpop.f32.mrf.mxu0
    %v6779 = vadd.f32 %v6738, %v6778
    %v6780 = vpop.f32.mrf.mxu0
    %v6781 = vpop.f32.mrf.mxu0
    %6782 = vdwg.mxu0
    %6783 = vmatprep.subr.bf16.mxu0 %v6497
    %6784 = vmatpush1.bf16.msra.mxu0 %v6496
    %6785 = vmatprep.subr.bf16.mxu0 %v6492
    %6786 = vmatpush1.bf16.msra.mxu0 %v6491
    %6787 = vmatprep.subr.bf16.mxu0 %v6487
    %6788 = vmatpush1.bf16.msra.mxu0 %v6486
    %6789 = vmatprep.subr.bf16.mxu0 %v6482
    %6790 = vmatpush1.bf16.msra.mxu0 %v6481
    %6791 = vmatprep.subr.bf16.mxu0 %v6477
    %6792 = vmatpush1.bf16.msra.mxu0 %v6476
    %6793 = vmatprep.subr.bf16.mxu0 %v6472
    %6794 = vmatpush1.bf16.msra.mxu0 %v6471
    %6795 = vmatprep.subr.bf16.mxu0 %v6467
    %6796 = vmatpush1.bf16.msra.mxu0 %v6466
    %6797 = vmatprep.subr.bf16.mxu0 %v6462
    %6798 = vmatpush1.bf16.msra.mxu0 %v6461
    %6799 = vmatprep.subr.bf16.mxu0 0
    %6800 = vmatpush2.bf16.msra.mxu0 0
    %6801 = vmatprep.subr.bf16.mxu0 0
    %6802 = vmatpush2.bf16.msra.mxu0 0
    %6803 = vmatprep.subr.bf16.mxu0 0
    %6804 = vmatpush2.bf16.msra.mxu0 0
    %6805 = vmatprep.subr.bf16.mxu0 0
    %6806 = vmatpush2.bf16.msra.mxu0 0
    %6807 = vmatprep.subr.bf16.mxu0 0
    %6808 = vmatpush2.bf16.msra.mxu0 0
    %6809 = vmatprep.subr.bf16.mxu0 0
    %6810 = vmatpush2.bf16.msra.mxu0 0
    %6811 = vmatprep.subr.bf16.mxu0 0
    %6812 = vmatpush2.bf16.msra.mxu0 0
    %6813 = vmatprep.subr.bf16.mxu0 0
    %6814 = vmatpush2.bf16.msra.mxu0 0
    %6815 = vmatprep.mubr.bf16.mxu0 0
    %6816 = vmatmul.mubr.bf16.gmra.mxu0 %v5378
    %v6817 = vpop.f32.mrf.mxu0
    %v6818 = vadd.f32 %v6777, %v6817
    %v6819 = vpop.f32.mrf.mxu0
    %v6820 = vadd.f32 %v6779, %v6819
    %v6821 = vpop.f32.mrf.mxu0
    %v6822 = vpop.f32.mrf.mxu0
    %6823 = vdwg.mxu0
    %6824 = vmatprep.subr.bf16.mxu0 %v6339
    %6825 = vmatpush1.bf16.msra.mxu0 %v6338
    %6826 = vmatprep.subr.bf16.mxu0 %v6334
    %6827 = vmatpush1.bf16.msra.mxu0 %v6333
    %6828 = vmatprep.subr.bf16.mxu0 %v6329
    %6829 = vmatpush1.bf16.msra.mxu0 %v6328
    %6830 = vmatprep.subr.bf16.mxu0 %v6324
    %6831 = vmatpush1.bf16.msra.mxu0 %v6323
    %6832 = vmatprep.subr.bf16.mxu0 %v6319
    %6833 = vmatpush1.bf16.msra.mxu0 %v6318
    %6834 = vmatprep.subr.bf16.mxu0 %v6314
    %6835 = vmatpush1.bf16.msra.mxu0 %v6313
    %6836 = vmatprep.subr.bf16.mxu0 %v6309
    %6837 = vmatpush1.bf16.msra.mxu0 %v6308
    %6838 = vmatprep.subr.bf16.mxu0 %v6304
    %6839 = vmatpush1.bf16.msra.mxu0 %v6303
    %6840 = vmatprep.subr.bf16.mxu0 %v6379
    %6841 = vmatpush2.bf16.msra.mxu0 %v6378
    %6842 = vmatprep.subr.bf16.mxu0 %v6374
    %6843 = vmatpush2.bf16.msra.mxu0 %v6373
    %6844 = vmatprep.subr.bf16.mxu0 %v6369
    %6845 = vmatpush2.bf16.msra.mxu0 %v6368
    %6846 = vmatprep.subr.bf16.mxu0 %v6364
    %6847 = vmatpush2.bf16.msra.mxu0 %v6363
    %6848 = vmatprep.subr.bf16.mxu0 %v6359
    %6849 = vmatpush2.bf16.msra.mxu0 %v6358
    %6850 = vmatprep.subr.bf16.mxu0 %v6354
    %6851 = vmatpush2.bf16.msra.mxu0 %v6353
    %6852 = vmatprep.subr.bf16.mxu0 %v6349
    %6853 = vmatpush2.bf16.msra.mxu0 %v6348
    %6854 = vmatprep.subr.bf16.mxu0 %v6344
    %6855 = vmatpush2.bf16.msra.mxu0 %v6343
    %6856 = vmatprep.mubr.bf16.mxu0 %v5382
    %6857 = vmatmul.mubr.bf16.gmra.mxu0 %v4951
    %v6858 = vpop.f32.mrf.mxu0
    %v6859 = vadd.f32 %v5647, %v6858
    %v6860 = vpop.f32.mrf.mxu0
    %v6861 = vadd.f32 %v5651, %v6860
    %v6862 = vpop.f32.mrf.mxu0
    %v6863 = vpop.f32.mrf.mxu0
    %6864 = vdwg.mxu0
    %6865 = vmatprep.subr.bf16.mxu0 %v6419
    %6866 = vmatpush1.bf16.msra.mxu0 %v6418
    %6867 = vmatprep.subr.bf16.mxu0 %v6414
    %6868 = vmatpush1.bf16.msra.mxu0 %v6413
    %6869 = vmatprep.subr.bf16.mxu0 %v6409
    %6870 = vmatpush1.bf16.msra.mxu0 %v6408
    %6871 = vmatprep.subr.bf16.mxu0 %v6404
    %6872 = vmatpush1.bf16.msra.mxu0 %v6403
    %6873 = vmatprep.subr.bf16.mxu0 %v6399
    %6874 = vmatpush1.bf16.msra.mxu0 %v6398
    %6875 = vmatprep.subr.bf16.mxu0 %v6394
    %6876 = vmatpush1.bf16.msra.mxu0 %v6393
    %6877 = vmatprep.subr.bf16.mxu0 %v6389
    %6878 = vmatpush1.bf16.msra.mxu0 %v6388
    %6879 = vmatprep.subr.bf16.mxu0 %v6384
    %6880 = vmatpush1.bf16.msra.mxu0 %v6383
    %6881 = vmatprep.subr.bf16.mxu0 %v6459
    %6882 = vmatpush2.bf16.msra.mxu0 %v6458
    %6883 = vmatprep.subr.bf16.mxu0 %v6454
    %6884 = vmatpush2.bf16.msra.mxu0 %v6453
    %6885 = vmatprep.subr.bf16.mxu0 %v6449
    %6886 = vmatpush2.bf16.msra.mxu0 %v6448
    %6887 = vmatprep.subr.bf16.mxu0 %v6444
    %6888 = vmatpush2.bf16.msra.mxu0 %v6443
    %6889 = vmatprep.subr.bf16.mxu0 %v6439
    %6890 = vmatpush2.bf16.msra.mxu0 %v6438
    %6891 = vmatprep.subr.bf16.mxu0 %v6434
    %6892 = vmatpush2.bf16.msra.mxu0 %v6433
    %6893 = vmatprep.subr.bf16.mxu0 %v6429
    %6894 = vmatpush2.bf16.msra.mxu0 %v6428
    %6895 = vmatprep.subr.bf16.mxu0 %v6424
    %6896 = vmatpush2.bf16.msra.mxu0 %v6423
    %6897 = vmatprep.mubr.bf16.mxu0 %v5392
    %6898 = vmatmul.mubr.bf16.gmra.mxu0 %v5387
    %v6899 = vpop.f32.mrf.mxu0
    %v6900 = vadd.f32 %v6859, %v6899
    %v6901 = vpop.f32.mrf.mxu0
    %v6902 = vadd.f32 %v6861, %v6901
    %v6903 = vpop.f32.mrf.mxu0
    %v6904 = vpop.f32.mrf.mxu0
    %6905 = vdwg.mxu0
    %6906 = vmatprep.subr.bf16.mxu0 %v6499
    %6907 = vmatpush1.bf16.msra.mxu0 %v6498
    %6908 = vmatprep.subr.bf16.mxu0 %v6494
    %6909 = vmatpush1.bf16.msra.mxu0 %v6493
    %6910 = vmatprep.subr.bf16.mxu0 %v6489
    %6911 = vmatpush1.bf16.msra.mxu0 %v6488
    %6912 = vmatprep.subr.bf16.mxu0 %v6484
    %6913 = vmatpush1.bf16.msra.mxu0 %v6483
    %6914 = vmatprep.subr.bf16.mxu0 %v6479
    %6915 = vmatpush1.bf16.msra.mxu0 %v6478
    %6916 = vmatprep.subr.bf16.mxu0 %v6474
    %6917 = vmatpush1.bf16.msra.mxu0 %v6473
    %6918 = vmatprep.subr.bf16.mxu0 %v6469
    %6919 = vmatpush1.bf16.msra.mxu0 %v6468
    %6920 = vmatprep.subr.bf16.mxu0 %v6464
    %6921 = vmatpush1.bf16.msra.mxu0 %v6463
    %6922 = vmatprep.subr.bf16.mxu0 0
    %6923 = vmatpush2.bf16.msra.mxu0 0
    %6924 = vmatprep.subr.bf16.mxu0 0
    %6925 = vmatpush2.bf16.msra.mxu0 0
    %6926 = vmatprep.subr.bf16.mxu0 0
    %6927 = vmatpush2.bf16.msra.mxu0 0
    %6928 = vmatprep.subr.bf16.mxu0 0
    %6929 = vmatpush2.bf16.msra.mxu0 0
    %6930 = vmatprep.subr.bf16.mxu0 0
    %6931 = vmatpush2.bf16.msra.mxu0 0
    %6932 = vmatprep.subr.bf16.mxu0 0
    %6933 = vmatpush2.bf16.msra.mxu0 0
    %6934 = vmatprep.subr.bf16.mxu0 0
    %6935 = vmatpush2.bf16.msra.mxu0 0
    %6936 = vmatprep.subr.bf16.mxu0 0
    %6937 = vmatpush2.bf16.msra.mxu0 0
    %6938 = vmatprep.mubr.bf16.mxu0 0
    %6939 = vmatmul.mubr.bf16.gmra.mxu0 %v5378
    %v6940 = vpop.f32.mrf.mxu0
    %v6941 = vadd.f32 %v6900, %v6940
    %v6942 = vpop.f32.mrf.mxu0
    %v6943 = vadd.f32 %v6902, %v6942
    %v6944 = vpop.f32.mrf.mxu0
    %v6945 = vpop.f32.mrf.mxu0
    %6946 = vdwg.mxu0
    %6947 = vmatprep.subr.bf16.mxu0 0
    %6948 = vmatpush1.bf16.msra.mxu0 %v6340
    %6949 = vmatprep.subr.bf16.mxu0 0
    %6950 = vmatpush1.bf16.msra.mxu0 %v6335
    %6951 = vmatprep.subr.bf16.mxu0 0
    %6952 = vmatpush1.bf16.msra.mxu0 %v6330
    %6953 = vmatprep.subr.bf16.mxu0 0
    %6954 = vmatpush1.bf16.msra.mxu0 %v6325
    %6955 = vmatprep.subr.bf16.mxu0 0
    %6956 = vmatpush1.bf16.msra.mxu0 %v6320
    %6957 = vmatprep.subr.bf16.mxu0 0
    %6958 = vmatpush1.bf16.msra.mxu0 %v6315
    %6959 = vmatprep.subr.bf16.mxu0 0
    %6960 = vmatpush1.bf16.msra.mxu0 %v6310
    %6961 = vmatprep.subr.bf16.mxu0 0
    %6962 = vmatpush1.bf16.msra.mxu0 %v6305
    %6963 = vmatprep.subr.bf16.mxu0 0
    %6964 = vmatpush2.bf16.msra.mxu0 %v6380
    %6965 = vmatprep.subr.bf16.mxu0 0
    %6966 = vmatpush2.bf16.msra.mxu0 %v6375
    %6967 = vmatprep.subr.bf16.mxu0 0
    %6968 = vmatpush2.bf16.msra.mxu0 %v6370
    %6969 = vmatprep.subr.bf16.mxu0 0
    %6970 = vmatpush2.bf16.msra.mxu0 %v6365
    %6971 = vmatprep.subr.bf16.mxu0 0
    %6972 = vmatpush2.bf16.msra.mxu0 %v6360
    %6973 = vmatprep.subr.bf16.mxu0 0
    %6974 = vmatpush2.bf16.msra.mxu0 %v6355
    %6975 = vmatprep.subr.bf16.mxu0 0
    %6976 = vmatpush2.bf16.msra.mxu0 %v6350
    %6977 = vmatprep.subr.bf16.mxu0 0
    %6978 = vmatpush2.bf16.msra.mxu0 %v6345
    %6979 = vmatprep.mubr.bf16.mxu0 %v5382
    %6980 = vmatmul.mubr.bf16.gmra.mxu0 %v4951
    %v6981 = vpop.f32.mrf.mxu0
    %v6982 = vadd.f32 %v5655, %v6981
    %v6983 = vpop.f32.mrf.mxu0
    %v6984 = vpop.f32.mrf.mxu0
    %v6985 = vpop.f32.mrf.mxu0
    %6986 = vdwg.mxu0
    %6987 = vmatprep.subr.bf16.mxu0 0
    %6988 = vmatpush1.bf16.msra.mxu0 %v6420
    %6989 = vmatprep.subr.bf16.mxu0 0
    %6990 = vmatpush1.bf16.msra.mxu0 %v6415
    %6991 = vmatprep.subr.bf16.mxu0 0
    %6992 = vmatpush1.bf16.msra.mxu0 %v6410
    %6993 = vmatprep.subr.bf16.mxu0 0
    %6994 = vmatpush1.bf16.msra.mxu0 %v6405
    %6995 = vmatprep.subr.bf16.mxu0 0
    %6996 = vmatpush1.bf16.msra.mxu0 %v6400
    %6997 = vmatprep.subr.bf16.mxu0 0
    %6998 = vmatpush1.bf16.msra.mxu0 %v6395
    %6999 = vmatprep.subr.bf16.mxu0 0
    %7000 = vmatpush1.bf16.msra.mxu0 %v6390
    %7001 = vmatprep.subr.bf16.mxu0 0
    %7002 = vmatpush1.bf16.msra.mxu0 %v6385
    %7003 = vmatprep.subr.bf16.mxu0 0
    %7004 = vmatpush2.bf16.msra.mxu0 %v6460
    %7005 = vmatprep.subr.bf16.mxu0 0
    %7006 = vmatpush2.bf16.msra.mxu0 %v6455
    %7007 = vmatprep.subr.bf16.mxu0 0
    %7008 = vmatpush2.bf16.msra.mxu0 %v6450
    %7009 = vmatprep.subr.bf16.mxu0 0
    %7010 = vmatpush2.bf16.msra.mxu0 %v6445
    %7011 = vmatprep.subr.bf16.mxu0 0
    %7012 = vmatpush2.bf16.msra.mxu0 %v6440
    %7013 = vmatprep.subr.bf16.mxu0 0
    %7014 = vmatpush2.bf16.msra.mxu0 %v6435
    %7015 = vmatprep.subr.bf16.mxu0 0
    %7016 = vmatpush2.bf16.msra.mxu0 %v6430
    %7017 = vmatprep.subr.bf16.mxu0 0
    %7018 = vmatpush2.bf16.msra.mxu0 %v6425
    %7019 = vmatprep.mubr.bf16.mxu0 %v5392
    %7020 = vmatmul.mubr.bf16.gmra.mxu0 %v5387
    %v7021 = vpop.f32.mrf.mxu0
    %v7022 = vadd.f32 %v6982, %v7021
    %v7023 = vpop.f32.mrf.mxu0
    %v7024 = vpop.f32.mrf.mxu0
    %v7025 = vpop.f32.mrf.mxu0
    %7026 = vdwg.mxu0
    %7027 = vmatprep.subr.bf16.mxu0 0
    %7028 = vmatpush1.bf16.msra.mxu0 %v6500
    %7029 = vmatprep.subr.bf16.mxu0 0
    %7030 = vmatpush1.bf16.msra.mxu0 %v6495
    %7031 = vmatprep.subr.bf16.mxu0 0
    %7032 = vmatpush1.bf16.msra.mxu0 %v6490
    %7033 = vmatprep.subr.bf16.mxu0 0
    %7034 = vmatpush1.bf16.msra.mxu0 %v6485
    %7035 = vmatprep.subr.bf16.mxu0 0
    %7036 = vmatpush1.bf16.msra.mxu0 %v6480
    %7037 = vmatprep.subr.bf16.mxu0 0
    %7038 = vmatpush1.bf16.msra.mxu0 %v6475
    %7039 = vmatprep.subr.bf16.mxu0 0
    %7040 = vmatpush1.bf16.msra.mxu0 %v6470
    %7041 = vmatprep.subr.bf16.mxu0 0
    %7042 = vmatpush1.bf16.msra.mxu0 %v6465
    %7043 = vmatprep.subr.bf16.mxu0 0
    %7044 = vmatpush2.bf16.msra.mxu0 0
    %7045 = vmatprep.subr.bf16.mxu0 0
    %7046 = vmatpush2.bf16.msra.mxu0 0
    %7047 = vmatprep.subr.bf16.mxu0 0
    %7048 = vmatpush2.bf16.msra.mxu0 0
    %7049 = vmatprep.subr.bf16.mxu0 0
    %7050 = vmatpush2.bf16.msra.mxu0 0
    %7051 = vmatprep.subr.bf16.mxu0 0
    %7052 = vmatpush2.bf16.msra.mxu0 0
    %7053 = vmatprep.subr.bf16.mxu0 0
    %7054 = vmatpush2.bf16.msra.mxu0 0
    %7055 = vmatprep.subr.bf16.mxu0 0
    %7056 = vmatpush2.bf16.msra.mxu0 0
    %7057 = vmatprep.subr.bf16.mxu0 0
    %7058 = vmatpush2.bf16.msra.mxu0 0
    %7059 = vmatprep.mubr.bf16.mxu0 0
    %7060 = vmatmul.mubr.bf16.gmra.mxu0 %v5378
    %v7061 = vpop.f32.mrf.mxu0
    %v7062 = vadd.f32 %v7022, %v7061
    %v7063 = vpop.f32.mrf.mxu0
    %v7064 = vpop.f32.mrf.mxu0
    %v7065 = vpop.f32.mrf.mxu0
    %7066 = vdwg.mxu0
    %7067 = vst [vmem:[#allocation11] sm:$0xff] %v6818
    %7068 = vst [vmem:[#allocation11 + $0x8] sm:$0xff] %v6820
    %7069 = vst [vmem:[#allocation11 + $0x10] sm:$0xff] %v6941
    %7070 = vst [vmem:[#allocation11 + $0x18] sm:$0xff] %v6943
    %7071 = vst [vmem:[#allocation11 + $0x20] sm:$0xff] %v7062
    // Predicated region
    $region42: #{tpu_custom_call.1} parent=1 // pred_check
      _
    $region43: #{tpu_custom_call.1} parent=1 // pred_check_branch
      %7073 = sbr.rel (0) target = $region45
    $region44: #{tpu_custom_call.1} parent=1 // pred_region
      %s7075 = ssub.s32 640, 640
      %7076 = vsyncadd [#allocation4], %s7075
      %s7078 = sshll.u32 [#allocation11], 4
      %s7079 = int_to_ptr.vmem [resolvable:$true] %s7078
      %7081 = dma.vmem_to_hbm [thread:$0]  %s7079, 640, %s5, [#allocation4]
    $region45: #{tpu_custom_call.1} parent=1 // pred_fallthru
      _
    // Predicated region
    $region46: #{tpu_custom_call.1} parent=1 // pred_check
      _
    $region47: #{tpu_custom_call.1} parent=1 // pred_check_branch
      %7083 = sbr.rel (0) target = $region49
    $region48: #{tpu_custom_call.1} parent=1 // pred_region
      %7084 = dma.done [#allocation4], 640
    $region49: #{tpu_custom_call.1} parent=1 // pred_fallthru
      _
    %7085 = vsyncpa [#allocation3], 1
    %7086 = vsyncpa [#allocation6], 1
    %7087 = vsyncpa [#allocation9], 1
    %7088 = vsyncpa [#allocation4], 1

// kernel: tpu_custom_call.1
$region0: #{tpu_custom_call.1}
  #allocation0 [shape = 'u32[]', space=smem, size = 0x4, offset = 0x4, fixed_abs, tag = 'smem constant byte address 0x4 - core index']
  #allocation1 [shape = 'u32[144,128]{1,0:T(1,128)}', space=vmem, size = 0x12000, scoped, tag = 'internal scratch']
  %s0 = inlined_call_operand.hbm [shape: f32[1,8,640], index: 0, kind: input, shape index: {}]
  %s1 = inlined_call_operand.hbm [shape: bf16[640,1920], index: 1, kind: input, shape index: {}]
  %s2 = inlined_call_operand.hbm [shape: f32[1,1920], index: 2, kind: input, shape index: {}]
  %s3 = inlined_call_operand.hbm [shape: bf16[640,640], index: 3, kind: input, shape index: {}]
  %s4 = inlined_call_operand.hbm [shape: f32[1,640], index: 4, kind: input, shape index: {}]
  %s5 = inlined_call_operand.hbm [shape: f32[1,8,640], index: 5, kind: output, shape index: {}]
  %s6 = sld [smem:[#allocation0]]
  $region50: #{tpu_custom_call.1} parent=0
    _
  %s8 = ssub.s32 1, %s6
  %s9 = scalar_select 0, %s8, %s6
  $region1: #{tpu_custom_call.1} parent=0
    #allocation2 [shape = 'u8[20480]{0}', space=vmem, size = 0x5000, scoped, tag = 'input window, operand 0, single buffered']
    #allocation3 [shape = 's32[1]{0}', space=sflag, size = 0x4, scoped, tag = 'scoped memory for tpu_custom_call.1']
    #allocation4 [shape = 's32[1]{0}', space=sflag, size = 0x4, scoped, tag = 'scoped memory for tpu_custom_call.1']
    #allocation5 [shape = 'u8[2457600]{0}', space=vmem, size = 0x258000, scoped, tag = 'input window, operand 1, single buffered']
    #allocation6 [shape = 's32[1]{0}', space=sflag, size = 0x4, scoped, tag = 'scoped memory for tpu_custom_call.1']
    #allocation7 [shape = 'u8[7680]{0}', space=vmem, size = 0x2000, scoped, tag = 'input window, operand 2, single buffered']
    #allocation8 [shape = 'u8[819200]{0}', space=vmem, size = 0xc8000, scoped, tag = 'input window, operand 3, single buffered']
    #allocation9 [shape = 's32[1]{0}', space=sflag, size = 0x4, scoped, tag = 'scoped memory for tpu_custom_call.1']
    #allocation10 [shape = 'u8[2560]{0}', space=vmem, size = 0xc00, scoped, tag = 'input window, operand 4, single buffered']
    #allocation11 [shape = 'u8[20480]{0}', space=vmem, size = 0x5000, scoped, tag = 'output window, operand 0, single buffered']
    %10 = vsyncpa [#allocation3], 0
    %11 = vsyncpa [#allocation6], 0
    %12 = vsyncpa [#allocation9], 0
    %13 = vsyncpa [#allocation4], 0
    // Predicated region
    $region2: #{tpu_custom_call.1} parent=1 // pred_check
      _
    $region3: #{tpu_custom_call.1} parent=1 // pred_check_branch
      %15 = sbr.rel (0) target = $region5
    $region4: #{tpu_custom_call.1} parent=1 // pred_region
      %s17 = ssub.s32 640, 640
      %18 = vsyncadd [#allocation3], %s17
      %s20 = sshll.u32 [#allocation2], 4
      %s21 = int_to_ptr.vmem [resolvable:$true] %s20
      %23 = dma.hbm_to_vmem [thread:$0]  %s0, 640, %s21, [#allocation3]
    $region5: #{tpu_custom_call.1} parent=1 // pred_fallthru
      _
    // Predicated region
    $region6: #{tpu_custom_call.1} parent=1 // pred_check
      _
    $region7: #{tpu_custom_call.1} parent=1 // pred_check_branch
      %25 = sbr.rel (0) target = $region9
    $region8: #{tpu_custom_call.1} parent=1 // pred_region
      %s27 = ssub.s32 76800, 76800
      %28 = vsyncadd [#allocation6], %s27
      %s29 = sshll.u32 [#allocation5], 4
      %s30 = int_to_ptr.vmem [resolvable:$true] %s29
      %35 = dma.hbm_to_vmem [thread:$0]  %s1, 76800, %s30, [#allocation6], 960, 960, 60
    $region9: #{tpu_custom_call.1} parent=1 // pred_fallthru
      _
    // Predicated region
    $region10: #{tpu_custom_call.1} parent=1 // pred_check
      _
    $region11: #{tpu_custom_call.1} parent=1 // pred_check_branch
      %37 = sbr.rel (0) target = $region13
    $region12: #{tpu_custom_call.1} parent=1 // pred_region
      %s39 = ssub.s32 240, 240
      %40 = vsyncadd [#allocation6], %s39
      %s42 = sshll.u32 [#allocation7], 4
      %s43 = int_to_ptr.vmem [resolvable:$true] %s42
      %45 = dma.hbm_to_vmem [thread:$0]  %s2, 240, %s43, [#allocation6]
    $region13: #{tpu_custom_call.1} parent=1 // pred_fallthru
      _
    // Predicated region
    $region14: #{tpu_custom_call.1} parent=1 // pred_check
      _
    $region15: #{tpu_custom_call.1} parent=1 // pred_check_branch
      %47 = sbr.rel (0) target = $region17
    $region16: #{tpu_custom_call.1} parent=1 // pred_region
      %s49 = ssub.s32 25600, 25600
      %50 = vsyncadd [#allocation9], %s49
      %s51 = sshll.u32 [#allocation8], 4
      %s52 = int_to_ptr.vmem [resolvable:$true] %s51
      %57 = dma.hbm_to_vmem [thread:$0]  %s3, 25600, %s52, [#allocation9], 320, 320, 20
    $region17: #{tpu_custom_call.1} parent=1 // pred_fallthru
      _
    // Predicated region
    $region18: #{tpu_custom_call.1} parent=1 // pred_check
      _
    $region19: #{tpu_custom_call.1} parent=1 // pred_check_branch
      %59 = sbr.rel (0) target = $region21
    $region20: #{tpu_custom_call.1} parent=1 // pred_region
      %s61 = ssub.s32 80, 80
      %62 = vsyncadd [#allocation9], %s61
      %s64 = sshll.u32 [#allocation10], 4
      %s65 = int_to_ptr.vmem [resolvable:$true] %s64
      %67 = dma.hbm_to_vmem [thread:$0]  %s4, 80, %s65, [#allocation9]
    $region21: #{tpu_custom_call.1} parent=1 // pred_fallthru
      _
    // Predicated region
    $region22: #{tpu_custom_call.1} parent=1 // pred_check
      _
    $region23: #{tpu_custom_call.1} parent=1 // pred_check_branch
      %69 = sbr.rel (0) target = $region25
    $region24: #{tpu_custom_call.1} parent=1 // pred_region
      %70 = dma.done [#allocation3], 640
    $region25: #{tpu_custom_call.1} parent=1 // pred_fallthru
      _
    // Predicated region
    $region26: #{tpu_custom_call.1} parent=1 // pred_check
      _
    $region27: #{tpu_custom_call.1} parent=1 // pred_check_branch
      %72 = sbr.rel (0) target = $region29
    $region28: #{tpu_custom_call.1} parent=1 // pred_region
      %73 = dma.done [#allocation6], 76800
    $region29: #{tpu_custom_call.1} parent=1 // pred_fallthru
      _
    // Predicated region
    $region30: #{tpu_custom_call.1} parent=1 // pred_check
      _
    $region31: #{tpu_custom_call.1} parent=1 // pred_check_branch
      %75 = sbr.rel (0) target = $region33
    $region32: #{tpu_custom_call.1} parent=1 // pred_region
      %76 = dma.done [#allocation6], 240
    $region33: #{tpu_custom_call.1} parent=1 // pred_fallthru
      _
    // Predicated region
    $region34: #{tpu_custom_call.1} parent=1 // pred_check
      _
    $region35: #{tpu_custom_call.1} parent=1 // pred_check_branch
      %78 = sbr.rel (0) target = $region37
    $region36: #{tpu_custom_call.1} parent=1 // pred_region
      %79 = dma.done [#allocation9], 25600
    $region37: #{tpu_custom_call.1} parent=1 // pred_fallthru
      _
    // Predicated region
    $region38: #{tpu_custom_call.1} parent=1 // pred_check
      _
    $region39: #{tpu_custom_call.1} parent=1 // pred_check_branch
      %81 = sbr.rel (0) target = $region41
    $region40: #{tpu_custom_call.1} parent=1 // pred_region
      %82 = dma.done [#allocation9], 80
    $region41: #{tpu_custom_call.1} parent=1 // pred_fallthru
      _
    %v84 = vld [vmem:[#allocation2] sm:$0xff]
    %v85 = vld [vmem:[#allocation2 + $0x8] sm:$0xff]
    %v86 = vld [vmem:[#allocation2 + $0x10] sm:$0xff]
    %v87 = vld [vmem:[#allocation2 + $0x18] sm:$0xff]
    %v88 = vld [vmem:[#allocation2 + $0x20] sm:$0xff]
    %v89 = vpack.c.bf16 %v84, %v84
    %v90 = vpack.c.bf16 %v85, %v85
    %v91 = vpack.c.bf16 %v86, %v86
    %v92 = vpack.c.bf16 %v87, %v87
    %v93 = vpack.c.bf16 %v88, %v88
    %v94 = vld [vmem:[#allocation5] sm:$0xff]
    %v95 = vld [vmem:[#allocation5 + $0x8] sm:$0xff]
    %v96 = vld [vmem:[#allocation5 + $0x10] sm:$0xff]
    %v97 = vld [vmem:[#allocation5 + $0x18] sm:$0xff]
    %v98 = vld [vmem:[#allocation5 + $0x20] sm:$0xff]
    %v99 = vld [vmem:[#allocation5 + $0x28] sm:$0xff]
    %v100 = vld [vmem:[#allocation5 + $0x30] sm:$0xff]
    %v101 = vld [vmem:[#allocation5 + $0x38] sm:$0xf]
    %v102 = vld [vmem:[#allocation5 + $0x3c] sm:$0xff]
    %v103 = vld [vmem:[#allocation5 + $0x44] sm:$0xff]
    %v104 = vld [vmem:[#allocation5 + $0x4c] sm:$0xff]
    %v105 = vld [vmem:[#allocation5 + $0x54] sm:$0xff]
    %v106 = vld [vmem:[#allocation5 + $0x5c] sm:$0xff]
    %v107 = vld [vmem:[#allocation5 + $0x64] sm:$0xff]
    %v108 = vld [vmem:[#allocation5 + $0x6c] sm:$0xff]
    %v109 = vld [vmem:[#allocation5 + $0x74] sm:$0xf]
    %v110 = vld [vmem:[#allocation5 + $0x78] sm:$0xff]
    %v111 = vld [vmem:[#allocation5 + $0x80] sm:$0xff]
    %v112 = vld [vmem:[#allocation5 + $0x88] sm:$0xff]
    %v113 = vld [vmem:[#allocation5 + $0x90] sm:$0xff]
    %v114 = vld [vmem:[#allocation5 + $0x98] sm:$0xff]
    %v115 = vld [vmem:[#allocation5 + $0xa0] sm:$0xff]
    %v116 = vld [vmem:[#allocation5 + $0xa8] sm:$0xff]
    %v117 = vld [vmem:[#allocation5 + $0xb0] sm:$0xf]
    %v118 = vld [vmem:[#allocation5 + $0xb4] sm:$0xff]
    %v119 = vld [vmem:[#allocation5 + $0xbc] sm:$0xff]
    %v120 = vld [vmem:[#allocation5 + $0xc4] sm:$0xff]
    %v121 = vld [vmem:[#allocation5 + $0xcc] sm:$0xff]
    %v122 = vld [vmem:[#allocation5 + $0xd4] sm:$0xff]
    %v123 = vld [vmem:[#allocation5 + $0xdc] sm:$0xff]
    %v124 = vld [vmem:[#allocation5 + $0xe4] sm:$0xff]
    %v125 = vld [vmem:[#allocation5 + $0xec] sm:$0xf]
    %v126 = vld [vmem:[#allocation5 + $0xf0] sm:$0xff]
    %v127 = vld [vmem:[#allocation5 + $0xf8] sm:$0xff]
    %v128 = vld [vmem:[#allocation5 + $0x100] sm:$0xff]
    %v129 = vld [vmem:[#allocation5 + $0x108] sm:$0xff]
    %v130 = vld [vmem:[#allocation5 + $0x110] sm:$0xff]
    %v131 = vld [vmem:[#allocation5 + $0x118] sm:$0xff]
    %v132 = vld [vmem:[#allocation5 + $0x120] sm:$0xff]
    %v133 = vld [vmem:[#allocation5 + $0x128] sm:$0xf]
    %v134 = vld [vmem:[#allocation5 + $0x12c] sm:$0xff]
    %v135 = vld [vmem:[#allocation5 + $0x134] sm:$0xff]
    %v136 = vld [vmem:[#allocation5 + $0x13c] sm:$0xff]
    %v137 = vld [vmem:[#allocation5 + $0x144] sm:$0xff]
    %v138 = vld [vmem:[#allocation5 + $0x14c] sm:$0xff]
    %v139 = vld [vmem:[#allocation5 + $0x154] sm:$0xff]
    %v140 = vld [vmem:[#allocation5 + $0x15c] sm:$0xff]
    %v141 = vld [vmem:[#allocation5 + $0x164] sm:$0xf]
    %v142 = vld [vmem:[#allocation5 + $0x168] sm:$0xff]
    %v143 = vld [vmem:[#allocation5 + $0x170] sm:$0xff]
    %v144 = vld [vmem:[#allocation5 + $0x178] sm:$0xff]
    %v145 = vld [vmem:[#allocation5 + $0x180] sm:$0xff]
    %v146 = vld [vmem:[#allocation5 + $0x188] sm:$0xff]
    %v147 = vld [vmem:[#allocation5 + $0x190] sm:$0xff]
    %v148 = vld [vmem:[#allocation5 + $0x198] sm:$0xff]
    %v149 = vld [vmem:[#allocation5 + $0x1a0] sm:$0xf]
    %v150 = vld [vmem:[#allocation5 + $0x1a4] sm:$0xff]
    %v151 = vld [vmem:[#allocation5 + $0x1ac] sm:$0xff]
    %v152 = vld [vmem:[#allocation5 + $0x1b4] sm:$0xff]
    %v153 = vld [vmem:[#allocation5 + $0x1bc] sm:$0xff]
    %v154 = vld [vmem:[#allocation5 + $0x1c4] sm:$0xff]
    %v155 = vld [vmem:[#allocation5 + $0x1cc] sm:$0xff]
    %v156 = vld [vmem:[#allocation5 + $0x1d4] sm:$0xff]
    %v157 = vld [vmem:[#allocation5 + $0x1dc] sm:$0xf]
    %v158 = vld [vmem:[#allocation5 + $0x1e0] sm:$0xff]
    %v159 = vld [vmem:[#allocation5 + $0x1e8] sm:$0xff]
    %v160 = vld [vmem:[#allocation5 + $0x1f0] sm:$0xff]
    %v161 = vld [vmem:[#allocation5 + $0x1f8] sm:$0xff]
    %v162 = vld [vmem:[#allocation5 + $0x200] sm:$0xff]
    %v163 = vld [vmem:[#allocation5 + $0x208] sm:$0xff]
    %v164 = vld [vmem:[#allocation5 + $0x210] sm:$0xff]
    %v165 = vld [vmem:[#allocation5 + $0x218] sm:$0xf]
    %v166 = vld [vmem:[#allocation5 + $0x21c] sm:$0xff]
    %v167 = vld [vmem:[#allocation5 + $0x224] sm:$0xff]
    %v168 = vld [vmem:[#allocation5 + $0x22c] sm:$0xff]
    %v169 = vld [vmem:[#allocation5 + $0x234] sm:$0xff]
    %v170 = vld [vmem:[#allocation5 + $0x23c] sm:$0xff]
    %v171 = vld [vmem:[#allocation5 + $0x244] sm:$0xff]
    %v172 = vld [vmem:[#allocation5 + $0x24c] sm:$0xff]
    %v173 = vld [vmem:[#allocation5 + $0x254] sm:$0xf]
    %v174 = vld [vmem:[#allocation5 + $0x258] sm:$0xff]
    %v175 = vld [vmem:[#allocation5 + $0x260] sm:$0xff]
    %v176 = vld [vmem:[#allocation5 + $0x268] sm:$0xff]
    %v177 = vld [vmem:[#allocation5 + $0x270] sm:$0xff]
    %v178 = vld [vmem:[#allocation5 + $0x278] sm:$0xff]
    %v179 = vld [vmem:[#allocation5 + $0x280] sm:$0xff]
    %v180 = vld [vmem:[#allocation5 + $0x288] sm:$0xff]
    %v181 = vld [vmem:[#allocation5 + $0x290] sm:$0xf]
    %v182 = vld [vmem:[#allocation5 + $0x294] sm:$0xff]
    %v183 = vld [vmem:[#allocation5 + $0x29c] sm:$0xff]
    %v184 = vld [vmem:[#allocation5 + $0x2a4] sm:$0xff]
    %v185 = vld [vmem:[#allocation5 + $0x2ac] sm:$0xff]
    %v186 = vld [vmem:[#allocation5 + $0x2b4] sm:$0xff]
    %v187 = vld [vmem:[#allocation5 + $0x2bc] sm:$0xff]
    %v188 = vld [vmem:[#allocation5 + $0x2c4] sm:$0xff]
    %v189 = vld [vmem:[#allocation5 + $0x2cc] sm:$0xf]
    %v190 = vld [vmem:[#allocation5 + $0x2d0] sm:$0xff]
    %v191 = vld [vmem:[#allocation5 + $0x2d8] sm:$0xff]
    %v192 = vld [vmem:[#allocation5 + $0x2e0] sm:$0xff]
    %v193 = vld [vmem:[#allocation5 + $0x2e8] sm:$0xff]
    %v194 = vld [vmem:[#allocation5 + $0x2f0] sm:$0xff]
    %v195 = vld [vmem:[#allocation5 + $0x2f8] sm:$0xff]
    %v196 = vld [vmem:[#allocation5 + $0x300] sm:$0xff]
    %v197 = vld [vmem:[#allocation5 + $0x308] sm:$0xf]
    %v198 = vld [vmem:[#allocation5 + $0x30c] sm:$0xff]
    %v199 = vld [vmem:[#allocation5 + $0x314] sm:$0xff]
    %v200 = vld [vmem:[#allocation5 + $0x31c] sm:$0xff]
    %v201 = vld [vmem:[#allocation5 + $0x324] sm:$0xff]
    %v202 = vld [vmem:[#allocation5 + $0x32c] sm:$0xff]
    %v203 = vld [vmem:[#allocation5 + $0x334] sm:$0xff]
    %v204 = vld [vmem:[#allocation5 + $0x33c] sm:$0xff]
    %v205 = vld [vmem:[#allocation5 + $0x344] sm:$0xf]
    %v206 = vld [vmem:[#allocation5 + $0x348] sm:$0xff]
    %v207 = vld [vmem:[#allocation5 + $0x350] sm:$0xff]
    %v208 = vld [vmem:[#allocation5 + $0x358] sm:$0xff]
    %v209 = vld [vmem:[#allocation5 + $0x360] sm:$0xff]
    %v210 = vld [vmem:[#allocation5 + $0x368] sm:$0xff]
    %v211 = vld [vmem:[#allocation5 + $0x370] sm:$0xff]
    %v212 = vld [vmem:[#allocation5 + $0x378] sm:$0xff]
    %v213 = vld [vmem:[#allocation5 + $0x380] sm:$0xf]
    %v214 = vld [vmem:[#allocation5 + $0x384] sm:$0xff]
    %v215 = vld [vmem:[#allocation5 + $0x38c] sm:$0xff]
    %v216 = vld [vmem:[#allocation5 + $0x394] sm:$0xff]
    %v217 = vld [vmem:[#allocation5 + $0x39c] sm:$0xff]
    %v218 = vld [vmem:[#allocation5 + $0x3a4] sm:$0xff]
    %v219 = vld [vmem:[#allocation5 + $0x3ac] sm:$0xff]
    %v220 = vld [vmem:[#allocation5 + $0x3b4] sm:$0xff]
    %v221 = vld [vmem:[#allocation5 + $0x3bc] sm:$0xf]
    %v222 = vld [vmem:[#allocation5 + $0x3c0] sm:$0xff]
    %v223 = vld [vmem:[#allocation5 + $0x3c8] sm:$0xff]
    %v224 = vld [vmem:[#allocation5 + $0x3d0] sm:$0xff]
    %v225 = vld [vmem:[#allocation5 + $0x3d8] sm:$0xff]
    %v226 = vld [vmem:[#allocation5 + $0x3e0] sm:$0xff]
    %v227 = vld [vmem:[#allocation5 + $0x3e8] sm:$0xff]
    %v228 = vld [vmem:[#allocation5 + $0x3f0] sm:$0xff]
    %v229 = vld [vmem:[#allocation5 + $0x3f8] sm:$0xf]
    %v230 = vld [vmem:[#allocation5 + $0x3fc] sm:$0xff]
    %v231 = vld [vmem:[#allocation5 + $0x404] sm:$0xff]
    %v232 = vld [vmem:[#allocation5 + $0x40c] sm:$0xff]
    %v233 = vld [vmem:[#allocation5 + $0x414] sm:$0xff]
    %v234 = vld [vmem:[#allocation5 + $0x41c] sm:$0xff]
    %v235 = vld [vmem:[#allocation5 + $0x424] sm:$0xff]
    %v236 = vld [vmem:[#allocation5 + $0x42c] sm:$0xff]
    %v237 = vld [vmem:[#allocation5 + $0x434] sm:$0xf]
    %v238 = vld [vmem:[#allocation5 + $0x438] sm:$0xff]
    %v239 = vld [vmem:[#allocation5 + $0x440] sm:$0xff]
    %v240 = vld [vmem:[#allocation5 + $0x448] sm:$0xff]
    %v241 = vld [vmem:[#allocation5 + $0x450] sm:$0xff]
    %v242 = vld [vmem:[#allocation5 + $0x458] sm:$0xff]
    %v243 = vld [vmem:[#allocation5 + $0x460] sm:$0xff]
    %v244 = vld [vmem:[#allocation5 + $0x468] sm:$0xff]
    %v245 = vld [vmem:[#allocation5 + $0x470] sm:$0xf]
    %v246 = vld [vmem:[#allocation5 + $0x474] sm:$0xff]
    %v247 = vld [vmem:[#allocation5 + $0x47c] sm:$0xff]
    %v248 = vld [vmem:[#allocation5 + $0x484] sm:$0xff]
    %v249 = vld [vmem:[#allocation5 + $0x48c] sm:$0xff]
    %v250 = vld [vmem:[#allocation5 + $0x494] sm:$0xff]
    %v251 = vld [vmem:[#allocation5 + $0x49c] sm:$0xff]
    %v252 = vld [vmem:[#allocation5 + $0x4a4] sm:$0xff]
    %v253 = vld [vmem:[#allocation5 + $0x4ac] sm:$0xf]
    %v254 = vld [vmem:[#allocation5 + $0x4b0] sm:$0xff]
    %v255 = vld [vmem:[#allocation5 + $0x4b8] sm:$0xff]
    %v256 = vld [vmem:[#allocation5 + $0x4c0] sm:$0xff]
    %v257 = vld [vmem:[#allocation5 + $0x4c8] sm:$0xff]
    %v258 = vld [vmem:[#allocation5 + $0x4d0] sm:$0xff]
    %v259 = vld [vmem:[#allocation5 + $0x4d8] sm:$0xff]
    %v260 = vld [vmem:[#allocation5 + $0x4e0] sm:$0xff]
    %v261 = vld [vmem:[#allocation5 + $0x4e8] sm:$0xf]
    %v262 = vld [vmem:[#allocation5 + $0x4ec] sm:$0xff]
    %v263 = vld [vmem:[#allocation5 + $0x4f4] sm:$0xff]
    %v264 = vld [vmem:[#allocation5 + $0x4fc] sm:$0xff]
    %v265 = vld [vmem:[#allocation5 + $0x504] sm:$0xff]
    %v266 = vld [vmem:[#allocation5 + $0x50c] sm:$0xff]
    %v267 = vld [vmem:[#allocation5 + $0x514] sm:$0xff]
    %v268 = vld [vmem:[#allocation5 + $0x51c] sm:$0xff]
    %v269 = vld [vmem:[#allocation5 + $0x524] sm:$0xf]
    %v270 = vld [vmem:[#allocation5 + $0x528] sm:$0xff]
    %v271 = vld [vmem:[#allocation5 + $0x530] sm:$0xff]
    %v272 = vld [vmem:[#allocation5 + $0x538] sm:$0xff]
    %v273 = vld [vmem:[#allocation5 + $0x540] sm:$0xff]
    %v274 = vld [vmem:[#allocation5 + $0x548] sm:$0xff]
    %v275 = vld [vmem:[#allocation5 + $0x550] sm:$0xff]
    %v276 = vld [vmem:[#allocation5 + $0x558] sm:$0xff]
    %v277 = vld [vmem:[#allocation5 + $0x560] sm:$0xf]
    %v278 = vld [vmem:[#allocation5 + $0x564] sm:$0xff]
    %v279 = vld [vmem:[#allocation5 + $0x56c] sm:$0xff]
    %v280 = vld [vmem:[#allocation5 + $0x574] sm:$0xff]
    %v281 = vld [vmem:[#allocation5 + $0x57c] sm:$0xff]
    %v282 = vld [vmem:[#allocation5 + $0x584] sm:$0xff]
    %v283 = vld [vmem:[#allocation5 + $0x58c] sm:$0xff]
    %v284 = vld [vmem:[#allocation5 + $0x594] sm:$0xff]
    %v285 = vld [vmem:[#allocation5 + $0x59c] sm:$0xf]
    %v286 = vld [vmem:[#allocation5 + $0x5a0] sm:$0xff]
    %v287 = vld [vmem:[#allocation5 + $0x5a8] sm:$0xff]
    %v288 = vld [vmem:[#allocation5 + $0x5b0] sm:$0xff]
    %v289 = vld [vmem:[#allocation5 + $0x5b8] sm:$0xff]
    %v290 = vld [vmem:[#allocation5 + $0x5c0] sm:$0xff]
    %v291 = vld [vmem:[#allocation5 + $0x5c8] sm:$0xff]
    %v292 = vld [vmem:[#allocation5 + $0x5d0] sm:$0xff]
    %v293 = vld [vmem:[#allocation5 + $0x5d8] sm:$0xf]
    %v294 = vld [vmem:[#allocation5 + $0x5dc] sm:$0xff]
    %v295 = vld [vmem:[#allocation5 + $0x5e4] sm:$0xff]
    %v296 = vld [vmem:[#allocation5 + $0x5ec] sm:$0xff]
    %v297 = vld [vmem:[#allocation5 + $0x5f4] sm:$0xff]
    %v298 = vld [vmem:[#allocation5 + $0x5fc] sm:$0xff]
    %v299 = vld [vmem:[#allocation5 + $0x604] sm:$0xff]
    %v300 = vld [vmem:[#allocation5 + $0x60c] sm:$0xff]
    %v301 = vld [vmem:[#allocation5 + $0x614] sm:$0xf]
    %v302 = vld [vmem:[#allocation5 + $0x618] sm:$0xff]
    %v303 = vld [vmem:[#allocation5 + $0x620] sm:$0xff]
    %v304 = vld [vmem:[#allocation5 + $0x628] sm:$0xff]
    %v305 = vld [vmem:[#allocation5 + $0x630] sm:$0xff]
    %v306 = vld [vmem:[#allocation5 + $0x638] sm:$0xff]
    %v307 = vld [vmem:[#allocation5 + $0x640] sm:$0xff]
    %v308 = vld [vmem:[#allocation5 + $0x648] sm:$0xff]
    %v309 = vld [vmem:[#allocation5 + $0x650] sm:$0xf]
    %v310 = vld [vmem:[#allocation5 + $0x654] sm:$0xff]
    %v311 = vld [vmem:[#allocation5 + $0x65c] sm:$0xff]
    %v312 = vld [vmem:[#allocation5 + $0x664] sm:$0xff]
    %v313 = vld [vmem:[#allocation5 + $0x66c] sm:$0xff]
    %v314 = vld [vmem:[#allocation5 + $0x674] sm:$0xff]
    %v315 = vld [vmem:[#allocation5 + $0x67c] sm:$0xff]
    %v316 = vld [vmem:[#allocation5 + $0x684] sm:$0xff]
    %v317 = vld [vmem:[#allocation5 + $0x68c] sm:$0xf]
    %v318 = vld [vmem:[#allocation5 + $0x690] sm:$0xff]
    %v319 = vld [vmem:[#allocation5 + $0x698] sm:$0xff]
    %v320 = vld [vmem:[#allocation5 + $0x6a0] sm:$0xff]
    %v321 = vld [vmem:[#allocation5 + $0x6a8] sm:$0xff]
    %v322 = vld [vmem:[#allocation5 + $0x6b0] sm:$0xff]
    %v323 = vld [vmem:[#allocation5 + $0x6b8] sm:$0xff]
    %v324 = vld [vmem:[#allocation5 + $0x6c0] sm:$0xff]
    %v325 = vld [vmem:[#allocation5 + $0x6c8] sm:$0xf]
    %v326 = vld [vmem:[#allocation5 + $0x6cc] sm:$0xff]
    %v327 = vld [vmem:[#allocation5 + $0x6d4] sm:$0xff]
    %v328 = vld [vmem:[#allocation5 + $0x6dc] sm:$0xff]
    %v329 = vld [vmem:[#allocation5 + $0x6e4] sm:$0xff]
    %v330 = vld [vmem:[#allocation5 + $0x6ec] sm:$0xff]
    %v331 = vld [vmem:[#allocation5 + $0x6f4] sm:$0xff]
    %v332 = vld [vmem:[#allocation5 + $0x6fc] sm:$0xff]
    %v333 = vld [vmem:[#allocation5 + $0x704] sm:$0xf]
    %v334 = vld [vmem:[#allocation5 + $0x708] sm:$0xff]
    %v335 = vld [vmem:[#allocation5 + $0x710] sm:$0xff]
    %v336 = vld [vmem:[#allocation5 + $0x718] sm:$0xff]
    %v337 = vld [vmem:[#allocation5 + $0x720] sm:$0xff]
    %v338 = vld [vmem:[#allocation5 + $0x728] sm:$0xff]
    %v339 = vld [vmem:[#allocation5 + $0x730] sm:$0xff]
    %v340 = vld [vmem:[#allocation5 + $0x738] sm:$0xff]
    %v341 = vld [vmem:[#allocation5 + $0x740] sm:$0xf]
    %v342 = vld [vmem:[#allocation5 + $0x744] sm:$0xff]
    %v343 = vld [vmem:[#allocation5 + $0x74c] sm:$0xff]
    %v344 = vld [vmem:[#allocation5 + $0x754] sm:$0xff]
    %v345 = vld [vmem:[#allocation5 + $0x75c] sm:$0xff]
    %v346 = vld [vmem:[#allocation5 + $0x764] sm:$0xff]
    %v347 = vld [vmem:[#allocation5 + $0x76c] sm:$0xff]
    %v348 = vld [vmem:[#allocation5 + $0x774] sm:$0xff]
    %v349 = vld [vmem:[#allocation5 + $0x77c] sm:$0xf]
    %v350 = vld [vmem:[#allocation5 + $0x780] sm:$0xff]
    %v351 = vld [vmem:[#allocation5 + $0x788] sm:$0xff]
    %v352 = vld [vmem:[#allocation5 + $0x790] sm:$0xff]
    %v353 = vld [vmem:[#allocation5 + $0x798] sm:$0xff]
    %v354 = vld [vmem:[#allocation5 + $0x7a0] sm:$0xff]
    %v355 = vld [vmem:[#allocation5 + $0x7a8] sm:$0xff]
    %v356 = vld [vmem:[#allocation5 + $0x7b0] sm:$0xff]
    %v357 = vld [vmem:[#allocation5 + $0x7b8] sm:$0xf]
    %v358 = vld [vmem:[#allocation5 + $0x7bc] sm:$0xff]
    %v359 = vld [vmem:[#allocation5 + $0x7c4] sm:$0xff]
    %v360 = vld [vmem:[#allocation5 + $0x7cc] sm:$0xff]
    %v361 = vld [vmem:[#allocation5 + $0x7d4] sm:$0xff]
    %v362 = vld [vmem:[#allocation5 + $0x7dc] sm:$0xff]
    %v363 = vld [vmem:[#allocation5 + $0x7e4] sm:$0xff]
    %v364 = vld [vmem:[#allocation5 + $0x7ec] sm:$0xff]
    %v365 = vld [vmem:[#allocation5 + $0x7f4] sm:$0xf]
    %v366 = vld [vmem:[#allocation5 + $0x7f8] sm:$0xff]
    %v367 = vld [vmem:[#allocation5 + $0x800] sm:$0xff]
    %v368 = vld [vmem:[#allocation5 + $0x808] sm:$0xff]
    %v369 = vld [vmem:[#allocation5 + $0x810] sm:$0xff]
    %v370 = vld [vmem:[#allocation5 + $0x818] sm:$0xff]
    %v371 = vld [vmem:[#allocation5 + $0x820] sm:$0xff]
    %v372 = vld [vmem:[#allocation5 + $0x828] sm:$0xff]
    %v373 = vld [vmem:[#allocation5 + $0x830] sm:$0xf]
    %v374 = vld [vmem:[#allocation5 + $0x834] sm:$0xff]
    %v375 = vld [vmem:[#allocation5 + $0x83c] sm:$0xff]
    %v376 = vld [vmem:[#allocation5 + $0x844] sm:$0xff]
    %v377 = vld [vmem:[#allocation5 + $0x84c] sm:$0xff]
    %v378 = vld [vmem:[#allocation5 + $0x854] sm:$0xff]
    %v379 = vld [vmem:[#allocation5 + $0x85c] sm:$0xff]
    %v380 = vld [vmem:[#allocation5 + $0x864] sm:$0xff]
    %v381 = vld [vmem:[#allocation5 + $0x86c] sm:$0xf]
    %v382 = vld [vmem:[#allocation5 + $0x870] sm:$0xff]
    %v383 = vld [vmem:[#allocation5 + $0x878] sm:$0xff]
    %v384 = vld [vmem:[#allocation5 + $0x880] sm:$0xff]
    %v385 = vld [vmem:[#allocation5 + $0x888] sm:$0xff]
    %v386 = vld [vmem:[#allocation5 + $0x890] sm:$0xff]
    %v387 = vld [vmem:[#allocation5 + $0x898] sm:$0xff]
    %v388 = vld [vmem:[#allocation5 + $0x8a0] sm:$0xff]
    %v389 = vld [vmem:[#allocation5 + $0x8a8] sm:$0xf]
    %v390 = vld [vmem:[#allocation5 + $0x8ac] sm:$0xff]
    %v391 = vld [vmem:[#allocation5 + $0x8b4] sm:$0xff]
    %v392 = vld [vmem:[#allocation5 + $0x8bc] sm:$0xff]
    %v393 = vld [vmem:[#allocation5 + $0x8c4] sm:$0xff]
    %v394 = vld [vmem:[#allocation5 + $0x8cc] sm:$0xff]
    %v395 = vld [vmem:[#allocation5 + $0x8d4] sm:$0xff]
    %v396 = vld [vmem:[#allocation5 + $0x8dc] sm:$0xff]
    %v397 = vld [vmem:[#allocation5 + $0x8e4] sm:$0xf]
    %v398 = vld [vmem:[#allocation5 + $0x8e8] sm:$0xff]
    %v399 = vld [vmem:[#allocation5 + $0x8f0] sm:$0xff]
    %v400 = vld [vmem:[#allocation5 + $0x8f8] sm:$0xff]
    %v401 = vld [vmem:[#allocation5 + $0x900] sm:$0xff]
    %v402 = vld [vmem:[#allocation5 + $0x908] sm:$0xff]
    %v403 = vld [vmem:[#allocation5 + $0x910] sm:$0xff]
    %v404 = vld [vmem:[#allocation5 + $0x918] sm:$0xff]
    %v405 = vld [vmem:[#allocation5 + $0x920] sm:$0xf]
    %v406 = vld [vmem:[#allocation5 + $0x924] sm:$0xff]
    %v407 = vld [vmem:[#allocation5 + $0x92c] sm:$0xff]
    %v408 = vld [vmem:[#allocation5 + $0x934] sm:$0xff]
    %v409 = vld [vmem:[#allocation5 + $0x93c] sm:$0xff]
    %v410 = vld [vmem:[#allocation5 + $0x944] sm:$0xff]
    %v411 = vld [vmem:[#allocation5 + $0x94c] sm:$0xff]
    %v412 = vld [vmem:[#allocation5 + $0x954] sm:$0xff]
    %v413 = vld [vmem:[#allocation5 + $0x95c] sm:$0xf]
    %v414 = vld [vmem:[#allocation5 + $0x960] sm:$0xff]
    %v415 = vld [vmem:[#allocation5 + $0x968] sm:$0xff]
    %v416 = vld [vmem:[#allocation5 + $0x970] sm:$0xff]
    %v417 = vld [vmem:[#allocation5 + $0x978] sm:$0xff]
    %v418 = vld [vmem:[#allocation5 + $0x980] sm:$0xff]
    %v419 = vld [vmem:[#allocation5 + $0x988] sm:$0xff]
    %v420 = vld [vmem:[#allocation5 + $0x990] sm:$0xff]
    %v421 = vld [vmem:[#allocation5 + $0x998] sm:$0xf]
    %v422 = vld [vmem:[#allocation5 + $0x99c] sm:$0xff]
    %v423 = vld [vmem:[#allocation5 + $0x9a4] sm:$0xff]
    %v424 = vld [vmem:[#allocation5 + $0x9ac] sm:$0xff]
    %v425 = vld [vmem:[#allocation5 + $0x9b4] sm:$0xff]
    %v426 = vld [vmem:[#allocation5 + $0x9bc] sm:$0xff]
    %v427 = vld [vmem:[#allocation5 + $0x9c4] sm:$0xff]
    %v428 = vld [vmem:[#allocation5 + $0x9cc] sm:$0xff]
    %v429 = vld [vmem:[#allocation5 + $0x9d4] sm:$0xf]
    %v430 = vld [vmem:[#allocation5 + $0x9d8] sm:$0xff]
    %v431 = vld [vmem:[#allocation5 + $0x9e0] sm:$0xff]
    %v432 = vld [vmem:[#allocation5 + $0x9e8] sm:$0xff]
    %v433 = vld [vmem:[#allocation5 + $0x9f0] sm:$0xff]
    %v434 = vld [vmem:[#allocation5 + $0x9f8] sm:$0xff]
    %v435 = vld [vmem:[#allocation5 + $0xa00] sm:$0xff]
    %v436 = vld [vmem:[#allocation5 + $0xa08] sm:$0xff]
    %v437 = vld [vmem:[#allocation5 + $0xa10] sm:$0xf]
    %v438 = vld [vmem:[#allocation5 + $0xa14] sm:$0xff]
    %v439 = vld [vmem:[#allocation5 + $0xa1c] sm:$0xff]
    %v440 = vld [vmem:[#allocation5 + $0xa24] sm:$0xff]
    %v441 = vld [vmem:[#allocation5 + $0xa2c] sm:$0xff]
    %v442 = vld [vmem:[#allocation5 + $0xa34] sm:$0xff]
    %v443 = vld [vmem:[#allocation5 + $0xa3c] sm:$0xff]
    %v444 = vld [vmem:[#allocation5 + $0xa44] sm:$0xff]
    %v445 = vld [vmem:[#allocation5 + $0xa4c] sm:$0xf]
    %v446 = vld [vmem:[#allocation5 + $0xa50] sm:$0xff]
    %v447 = vld [vmem:[#allocation5 + $0xa58] sm:$0xff]
    %v448 = vld [vmem:[#allocation5 + $0xa60] sm:$0xff]
    %v449 = vld [vmem:[#allocation5 + $0xa68] sm:$0xff]
    %v450 = vld [vmem:[#allocation5 + $0xa70] sm:$0xff]
    %v451 = vld [vmem:[#allocation5 + $0xa78] sm:$0xff]
    %v452 = vld [vmem:[#allocation5 + $0xa80] sm:$0xff]
    %v453 = vld [vmem:[#allocation5 + $0xa88] sm:$0xf]
    %v454 = vld [vmem:[#allocation5 + $0xa8c] sm:$0xff]
    %v455 = vld [vmem:[#allocation5 + $0xa94] sm:$0xff]
    %v456 = vld [vmem:[#allocation5 + $0xa9c] sm:$0xff]
    %v457 = vld [vmem:[#allocation5 + $0xaa4] sm:$0xff]
    %v458 = vld [vmem:[#allocation5 + $0xaac] sm:$0xff]
    %v459 = vld [vmem:[#allocation5 + $0xab4] sm:$0xff]
    %v460 = vld [vmem:[#allocation5 + $0xabc] sm:$0xff]
    %v461 = vld [vmem:[#allocation5 + $0xac4] sm:$0xf]
    %v462 = vld [vmem:[#allocation5 + $0xac8] sm:$0xff]
    %v463 = vld [vmem:[#allocation5 + $0xad0] sm:$0xff]
    %v464 = vld [vmem:[#allocation5 + $0xad8] sm:$0xff]
    %v465 = vld [vmem:[#allocation5 + $0xae0] sm:$0xff]
    %v466 = vld [vmem:[#allocation5 + $0xae8] sm:$0xff]
    %v467 = vld [vmem:[#allocation5 + $0xaf0] sm:$0xff]
    %v468 = vld [vmem:[#allocation5 + $0xaf8] sm:$0xff]
    %v469 = vld [vmem:[#allocation5 + $0xb00] sm:$0xf]
    %v470 = vld [vmem:[#allocation5 + $0xb04] sm:$0xff]
    %v471 = vld [vmem:[#allocation5 + $0xb0c] sm:$0xff]
    %v472 = vld [vmem:[#allocation5 + $0xb14] sm:$0xff]
    %v473 = vld [vmem:[#allocation5 + $0xb1c] sm:$0xff]
    %v474 = vld [vmem:[#allocation5 + $0xb24] sm:$0xff]
    %v475 = vld [vmem:[#allocation5 + $0xb2c] sm:$0xff]
    %v476 = vld [vmem:[#allocation5 + $0xb34] sm:$0xff]
    %v477 = vld [vmem:[#allocation5 + $0xb3c] sm:$0xf]
    %v478 = vld [vmem:[#allocation5 + $0xb40] sm:$0xff]
    %v479 = vld [vmem:[#allocation5 + $0xb48] sm:$0xff]
    %v480 = vld [vmem:[#allocation5 + $0xb50] sm:$0xff]
    %v481 = vld [vmem:[#allocation5 + $0xb58] sm:$0xff]
    %v482 = vld [vmem:[#allocation5 + $0xb60] sm:$0xff]
    %v483 = vld [vmem:[#allocation5 + $0xb68] sm:$0xff]
    %v484 = vld [vmem:[#allocation5 + $0xb70] sm:$0xff]
    %v485 = vld [vmem:[#allocation5 + $0xb78] sm:$0xf]
    %v486 = vld [vmem:[#allocation5 + $0xb7c] sm:$0xff]
    %v487 = vld [vmem:[#allocation5 + $0xb84] sm:$0xff]
    %v488 = vld [vmem:[#allocation5 + $0xb8c] sm:$0xff]
    %v489 = vld [vmem:[#allocation5 + $0xb94] sm:$0xff]
    %v490 = vld [vmem:[#allocation5 + $0xb9c] sm:$0xff]
    %v491 = vld [vmem:[#allocation5 + $0xba4] sm:$0xff]
    %v492 = vld [vmem:[#allocation5 + $0xbac] sm:$0xff]
    %v493 = vld [vmem:[#allocation5 + $0xbb4] sm:$0xf]
    %v494 = vld [vmem:[#allocation5 + $0xbb8] sm:$0xff]
    %v495 = vld [vmem:[#allocation5 + $0xbc0] sm:$0xff]
    %v496 = vld [vmem:[#allocation5 + $0xbc8] sm:$0xff]
    %v497 = vld [vmem:[#allocation5 + $0xbd0] sm:$0xff]
    %v498 = vld [vmem:[#allocation5 + $0xbd8] sm:$0xff]
    %v499 = vld [vmem:[#allocation5 + $0xbe0] sm:$0xff]
    %v500 = vld [vmem:[#allocation5 + $0xbe8] sm:$0xff]
    %v501 = vld [vmem:[#allocation5 + $0xbf0] sm:$0xf]
    %v502 = vld [vmem:[#allocation5 + $0xbf4] sm:$0xff]
    %v503 = vld [vmem:[#allocation5 + $0xbfc] sm:$0xff]
    %v504 = vld [vmem:[#allocation5 + $0xc04] sm:$0xff]
    %v505 = vld [vmem:[#allocation5 + $0xc0c] sm:$0xff]
    %v506 = vld [vmem:[#allocation5 + $0xc14] sm:$0xff]
    %v507 = vld [vmem:[#allocation5 + $0xc1c] sm:$0xff]
    %v508 = vld [vmem:[#allocation5 + $0xc24] sm:$0xff]
    %v509 = vld [vmem:[#allocation5 + $0xc2c] sm:$0xf]
    %v510 = vld [vmem:[#allocation5 + $0xc30] sm:$0xff]
    %v511 = vld [vmem:[#allocation5 + $0xc38] sm:$0xff]
    %v512 = vld [vmem:[#allocation5 + $0xc40] sm:$0xff]
    %v513 = vld [vmem:[#allocation5 + $0xc48] sm:$0xff]
    %v514 = vld [vmem:[#allocation5 + $0xc50] sm:$0xff]
    %v515 = vld [vmem:[#allocation5 + $0xc58] sm:$0xff]
    %v516 = vld [vmem:[#allocation5 + $0xc60] sm:$0xff]
    %v517 = vld [vmem:[#allocation5 + $0xc68] sm:$0xf]
    %v518 = vld [vmem:[#allocation5 + $0xc6c] sm:$0xff]
    %v519 = vld [vmem:[#allocation5 + $0xc74] sm:$0xff]
    %v520 = vld [vmem:[#allocation5 + $0xc7c] sm:$0xff]
    %v521 = vld [vmem:[#allocation5 + $0xc84] sm:$0xff]
    %v522 = vld [vmem:[#allocation5 + $0xc8c] sm:$0xff]
    %v523 = vld [vmem:[#allocation5 + $0xc94] sm:$0xff]
    %v524 = vld [vmem:[#allocation5 + $0xc9c] sm:$0xff]
    %v525 = vld [vmem:[#allocation5 + $0xca4] sm:$0xf]
    %v526 = vld [vmem:[#allocation5 + $0xca8] sm:$0xff]
    %v527 = vld [vmem:[#allocation5 + $0xcb0] sm:$0xff]
    %v528 = vld [vmem:[#allocation5 + $0xcb8] sm:$0xff]
    %v529 = vld [vmem:[#allocation5 + $0xcc0] sm:$0xff]
    %v530 = vld [vmem:[#allocation5 + $0xcc8] sm:$0xff]
    %v531 = vld [vmem:[#allocation5 + $0xcd0] sm:$0xff]
    %v532 = vld [vmem:[#allocation5 + $0xcd8] sm:$0xff]
    %v533 = vld [vmem:[#allocation5 + $0xce0] sm:$0xf]
    %v534 = vld [vmem:[#allocation5 + $0xce4] sm:$0xff]
    %v535 = vld [vmem:[#allocation5 + $0xcec] sm:$0xff]
    %v536 = vld [vmem:[#allocation5 + $0xcf4] sm:$0xff]
    %v537 = vld [vmem:[#allocation5 + $0xcfc] sm:$0xff]
    %v538 = vld [vmem:[#allocation5 + $0xd04] sm:$0xff]
    %v539 = vld [vmem:[#allocation5 + $0xd0c] sm:$0xff]
    %v540 = vld [vmem:[#allocation5 + $0xd14] sm:$0xff]
    %v541 = vld [vmem:[#allocation5 + $0xd1c] sm:$0xf]
    %v542 = vld [vmem:[#allocation5 + $0xd20] sm:$0xff]
    %v543 = vld [vmem:[#allocation5 + $0xd28] sm:$0xff]
    %v544 = vld [vmem:[#allocation5 + $0xd30] sm:$0xff]
    %v545 = vld [vmem:[#allocation5 + $0xd38] sm:$0xff]
    %v546 = vld [vmem:[#allocation5 + $0xd40] sm:$0xff]
    %v547 = vld [vmem:[#allocation5 + $0xd48] sm:$0xff]
    %v548 = vld [vmem:[#allocation5 + $0xd50] sm:$0xff]
    %v549 = vld [vmem:[#allocation5 + $0xd58] sm:$0xf]
    %v550 = vld [vmem:[#allocation5 + $0xd5c] sm:$0xff]
    %v551 = vld [vmem:[#allocation5 + $0xd64] sm:$0xff]
    %v552 = vld [vmem:[#allocation5 + $0xd6c] sm:$0xff]
    %v553 = vld [vmem:[#allocation5 + $0xd74] sm:$0xff]
    %v554 = vld [vmem:[#allocation5 + $0xd7c] sm:$0xff]
    %v555 = vld [vmem:[#allocation5 + $0xd84] sm:$0xff]
    %v556 = vld [vmem:[#allocation5 + $0xd8c] sm:$0xff]
    %v557 = vld [vmem:[#allocation5 + $0xd94] sm:$0xf]
    %v558 = vld [vmem:[#allocation5 + $0xd98] sm:$0xff]
    %v559 = vld [vmem:[#allocation5 + $0xda0] sm:$0xff]
    %v560 = vld [vmem:[#allocation5 + $0xda8] sm:$0xff]
    %v561 = vld [vmem:[#allocation5 + $0xdb0] sm:$0xff]
    %v562 = vld [vmem:[#allocation5 + $0xdb8] sm:$0xff]
    %v563 = vld [vmem:[#allocation5 + $0xdc0] sm:$0xff]
    %v564 = vld [vmem:[#allocation5 + $0xdc8] sm:$0xff]
    %v565 = vld [vmem:[#allocation5 + $0xdd0] sm:$0xf]
    %v566 = vld [vmem:[#allocation5 + $0xdd4] sm:$0xff]
    %v567 = vld [vmem:[#allocation5 + $0xddc] sm:$0xff]
    %v568 = vld [vmem:[#allocation5 + $0xde4] sm:$0xff]
    %v569 = vld [vmem:[#allocation5 + $0xdec] sm:$0xff]
    %v570 = vld [vmem:[#allocation5 + $0xdf4] sm:$0xff]
    %v571 = vld [vmem:[#allocation5 + $0xdfc] sm:$0xff]
    %v572 = vld [vmem:[#allocation5 + $0xe04] sm:$0xff]
    %v573 = vld [vmem:[#allocation5 + $0xe0c] sm:$0xf]
    %v574 = vld [vmem:[#allocation5 + $0xe10] sm:$0xff]
    %v575 = vld [vmem:[#allocation5 + $0xe18] sm:$0xff]
    %v576 = vld [vmem:[#allocation5 + $0xe20] sm:$0xff]
    %v577 = vld [vmem:[#allocation5 + $0xe28] sm:$0xff]
    %v578 = vld [vmem:[#allocation5 + $0xe30] sm:$0xff]
    %v579 = vld [vmem:[#allocation5 + $0xe38] sm:$0xff]
    %v580 = vld [vmem:[#allocation5 + $0xe40] sm:$0xff]
    %v581 = vld [vmem:[#allocation5 + $0xe48] sm:$0xf]
    %v582 = vld [vmem:[#allocation5 + $0xe4c] sm:$0xff]
    %v583 = vld [vmem:[#allocation5 + $0xe54] sm:$0xff]
    %v584 = vld [vmem:[#allocation5 + $0xe5c] sm:$0xff]
    %v585 = vld [vmem:[#allocation5 + $0xe64] sm:$0xff]
    %v586 = vld [vmem:[#allocation5 + $0xe6c] sm:$0xff]
    %v587 = vld [vmem:[#allocation5 + $0xe74] sm:$0xff]
    %v588 = vld [vmem:[#allocation5 + $0xe7c] sm:$0xff]
    %v589 = vld [vmem:[#allocation5 + $0xe84] sm:$0xf]
    %v590 = vld [vmem:[#allocation5 + $0xe88] sm:$0xff]
    %v591 = vld [vmem:[#allocation5 + $0xe90] sm:$0xff]
    %v592 = vld [vmem:[#allocation5 + $0xe98] sm:$0xff]
    %v593 = vld [vmem:[#allocation5 + $0xea0] sm:$0xff]
    %v594 = vld [vmem:[#allocation5 + $0xea8] sm:$0xff]
    %v595 = vld [vmem:[#allocation5 + $0xeb0] sm:$0xff]
    %v596 = vld [vmem:[#allocation5 + $0xeb8] sm:$0xff]
    %v597 = vld [vmem:[#allocation5 + $0xec0] sm:$0xf]
    %v598 = vld [vmem:[#allocation5 + $0xec4] sm:$0xff]
    %v599 = vld [vmem:[#allocation5 + $0xecc] sm:$0xff]
    %v600 = vld [vmem:[#allocation5 + $0xed4] sm:$0xff]
    %v601 = vld [vmem:[#allocation5 + $0xedc] sm:$0xff]
    %v602 = vld [vmem:[#allocation5 + $0xee4] sm:$0xff]
    %v603 = vld [vmem:[#allocation5 + $0xeec] sm:$0xff]
    %v604 = vld [vmem:[#allocation5 + $0xef4] sm:$0xff]
    %v605 = vld [vmem:[#allocation5 + $0xefc] sm:$0xf]
    %v606 = vld [vmem:[#allocation5 + $0xf00] sm:$0xff]
    %v607 = vld [vmem:[#allocation5 + $0xf08] sm:$0xff]
    %v608 = vld [vmem:[#allocation5 + $0xf10] sm:$0xff]
    %v609 = vld [vmem:[#allocation5 + $0xf18] sm:$0xff]
    %v610 = vld [vmem:[#allocation5 + $0xf20] sm:$0xff]
    %v611 = vld [vmem:[#allocation5 + $0xf28] sm:$0xff]
    %v612 = vld [vmem:[#allocation5 + $0xf30] sm:$0xff]
    %v613 = vld [vmem:[#allocation5 + $0xf38] sm:$0xf]
    %v614 = vld [vmem:[#allocation5 + $0xf3c] sm:$0xff]
    %v615 = vld [vmem:[#allocation5 + $0xf44] sm:$0xff]
    %v616 = vld [vmem:[#allocation5 + $0xf4c] sm:$0xff]
    %v617 = vld [vmem:[#allocation5 + $0xf54] sm:$0xff]
    %v618 = vld [vmem:[#allocation5 + $0xf5c] sm:$0xff]
    %v619 = vld [vmem:[#allocation5 + $0xf64] sm:$0xff]
    %v620 = vld [vmem:[#allocation5 + $0xf6c] sm:$0xff]
    %v621 = vld [vmem:[#allocation5 + $0xf74] sm:$0xf]
    %v622 = vld [vmem:[#allocation5 + $0xf78] sm:$0xff]
    %v623 = vld [vmem:[#allocation5 + $0xf80] sm:$0xff]
    %v624 = vld [vmem:[#allocation5 + $0xf88] sm:$0xff]
    %v625 = vld [vmem:[#allocation5 + $0xf90] sm:$0xff]
    %v626 = vld [vmem:[#allocation5 + $0xf98] sm:$0xff]
    %v627 = vld [vmem:[#allocation5 + $0xfa0] sm:$0xff]
    %v628 = vld [vmem:[#allocation5 + $0xfa8] sm:$0xff]
    %v629 = vld [vmem:[#allocation5 + $0xfb0] sm:$0xf]
    %v630 = vld [vmem:[#allocation5 + $0xfb4] sm:$0xff]
    %v631 = vld [vmem:[#allocation5 + $0xfbc] sm:$0xff]
    %v632 = vld [vmem:[#allocation5 + $0xfc4] sm:$0xff]
    %v633 = vld [vmem:[#allocation5 + $0xfcc] sm:$0xff]
    %v634 = vld [vmem:[#allocation5 + $0xfd4] sm:$0xff]
    %v635 = vld [vmem:[#allocation5 + $0xfdc] sm:$0xff]
    %v636 = vld [vmem:[#allocation5 + $0xfe4] sm:$0xff]
    %v637 = vld [vmem:[#allocation5 + $0xfec] sm:$0xf]
    %v638 = vld [vmem:[#allocation5 + $0xff0] sm:$0xff]
    %v639 = vld [vmem:[#allocation5 + $0xff8] sm:$0xff]
    %v640 = vld [vmem:[#allocation5 + $0x1000] sm:$0xff]
    %v641 = vld [vmem:[#allocation5 + $0x1008] sm:$0xff]
    %v642 = vld [vmem:[#allocation5 + $0x1010] sm:$0xff]
    %v643 = vld [vmem:[#allocation5 + $0x1018] sm:$0xff]
    %v644 = vld [vmem:[#allocation5 + $0x1020] sm:$0xff]
    %v645 = vld [vmem:[#allocation5 + $0x1028] sm:$0xf]
    %v646 = vld [vmem:[#allocation5 + $0x102c] sm:$0xff]
    %v647 = vld [vmem:[#allocation5 + $0x1034] sm:$0xff]
    %v648 = vld [vmem:[#allocation5 + $0x103c] sm:$0xff]
    %v649 = vld [vmem:[#allocation5 + $0x1044] sm:$0xff]
    %v650 = vld [vmem:[#allocation5 + $0x104c] sm:$0xff]
    %v651 = vld [vmem:[#allocation5 + $0x1054] sm:$0xff]
    %v652 = vld [vmem:[#allocation5 + $0x105c] sm:$0xff]
    %v653 = vld [vmem:[#allocation5 + $0x1064] sm:$0xf]
    %v654 = vld [vmem:[#allocation5 + $0x1068] sm:$0xff]
    %v655 = vld [vmem:[#allocation5 + $0x1070] sm:$0xff]
    %v656 = vld [vmem:[#allocation5 + $0x1078] sm:$0xff]
    %v657 = vld [vmem:[#allocation5 + $0x1080] sm:$0xff]
    %v658 = vld [vmem:[#allocation5 + $0x1088] sm:$0xff]
    %v659 = vld [vmem:[#allocation5 + $0x1090] sm:$0xff]
    %v660 = vld [vmem:[#allocation5 + $0x1098] sm:$0xff]
    %v661 = vld [vmem:[#allocation5 + $0x10a0] sm:$0xf]
    %v662 = vld [vmem:[#allocation5 + $0x10a4] sm:$0xff]
    %v663 = vld [vmem:[#allocation5 + $0x10ac] sm:$0xff]
    %v664 = vld [vmem:[#allocation5 + $0x10b4] sm:$0xff]
    %v665 = vld [vmem:[#allocation5 + $0x10bc] sm:$0xff]
    %v666 = vld [vmem:[#allocation5 + $0x10c4] sm:$0xff]
    %v667 = vld [vmem:[#allocation5 + $0x10cc] sm:$0xff]
    %v668 = vld [vmem:[#allocation5 + $0x10d4] sm:$0xff]
    %v669 = vld [vmem:[#allocation5 + $0x10dc] sm:$0xf]
    %v670 = vld [vmem:[#allocation5 + $0x10e0] sm:$0xff]
    %v671 = vld [vmem:[#allocation5 + $0x10e8] sm:$0xff]
    %v672 = vld [vmem:[#allocation5 + $0x10f0] sm:$0xff]
    %v673 = vld [vmem:[#allocation5 + $0x10f8] sm:$0xff]
    %v674 = vld [vmem:[#allocation5 + $0x1100] sm:$0xff]
    %v675 = vld [vmem:[#allocation5 + $0x1108] sm:$0xff]
    %v676 = vld [vmem:[#allocation5 + $0x1110] sm:$0xff]
    %v677 = vld [vmem:[#allocation5 + $0x1118] sm:$0xf]
    %v678 = vld [vmem:[#allocation5 + $0x111c] sm:$0xff]
    %v679 = vld [vmem:[#allocation5 + $0x1124] sm:$0xff]
    %v680 = vld [vmem:[#allocation5 + $0x112c] sm:$0xff]
    %v681 = vld [vmem:[#allocation5 + $0x1134] sm:$0xff]
    %v682 = vld [vmem:[#allocation5 + $0x113c] sm:$0xff]
    %v683 = vld [vmem:[#allocation5 + $0x1144] sm:$0xff]
    %v684 = vld [vmem:[#allocation5 + $0x114c] sm:$0xff]
    %v685 = vld [vmem:[#allocation5 + $0x1154] sm:$0xf]
    %v686 = vld [vmem:[#allocation5 + $0x1158] sm:$0xff]
    %v687 = vld [vmem:[#allocation5 + $0x1160] sm:$0xff]
    %v688 = vld [vmem:[#allocation5 + $0x1168] sm:$0xff]
    %v689 = vld [vmem:[#allocation5 + $0x1170] sm:$0xff]
    %v690 = vld [vmem:[#allocation5 + $0x1178] sm:$0xff]
    %v691 = vld [vmem:[#allocation5 + $0x1180] sm:$0xff]
    %v692 = vld [vmem:[#allocation5 + $0x1188] sm:$0xff]
    %v693 = vld [vmem:[#allocation5 + $0x1190] sm:$0xf]
    %v694 = vld [vmem:[#allocation5 + $0x1194] sm:$0xff]
    %v695 = vld [vmem:[#allocation5 + $0x119c] sm:$0xff]
    %v696 = vld [vmem:[#allocation5 + $0x11a4] sm:$0xff]
    %v697 = vld [vmem:[#allocation5 + $0x11ac] sm:$0xff]
    %v698 = vld [vmem:[#allocation5 + $0x11b4] sm:$0xff]
    %v699 = vld [vmem:[#allocation5 + $0x11bc] sm:$0xff]
    %v700 = vld [vmem:[#allocation5 + $0x11c4] sm:$0xff]
    %v701 = vld [vmem:[#allocation5 + $0x11cc] sm:$0xf]
    %v702 = vld [vmem:[#allocation5 + $0x11d0] sm:$0xff]
    %v703 = vld [vmem:[#allocation5 + $0x11d8] sm:$0xff]
    %v704 = vld [vmem:[#allocation5 + $0x11e0] sm:$0xff]
    %v705 = vld [vmem:[#allocation5 + $0x11e8] sm:$0xff]
    %v706 = vld [vmem:[#allocation5 + $0x11f0] sm:$0xff]
    %v707 = vld [vmem:[#allocation5 + $0x11f8] sm:$0xff]
    %v708 = vld [vmem:[#allocation5 + $0x1200] sm:$0xff]
    %v709 = vld [vmem:[#allocation5 + $0x1208] sm:$0xf]
    %v710 = vld [vmem:[#allocation5 + $0x120c] sm:$0xff]
    %v711 = vld [vmem:[#allocation5 + $0x1214] sm:$0xff]
    %v712 = vld [vmem:[#allocation5 + $0x121c] sm:$0xff]
    %v713 = vld [vmem:[#allocation5 + $0x1224] sm:$0xff]
    %v714 = vld [vmem:[#allocation5 + $0x122c] sm:$0xff]
    %v715 = vld [vmem:[#allocation5 + $0x1234] sm:$0xff]
    %v716 = vld [vmem:[#allocation5 + $0x123c] sm:$0xff]
    %v717 = vld [vmem:[#allocation5 + $0x1244] sm:$0xf]
    %v718 = vld [vmem:[#allocation5 + $0x1248] sm:$0xff]
    %v719 = vld [vmem:[#allocation5 + $0x1250] sm:$0xff]
    %v720 = vld [vmem:[#allocation5 + $0x1258] sm:$0xff]
    %v721 = vld [vmem:[#allocation5 + $0x1260] sm:$0xff]
    %v722 = vld [vmem:[#allocation5 + $0x1268] sm:$0xff]
    %v723 = vld [vmem:[#allocation5 + $0x1270] sm:$0xff]
    %v724 = vld [vmem:[#allocation5 + $0x1278] sm:$0xff]
    %v725 = vld [vmem:[#allocation5 + $0x1280] sm:$0xf]
    %v726 = vld [vmem:[#allocation5 + $0x1284] sm:$0xff]
    %v727 = vld [vmem:[#allocation5 + $0x128c] sm:$0xff]
    %v728 = vld [vmem:[#allocation5 + $0x1294] sm:$0xff]
    %v729 = vld [vmem:[#allocation5 + $0x129c] sm:$0xff]
    %v730 = vld [vmem:[#allocation5 + $0x12a4] sm:$0xff]
    %v731 = vld [vmem:[#allocation5 + $0x12ac] sm:$0xff]
    %v732 = vld [vmem:[#allocation5 + $0x12b4] sm:$0xff]
    %v733 = vld [vmem:[#allocation5 + $0x12bc] sm:$0xf]
    %v734 = vld [vmem:[#allocation7] sm:$0xff]
    %v735 = vld [vmem:[#allocation7 + $0x8] sm:$0xff]
    %v738 = vlaneseq
    %v739 = vshrl.u32 %v738, 7
    %v740 = vsub.s32 0, %v739
    %v741 = vrot.slane %v734, %v740
    %v742 = vlaneseq
    %v743 = vshrl.u32 %v742, 7
    %v744 = vsub.s32 1, %v743
    %v745 = vrot.slane %v734, %v744
    %v746 = vlaneseq
    %v747 = vshrl.u32 %v746, 7
    %v748 = vsub.s32 2, %v747
    %v749 = vrot.slane %v734, %v748
    %v750 = vlaneseq
    %v751 = vshrl.u32 %v750, 7
    %v752 = vsub.s32 3, %v751
    %v753 = vrot.slane %v734, %v752
    %v754 = vlaneseq
    %v755 = vshrl.u32 %v754, 7
    %v756 = vsub.s32 4, %v755
    %v757 = vrot.slane %v734, %v756
    %v758 = vlaneseq
    %v759 = vshrl.u32 %v758, 7
    %v760 = vsub.s32 5, %v759
    %v761 = vrot.slane %v734, %v760
    %v762 = vlaneseq
    %v763 = vshrl.u32 %v762, 7
    %v764 = vsub.s32 6, %v763
    %v765 = vrot.slane %v734, %v764
    %v766 = vlaneseq
    %v767 = vshrl.u32 %v766, 7
    %v768 = vsub.s32 7, %v767
    %v769 = vrot.slane %v734, %v768
    %v770 = vlaneseq
    %v771 = vshrl.u32 %v770, 7
    %v772 = vsub.s32 0, %v771
    %v773 = vrot.slane %v735, %v772
    %v774 = vlaneseq
    %v775 = vshrl.u32 %v774, 7
    %v776 = vsub.s32 1, %v775
    %v777 = vrot.slane %v735, %v776
    %v778 = vlaneseq
    %v779 = vshrl.u32 %v778, 7
    %v780 = vsub.s32 2, %v779
    %v781 = vrot.slane %v735, %v780
    %v782 = vlaneseq
    %v783 = vshrl.u32 %v782, 7
    %v784 = vsub.s32 3, %v783
    %v785 = vrot.slane %v735, %v784
    %v786 = vlaneseq
    %v787 = vshrl.u32 %v786, 7
    %v788 = vsub.s32 4, %v787
    %v789 = vrot.slane %v735, %v788
    %v790 = vlaneseq
    %v791 = vshrl.u32 %v790, 7
    %v792 = vsub.s32 5, %v791
    %v793 = vrot.slane %v735, %v792
    %v794 = vlaneseq
    %v795 = vshrl.u32 %v794, 7
    %v796 = vsub.s32 6, %v795
    %v797 = vrot.slane %v735, %v796
    %v1453 = vunpack.c.l.b16 %v94
    %v1454 = vunpack.c.h.b16 %v94
    %v1455 = vunpack.c.l.b16 %v95
    %v1456 = vunpack.c.h.b16 %v95
    %v1457 = vunpack.c.l.b16 %v96
    %v1458 = vunpack.c.h.b16 %v96
    %v1459 = vunpack.c.l.b16 %v97
    %v1460 = vunpack.c.h.b16 %v97
    %v1461 = vunpack.c.l.b16 %v98
    %v1462 = vunpack.c.h.b16 %v98
    %v1463 = vunpack.c.l.b16 %v99
    %v1464 = vunpack.c.h.b16 %v99
    %v1465 = vunpack.c.l.b16 %v100
    %v1466 = vunpack.c.h.b16 %v100
    %v1467 = vunpack.c.l.b16 %v101
    %v1468 = vunpack.c.l.b16 %v102
    %v1469 = vunpack.c.h.b16 %v102
    %v1470 = vunpack.c.l.b16 %v103
    %v1471 = vunpack.c.h.b16 %v103
    %v1472 = vunpack.c.l.b16 %v104
    %v1473 = vunpack.c.h.b16 %v104
    %v1474 = vunpack.c.l.b16 %v105
    %v1475 = vunpack.c.h.b16 %v105
    %v1476 = vunpack.c.l.b16 %v106
    %v1477 = vunpack.c.h.b16 %v106
    %v1478 = vunpack.c.l.b16 %v107
    %v1479 = vunpack.c.h.b16 %v107
    %v1480 = vunpack.c.l.b16 %v108
    %v1481 = vunpack.c.h.b16 %v108
    %v1482 = vunpack.c.l.b16 %v109
    %v1483 = vunpack.c.l.b16 %v110
    %v1484 = vunpack.c.h.b16 %v110
    %v1485 = vunpack.c.l.b16 %v111
    %v1486 = vunpack.c.h.b16 %v111
    %v1487 = vunpack.c.l.b16 %v112
    %v1488 = vunpack.c.h.b16 %v112
    %v1489 = vunpack.c.l.b16 %v113
    %v1490 = vunpack.c.h.b16 %v113
    %v1491 = vunpack.c.l.b16 %v114
    %v1492 = vunpack.c.h.b16 %v114
    %v1493 = vunpack.c.l.b16 %v115
    %v1494 = vunpack.c.h.b16 %v115
    %v1495 = vunpack.c.l.b16 %v116
    %v1496 = vunpack.c.h.b16 %v116
    %v1497 = vunpack.c.l.b16 %v117
    %v1498 = vunpack.c.l.b16 %v118
    %v1499 = vunpack.c.h.b16 %v118
    %v1500 = vunpack.c.l.b16 %v119
    %v1501 = vunpack.c.h.b16 %v119
    %v1502 = vunpack.c.l.b16 %v120
    %v1503 = vunpack.c.h.b16 %v120
    %v1504 = vunpack.c.l.b16 %v121
    %v1505 = vunpack.c.h.b16 %v121
    %v1506 = vunpack.c.l.b16 %v122
    %v1507 = vunpack.c.h.b16 %v122
    %v1508 = vunpack.c.l.b16 %v123
    %v1509 = vunpack.c.h.b16 %v123
    %v1510 = vunpack.c.l.b16 %v124
    %v1511 = vunpack.c.h.b16 %v124
    %v1512 = vunpack.c.l.b16 %v125
    %v1513 = vunpack.c.l.b16 %v126
    %v1514 = vunpack.c.h.b16 %v126
    %v1515 = vunpack.c.l.b16 %v127
    %v1516 = vunpack.c.h.b16 %v127
    %v1517 = vunpack.c.l.b16 %v128
    %v1518 = vunpack.c.h.b16 %v128
    %v1519 = vunpack.c.l.b16 %v129
    %v1520 = vunpack.c.h.b16 %v129
    %v1521 = vunpack.c.l.b16 %v130
    %v1522 = vunpack.c.h.b16 %v130
    %v1523 = vunpack.c.l.b16 %v131
    %v1524 = vunpack.c.h.b16 %v131
    %v1525 = vunpack.c.l.b16 %v132
    %v1526 = vunpack.c.h.b16 %v132
    %v1527 = vunpack.c.l.b16 %v133
    %v1528 = vunpack.c.l.b16 %v134
    %v1529 = vunpack.c.h.b16 %v134
    %v1530 = vunpack.c.l.b16 %v135
    %v1531 = vunpack.c.h.b16 %v135
    %v1532 = vunpack.c.l.b16 %v136
    %v1533 = vunpack.c.h.b16 %v136
    %v1534 = vunpack.c.l.b16 %v137
    %v1535 = vunpack.c.h.b16 %v137
    %v1536 = vunpack.c.l.b16 %v138
    %v1537 = vunpack.c.h.b16 %v138
    %v1538 = vunpack.c.l.b16 %v139
    %v1539 = vunpack.c.h.b16 %v139
    %v1540 = vunpack.c.l.b16 %v140
    %v1541 = vunpack.c.h.b16 %v140
    %v1542 = vunpack.c.l.b16 %v141
    %v1543 = vunpack.c.l.b16 %v142
    %v1544 = vunpack.c.h.b16 %v142
    %v1545 = vunpack.c.l.b16 %v143
    %v1546 = vunpack.c.h.b16 %v143
    %v1547 = vunpack.c.l.b16 %v144
    %v1548 = vunpack.c.h.b16 %v144
    %v1549 = vunpack.c.l.b16 %v145
    %v1550 = vunpack.c.h.b16 %v145
    %v1551 = vunpack.c.l.b16 %v146
    %v1552 = vunpack.c.h.b16 %v146
    %v1553 = vunpack.c.l.b16 %v147
    %v1554 = vunpack.c.h.b16 %v147
    %v1555 = vunpack.c.l.b16 %v148
    %v1556 = vunpack.c.h.b16 %v148
    %v1557 = vunpack.c.l.b16 %v149
    %v1558 = vunpack.c.l.b16 %v150
    %v1559 = vunpack.c.h.b16 %v150
    %v1560 = vunpack.c.l.b16 %v151
    %v1561 = vunpack.c.h.b16 %v151
    %v1562 = vunpack.c.l.b16 %v152
    %v1563 = vunpack.c.h.b16 %v152
    %v1564 = vunpack.c.l.b16 %v153
    %v1565 = vunpack.c.h.b16 %v153
    %v1566 = vunpack.c.l.b16 %v154
    %v1567 = vunpack.c.h.b16 %v154
    %v1568 = vunpack.c.l.b16 %v155
    %v1569 = vunpack.c.h.b16 %v155
    %v1570 = vunpack.c.l.b16 %v156
    %v1571 = vunpack.c.h.b16 %v156
    %v1572 = vunpack.c.l.b16 %v157
    %v1573 = vunpack.c.l.b16 %v158
    %v1574 = vunpack.c.h.b16 %v158
    %v1575 = vunpack.c.l.b16 %v159
    %v1576 = vunpack.c.h.b16 %v159
    %v1577 = vunpack.c.l.b16 %v160
    %v1578 = vunpack.c.h.b16 %v160
    %v1579 = vunpack.c.l.b16 %v161
    %v1580 = vunpack.c.h.b16 %v161
    %v1581 = vunpack.c.l.b16 %v162
    %v1582 = vunpack.c.h.b16 %v162
    %v1583 = vunpack.c.l.b16 %v163
    %v1584 = vunpack.c.h.b16 %v163
    %v1585 = vunpack.c.l.b16 %v164
    %v1586 = vunpack.c.h.b16 %v164
    %v1587 = vunpack.c.l.b16 %v165
    %v1588 = vunpack.c.l.b16 %v166
    %v1589 = vunpack.c.h.b16 %v166
    %v1590 = vunpack.c.l.b16 %v167
    %v1591 = vunpack.c.h.b16 %v167
    %v1592 = vunpack.c.l.b16 %v168
    %v1593 = vunpack.c.h.b16 %v168
    %v1594 = vunpack.c.l.b16 %v169
    %v1595 = vunpack.c.h.b16 %v169
    %v1596 = vunpack.c.l.b16 %v170
    %v1597 = vunpack.c.h.b16 %v170
    %v1598 = vunpack.c.l.b16 %v171
    %v1599 = vunpack.c.h.b16 %v171
    %v1600 = vunpack.c.l.b16 %v172
    %v1601 = vunpack.c.h.b16 %v172
    %v1602 = vunpack.c.l.b16 %v173
    %v1603 = vunpack.c.l.b16 %v174
    %v1604 = vunpack.c.h.b16 %v174
    %v1605 = vunpack.c.l.b16 %v175
    %v1606 = vunpack.c.h.b16 %v175
    %v1607 = vunpack.c.l.b16 %v176
    %v1608 = vunpack.c.h.b16 %v176
    %v1609 = vunpack.c.l.b16 %v177
    %v1610 = vunpack.c.h.b16 %v177
    %v1611 = vunpack.c.l.b16 %v178
    %v1612 = vunpack.c.h.b16 %v178
    %v1613 = vunpack.c.l.b16 %v179
    %v1614 = vunpack.c.h.b16 %v179
    %v1615 = vunpack.c.l.b16 %v180
    %v1616 = vunpack.c.h.b16 %v180
    %v1617 = vunpack.c.l.b16 %v181
    %v1618 = vunpack.c.l.b16 %v182
    %v1619 = vunpack.c.h.b16 %v182
    %v1620 = vunpack.c.l.b16 %v183
    %v1621 = vunpack.c.h.b16 %v183
    %v1622 = vunpack.c.l.b16 %v184
    %v1623 = vunpack.c.h.b16 %v184
    %v1624 = vunpack.c.l.b16 %v185
    %v1625 = vunpack.c.h.b16 %v185
    %v1626 = vunpack.c.l.b16 %v186
    %v1627 = vunpack.c.h.b16 %v186
    %v1628 = vunpack.c.l.b16 %v187
    %v1629 = vunpack.c.h.b16 %v187
    %v1630 = vunpack.c.l.b16 %v188
    %v1631 = vunpack.c.h.b16 %v188
    %v1632 = vunpack.c.l.b16 %v189
    %v1633 = vunpack.c.l.b16 %v190
    %v1634 = vunpack.c.h.b16 %v190
    %v1635 = vunpack.c.l.b16 %v191
    %v1636 = vunpack.c.h.b16 %v191
    %v1637 = vunpack.c.l.b16 %v192
    %v1638 = vunpack.c.h.b16 %v192
    %v1639 = vunpack.c.l.b16 %v193
    %v1640 = vunpack.c.h.b16 %v193
    %v1641 = vunpack.c.l.b16 %v194
    %v1642 = vunpack.c.h.b16 %v194
    %v1643 = vunpack.c.l.b16 %v195
    %v1644 = vunpack.c.h.b16 %v195
    %v1645 = vunpack.c.l.b16 %v196
    %v1646 = vunpack.c.h.b16 %v196
    %v1647 = vunpack.c.l.b16 %v197
    %v1648 = vunpack.c.l.b16 %v198
    %v1649 = vunpack.c.h.b16 %v198
    %v1650 = vunpack.c.l.b16 %v199
    %v1651 = vunpack.c.h.b16 %v199
    %v1652 = vunpack.c.l.b16 %v200
    %v1653 = vunpack.c.h.b16 %v200
    %v1654 = vunpack.c.l.b16 %v201
    %v1655 = vunpack.c.h.b16 %v201
    %v1656 = vunpack.c.l.b16 %v202
    %v1657 = vunpack.c.h.b16 %v202
    %v1658 = vunpack.c.l.b16 %v203
    %v1659 = vunpack.c.h.b16 %v203
    %v1660 = vunpack.c.l.b16 %v204
    %v1661 = vunpack.c.h.b16 %v204
    %v1662 = vunpack.c.l.b16 %v205
    %v1663 = vunpack.c.l.b16 %v206
    %v1664 = vunpack.c.h.b16 %v206
    %v1665 = vunpack.c.l.b16 %v207
    %v1666 = vunpack.c.h.b16 %v207
    %v1667 = vunpack.c.l.b16 %v208
    %v1668 = vunpack.c.h.b16 %v208
    %v1669 = vunpack.c.l.b16 %v209
    %v1670 = vunpack.c.h.b16 %v209
    %v1671 = vunpack.c.l.b16 %v210
    %v1672 = vunpack.c.h.b16 %v210
    %v1673 = vunpack.c.l.b16 %v211
    %v1674 = vunpack.c.h.b16 %v211
    %v1675 = vunpack.c.l.b16 %v212
    %v1676 = vunpack.c.h.b16 %v212
    %v1677 = vunpack.c.l.b16 %v213
    %v1678 = vunpack.c.l.b16 %v214
    %v1679 = vunpack.c.h.b16 %v214
    %v1680 = vunpack.c.l.b16 %v215
    %v1681 = vunpack.c.h.b16 %v215
    %v1682 = vunpack.c.l.b16 %v216
    %v1683 = vunpack.c.h.b16 %v216
    %v1684 = vunpack.c.l.b16 %v217
    %v1685 = vunpack.c.h.b16 %v217
    %v1686 = vunpack.c.l.b16 %v218
    %v1687 = vunpack.c.h.b16 %v218
    %v1688 = vunpack.c.l.b16 %v219
    %v1689 = vunpack.c.h.b16 %v219
    %v1690 = vunpack.c.l.b16 %v220
    %v1691 = vunpack.c.h.b16 %v220
    %v1692 = vunpack.c.l.b16 %v221
    %v1693 = vunpack.c.l.b16 %v222
    %v1694 = vunpack.c.h.b16 %v222
    %v1695 = vunpack.c.l.b16 %v223
    %v1696 = vunpack.c.h.b16 %v223
    %v1697 = vunpack.c.l.b16 %v224
    %v1698 = vunpack.c.h.b16 %v224
    %v1699 = vunpack.c.l.b16 %v225
    %v1700 = vunpack.c.h.b16 %v225
    %v1701 = vunpack.c.l.b16 %v226
    %v1702 = vunpack.c.h.b16 %v226
    %v1703 = vunpack.c.l.b16 %v227
    %v1704 = vunpack.c.h.b16 %v227
    %v1705 = vunpack.c.l.b16 %v228
    %v1706 = vunpack.c.h.b16 %v228
    %v1707 = vunpack.c.l.b16 %v229
    %v1708 = vunpack.c.l.b16 %v230
    %v1709 = vunpack.c.h.b16 %v230
    %v1710 = vunpack.c.l.b16 %v231
    %v1711 = vunpack.c.h.b16 %v231
    %v1712 = vunpack.c.l.b16 %v232
    %v1713 = vunpack.c.h.b16 %v232
    %v1714 = vunpack.c.l.b16 %v233
    %v1715 = vunpack.c.h.b16 %v233
    %v1716 = vunpack.c.l.b16 %v234
    %v1717 = vunpack.c.h.b16 %v234
    %v1718 = vunpack.c.l.b16 %v235
    %v1719 = vunpack.c.h.b16 %v235
    %v1720 = vunpack.c.l.b16 %v236
    %v1721 = vunpack.c.h.b16 %v236
    %v1722 = vunpack.c.l.b16 %v237
    %v1723 = vunpack.c.l.b16 %v238
    %v1724 = vunpack.c.h.b16 %v238
    %v1725 = vunpack.c.l.b16 %v239
    %v1726 = vunpack.c.h.b16 %v239
    %v1727 = vunpack.c.l.b16 %v240
    %v1728 = vunpack.c.h.b16 %v240
    %v1729 = vunpack.c.l.b16 %v241
    %v1730 = vunpack.c.h.b16 %v241
    %v1731 = vunpack.c.l.b16 %v242
    %v1732 = vunpack.c.h.b16 %v242
    %v1733 = vunpack.c.l.b16 %v243
    %v1734 = vunpack.c.h.b16 %v243
    %v1735 = vunpack.c.l.b16 %v244
    %v1736 = vunpack.c.h.b16 %v244
    %v1737 = vunpack.c.l.b16 %v245
    %v1738 = vunpack.c.l.b16 %v246
    %v1739 = vunpack.c.h.b16 %v246
    %v1740 = vunpack.c.l.b16 %v247
    %v1741 = vunpack.c.h.b16 %v247
    %v1742 = vunpack.c.l.b16 %v248
    %v1743 = vunpack.c.h.b16 %v248
    %v1744 = vunpack.c.l.b16 %v249
    %v1745 = vunpack.c.h.b16 %v249
    %v1746 = vunpack.c.l.b16 %v250
    %v1747 = vunpack.c.h.b16 %v250
    %v1748 = vunpack.c.l.b16 %v251
    %v1749 = vunpack.c.h.b16 %v251
    %v1750 = vunpack.c.l.b16 %v252
    %v1751 = vunpack.c.h.b16 %v252
    %v1752 = vunpack.c.l.b16 %v253
    %v1753 = vunpack.c.l.b16 %v254
    %v1754 = vunpack.c.h.b16 %v254
    %v1755 = vunpack.c.l.b16 %v255
    %v1756 = vunpack.c.h.b16 %v255
    %v1757 = vunpack.c.l.b16 %v256
    %v1758 = vunpack.c.h.b16 %v256
    %v1759 = vunpack.c.l.b16 %v257
    %v1760 = vunpack.c.h.b16 %v257
    %v1761 = vunpack.c.l.b16 %v258
    %v1762 = vunpack.c.h.b16 %v258
    %v1763 = vunpack.c.l.b16 %v259
    %v1764 = vunpack.c.h.b16 %v259
    %v1765 = vunpack.c.l.b16 %v260
    %v1766 = vunpack.c.h.b16 %v260
    %v1767 = vunpack.c.l.b16 %v261
    %v1768 = vunpack.c.l.b16 %v262
    %v1769 = vunpack.c.h.b16 %v262
    %v1770 = vunpack.c.l.b16 %v263
    %v1771 = vunpack.c.h.b16 %v263
    %v1772 = vunpack.c.l.b16 %v264
    %v1773 = vunpack.c.h.b16 %v264
    %v1774 = vunpack.c.l.b16 %v265
    %v1775 = vunpack.c.h.b16 %v265
    %v1776 = vunpack.c.l.b16 %v266
    %v1777 = vunpack.c.h.b16 %v266
    %v1778 = vunpack.c.l.b16 %v267
    %v1779 = vunpack.c.h.b16 %v267
    %v1780 = vunpack.c.l.b16 %v268
    %v1781 = vunpack.c.h.b16 %v268
    %v1782 = vunpack.c.l.b16 %v269
    %v1783 = vunpack.c.l.b16 %v270
    %v1784 = vunpack.c.h.b16 %v270
    %v1785 = vunpack.c.l.b16 %v271
    %v1786 = vunpack.c.h.b16 %v271
    %v1787 = vunpack.c.l.b16 %v272
    %v1788 = vunpack.c.h.b16 %v272
    %v1789 = vunpack.c.l.b16 %v273
    %v1790 = vunpack.c.h.b16 %v273
    %v1791 = vunpack.c.l.b16 %v274
    %v1792 = vunpack.c.h.b16 %v274
    %v1793 = vunpack.c.l.b16 %v275
    %v1794 = vunpack.c.h.b16 %v275
    %v1795 = vunpack.c.l.b16 %v276
    %v1796 = vunpack.c.h.b16 %v276
    %v1797 = vunpack.c.l.b16 %v277
    %v1798 = vunpack.c.l.b16 %v278
    %v1799 = vunpack.c.h.b16 %v278
    %v1800 = vunpack.c.l.b16 %v279
    %v1801 = vunpack.c.h.b16 %v279
    %v1802 = vunpack.c.l.b16 %v280
    %v1803 = vunpack.c.h.b16 %v280
    %v1804 = vunpack.c.l.b16 %v281
    %v1805 = vunpack.c.h.b16 %v281
    %v1806 = vunpack.c.l.b16 %v282
    %v1807 = vunpack.c.h.b16 %v282
    %v1808 = vunpack.c.l.b16 %v283
    %v1809 = vunpack.c.h.b16 %v283
    %v1810 = vunpack.c.l.b16 %v284
    %v1811 = vunpack.c.h.b16 %v284
    %v1812 = vunpack.c.l.b16 %v285
    %v1813 = vunpack.c.l.b16 %v286
    %v1814 = vunpack.c.h.b16 %v286
    %v1815 = vunpack.c.l.b16 %v287
    %v1816 = vunpack.c.h.b16 %v287
    %v1817 = vunpack.c.l.b16 %v288
    %v1818 = vunpack.c.h.b16 %v288
    %v1819 = vunpack.c.l.b16 %v289
    %v1820 = vunpack.c.h.b16 %v289
    %v1821 = vunpack.c.l.b16 %v290
    %v1822 = vunpack.c.h.b16 %v290
    %v1823 = vunpack.c.l.b16 %v291
    %v1824 = vunpack.c.h.b16 %v291
    %v1825 = vunpack.c.l.b16 %v292
    %v1826 = vunpack.c.h.b16 %v292
    %v1827 = vunpack.c.l.b16 %v293
    %v1828 = vunpack.c.l.b16 %v294
    %v1829 = vunpack.c.h.b16 %v294
    %v1830 = vunpack.c.l.b16 %v295
    %v1831 = vunpack.c.h.b16 %v295
    %v1832 = vunpack.c.l.b16 %v296
    %v1833 = vunpack.c.h.b16 %v296
    %v1834 = vunpack.c.l.b16 %v297
    %v1835 = vunpack.c.h.b16 %v297
    %v1836 = vunpack.c.l.b16 %v298
    %v1837 = vunpack.c.h.b16 %v298
    %v1838 = vunpack.c.l.b16 %v299
    %v1839 = vunpack.c.h.b16 %v299
    %v1840 = vunpack.c.l.b16 %v300
    %v1841 = vunpack.c.h.b16 %v300
    %v1842 = vunpack.c.l.b16 %v301
    %v1843 = vunpack.c.l.b16 %v302
    %v1844 = vunpack.c.h.b16 %v302
    %v1845 = vunpack.c.l.b16 %v303
    %v1846 = vunpack.c.h.b16 %v303
    %v1847 = vunpack.c.l.b16 %v304
    %v1848 = vunpack.c.h.b16 %v304
    %v1849 = vunpack.c.l.b16 %v305
    %v1850 = vunpack.c.h.b16 %v305
    %v1851 = vunpack.c.l.b16 %v306
    %v1852 = vunpack.c.h.b16 %v306
    %v1853 = vunpack.c.l.b16 %v307
    %v1854 = vunpack.c.h.b16 %v307
    %v1855 = vunpack.c.l.b16 %v308
    %v1856 = vunpack.c.h.b16 %v308
    %v1857 = vunpack.c.l.b16 %v309
    %v1858 = vunpack.c.l.b16 %v310
    %v1859 = vunpack.c.h.b16 %v310
    %v1860 = vunpack.c.l.b16 %v311
    %v1861 = vunpack.c.h.b16 %v311
    %v1862 = vunpack.c.l.b16 %v312
    %v1863 = vunpack.c.h.b16 %v312
    %v1864 = vunpack.c.l.b16 %v313
    %v1865 = vunpack.c.h.b16 %v313
    %v1866 = vunpack.c.l.b16 %v314
    %v1867 = vunpack.c.h.b16 %v314
    %v1868 = vunpack.c.l.b16 %v315
    %v1869 = vunpack.c.h.b16 %v315
    %v1870 = vunpack.c.l.b16 %v316
    %v1871 = vunpack.c.h.b16 %v316
    %v1872 = vunpack.c.l.b16 %v317
    %v1873 = vunpack.c.l.b16 %v318
    %v1874 = vunpack.c.h.b16 %v318
    %v1875 = vunpack.c.l.b16 %v319
    %v1876 = vunpack.c.h.b16 %v319
    %v1877 = vunpack.c.l.b16 %v320
    %v1878 = vunpack.c.h.b16 %v320
    %v1879 = vunpack.c.l.b16 %v321
    %v1880 = vunpack.c.h.b16 %v321
    %v1881 = vunpack.c.l.b16 %v322
    %v1882 = vunpack.c.h.b16 %v322
    %v1883 = vunpack.c.l.b16 %v323
    %v1884 = vunpack.c.h.b16 %v323
    %v1885 = vunpack.c.l.b16 %v324
    %v1886 = vunpack.c.h.b16 %v324
    %v1887 = vunpack.c.l.b16 %v325
    %v1888 = vunpack.c.l.b16 %v326
    %v1889 = vunpack.c.h.b16 %v326
    %v1890 = vunpack.c.l.b16 %v327
    %v1891 = vunpack.c.h.b16 %v327
    %v1892 = vunpack.c.l.b16 %v328
    %v1893 = vunpack.c.h.b16 %v328
    %v1894 = vunpack.c.l.b16 %v329
    %v1895 = vunpack.c.h.b16 %v329
    %v1896 = vunpack.c.l.b16 %v330
    %v1897 = vunpack.c.h.b16 %v330
    %v1898 = vunpack.c.l.b16 %v331
    %v1899 = vunpack.c.h.b16 %v331
    %v1900 = vunpack.c.l.b16 %v332
    %v1901 = vunpack.c.h.b16 %v332
    %v1902 = vunpack.c.l.b16 %v333
    %v1903 = vunpack.c.l.b16 %v334
    %v1904 = vunpack.c.h.b16 %v334
    %v1905 = vunpack.c.l.b16 %v335
    %v1906 = vunpack.c.h.b16 %v335
    %v1907 = vunpack.c.l.b16 %v336
    %v1908 = vunpack.c.h.b16 %v336
    %v1909 = vunpack.c.l.b16 %v337
    %v1910 = vunpack.c.h.b16 %v337
    %v1911 = vunpack.c.l.b16 %v338
    %v1912 = vunpack.c.h.b16 %v338
    %v1913 = vunpack.c.l.b16 %v339
    %v1914 = vunpack.c.h.b16 %v339
    %v1915 = vunpack.c.l.b16 %v340
    %v1916 = vunpack.c.h.b16 %v340
    %v1917 = vunpack.c.l.b16 %v341
    %v1918 = vunpack.c.l.b16 %v342
    %v1919 = vunpack.c.h.b16 %v342
    %v1920 = vunpack.c.l.b16 %v343
    %v1921 = vunpack.c.h.b16 %v343
    %v1922 = vunpack.c.l.b16 %v344
    %v1923 = vunpack.c.h.b16 %v344
    %v1924 = vunpack.c.l.b16 %v345
    %v1925 = vunpack.c.h.b16 %v345
    %v1926 = vunpack.c.l.b16 %v346
    %v1927 = vunpack.c.h.b16 %v346
    %v1928 = vunpack.c.l.b16 %v347
    %v1929 = vunpack.c.h.b16 %v347
    %v1930 = vunpack.c.l.b16 %v348
    %v1931 = vunpack.c.h.b16 %v348
    %v1932 = vunpack.c.l.b16 %v349
    %v1933 = vunpack.c.l.b16 %v350
    %v1934 = vunpack.c.h.b16 %v350
    %v1935 = vunpack.c.l.b16 %v351
    %v1936 = vunpack.c.h.b16 %v351
    %v1937 = vunpack.c.l.b16 %v352
    %v1938 = vunpack.c.h.b16 %v352
    %v1939 = vunpack.c.l.b16 %v353
    %v1940 = vunpack.c.h.b16 %v353
    %v1941 = vunpack.c.l.b16 %v354
    %v1942 = vunpack.c.h.b16 %v354
    %v1943 = vunpack.c.l.b16 %v355
    %v1944 = vunpack.c.h.b16 %v355
    %v1945 = vunpack.c.l.b16 %v356
    %v1946 = vunpack.c.h.b16 %v356
    %v1947 = vunpack.c.l.b16 %v357
    %v1948 = vunpack.c.l.b16 %v358
    %v1949 = vunpack.c.h.b16 %v358
    %v1950 = vunpack.c.l.b16 %v359
    %v1951 = vunpack.c.h.b16 %v359
    %v1952 = vunpack.c.l.b16 %v360
    %v1953 = vunpack.c.h.b16 %v360
    %v1954 = vunpack.c.l.b16 %v361
    %v1955 = vunpack.c.h.b16 %v361
    %v1956 = vunpack.c.l.b16 %v362
    %v1957 = vunpack.c.h.b16 %v362
    %v1958 = vunpack.c.l.b16 %v363
    %v1959 = vunpack.c.h.b16 %v363
    %v1960 = vunpack.c.l.b16 %v364
    %v1961 = vunpack.c.h.b16 %v364
    %v1962 = vunpack.c.l.b16 %v365
    %v1963 = vunpack.c.l.b16 %v366
    %v1964 = vunpack.c.h.b16 %v366
    %v1965 = vunpack.c.l.b16 %v367
    %v1966 = vunpack.c.h.b16 %v367
    %v1967 = vunpack.c.l.b16 %v368
    %v1968 = vunpack.c.h.b16 %v368
    %v1969 = vunpack.c.l.b16 %v369
    %v1970 = vunpack.c.h.b16 %v369
    %v1971 = vunpack.c.l.b16 %v370
    %v1972 = vunpack.c.h.b16 %v370
    %v1973 = vunpack.c.l.b16 %v371
    %v1974 = vunpack.c.h.b16 %v371
    %v1975 = vunpack.c.l.b16 %v372
    %v1976 = vunpack.c.h.b16 %v372
    %v1977 = vunpack.c.l.b16 %v373
    %v1978 = vunpack.c.l.b16 %v374
    %v1979 = vunpack.c.h.b16 %v374
    %v1980 = vunpack.c.l.b16 %v375
    %v1981 = vunpack.c.h.b16 %v375
    %v1982 = vunpack.c.l.b16 %v376
    %v1983 = vunpack.c.h.b16 %v376
    %v1984 = vunpack.c.l.b16 %v377
    %v1985 = vunpack.c.h.b16 %v377
    %v1986 = vunpack.c.l.b16 %v378
    %v1987 = vunpack.c.h.b16 %v378
    %v1988 = vunpack.c.l.b16 %v379
    %v1989 = vunpack.c.h.b16 %v379
    %v1990 = vunpack.c.l.b16 %v380
    %v1991 = vunpack.c.h.b16 %v380
    %v1992 = vunpack.c.l.b16 %v381
    %v1993 = vunpack.c.l.b16 %v382
    %v1994 = vunpack.c.h.b16 %v382
    %v1995 = vunpack.c.l.b16 %v383
    %v1996 = vunpack.c.h.b16 %v383
    %v1997 = vunpack.c.l.b16 %v384
    %v1998 = vunpack.c.h.b16 %v384
    %v1999 = vunpack.c.l.b16 %v385
    %v2000 = vunpack.c.h.b16 %v385
    %v2001 = vunpack.c.l.b16 %v386
    %v2002 = vunpack.c.h.b16 %v386
    %v2003 = vunpack.c.l.b16 %v387
    %v2004 = vunpack.c.h.b16 %v387
    %v2005 = vunpack.c.l.b16 %v388
    %v2006 = vunpack.c.h.b16 %v388
    %v2007 = vunpack.c.l.b16 %v389
    %v2008 = vunpack.c.l.b16 %v390
    %v2009 = vunpack.c.h.b16 %v390
    %v2010 = vunpack.c.l.b16 %v391
    %v2011 = vunpack.c.h.b16 %v391
    %v2012 = vunpack.c.l.b16 %v392
    %v2013 = vunpack.c.h.b16 %v392
    %v2014 = vunpack.c.l.b16 %v393
    %v2015 = vunpack.c.h.b16 %v393
    %v2016 = vunpack.c.l.b16 %v394
    %v2017 = vunpack.c.h.b16 %v394
    %v2018 = vunpack.c.l.b16 %v395
    %v2019 = vunpack.c.h.b16 %v395
    %v2020 = vunpack.c.l.b16 %v396
    %v2021 = vunpack.c.h.b16 %v396
    %v2022 = vunpack.c.l.b16 %v397
    %v2023 = vunpack.c.l.b16 %v398
    %v2024 = vunpack.c.h.b16 %v398
    %v2025 = vunpack.c.l.b16 %v399
    %v2026 = vunpack.c.h.b16 %v399
    %v2027 = vunpack.c.l.b16 %v400
    %v2028 = vunpack.c.h.b16 %v400
    %v2029 = vunpack.c.l.b16 %v401
    %v2030 = vunpack.c.h.b16 %v401
    %v2031 = vunpack.c.l.b16 %v402
    %v2032 = vunpack.c.h.b16 %v402
    %v2033 = vunpack.c.l.b16 %v403
    %v2034 = vunpack.c.h.b16 %v403
    %v2035 = vunpack.c.l.b16 %v404
    %v2036 = vunpack.c.h.b16 %v404
    %v2037 = vunpack.c.l.b16 %v405
    %v2038 = vunpack.c.l.b16 %v406
    %v2039 = vunpack.c.h.b16 %v406
    %v2040 = vunpack.c.l.b16 %v407
    %v2041 = vunpack.c.h.b16 %v407
    %v2042 = vunpack.c.l.b16 %v408
    %v2043 = vunpack.c.h.b16 %v408
    %v2044 = vunpack.c.l.b16 %v409
    %v2045 = vunpack.c.h.b16 %v409
    %v2046 = vunpack.c.l.b16 %v410
    %v2047 = vunpack.c.h.b16 %v410
    %v2048 = vunpack.c.l.b16 %v411
    %v2049 = vunpack.c.h.b16 %v411
    %v2050 = vunpack.c.l.b16 %v412
    %v2051 = vunpack.c.h.b16 %v412
    %v2052 = vunpack.c.l.b16 %v413
    %v2053 = vunpack.c.l.b16 %v414
    %v2054 = vunpack.c.h.b16 %v414
    %v2055 = vunpack.c.l.b16 %v415
    %v2056 = vunpack.c.h.b16 %v415
    %v2057 = vunpack.c.l.b16 %v416
    %v2058 = vunpack.c.h.b16 %v416
    %v2059 = vunpack.c.l.b16 %v417
    %v2060 = vunpack.c.h.b16 %v417
    %v2061 = vunpack.c.l.b16 %v418
    %v2062 = vunpack.c.h.b16 %v418
    %v2063 = vunpack.c.l.b16 %v419
    %v2064 = vunpack.c.h.b16 %v419
    %v2065 = vunpack.c.l.b16 %v420
    %v2066 = vunpack.c.h.b16 %v420
    %v2067 = vunpack.c.l.b16 %v421
    %v2068 = vunpack.c.l.b16 %v422
    %v2069 = vunpack.c.h.b16 %v422
    %v2070 = vunpack.c.l.b16 %v423
    %v2071 = vunpack.c.h.b16 %v423
    %v2072 = vunpack.c.l.b16 %v424
    %v2073 = vunpack.c.h.b16 %v424
    %v2074 = vunpack.c.l.b16 %v425
    %v2075 = vunpack.c.h.b16 %v425
    %v2076 = vunpack.c.l.b16 %v426
    %v2077 = vunpack.c.h.b16 %v426
    %v2078 = vunpack.c.l.b16 %v427
    %v2079 = vunpack.c.h.b16 %v427
    %v2080 = vunpack.c.l.b16 %v428
    %v2081 = vunpack.c.h.b16 %v428
    %v2082 = vunpack.c.l.b16 %v429
    %v2083 = vunpack.c.l.b16 %v430
    %v2084 = vunpack.c.h.b16 %v430
    %v2085 = vunpack.c.l.b16 %v431
    %v2086 = vunpack.c.h.b16 %v431
    %v2087 = vunpack.c.l.b16 %v432
    %v2088 = vunpack.c.h.b16 %v432
    %v2089 = vunpack.c.l.b16 %v433
    %v2090 = vunpack.c.h.b16 %v433
    %v2091 = vunpack.c.l.b16 %v434
    %v2092 = vunpack.c.h.b16 %v434
    %v2093 = vunpack.c.l.b16 %v435
    %v2094 = vunpack.c.h.b16 %v435
    %v2095 = vunpack.c.l.b16 %v436
    %v2096 = vunpack.c.h.b16 %v436
    %v2097 = vunpack.c.l.b16 %v437
    %v2098 = vunpack.c.l.b16 %v438
    %v2099 = vunpack.c.h.b16 %v438
    %v2100 = vunpack.c.l.b16 %v439
    %v2101 = vunpack.c.h.b16 %v439
    %v2102 = vunpack.c.l.b16 %v440
    %v2103 = vunpack.c.h.b16 %v440
    %v2104 = vunpack.c.l.b16 %v441
    %v2105 = vunpack.c.h.b16 %v441
    %v2106 = vunpack.c.l.b16 %v442
    %v2107 = vunpack.c.h.b16 %v442
    %v2108 = vunpack.c.l.b16 %v443
    %v2109 = vunpack.c.h.b16 %v443
    %v2110 = vunpack.c.l.b16 %v444
    %v2111 = vunpack.c.h.b16 %v444
    %v2112 = vunpack.c.l.b16 %v445
    %v2113 = vunpack.c.l.b16 %v446
    %v2114 = vunpack.c.h.b16 %v446
    %v2115 = vunpack.c.l.b16 %v447
    %v2116 = vunpack.c.h.b16 %v447
    %v2117 = vunpack.c.l.b16 %v448
    %v2118 = vunpack.c.h.b16 %v448
    %v2119 = vunpack.c.l.b16 %v449
    %v2120 = vunpack.c.h.b16 %v449
    %v2121 = vunpack.c.l.b16 %v450
    %v2122 = vunpack.c.h.b16 %v450
    %v2123 = vunpack.c.l.b16 %v451
    %v2124 = vunpack.c.h.b16 %v451
    %v2125 = vunpack.c.l.b16 %v452
    %v2126 = vunpack.c.h.b16 %v452
    %v2127 = vunpack.c.l.b16 %v453
    %v2128 = vunpack.c.l.b16 %v454
    %v2129 = vunpack.c.h.b16 %v454
    %v2130 = vunpack.c.l.b16 %v455
    %v2131 = vunpack.c.h.b16 %v455
    %v2132 = vunpack.c.l.b16 %v456
    %v2133 = vunpack.c.h.b16 %v456
    %v2134 = vunpack.c.l.b16 %v457
    %v2135 = vunpack.c.h.b16 %v457
    %v2136 = vunpack.c.l.b16 %v458
    %v2137 = vunpack.c.h.b16 %v458
    %v2138 = vunpack.c.l.b16 %v459
    %v2139 = vunpack.c.h.b16 %v459
    %v2140 = vunpack.c.l.b16 %v460
    %v2141 = vunpack.c.h.b16 %v460
    %v2142 = vunpack.c.l.b16 %v461
    %v2143 = vunpack.c.l.b16 %v462
    %v2144 = vunpack.c.h.b16 %v462
    %v2145 = vunpack.c.l.b16 %v463
    %v2146 = vunpack.c.h.b16 %v463
    %v2147 = vunpack.c.l.b16 %v464
    %v2148 = vunpack.c.h.b16 %v464
    %v2149 = vunpack.c.l.b16 %v465
    %v2150 = vunpack.c.h.b16 %v465
    %v2151 = vunpack.c.l.b16 %v466
    %v2152 = vunpack.c.h.b16 %v466
    %v2153 = vunpack.c.l.b16 %v467
    %v2154 = vunpack.c.h.b16 %v467
    %v2155 = vunpack.c.l.b16 %v468
    %v2156 = vunpack.c.h.b16 %v468
    %v2157 = vunpack.c.l.b16 %v469
    %v2158 = vunpack.c.l.b16 %v470
    %v2159 = vunpack.c.h.b16 %v470
    %v2160 = vunpack.c.l.b16 %v471
    %v2161 = vunpack.c.h.b16 %v471
    %v2162 = vunpack.c.l.b16 %v472
    %v2163 = vunpack.c.h.b16 %v472
    %v2164 = vunpack.c.l.b16 %v473
    %v2165 = vunpack.c.h.b16 %v473
    %v2166 = vunpack.c.l.b16 %v474
    %v2167 = vunpack.c.h.b16 %v474
    %v2168 = vunpack.c.l.b16 %v475
    %v2169 = vunpack.c.h.b16 %v475
    %v2170 = vunpack.c.l.b16 %v476
    %v2171 = vunpack.c.h.b16 %v476
    %v2172 = vunpack.c.l.b16 %v477
    %v2173 = vunpack.c.l.b16 %v478
    %v2174 = vunpack.c.h.b16 %v478
    %v2175 = vunpack.c.l.b16 %v479
    %v2176 = vunpack.c.h.b16 %v479
    %v2177 = vunpack.c.l.b16 %v480
    %v2178 = vunpack.c.h.b16 %v480
    %v2179 = vunpack.c.l.b16 %v481
    %v2180 = vunpack.c.h.b16 %v481
    %v2181 = vunpack.c.l.b16 %v482
    %v2182 = vunpack.c.h.b16 %v482
    %v2183 = vunpack.c.l.b16 %v483
    %v2184 = vunpack.c.h.b16 %v483
    %v2185 = vunpack.c.l.b16 %v484
    %v2186 = vunpack.c.h.b16 %v484
    %v2187 = vunpack.c.l.b16 %v485
    %v2188 = vunpack.c.l.b16 %v486
    %v2189 = vunpack.c.h.b16 %v486
    %v2190 = vunpack.c.l.b16 %v487
    %v2191 = vunpack.c.h.b16 %v487
    %v2192 = vunpack.c.l.b16 %v488
    %v2193 = vunpack.c.h.b16 %v488
    %v2194 = vunpack.c.l.b16 %v489
    %v2195 = vunpack.c.h.b16 %v489
    %v2196 = vunpack.c.l.b16 %v490
    %v2197 = vunpack.c.h.b16 %v490
    %v2198 = vunpack.c.l.b16 %v491
    %v2199 = vunpack.c.h.b16 %v491
    %v2200 = vunpack.c.l.b16 %v492
    %v2201 = vunpack.c.h.b16 %v492
    %v2202 = vunpack.c.l.b16 %v493
    %v2203 = vunpack.c.l.b16 %v494
    %v2204 = vunpack.c.h.b16 %v494
    %v2205 = vunpack.c.l.b16 %v495
    %v2206 = vunpack.c.h.b16 %v495
    %v2207 = vunpack.c.l.b16 %v496
    %v2208 = vunpack.c.h.b16 %v496
    %v2209 = vunpack.c.l.b16 %v497
    %v2210 = vunpack.c.h.b16 %v497
    %v2211 = vunpack.c.l.b16 %v498
    %v2212 = vunpack.c.h.b16 %v498
    %v2213 = vunpack.c.l.b16 %v499
    %v2214 = vunpack.c.h.b16 %v499
    %v2215 = vunpack.c.l.b16 %v500
    %v2216 = vunpack.c.h.b16 %v500
    %v2217 = vunpack.c.l.b16 %v501
    %v2218 = vunpack.c.l.b16 %v502
    %v2219 = vunpack.c.h.b16 %v502
    %v2220 = vunpack.c.l.b16 %v503
    %v2221 = vunpack.c.h.b16 %v503
    %v2222 = vunpack.c.l.b16 %v504
    %v2223 = vunpack.c.h.b16 %v504
    %v2224 = vunpack.c.l.b16 %v505
    %v2225 = vunpack.c.h.b16 %v505
    %v2226 = vunpack.c.l.b16 %v506
    %v2227 = vunpack.c.h.b16 %v506
    %v2228 = vunpack.c.l.b16 %v507
    %v2229 = vunpack.c.h.b16 %v507
    %v2230 = vunpack.c.l.b16 %v508
    %v2231 = vunpack.c.h.b16 %v508
    %v2232 = vunpack.c.l.b16 %v509
    %v2233 = vunpack.c.l.b16 %v510
    %v2234 = vunpack.c.h.b16 %v510
    %v2235 = vunpack.c.l.b16 %v511
    %v2236 = vunpack.c.h.b16 %v511
    %v2237 = vunpack.c.l.b16 %v512
    %v2238 = vunpack.c.h.b16 %v512
    %v2239 = vunpack.c.l.b16 %v513
    %v2240 = vunpack.c.h.b16 %v513
    %v2241 = vunpack.c.l.b16 %v514
    %v2242 = vunpack.c.h.b16 %v514
    %v2243 = vunpack.c.l.b16 %v515
    %v2244 = vunpack.c.h.b16 %v515
    %v2245 = vunpack.c.l.b16 %v516
    %v2246 = vunpack.c.h.b16 %v516
    %v2247 = vunpack.c.l.b16 %v517
    %v2248 = vunpack.c.l.b16 %v518
    %v2249 = vunpack.c.h.b16 %v518
    %v2250 = vunpack.c.l.b16 %v519
    %v2251 = vunpack.c.h.b16 %v519
    %v2252 = vunpack.c.l.b16 %v520
    %v2253 = vunpack.c.h.b16 %v520
    %v2254 = vunpack.c.l.b16 %v521
    %v2255 = vunpack.c.h.b16 %v521
    %v2256 = vunpack.c.l.b16 %v522
    %v2257 = vunpack.c.h.b16 %v522
    %v2258 = vunpack.c.l.b16 %v523
    %v2259 = vunpack.c.h.b16 %v523
    %v2260 = vunpack.c.l.b16 %v524
    %v2261 = vunpack.c.h.b16 %v524
    %v2262 = vunpack.c.l.b16 %v525
    %v2263 = vunpack.c.l.b16 %v526
    %v2264 = vunpack.c.h.b16 %v526
    %v2265 = vunpack.c.l.b16 %v527
    %v2266 = vunpack.c.h.b16 %v527
    %v2267 = vunpack.c.l.b16 %v528
    %v2268 = vunpack.c.h.b16 %v528
    %v2269 = vunpack.c.l.b16 %v529
    %v2270 = vunpack.c.h.b16 %v529
    %v2271 = vunpack.c.l.b16 %v530
    %v2272 = vunpack.c.h.b16 %v530
    %v2273 = vunpack.c.l.b16 %v531
    %v2274 = vunpack.c.h.b16 %v531
    %v2275 = vunpack.c.l.b16 %v532
    %v2276 = vunpack.c.h.b16 %v532
    %v2277 = vunpack.c.l.b16 %v533
    %v2278 = vunpack.c.l.b16 %v534
    %v2279 = vunpack.c.h.b16 %v534
    %v2280 = vunpack.c.l.b16 %v535
    %v2281 = vunpack.c.h.b16 %v535
    %v2282 = vunpack.c.l.b16 %v536
    %v2283 = vunpack.c.h.b16 %v536
    %v2284 = vunpack.c.l.b16 %v537
    %v2285 = vunpack.c.h.b16 %v537
    %v2286 = vunpack.c.l.b16 %v538
    %v2287 = vunpack.c.h.b16 %v538
    %v2288 = vunpack.c.l.b16 %v539
    %v2289 = vunpack.c.h.b16 %v539
    %v2290 = vunpack.c.l.b16 %v540
    %v2291 = vunpack.c.h.b16 %v540
    %v2292 = vunpack.c.l.b16 %v541
    %v2293 = vunpack.c.l.b16 %v542
    %v2294 = vunpack.c.h.b16 %v542
    %v2295 = vunpack.c.l.b16 %v543
    %v2296 = vunpack.c.h.b16 %v543
    %v2297 = vunpack.c.l.b16 %v544
    %v2298 = vunpack.c.h.b16 %v544
    %v2299 = vunpack.c.l.b16 %v545
    %v2300 = vunpack.c.h.b16 %v545
    %v2301 = vunpack.c.l.b16 %v546
    %v2302 = vunpack.c.h.b16 %v546
    %v2303 = vunpack.c.l.b16 %v547
    %v2304 = vunpack.c.h.b16 %v547
    %v2305 = vunpack.c.l.b16 %v548
    %v2306 = vunpack.c.h.b16 %v548
    %v2307 = vunpack.c.l.b16 %v549
    %v2308 = vunpack.c.l.b16 %v550
    %v2309 = vunpack.c.h.b16 %v550
    %v2310 = vunpack.c.l.b16 %v551
    %v2311 = vunpack.c.h.b16 %v551
    %v2312 = vunpack.c.l.b16 %v552
    %v2313 = vunpack.c.h.b16 %v552
    %v2314 = vunpack.c.l.b16 %v553
    %v2315 = vunpack.c.h.b16 %v553
    %v2316 = vunpack.c.l.b16 %v554
    %v2317 = vunpack.c.h.b16 %v554
    %v2318 = vunpack.c.l.b16 %v555
    %v2319 = vunpack.c.h.b16 %v555
    %v2320 = vunpack.c.l.b16 %v556
    %v2321 = vunpack.c.h.b16 %v556
    %v2322 = vunpack.c.l.b16 %v557
    %v2323 = vunpack.c.l.b16 %v558
    %v2324 = vunpack.c.h.b16 %v558
    %v2325 = vunpack.c.l.b16 %v559
    %v2326 = vunpack.c.h.b16 %v559
    %v2327 = vunpack.c.l.b16 %v560
    %v2328 = vunpack.c.h.b16 %v560
    %v2329 = vunpack.c.l.b16 %v561
    %v2330 = vunpack.c.h.b16 %v561
    %v2331 = vunpack.c.l.b16 %v562
    %v2332 = vunpack.c.h.b16 %v562
    %v2333 = vunpack.c.l.b16 %v563
    %v2334 = vunpack.c.h.b16 %v563
    %v2335 = vunpack.c.l.b16 %v564
    %v2336 = vunpack.c.h.b16 %v564
    %v2337 = vunpack.c.l.b16 %v565
    %v2338 = vunpack.c.l.b16 %v566
    %v2339 = vunpack.c.h.b16 %v566
    %v2340 = vunpack.c.l.b16 %v567
    %v2341 = vunpack.c.h.b16 %v567
    %v2342 = vunpack.c.l.b16 %v568
    %v2343 = vunpack.c.h.b16 %v568
    %v2344 = vunpack.c.l.b16 %v569
    %v2345 = vunpack.c.h.b16 %v569
    %v2346 = vunpack.c.l.b16 %v570
    %v2347 = vunpack.c.h.b16 %v570
    %v2348 = vunpack.c.l.b16 %v571
    %v2349 = vunpack.c.h.b16 %v571
    %v2350 = vunpack.c.l.b16 %v572
    %v2351 = vunpack.c.h.b16 %v572
    %v2352 = vunpack.c.l.b16 %v573
    %v2353 = vunpack.c.l.b16 %v574
    %v2354 = vunpack.c.h.b16 %v574
    %v2355 = vunpack.c.l.b16 %v575
    %v2356 = vunpack.c.h.b16 %v575
    %v2357 = vunpack.c.l.b16 %v576
    %v2358 = vunpack.c.h.b16 %v576
    %v2359 = vunpack.c.l.b16 %v577
    %v2360 = vunpack.c.h.b16 %v577
    %v2361 = vunpack.c.l.b16 %v578
    %v2362 = vunpack.c.h.b16 %v578
    %v2363 = vunpack.c.l.b16 %v579
    %v2364 = vunpack.c.h.b16 %v579
    %v2365 = vunpack.c.l.b16 %v580
    %v2366 = vunpack.c.h.b16 %v580
    %v2367 = vunpack.c.l.b16 %v581
    %v2368 = vunpack.c.l.b16 %v582
    %v2369 = vunpack.c.h.b16 %v582
    %v2370 = vunpack.c.l.b16 %v583
    %v2371 = vunpack.c.h.b16 %v583
    %v2372 = vunpack.c.l.b16 %v584
    %v2373 = vunpack.c.h.b16 %v584
    %v2374 = vunpack.c.l.b16 %v585
    %v2375 = vunpack.c.h.b16 %v585
    %v2376 = vunpack.c.l.b16 %v586
    %v2377 = vunpack.c.h.b16 %v586
    %v2378 = vunpack.c.l.b16 %v587
    %v2379 = vunpack.c.h.b16 %v587
    %v2380 = vunpack.c.l.b16 %v588
    %v2381 = vunpack.c.h.b16 %v588
    %v2382 = vunpack.c.l.b16 %v589
    %v2383 = vunpack.c.l.b16 %v590
    %v2384 = vunpack.c.h.b16 %v590
    %v2385 = vunpack.c.l.b16 %v591
    %v2386 = vunpack.c.h.b16 %v591
    %v2387 = vunpack.c.l.b16 %v592
    %v2388 = vunpack.c.h.b16 %v592
    %v2389 = vunpack.c.l.b16 %v593
    %v2390 = vunpack.c.h.b16 %v593
    %v2391 = vunpack.c.l.b16 %v594
    %v2392 = vunpack.c.h.b16 %v594
    %v2393 = vunpack.c.l.b16 %v595
    %v2394 = vunpack.c.h.b16 %v595
    %v2395 = vunpack.c.l.b16 %v596
    %v2396 = vunpack.c.h.b16 %v596
    %v2397 = vunpack.c.l.b16 %v597
    %v2398 = vunpack.c.l.b16 %v598
    %v2399 = vunpack.c.h.b16 %v598
    %v2400 = vunpack.c.l.b16 %v599
    %v2401 = vunpack.c.h.b16 %v599
    %v2402 = vunpack.c.l.b16 %v600
    %v2403 = vunpack.c.h.b16 %v600
    %v2404 = vunpack.c.l.b16 %v601
    %v2405 = vunpack.c.h.b16 %v601
    %v2406 = vunpack.c.l.b16 %v602
    %v2407 = vunpack.c.h.b16 %v602
    %v2408 = vunpack.c.l.b16 %v603
    %v2409 = vunpack.c.h.b16 %v603
    %v2410 = vunpack.c.l.b16 %v604
    %v2411 = vunpack.c.h.b16 %v604
    %v2412 = vunpack.c.l.b16 %v605
    %v2413 = vunpack.c.l.b16 %v606
    %v2414 = vunpack.c.h.b16 %v606
    %v2415 = vunpack.c.l.b16 %v607
    %v2416 = vunpack.c.h.b16 %v607
    %v2417 = vunpack.c.l.b16 %v608
    %v2418 = vunpack.c.h.b16 %v608
    %v2419 = vunpack.c.l.b16 %v609
    %v2420 = vunpack.c.h.b16 %v609
    %v2421 = vunpack.c.l.b16 %v610
    %v2422 = vunpack.c.h.b16 %v610
    %v2423 = vunpack.c.l.b16 %v611
    %v2424 = vunpack.c.h.b16 %v611
    %v2425 = vunpack.c.l.b16 %v612
    %v2426 = vunpack.c.h.b16 %v612
    %v2427 = vunpack.c.l.b16 %v613
    %v2428 = vunpack.c.l.b16 %v614
    %v2429 = vunpack.c.h.b16 %v614
    %v2430 = vunpack.c.l.b16 %v615
    %v2431 = vunpack.c.h.b16 %v615
    %v2432 = vunpack.c.l.b16 %v616
    %v2433 = vunpack.c.h.b16 %v616
    %v2434 = vunpack.c.l.b16 %v617
    %v2435 = vunpack.c.h.b16 %v617
    %v2436 = vunpack.c.l.b16 %v618
    %v2437 = vunpack.c.h.b16 %v618
    %v2438 = vunpack.c.l.b16 %v619
    %v2439 = vunpack.c.h.b16 %v619
    %v2440 = vunpack.c.l.b16 %v620
    %v2441 = vunpack.c.h.b16 %v620
    %v2442 = vunpack.c.l.b16 %v621
    %v2443 = vunpack.c.l.b16 %v622
    %v2444 = vunpack.c.h.b16 %v622
    %v2445 = vunpack.c.l.b16 %v623
    %v2446 = vunpack.c.h.b16 %v623
    %v2447 = vunpack.c.l.b16 %v624
    %v2448 = vunpack.c.h.b16 %v624
    %v2449 = vunpack.c.l.b16 %v625
    %v2450 = vunpack.c.h.b16 %v625
    %v2451 = vunpack.c.l.b16 %v626
    %v2452 = vunpack.c.h.b16 %v626
    %v2453 = vunpack.c.l.b16 %v627
    %v2454 = vunpack.c.h.b16 %v627
    %v2455 = vunpack.c.l.b16 %v628
    %v2456 = vunpack.c.h.b16 %v628
    %v2457 = vunpack.c.l.b16 %v629
    %v2458 = vunpack.c.l.b16 %v630
    %v2459 = vunpack.c.h.b16 %v630
    %v2460 = vunpack.c.l.b16 %v631
    %v2461 = vunpack.c.h.b16 %v631
    %v2462 = vunpack.c.l.b16 %v632
    %v2463 = vunpack.c.h.b16 %v632
    %v2464 = vunpack.c.l.b16 %v633
    %v2465 = vunpack.c.h.b16 %v633
    %v2466 = vunpack.c.l.b16 %v634
    %v2467 = vunpack.c.h.b16 %v634
    %v2468 = vunpack.c.l.b16 %v635
    %v2469 = vunpack.c.h.b16 %v635
    %v2470 = vunpack.c.l.b16 %v636
    %v2471 = vunpack.c.h.b16 %v636
    %v2472 = vunpack.c.l.b16 %v637
    %v2473 = vunpack.c.l.b16 %v638
    %v2474 = vunpack.c.h.b16 %v638
    %v2475 = vunpack.c.l.b16 %v639
    %v2476 = vunpack.c.h.b16 %v639
    %v2477 = vunpack.c.l.b16 %v640
    %v2478 = vunpack.c.h.b16 %v640
    %v2479 = vunpack.c.l.b16 %v641
    %v2480 = vunpack.c.h.b16 %v641
    %v2481 = vunpack.c.l.b16 %v642
    %v2482 = vunpack.c.h.b16 %v642
    %v2483 = vunpack.c.l.b16 %v643
    %v2484 = vunpack.c.h.b16 %v643
    %v2485 = vunpack.c.l.b16 %v644
    %v2486 = vunpack.c.h.b16 %v644
    %v2487 = vunpack.c.l.b16 %v645
    %v2488 = vunpack.c.l.b16 %v646
    %v2489 = vunpack.c.h.b16 %v646
    %v2490 = vunpack.c.l.b16 %v647
    %v2491 = vunpack.c.h.b16 %v647
    %v2492 = vunpack.c.l.b16 %v648
    %v2493 = vunpack.c.h.b16 %v648
    %v2494 = vunpack.c.l.b16 %v649
    %v2495 = vunpack.c.h.b16 %v649
    %v2496 = vunpack.c.l.b16 %v650
    %v2497 = vunpack.c.h.b16 %v650
    %v2498 = vunpack.c.l.b16 %v651
    %v2499 = vunpack.c.h.b16 %v651
    %v2500 = vunpack.c.l.b16 %v652
    %v2501 = vunpack.c.h.b16 %v652
    %v2502 = vunpack.c.l.b16 %v653
    %v2503 = vunpack.c.l.b16 %v654
    %v2504 = vunpack.c.h.b16 %v654
    %v2505 = vunpack.c.l.b16 %v655
    %v2506 = vunpack.c.h.b16 %v655
    %v2507 = vunpack.c.l.b16 %v656
    %v2508 = vunpack.c.h.b16 %v656
    %v2509 = vunpack.c.l.b16 %v657
    %v2510 = vunpack.c.h.b16 %v657
    %v2511 = vunpack.c.l.b16 %v658
    %v2512 = vunpack.c.h.b16 %v658
    %v2513 = vunpack.c.l.b16 %v659
    %v2514 = vunpack.c.h.b16 %v659
    %v2515 = vunpack.c.l.b16 %v660
    %v2516 = vunpack.c.h.b16 %v660
    %v2517 = vunpack.c.l.b16 %v661
    %v2518 = vunpack.c.l.b16 %v662
    %v2519 = vunpack.c.h.b16 %v662
    %v2520 = vunpack.c.l.b16 %v663
    %v2521 = vunpack.c.h.b16 %v663
    %v2522 = vunpack.c.l.b16 %v664
    %v2523 = vunpack.c.h.b16 %v664
    %v2524 = vunpack.c.l.b16 %v665
    %v2525 = vunpack.c.h.b16 %v665
    %v2526 = vunpack.c.l.b16 %v666
    %v2527 = vunpack.c.h.b16 %v666
    %v2528 = vunpack.c.l.b16 %v667
    %v2529 = vunpack.c.h.b16 %v667
    %v2530 = vunpack.c.l.b16 %v668
    %v2531 = vunpack.c.h.b16 %v668
    %v2532 = vunpack.c.l.b16 %v669
    %v2533 = vunpack.c.l.b16 %v670
    %v2534 = vunpack.c.h.b16 %v670
    %v2535 = vunpack.c.l.b16 %v671
    %v2536 = vunpack.c.h.b16 %v671
    %v2537 = vunpack.c.l.b16 %v672
    %v2538 = vunpack.c.h.b16 %v672
    %v2539 = vunpack.c.l.b16 %v673
    %v2540 = vunpack.c.h.b16 %v673
    %v2541 = vunpack.c.l.b16 %v674
    %v2542 = vunpack.c.h.b16 %v674
    %v2543 = vunpack.c.l.b16 %v675
    %v2544 = vunpack.c.h.b16 %v675
    %v2545 = vunpack.c.l.b16 %v676
    %v2546 = vunpack.c.h.b16 %v676
    %v2547 = vunpack.c.l.b16 %v677
    %v2548 = vunpack.c.l.b16 %v678
    %v2549 = vunpack.c.h.b16 %v678
    %v2550 = vunpack.c.l.b16 %v679
    %v2551 = vunpack.c.h.b16 %v679
    %v2552 = vunpack.c.l.b16 %v680
    %v2553 = vunpack.c.h.b16 %v680
    %v2554 = vunpack.c.l.b16 %v681
    %v2555 = vunpack.c.h.b16 %v681
    %v2556 = vunpack.c.l.b16 %v682
    %v2557 = vunpack.c.h.b16 %v682
    %v2558 = vunpack.c.l.b16 %v683
    %v2559 = vunpack.c.h.b16 %v683
    %v2560 = vunpack.c.l.b16 %v684
    %v2561 = vunpack.c.h.b16 %v684
    %v2562 = vunpack.c.l.b16 %v685
    %v2563 = vunpack.c.l.b16 %v686
    %v2564 = vunpack.c.h.b16 %v686
    %v2565 = vunpack.c.l.b16 %v687
    %v2566 = vunpack.c.h.b16 %v687
    %v2567 = vunpack.c.l.b16 %v688
    %v2568 = vunpack.c.h.b16 %v688
    %v2569 = vunpack.c.l.b16 %v689
    %v2570 = vunpack.c.h.b16 %v689
    %v2571 = vunpack.c.l.b16 %v690
    %v2572 = vunpack.c.h.b16 %v690
    %v2573 = vunpack.c.l.b16 %v691
    %v2574 = vunpack.c.h.b16 %v691
    %v2575 = vunpack.c.l.b16 %v692
    %v2576 = vunpack.c.h.b16 %v692
    %v2577 = vunpack.c.l.b16 %v693
    %v2578 = vunpack.c.l.b16 %v694
    %v2579 = vunpack.c.h.b16 %v694
    %v2580 = vunpack.c.l.b16 %v695
    %v2581 = vunpack.c.h.b16 %v695
    %v2582 = vunpack.c.l.b16 %v696
    %v2583 = vunpack.c.h.b16 %v696
    %v2584 = vunpack.c.l.b16 %v697
    %v2585 = vunpack.c.h.b16 %v697
    %v2586 = vunpack.c.l.b16 %v698
    %v2587 = vunpack.c.h.b16 %v698
    %v2588 = vunpack.c.l.b16 %v699
    %v2589 = vunpack.c.h.b16 %v699
    %v2590 = vunpack.c.l.b16 %v700
    %v2591 = vunpack.c.h.b16 %v700
    %v2592 = vunpack.c.l.b16 %v701
    %v2593 = vunpack.c.l.b16 %v702
    %v2594 = vunpack.c.h.b16 %v702
    %v2595 = vunpack.c.l.b16 %v703
    %v2596 = vunpack.c.h.b16 %v703
    %v2597 = vunpack.c.l.b16 %v704
    %v2598 = vunpack.c.h.b16 %v704
    %v2599 = vunpack.c.l.b16 %v705
    %v2600 = vunpack.c.h.b16 %v705
    %v2601 = vunpack.c.l.b16 %v706
    %v2602 = vunpack.c.h.b16 %v706
    %v2603 = vunpack.c.l.b16 %v707
    %v2604 = vunpack.c.h.b16 %v707
    %v2605 = vunpack.c.l.b16 %v708
    %v2606 = vunpack.c.h.b16 %v708
    %v2607 = vunpack.c.l.b16 %v709
    %v2608 = vunpack.c.l.b16 %v710
    %v2609 = vunpack.c.h.b16 %v710
    %v2610 = vunpack.c.l.b16 %v711
    %v2611 = vunpack.c.h.b16 %v711
    %v2612 = vunpack.c.l.b16 %v712
    %v2613 = vunpack.c.h.b16 %v712
    %v2614 = vunpack.c.l.b16 %v713
    %v2615 = vunpack.c.h.b16 %v713
    %v2616 = vunpack.c.l.b16 %v714
    %v2617 = vunpack.c.h.b16 %v714
    %v2618 = vunpack.c.l.b16 %v715
    %v2619 = vunpack.c.h.b16 %v715
    %v2620 = vunpack.c.l.b16 %v716
    %v2621 = vunpack.c.h.b16 %v716
    %v2622 = vunpack.c.l.b16 %v717
    %v2623 = vunpack.c.l.b16 %v718
    %v2624 = vunpack.c.h.b16 %v718
    %v2625 = vunpack.c.l.b16 %v719
    %v2626 = vunpack.c.h.b16 %v719
    %v2627 = vunpack.c.l.b16 %v720
    %v2628 = vunpack.c.h.b16 %v720
    %v2629 = vunpack.c.l.b16 %v721
    %v2630 = vunpack.c.h.b16 %v721
    %v2631 = vunpack.c.l.b16 %v722
    %v2632 = vunpack.c.h.b16 %v722
    %v2633 = vunpack.c.l.b16 %v723
    %v2634 = vunpack.c.h.b16 %v723
    %v2635 = vunpack.c.l.b16 %v724
    %v2636 = vunpack.c.h.b16 %v724
    %v2637 = vunpack.c.l.b16 %v725
    %v2638 = vunpack.c.l.b16 %v726
    %v2639 = vunpack.c.h.b16 %v726
    %v2640 = vunpack.c.l.b16 %v727
    %v2641 = vunpack.c.h.b16 %v727
    %v2642 = vunpack.c.l.b16 %v728
    %v2643 = vunpack.c.h.b16 %v728
    %v2644 = vunpack.c.l.b16 %v729
    %v2645 = vunpack.c.h.b16 %v729
    %v2646 = vunpack.c.l.b16 %v730
    %v2647 = vunpack.c.h.b16 %v730
    %v2648 = vunpack.c.l.b16 %v731
    %v2649 = vunpack.c.h.b16 %v731
    %v2650 = vunpack.c.l.b16 %v732
    %v2651 = vunpack.c.h.b16 %v732
    %v2652 = vunpack.c.l.b16 %v733
    %v2653 = vpack.c.b16 %v1468, %v1453
    %v2654 = vpack.c.b16 %v1469, %v1454
    %v2655 = vpack.c.b16 %v1470, %v1455
    %v2656 = vpack.c.b16 %v1471, %v1456
    %v2657 = vpack.c.b16 %v1472, %v1457
    %v2658 = vpack.c.b16 %v1473, %v1458
    %v2659 = vpack.c.b16 %v1474, %v1459
    %v2660 = vpack.c.b16 %v1475, %v1460
    %v2661 = vpack.c.b16 %v1476, %v1461
    %v2662 = vpack.c.b16 %v1477, %v1462
    %v2663 = vpack.c.b16 %v1478, %v1463
    %v2664 = vpack.c.b16 %v1479, %v1464
    %v2665 = vpack.c.b16 %v1480, %v1465
    %v2666 = vpack.c.b16 %v1481, %v1466
    %v2667 = vpack.c.b16 %v1482, %v1467
    %v2668 = vpack.c.b16 %v1498, %v1483
    %v2669 = vpack.c.b16 %v1499, %v1484
    %v2670 = vpack.c.b16 %v1500, %v1485
    %v2671 = vpack.c.b16 %v1501, %v1486
    %v2672 = vpack.c.b16 %v1502, %v1487
    %v2673 = vpack.c.b16 %v1503, %v1488
    %v2674 = vpack.c.b16 %v1504, %v1489
    %v2675 = vpack.c.b16 %v1505, %v1490
    %v2676 = vpack.c.b16 %v1506, %v1491
    %v2677 = vpack.c.b16 %v1507, %v1492
    %v2678 = vpack.c.b16 %v1508, %v1493
    %v2679 = vpack.c.b16 %v1509, %v1494
    %v2680 = vpack.c.b16 %v1510, %v1495
    %v2681 = vpack.c.b16 %v1511, %v1496
    %v2682 = vpack.c.b16 %v1512, %v1497
    %v2683 = vpack.c.b16 %v1528, %v1513
    %v2684 = vpack.c.b16 %v1529, %v1514
    %v2685 = vpack.c.b16 %v1530, %v1515
    %v2686 = vpack.c.b16 %v1531, %v1516
    %v2687 = vpack.c.b16 %v1532, %v1517
    %v2688 = vpack.c.b16 %v1533, %v1518
    %v2689 = vpack.c.b16 %v1534, %v1519
    %v2690 = vpack.c.b16 %v1535, %v1520
    %v2691 = vpack.c.b16 %v1536, %v1521
    %v2692 = vpack.c.b16 %v1537, %v1522
    %v2693 = vpack.c.b16 %v1538, %v1523
    %v2694 = vpack.c.b16 %v1539, %v1524
    %v2695 = vpack.c.b16 %v1540, %v1525
    %v2696 = vpack.c.b16 %v1541, %v1526
    %v2697 = vpack.c.b16 %v1542, %v1527
    %v2698 = vpack.c.b16 %v1558, %v1543
    %v2699 = vpack.c.b16 %v1559, %v1544
    %v2700 = vpack.c.b16 %v1560, %v1545
    %v2701 = vpack.c.b16 %v1561, %v1546
    %v2702 = vpack.c.b16 %v1562, %v1547
    %v2703 = vpack.c.b16 %v1563, %v1548
    %v2704 = vpack.c.b16 %v1564, %v1549
    %v2705 = vpack.c.b16 %v1565, %v1550
    %v2706 = vpack.c.b16 %v1566, %v1551
    %v2707 = vpack.c.b16 %v1567, %v1552
    %v2708 = vpack.c.b16 %v1568, %v1553
    %v2709 = vpack.c.b16 %v1569, %v1554
    %v2710 = vpack.c.b16 %v1570, %v1555
    %v2711 = vpack.c.b16 %v1571, %v1556
    %v2712 = vpack.c.b16 %v1572, %v1557
    %v2713 = vpack.c.b16 %v1588, %v1573
    %v2714 = vpack.c.b16 %v1589, %v1574
    %v2715 = vpack.c.b16 %v1590, %v1575
    %v2716 = vpack.c.b16 %v1591, %v1576
    %v2717 = vpack.c.b16 %v1592, %v1577
    %v2718 = vpack.c.b16 %v1593, %v1578
    %v2719 = vpack.c.b16 %v1594, %v1579
    %v2720 = vpack.c.b16 %v1595, %v1580
    %v2721 = vpack.c.b16 %v1596, %v1581
    %v2722 = vpack.c.b16 %v1597, %v1582
    %v2723 = vpack.c.b16 %v1598, %v1583
    %v2724 = vpack.c.b16 %v1599, %v1584
    %v2725 = vpack.c.b16 %v1600, %v1585
    %v2726 = vpack.c.b16 %v1601, %v1586
    %v2727 = vpack.c.b16 %v1602, %v1587
    %v2728 = vpack.c.b16 %v1618, %v1603
    %v2729 = vpack.c.b16 %v1619, %v1604
    %v2730 = vpack.c.b16 %v1620, %v1605
    %v2731 = vpack.c.b16 %v1621, %v1606
    %v2732 = vpack.c.b16 %v1622, %v1607
    %v2733 = vpack.c.b16 %v1623, %v1608
    %v2734 = vpack.c.b16 %v1624, %v1609
    %v2735 = vpack.c.b16 %v1625, %v1610
    %v2736 = vpack.c.b16 %v1626, %v1611
    %v2737 = vpack.c.b16 %v1627, %v1612
    %v2738 = vpack.c.b16 %v1628, %v1613
    %v2739 = vpack.c.b16 %v1629, %v1614
    %v2740 = vpack.c.b16 %v1630, %v1615
    %v2741 = vpack.c.b16 %v1631, %v1616
    %v2742 = vpack.c.b16 %v1632, %v1617
    %v2743 = vpack.c.b16 %v1648, %v1633
    %v2744 = vpack.c.b16 %v1649, %v1634
    %v2745 = vpack.c.b16 %v1650, %v1635
    %v2746 = vpack.c.b16 %v1651, %v1636
    %v2747 = vpack.c.b16 %v1652, %v1637
    %v2748 = vpack.c.b16 %v1653, %v1638
    %v2749 = vpack.c.b16 %v1654, %v1639
    %v2750 = vpack.c.b16 %v1655, %v1640
    %v2751 = vpack.c.b16 %v1656, %v1641
    %v2752 = vpack.c.b16 %v1657, %v1642
    %v2753 = vpack.c.b16 %v1658, %v1643
    %v2754 = vpack.c.b16 %v1659, %v1644
    %v2755 = vpack.c.b16 %v1660, %v1645
    %v2756 = vpack.c.b16 %v1661, %v1646
    %v2757 = vpack.c.b16 %v1662, %v1647
    %v2758 = vpack.c.b16 %v1678, %v1663
    %v2759 = vpack.c.b16 %v1679, %v1664
    %v2760 = vpack.c.b16 %v1680, %v1665
    %v2761 = vpack.c.b16 %v1681, %v1666
    %v2762 = vpack.c.b16 %v1682, %v1667
    %v2763 = vpack.c.b16 %v1683, %v1668
    %v2764 = vpack.c.b16 %v1684, %v1669
    %v2765 = vpack.c.b16 %v1685, %v1670
    %v2766 = vpack.c.b16 %v1686, %v1671
    %v2767 = vpack.c.b16 %v1687, %v1672
    %v2768 = vpack.c.b16 %v1688, %v1673
    %v2769 = vpack.c.b16 %v1689, %v1674
    %v2770 = vpack.c.b16 %v1690, %v1675
    %v2771 = vpack.c.b16 %v1691, %v1676
    %v2772 = vpack.c.b16 %v1692, %v1677
    %v2773 = vpack.c.b16 %v1708, %v1693
    %v2774 = vpack.c.b16 %v1709, %v1694
    %v2775 = vpack.c.b16 %v1710, %v1695
    %v2776 = vpack.c.b16 %v1711, %v1696
    %v2777 = vpack.c.b16 %v1712, %v1697
    %v2778 = vpack.c.b16 %v1713, %v1698
    %v2779 = vpack.c.b16 %v1714, %v1699
    %v2780 = vpack.c.b16 %v1715, %v1700
    %v2781 = vpack.c.b16 %v1716, %v1701
    %v2782 = vpack.c.b16 %v1717, %v1702
    %v2783 = vpack.c.b16 %v1718, %v1703
    %v2784 = vpack.c.b16 %v1719, %v1704
    %v2785 = vpack.c.b16 %v1720, %v1705
    %v2786 = vpack.c.b16 %v1721, %v1706
    %v2787 = vpack.c.b16 %v1722, %v1707
    %v2788 = vpack.c.b16 %v1738, %v1723
    %v2789 = vpack.c.b16 %v1739, %v1724
    %v2790 = vpack.c.b16 %v1740, %v1725
    %v2791 = vpack.c.b16 %v1741, %v1726
    %v2792 = vpack.c.b16 %v1742, %v1727
    %v2793 = vpack.c.b16 %v1743, %v1728
    %v2794 = vpack.c.b16 %v1744, %v1729
    %v2795 = vpack.c.b16 %v1745, %v1730
    %v2796 = vpack.c.b16 %v1746, %v1731
    %v2797 = vpack.c.b16 %v1747, %v1732
    %v2798 = vpack.c.b16 %v1748, %v1733
    %v2799 = vpack.c.b16 %v1749, %v1734
    %v2800 = vpack.c.b16 %v1750, %v1735
    %v2801 = vpack.c.b16 %v1751, %v1736
    %v2802 = vpack.c.b16 %v1752, %v1737
    %v2803 = vpack.c.b16 %v1768, %v1753
    %v2804 = vpack.c.b16 %v1769, %v1754
    %v2805 = vpack.c.b16 %v1770, %v1755
    %v2806 = vpack.c.b16 %v1771, %v1756
    %v2807 = vpack.c.b16 %v1772, %v1757
    %v2808 = vpack.c.b16 %v1773, %v1758
    %v2809 = vpack.c.b16 %v1774, %v1759
    %v2810 = vpack.c.b16 %v1775, %v1760
    %v2811 = vpack.c.b16 %v1776, %v1761
    %v2812 = vpack.c.b16 %v1777, %v1762
    %v2813 = vpack.c.b16 %v1778, %v1763
    %v2814 = vpack.c.b16 %v1779, %v1764
    %v2815 = vpack.c.b16 %v1780, %v1765
    %v2816 = vpack.c.b16 %v1781, %v1766
    %v2817 = vpack.c.b16 %v1782, %v1767
    %v2818 = vpack.c.b16 %v1798, %v1783
    %v2819 = vpack.c.b16 %v1799, %v1784
    %v2820 = vpack.c.b16 %v1800, %v1785
    %v2821 = vpack.c.b16 %v1801, %v1786
    %v2822 = vpack.c.b16 %v1802, %v1787
    %v2823 = vpack.c.b16 %v1803, %v1788
    %v2824 = vpack.c.b16 %v1804, %v1789
    %v2825 = vpack.c.b16 %v1805, %v1790
    %v2826 = vpack.c.b16 %v1806, %v1791
    %v2827 = vpack.c.b16 %v1807, %v1792
    %v2828 = vpack.c.b16 %v1808, %v1793
    %v2829 = vpack.c.b16 %v1809, %v1794
    %v2830 = vpack.c.b16 %v1810, %v1795
    %v2831 = vpack.c.b16 %v1811, %v1796
    %v2832 = vpack.c.b16 %v1812, %v1797
    %v2833 = vpack.c.b16 %v1828, %v1813
    %v2834 = vpack.c.b16 %v1829, %v1814
    %v2835 = vpack.c.b16 %v1830, %v1815
    %v2836 = vpack.c.b16 %v1831, %v1816
    %v2837 = vpack.c.b16 %v1832, %v1817
    %v2838 = vpack.c.b16 %v1833, %v1818
    %v2839 = vpack.c.b16 %v1834, %v1819
    %v2840 = vpack.c.b16 %v1835, %v1820
    %v2841 = vpack.c.b16 %v1836, %v1821
    %v2842 = vpack.c.b16 %v1837, %v1822
    %v2843 = vpack.c.b16 %v1838, %v1823
    %v2844 = vpack.c.b16 %v1839, %v1824
    %v2845 = vpack.c.b16 %v1840, %v1825
    %v2846 = vpack.c.b16 %v1841, %v1826
    %v2847 = vpack.c.b16 %v1842, %v1827
    %v2848 = vpack.c.b16 %v1858, %v1843
    %v2849 = vpack.c.b16 %v1859, %v1844
    %v2850 = vpack.c.b16 %v1860, %v1845
    %v2851 = vpack.c.b16 %v1861, %v1846
    %v2852 = vpack.c.b16 %v1862, %v1847
    %v2853 = vpack.c.b16 %v1863, %v1848
    %v2854 = vpack.c.b16 %v1864, %v1849
    %v2855 = vpack.c.b16 %v1865, %v1850
    %v2856 = vpack.c.b16 %v1866, %v1851
    %v2857 = vpack.c.b16 %v1867, %v1852
    %v2858 = vpack.c.b16 %v1868, %v1853
    %v2859 = vpack.c.b16 %v1869, %v1854
    %v2860 = vpack.c.b16 %v1870, %v1855
    %v2861 = vpack.c.b16 %v1871, %v1856
    %v2862 = vpack.c.b16 %v1872, %v1857
    %v2863 = vpack.c.b16 %v1888, %v1873
    %v2864 = vpack.c.b16 %v1889, %v1874
    %v2865 = vpack.c.b16 %v1890, %v1875
    %v2866 = vpack.c.b16 %v1891, %v1876
    %v2867 = vpack.c.b16 %v1892, %v1877
    %v2868 = vpack.c.b16 %v1893, %v1878
    %v2869 = vpack.c.b16 %v1894, %v1879
    %v2870 = vpack.c.b16 %v1895, %v1880
    %v2871 = vpack.c.b16 %v1896, %v1881
    %v2872 = vpack.c.b16 %v1897, %v1882
    %v2873 = vpack.c.b16 %v1898, %v1883
    %v2874 = vpack.c.b16 %v1899, %v1884
    %v2875 = vpack.c.b16 %v1900, %v1885
    %v2876 = vpack.c.b16 %v1901, %v1886
    %v2877 = vpack.c.b16 %v1902, %v1887
    %v2878 = vpack.c.b16 %v1918, %v1903
    %v2879 = vpack.c.b16 %v1919, %v1904
    %v2880 = vpack.c.b16 %v1920, %v1905
    %v2881 = vpack.c.b16 %v1921, %v1906
    %v2882 = vpack.c.b16 %v1922, %v1907
    %v2883 = vpack.c.b16 %v1923, %v1908
    %v2884 = vpack.c.b16 %v1924, %v1909
    %v2885 = vpack.c.b16 %v1925, %v1910
    %v2886 = vpack.c.b16 %v1926, %v1911
    %v2887 = vpack.c.b16 %v1927, %v1912
    %v2888 = vpack.c.b16 %v1928, %v1913
    %v2889 = vpack.c.b16 %v1929, %v1914
    %v2890 = vpack.c.b16 %v1930, %v1915
    %v2891 = vpack.c.b16 %v1931, %v1916
    %v2892 = vpack.c.b16 %v1932, %v1917
    %v2893 = vpack.c.b16 %v1948, %v1933
    %v2894 = vpack.c.b16 %v1949, %v1934
    %v2895 = vpack.c.b16 %v1950, %v1935
    %v2896 = vpack.c.b16 %v1951, %v1936
    %v2897 = vpack.c.b16 %v1952, %v1937
    %v2898 = vpack.c.b16 %v1953, %v1938
    %v2899 = vpack.c.b16 %v1954, %v1939
    %v2900 = vpack.c.b16 %v1955, %v1940
    %v2901 = vpack.c.b16 %v1956, %v1941
    %v2902 = vpack.c.b16 %v1957, %v1942
    %v2903 = vpack.c.b16 %v1958, %v1943
    %v2904 = vpack.c.b16 %v1959, %v1944
    %v2905 = vpack.c.b16 %v1960, %v1945
    %v2906 = vpack.c.b16 %v1961, %v1946
    %v2907 = vpack.c.b16 %v1962, %v1947
    %v2908 = vpack.c.b16 %v1978, %v1963
    %v2909 = vpack.c.b16 %v1979, %v1964
    %v2910 = vpack.c.b16 %v1980, %v1965
    %v2911 = vpack.c.b16 %v1981, %v1966
    %v2912 = vpack.c.b16 %v1982, %v1967
    %v2913 = vpack.c.b16 %v1983, %v1968
    %v2914 = vpack.c.b16 %v1984, %v1969
    %v2915 = vpack.c.b16 %v1985, %v1970
    %v2916 = vpack.c.b16 %v1986, %v1971
    %v2917 = vpack.c.b16 %v1987, %v1972
    %v2918 = vpack.c.b16 %v1988, %v1973
    %v2919 = vpack.c.b16 %v1989, %v1974
    %v2920 = vpack.c.b16 %v1990, %v1975
    %v2921 = vpack.c.b16 %v1991, %v1976
    %v2922 = vpack.c.b16 %v1992, %v1977
    %v2923 = vpack.c.b16 %v2008, %v1993
    %v2924 = vpack.c.b16 %v2009, %v1994
    %v2925 = vpack.c.b16 %v2010, %v1995
    %v2926 = vpack.c.b16 %v2011, %v1996
    %v2927 = vpack.c.b16 %v2012, %v1997
    %v2928 = vpack.c.b16 %v2013, %v1998
    %v2929 = vpack.c.b16 %v2014, %v1999
    %v2930 = vpack.c.b16 %v2015, %v2000
    %v2931 = vpack.c.b16 %v2016, %v2001
    %v2932 = vpack.c.b16 %v2017, %v2002
    %v2933 = vpack.c.b16 %v2018, %v2003
    %v2934 = vpack.c.b16 %v2019, %v2004
    %v2935 = vpack.c.b16 %v2020, %v2005
    %v2936 = vpack.c.b16 %v2021, %v2006
    %v2937 = vpack.c.b16 %v2022, %v2007
    %v2938 = vpack.c.b16 %v2038, %v2023
    %v2939 = vpack.c.b16 %v2039, %v2024
    %v2940 = vpack.c.b16 %v2040, %v2025
    %v2941 = vpack.c.b16 %v2041, %v2026
    %v2942 = vpack.c.b16 %v2042, %v2027
    %v2943 = vpack.c.b16 %v2043, %v2028
    %v2944 = vpack.c.b16 %v2044, %v2029
    %v2945 = vpack.c.b16 %v2045, %v2030
    %v2946 = vpack.c.b16 %v2046, %v2031
    %v2947 = vpack.c.b16 %v2047, %v2032
    %v2948 = vpack.c.b16 %v2048, %v2033
    %v2949 = vpack.c.b16 %v2049, %v2034
    %v2950 = vpack.c.b16 %v2050, %v2035
    %v2951 = vpack.c.b16 %v2051, %v2036
    %v2952 = vpack.c.b16 %v2052, %v2037
    %v2953 = vpack.c.b16 %v2068, %v2053
    %v2954 = vpack.c.b16 %v2069, %v2054
    %v2955 = vpack.c.b16 %v2070, %v2055
    %v2956 = vpack.c.b16 %v2071, %v2056
    %v2957 = vpack.c.b16 %v2072, %v2057
    %v2958 = vpack.c.b16 %v2073, %v2058
    %v2959 = vpack.c.b16 %v2074, %v2059
    %v2960 = vpack.c.b16 %v2075, %v2060
    %v2961 = vpack.c.b16 %v2076, %v2061
    %v2962 = vpack.c.b16 %v2077, %v2062
    %v2963 = vpack.c.b16 %v2078, %v2063
    %v2964 = vpack.c.b16 %v2079, %v2064
    %v2965 = vpack.c.b16 %v2080, %v2065
    %v2966 = vpack.c.b16 %v2081, %v2066
    %v2967 = vpack.c.b16 %v2082, %v2067
    %v2968 = vpack.c.b16 %v2098, %v2083
    %v2969 = vpack.c.b16 %v2099, %v2084
    %v2970 = vpack.c.b16 %v2100, %v2085
    %v2971 = vpack.c.b16 %v2101, %v2086
    %v2972 = vpack.c.b16 %v2102, %v2087
    %v2973 = vpack.c.b16 %v2103, %v2088
    %v2974 = vpack.c.b16 %v2104, %v2089
    %v2975 = vpack.c.b16 %v2105, %v2090
    %v2976 = vpack.c.b16 %v2106, %v2091
    %v2977 = vpack.c.b16 %v2107, %v2092
    %v2978 = vpack.c.b16 %v2108, %v2093
    %v2979 = vpack.c.b16 %v2109, %v2094
    %v2980 = vpack.c.b16 %v2110, %v2095
    %v2981 = vpack.c.b16 %v2111, %v2096
    %v2982 = vpack.c.b16 %v2112, %v2097
    %v2983 = vpack.c.b16 %v2128, %v2113
    %v2984 = vpack.c.b16 %v2129, %v2114
    %v2985 = vpack.c.b16 %v2130, %v2115
    %v2986 = vpack.c.b16 %v2131, %v2116
    %v2987 = vpack.c.b16 %v2132, %v2117
    %v2988 = vpack.c.b16 %v2133, %v2118
    %v2989 = vpack.c.b16 %v2134, %v2119
    %v2990 = vpack.c.b16 %v2135, %v2120
    %v2991 = vpack.c.b16 %v2136, %v2121
    %v2992 = vpack.c.b16 %v2137, %v2122
    %v2993 = vpack.c.b16 %v2138, %v2123
    %v2994 = vpack.c.b16 %v2139, %v2124
    %v2995 = vpack.c.b16 %v2140, %v2125
    %v2996 = vpack.c.b16 %v2141, %v2126
    %v2997 = vpack.c.b16 %v2142, %v2127
    %v2998 = vpack.c.b16 %v2158, %v2143
    %v2999 = vpack.c.b16 %v2159, %v2144
    %v3000 = vpack.c.b16 %v2160, %v2145
    %v3001 = vpack.c.b16 %v2161, %v2146
    %v3002 = vpack.c.b16 %v2162, %v2147
    %v3003 = vpack.c.b16 %v2163, %v2148
    %v3004 = vpack.c.b16 %v2164, %v2149
    %v3005 = vpack.c.b16 %v2165, %v2150
    %v3006 = vpack.c.b16 %v2166, %v2151
    %v3007 = vpack.c.b16 %v2167, %v2152
    %v3008 = vpack.c.b16 %v2168, %v2153
    %v3009 = vpack.c.b16 %v2169, %v2154
    %v3010 = vpack.c.b16 %v2170, %v2155
    %v3011 = vpack.c.b16 %v2171, %v2156
    %v3012 = vpack.c.b16 %v2172, %v2157
    %v3013 = vpack.c.b16 %v2188, %v2173
    %v3014 = vpack.c.b16 %v2189, %v2174
    %v3015 = vpack.c.b16 %v2190, %v2175
    %v3016 = vpack.c.b16 %v2191, %v2176
    %v3017 = vpack.c.b16 %v2192, %v2177
    %v3018 = vpack.c.b16 %v2193, %v2178
    %v3019 = vpack.c.b16 %v2194, %v2179
    %v3020 = vpack.c.b16 %v2195, %v2180
    %v3021 = vpack.c.b16 %v2196, %v2181
    %v3022 = vpack.c.b16 %v2197, %v2182
    %v3023 = vpack.c.b16 %v2198, %v2183
    %v3024 = vpack.c.b16 %v2199, %v2184
    %v3025 = vpack.c.b16 %v2200, %v2185
    %v3026 = vpack.c.b16 %v2201, %v2186
    %v3027 = vpack.c.b16 %v2202, %v2187
    %v3028 = vpack.c.b16 %v2218, %v2203
    %v3029 = vpack.c.b16 %v2219, %v2204
    %v3030 = vpack.c.b16 %v2220, %v2205
    %v3031 = vpack.c.b16 %v2221, %v2206
    %v3032 = vpack.c.b16 %v2222, %v2207
    %v3033 = vpack.c.b16 %v2223, %v2208
    %v3034 = vpack.c.b16 %v2224, %v2209
    %v3035 = vpack.c.b16 %v2225, %v2210
    %v3036 = vpack.c.b16 %v2226, %v2211
    %v3037 = vpack.c.b16 %v2227, %v2212
    %v3038 = vpack.c.b16 %v2228, %v2213
    %v3039 = vpack.c.b16 %v2229, %v2214
    %v3040 = vpack.c.b16 %v2230, %v2215
    %v3041 = vpack.c.b16 %v2231, %v2216
    %v3042 = vpack.c.b16 %v2232, %v2217
    %v3043 = vpack.c.b16 %v2248, %v2233
    %v3044 = vpack.c.b16 %v2249, %v2234
    %v3045 = vpack.c.b16 %v2250, %v2235
    %v3046 = vpack.c.b16 %v2251, %v2236
    %v3047 = vpack.c.b16 %v2252, %v2237
    %v3048 = vpack.c.b16 %v2253, %v2238
    %v3049 = vpack.c.b16 %v2254, %v2239
    %v3050 = vpack.c.b16 %v2255, %v2240
    %v3051 = vpack.c.b16 %v2256, %v2241
    %v3052 = vpack.c.b16 %v2257, %v2242
    %v3053 = vpack.c.b16 %v2258, %v2243
    %v3054 = vpack.c.b16 %v2259, %v2244
    %v3055 = vpack.c.b16 %v2260, %v2245
    %v3056 = vpack.c.b16 %v2261, %v2246
    %v3057 = vpack.c.b16 %v2262, %v2247
    %v3058 = vpack.c.b16 %v2278, %v2263
    %v3059 = vpack.c.b16 %v2279, %v2264
    %v3060 = vpack.c.b16 %v2280, %v2265
    %v3061 = vpack.c.b16 %v2281, %v2266
    %v3062 = vpack.c.b16 %v2282, %v2267
    %v3063 = vpack.c.b16 %v2283, %v2268
    %v3064 = vpack.c.b16 %v2284, %v2269
    %v3065 = vpack.c.b16 %v2285, %v2270
    %v3066 = vpack.c.b16 %v2286, %v2271
    %v3067 = vpack.c.b16 %v2287, %v2272
    %v3068 = vpack.c.b16 %v2288, %v2273
    %v3069 = vpack.c.b16 %v2289, %v2274
    %v3070 = vpack.c.b16 %v2290, %v2275
    %v3071 = vpack.c.b16 %v2291, %v2276
    %v3072 = vpack.c.b16 %v2292, %v2277
    %v3073 = vpack.c.b16 %v2308, %v2293
    %v3074 = vpack.c.b16 %v2309, %v2294
    %v3075 = vpack.c.b16 %v2310, %v2295
    %v3076 = vpack.c.b16 %v2311, %v2296
    %v3077 = vpack.c.b16 %v2312, %v2297
    %v3078 = vpack.c.b16 %v2313, %v2298
    %v3079 = vpack.c.b16 %v2314, %v2299
    %v3080 = vpack.c.b16 %v2315, %v2300
    %v3081 = vpack.c.b16 %v2316, %v2301
    %v3082 = vpack.c.b16 %v2317, %v2302
    %v3083 = vpack.c.b16 %v2318, %v2303
    %v3084 = vpack.c.b16 %v2319, %v2304
    %v3085 = vpack.c.b16 %v2320, %v2305
    %v3086 = vpack.c.b16 %v2321, %v2306
    %v3087 = vpack.c.b16 %v2322, %v2307
    %v3088 = vpack.c.b16 %v2338, %v2323
    %v3089 = vpack.c.b16 %v2339, %v2324
    %v3090 = vpack.c.b16 %v2340, %v2325
    %v3091 = vpack.c.b16 %v2341, %v2326
    %v3092 = vpack.c.b16 %v2342, %v2327
    %v3093 = vpack.c.b16 %v2343, %v2328
    %v3094 = vpack.c.b16 %v2344, %v2329
    %v3095 = vpack.c.b16 %v2345, %v2330
    %v3096 = vpack.c.b16 %v2346, %v2331
    %v3097 = vpack.c.b16 %v2347, %v2332
    %v3098 = vpack.c.b16 %v2348, %v2333
    %v3099 = vpack.c.b16 %v2349, %v2334
    %v3100 = vpack.c.b16 %v2350, %v2335
    %v3101 = vpack.c.b16 %v2351, %v2336
    %v3102 = vpack.c.b16 %v2352, %v2337
    %v3103 = vpack.c.b16 %v2368, %v2353
    %v3104 = vpack.c.b16 %v2369, %v2354
    %v3105 = vpack.c.b16 %v2370, %v2355
    %v3106 = vpack.c.b16 %v2371, %v2356
    %v3107 = vpack.c.b16 %v2372, %v2357
    %v3108 = vpack.c.b16 %v2373, %v2358
    %v3109 = vpack.c.b16 %v2374, %v2359
    %v3110 = vpack.c.b16 %v2375, %v2360
    %v3111 = vpack.c.b16 %v2376, %v2361
    %v3112 = vpack.c.b16 %v2377, %v2362
    %v3113 = vpack.c.b16 %v2378, %v2363
    %v3114 = vpack.c.b16 %v2379, %v2364
    %v3115 = vpack.c.b16 %v2380, %v2365
    %v3116 = vpack.c.b16 %v2381, %v2366
    %v3117 = vpack.c.b16 %v2382, %v2367
    %v3118 = vpack.c.b16 %v2398, %v2383
    %v3119 = vpack.c.b16 %v2399, %v2384
    %v3120 = vpack.c.b16 %v2400, %v2385
    %v3121 = vpack.c.b16 %v2401, %v2386
    %v3122 = vpack.c.b16 %v2402, %v2387
    %v3123 = vpack.c.b16 %v2403, %v2388
    %v3124 = vpack.c.b16 %v2404, %v2389
    %v3125 = vpack.c.b16 %v2405, %v2390
    %v3126 = vpack.c.b16 %v2406, %v2391
    %v3127 = vpack.c.b16 %v2407, %v2392
    %v3128 = vpack.c.b16 %v2408, %v2393
    %v3129 = vpack.c.b16 %v2409, %v2394
    %v3130 = vpack.c.b16 %v2410, %v2395
    %v3131 = vpack.c.b16 %v2411, %v2396
    %v3132 = vpack.c.b16 %v2412, %v2397
    %v3133 = vpack.c.b16 %v2428, %v2413
    %v3134 = vpack.c.b16 %v2429, %v2414
    %v3135 = vpack.c.b16 %v2430, %v2415
    %v3136 = vpack.c.b16 %v2431, %v2416
    %v3137 = vpack.c.b16 %v2432, %v2417
    %v3138 = vpack.c.b16 %v2433, %v2418
    %v3139 = vpack.c.b16 %v2434, %v2419
    %v3140 = vpack.c.b16 %v2435, %v2420
    %v3141 = vpack.c.b16 %v2436, %v2421
    %v3142 = vpack.c.b16 %v2437, %v2422
    %v3143 = vpack.c.b16 %v2438, %v2423
    %v3144 = vpack.c.b16 %v2439, %v2424
    %v3145 = vpack.c.b16 %v2440, %v2425
    %v3146 = vpack.c.b16 %v2441, %v2426
    %v3147 = vpack.c.b16 %v2442, %v2427
    %v3148 = vpack.c.b16 %v2458, %v2443
    %v3149 = vpack.c.b16 %v2459, %v2444
    %v3150 = vpack.c.b16 %v2460, %v2445
    %v3151 = vpack.c.b16 %v2461, %v2446
    %v3152 = vpack.c.b16 %v2462, %v2447
    %v3153 = vpack.c.b16 %v2463, %v2448
    %v3154 = vpack.c.b16 %v2464, %v2449
    %v3155 = vpack.c.b16 %v2465, %v2450
    %v3156 = vpack.c.b16 %v2466, %v2451
    %v3157 = vpack.c.b16 %v2467, %v2452
    %v3158 = vpack.c.b16 %v2468, %v2453
    %v3159 = vpack.c.b16 %v2469, %v2454
    %v3160 = vpack.c.b16 %v2470, %v2455
    %v3161 = vpack.c.b16 %v2471, %v2456
    %v3162 = vpack.c.b16 %v2472, %v2457
    %v3163 = vpack.c.b16 %v2488, %v2473
    %v3164 = vpack.c.b16 %v2489, %v2474
    %v3165 = vpack.c.b16 %v2490, %v2475
    %v3166 = vpack.c.b16 %v2491, %v2476
    %v3167 = vpack.c.b16 %v2492, %v2477
    %v3168 = vpack.c.b16 %v2493, %v2478
    %v3169 = vpack.c.b16 %v2494, %v2479
    %v3170 = vpack.c.b16 %v2495, %v2480
    %v3171 = vpack.c.b16 %v2496, %v2481
    %v3172 = vpack.c.b16 %v2497, %v2482
    %v3173 = vpack.c.b16 %v2498, %v2483
    %v3174 = vpack.c.b16 %v2499, %v2484
    %v3175 = vpack.c.b16 %v2500, %v2485
    %v3176 = vpack.c.b16 %v2501, %v2486
    %v3177 = vpack.c.b16 %v2502, %v2487
    %v3178 = vpack.c.b16 %v2518, %v2503
    %v3179 = vpack.c.b16 %v2519, %v2504
    %v3180 = vpack.c.b16 %v2520, %v2505
    %v3181 = vpack.c.b16 %v2521, %v2506
    %v3182 = vpack.c.b16 %v2522, %v2507
    %v3183 = vpack.c.b16 %v2523, %v2508
    %v3184 = vpack.c.b16 %v2524, %v2509
    %v3185 = vpack.c.b16 %v2525, %v2510
    %v3186 = vpack.c.b16 %v2526, %v2511
    %v3187 = vpack.c.b16 %v2527, %v2512
    %v3188 = vpack.c.b16 %v2528, %v2513
    %v3189 = vpack.c.b16 %v2529, %v2514
    %v3190 = vpack.c.b16 %v2530, %v2515
    %v3191 = vpack.c.b16 %v2531, %v2516
    %v3192 = vpack.c.b16 %v2532, %v2517
    %v3193 = vpack.c.b16 %v2548, %v2533
    %v3194 = vpack.c.b16 %v2549, %v2534
    %v3195 = vpack.c.b16 %v2550, %v2535
    %v3196 = vpack.c.b16 %v2551, %v2536
    %v3197 = vpack.c.b16 %v2552, %v2537
    %v3198 = vpack.c.b16 %v2553, %v2538
    %v3199 = vpack.c.b16 %v2554, %v2539
    %v3200 = vpack.c.b16 %v2555, %v2540
    %v3201 = vpack.c.b16 %v2556, %v2541
    %v3202 = vpack.c.b16 %v2557, %v2542
    %v3203 = vpack.c.b16 %v2558, %v2543
    %v3204 = vpack.c.b16 %v2559, %v2544
    %v3205 = vpack.c.b16 %v2560, %v2545
    %v3206 = vpack.c.b16 %v2561, %v2546
    %v3207 = vpack.c.b16 %v2562, %v2547
    %v3208 = vpack.c.b16 %v2578, %v2563
    %v3209 = vpack.c.b16 %v2579, %v2564
    %v3210 = vpack.c.b16 %v2580, %v2565
    %v3211 = vpack.c.b16 %v2581, %v2566
    %v3212 = vpack.c.b16 %v2582, %v2567
    %v3213 = vpack.c.b16 %v2583, %v2568
    %v3214 = vpack.c.b16 %v2584, %v2569
    %v3215 = vpack.c.b16 %v2585, %v2570
    %v3216 = vpack.c.b16 %v2586, %v2571
    %v3217 = vpack.c.b16 %v2587, %v2572
    %v3218 = vpack.c.b16 %v2588, %v2573
    %v3219 = vpack.c.b16 %v2589, %v2574
    %v3220 = vpack.c.b16 %v2590, %v2575
    %v3221 = vpack.c.b16 %v2591, %v2576
    %v3222 = vpack.c.b16 %v2592, %v2577
    %v3223 = vpack.c.b16 %v2608, %v2593
    %v3224 = vpack.c.b16 %v2609, %v2594
    %v3225 = vpack.c.b16 %v2610, %v2595
    %v3226 = vpack.c.b16 %v2611, %v2596
    %v3227 = vpack.c.b16 %v2612, %v2597
    %v3228 = vpack.c.b16 %v2613, %v2598
    %v3229 = vpack.c.b16 %v2614, %v2599
    %v3230 = vpack.c.b16 %v2615, %v2600
    %v3231 = vpack.c.b16 %v2616, %v2601
    %v3232 = vpack.c.b16 %v2617, %v2602
    %v3233 = vpack.c.b16 %v2618, %v2603
    %v3234 = vpack.c.b16 %v2619, %v2604
    %v3235 = vpack.c.b16 %v2620, %v2605
    %v3236 = vpack.c.b16 %v2621, %v2606
    %v3237 = vpack.c.b16 %v2622, %v2607
    %v3238 = vpack.c.b16 %v2638, %v2623
    %v3239 = vpack.c.b16 %v2639, %v2624
    %v3240 = vpack.c.b16 %v2640, %v2625
    %v3241 = vpack.c.b16 %v2641, %v2626
    %v3242 = vpack.c.b16 %v2642, %v2627
    %v3243 = vpack.c.b16 %v2643, %v2628
    %v3244 = vpack.c.b16 %v2644, %v2629
    %v3245 = vpack.c.b16 %v2645, %v2630
    %v3246 = vpack.c.b16 %v2646, %v2631
    %v3247 = vpack.c.b16 %v2647, %v2632
    %v3248 = vpack.c.b16 %v2648, %v2633
    %v3249 = vpack.c.b16 %v2649, %v2634
    %v3250 = vpack.c.b16 %v2650, %v2635
    %v3251 = vpack.c.b16 %v2651, %v2636
    %v3252 = vpack.c.b16 %v2652, %v2637
    %3853 = vmatprep.subr.bf16.mxu0 %v2759
    %3854 = vmatpush1.bf16.msra.mxu0 %v2758
    %3855 = vmatprep.subr.bf16.mxu0 %v2744
    %3856 = vmatpush1.bf16.msra.mxu0 %v2743
    %3857 = vmatprep.subr.bf16.mxu0 %v2729
    %3858 = vmatpush1.bf16.msra.mxu0 %v2728
    %3859 = vmatprep.subr.bf16.mxu0 %v2714
    %3860 = vmatpush1.bf16.msra.mxu0 %v2713
    %3861 = vmatprep.subr.bf16.mxu0 %v2699
    %3862 = vmatpush1.bf16.msra.mxu0 %v2698
    %3863 = vmatprep.subr.bf16.mxu0 %v2684
    %3864 = vmatpush1.bf16.msra.mxu0 %v2683
    %3865 = vmatprep.subr.bf16.mxu0 %v2669
    %3866 = vmatpush1.bf16.msra.mxu0 %v2668
    %3867 = vmatprep.subr.bf16.mxu0 %v2654
    %3868 = vmatpush1.bf16.msra.mxu0 %v2653
    %3869 = vmatprep.subr.bf16.mxu0 %v2879
    %3870 = vmatpush2.bf16.msra.mxu0 %v2878
    %3871 = vmatprep.subr.bf16.mxu0 %v2864
    %3872 = vmatpush2.bf16.msra.mxu0 %v2863
    %3873 = vmatprep.subr.bf16.mxu0 %v2849
    %3874 = vmatpush2.bf16.msra.mxu0 %v2848
    %3875 = vmatprep.subr.bf16.mxu0 %v2834
    %3876 = vmatpush2.bf16.msra.mxu0 %v2833
    %3877 = vmatprep.subr.bf16.mxu0 %v2819
    %3878 = vmatpush2.bf16.msra.mxu0 %v2818
    %3879 = vmatprep.subr.bf16.mxu0 %v2804
    %3880 = vmatpush2.bf16.msra.mxu0 %v2803
    %3881 = vmatprep.subr.bf16.mxu0 %v2789
    %3882 = vmatpush2.bf16.msra.mxu0 %v2788
    %3883 = vmatprep.subr.bf16.mxu0 %v2774
    %3884 = vmatpush2.bf16.msra.mxu0 %v2773
    %3885 = vmatprep.mubr.bf16.mxu0 %v90
    %3886 = vmatmul.mubr.bf16.gmra.mxu0 %v89
    %v3887 = vpop.f32.mrf.mxu0
    %v3888 = vadd.f32 %v741, %v3887
    %v3889 = vpop.f32.mrf.mxu0
    %v3890 = vadd.f32 %v745, %v3889
    %v3891 = vpop.f32.mrf.mxu0
    %v3892 = vpop.f32.mrf.mxu0
    %3893 = vdwg.mxu0
    %3894 = vmatprep.subr.bf16.mxu0 %v2999
    %3895 = vmatpush1.bf16.msra.mxu0 %v2998
    %3896 = vmatprep.subr.bf16.mxu0 %v2984
    %3897 = vmatpush1.bf16.msra.mxu0 %v2983
    %3898 = vmatprep.subr.bf16.mxu0 %v2969
    %3899 = vmatpush1.bf16.msra.mxu0 %v2968
    %3900 = vmatprep.subr.bf16.mxu0 %v2954
    %3901 = vmatpush1.bf16.msra.mxu0 %v2953
    %3902 = vmatprep.subr.bf16.mxu0 %v2939
    %3903 = vmatpush1.bf16.msra.mxu0 %v2938
    %3904 = vmatprep.subr.bf16.mxu0 %v2924
    %3905 = vmatpush1.bf16.msra.mxu0 %v2923
    %3906 = vmatprep.subr.bf16.mxu0 %v2909
    %3907 = vmatpush1.bf16.msra.mxu0 %v2908
    %3908 = vmatprep.subr.bf16.mxu0 %v2894
    %3909 = vmatpush1.bf16.msra.mxu0 %v2893
    %3910 = vmatprep.subr.bf16.mxu0 %v3119
    %3911 = vmatpush2.bf16.msra.mxu0 %v3118
    %3912 = vmatprep.subr.bf16.mxu0 %v3104
    %3913 = vmatpush2.bf16.msra.mxu0 %v3103
    %3914 = vmatprep.subr.bf16.mxu0 %v3089
    %3915 = vmatpush2.bf16.msra.mxu0 %v3088
    %3916 = vmatprep.subr.bf16.mxu0 %v3074
    %3917 = vmatpush2.bf16.msra.mxu0 %v3073
    %3918 = vmatprep.subr.bf16.mxu0 %v3059
    %3919 = vmatpush2.bf16.msra.mxu0 %v3058
    %3920 = vmatprep.subr.bf16.mxu0 %v3044
    %3921 = vmatpush2.bf16.msra.mxu0 %v3043
    %3922 = vmatprep.subr.bf16.mxu0 %v3029
    %3923 = vmatpush2.bf16.msra.mxu0 %v3028
    %3924 = vmatprep.subr.bf16.mxu0 %v3014
    %3925 = vmatpush2.bf16.msra.mxu0 %v3013
    %3926 = vmatprep.mubr.bf16.mxu0 %v92
    %3927 = vmatmul.mubr.bf16.gmra.mxu0 %v91
    %v3928 = vpop.f32.mrf.mxu0
    %v3929 = vadd.f32 %v3888, %v3928
    %v3930 = vpop.f32.mrf.mxu0
    %v3931 = vadd.f32 %v3890, %v3930
    %v3932 = vpop.f32.mrf.mxu0
    %v3933 = vpop.f32.mrf.mxu0
    %3934 = vdwg.mxu0
    %3935 = vmatprep.subr.bf16.mxu0 %v3239
    %3936 = vmatpush1.bf16.msra.mxu0 %v3238
    %3937 = vmatprep.subr.bf16.mxu0 %v3224
    %3938 = vmatpush1.bf16.msra.mxu0 %v3223
    %3939 = vmatprep.subr.bf16.mxu0 %v3209
    %3940 = vmatpush1.bf16.msra.mxu0 %v3208
    %3941 = vmatprep.subr.bf16.mxu0 %v3194
    %3942 = vmatpush1.bf16.msra.mxu0 %v3193
    %3943 = vmatprep.subr.bf16.mxu0 %v3179
    %3944 = vmatpush1.bf16.msra.mxu0 %v3178
    %3945 = vmatprep.subr.bf16.mxu0 %v3164
    %3946 = vmatpush1.bf16.msra.mxu0 %v3163
    %3947 = vmatprep.subr.bf16.mxu0 %v3149
    %3948 = vmatpush1.bf16.msra.mxu0 %v3148
    %3949 = vmatprep.subr.bf16.mxu0 %v3134
    %3950 = vmatpush1.bf16.msra.mxu0 %v3133
    %3951 = vmatprep.subr.bf16.mxu0 0
    %3952 = vmatpush2.bf16.msra.mxu0 0
    %3953 = vmatprep.subr.bf16.mxu0 0
    %3954 = vmatpush2.bf16.msra.mxu0 0
    %3955 = vmatprep.subr.bf16.mxu0 0
    %3956 = vmatpush2.bf16.msra.mxu0 0
    %3957 = vmatprep.subr.bf16.mxu0 0
    %3958 = vmatpush2.bf16.msra.mxu0 0
    %3959 = vmatprep.subr.bf16.mxu0 0
    %3960 = vmatpush2.bf16.msra.mxu0 0
    %3961 = vmatprep.subr.bf16.mxu0 0
    %3962 = vmatpush2.bf16.msra.mxu0 0
    %3963 = vmatprep.subr.bf16.mxu0 0
    %3964 = vmatpush2.bf16.msra.mxu0 0
    %3965 = vmatprep.subr.bf16.mxu0 0
    %3966 = vmatpush2.bf16.msra.mxu0 0
    %3967 = vmatprep.mubr.bf16.mxu0 0
    %3968 = vmatmul.mubr.bf16.gmra.mxu0 %v93
    %v3969 = vpop.f32.mrf.mxu0
    %v3970 = vadd.f32 %v3929, %v3969
    %v3971 = vpop.f32.mrf.mxu0
    %v3972 = vadd.f32 %v3931, %v3971
    %v3973 = vpop.f32.mrf.mxu0
    %v3974 = vpop.f32.mrf.mxu0
    %3975 = vdwg.mxu0
    %3976 = vmatprep.subr.bf16.mxu0 %v2761
    %3977 = vmatpush1.bf16.msra.mxu0 %v2760
    %3978 = vmatprep.subr.bf16.mxu0 %v2746
    %3979 = vmatpush1.bf16.msra.mxu0 %v2745
    %3980 = vmatprep.subr.bf16.mxu0 %v2731
    %3981 = vmatpush1.bf16.msra.mxu0 %v2730
    %3982 = vmatprep.subr.bf16.mxu0 %v2716
    %3983 = vmatpush1.bf16.msra.mxu0 %v2715
    %3984 = vmatprep.subr.bf16.mxu0 %v2701
    %3985 = vmatpush1.bf16.msra.mxu0 %v2700
    %3986 = vmatprep.subr.bf16.mxu0 %v2686
    %3987 = vmatpush1.bf16.msra.mxu0 %v2685
    %3988 = vmatprep.subr.bf16.mxu0 %v2671
    %3989 = vmatpush1.bf16.msra.mxu0 %v2670
    %3990 = vmatprep.subr.bf16.mxu0 %v2656
    %3991 = vmatpush1.bf16.msra.mxu0 %v2655
    %3992 = vmatprep.subr.bf16.mxu0 %v2881
    %3993 = vmatpush2.bf16.msra.mxu0 %v2880
    %3994 = vmatprep.subr.bf16.mxu0 %v2866
    %3995 = vmatpush2.bf16.msra.mxu0 %v2865
    %3996 = vmatprep.subr.bf16.mxu0 %v2851
    %3997 = vmatpush2.bf16.msra.mxu0 %v2850
    %3998 = vmatprep.subr.bf16.mxu0 %v2836
    %3999 = vmatpush2.bf16.msra.mxu0 %v2835
    %4000 = vmatprep.subr.bf16.mxu0 %v2821
    %4001 = vmatpush2.bf16.msra.mxu0 %v2820
    %4002 = vmatprep.subr.bf16.mxu0 %v2806
    %4003 = vmatpush2.bf16.msra.mxu0 %v2805
    %4004 = vmatprep.subr.bf16.mxu0 %v2791
    %4005 = vmatpush2.bf16.msra.mxu0 %v2790
    %4006 = vmatprep.subr.bf16.mxu0 %v2776
    %4007 = vmatpush2.bf16.msra.mxu0 %v2775
    %4008 = vmatprep.mubr.bf16.mxu0 %v90
    %4009 = vmatmul.mubr.bf16.gmra.mxu0 %v89
    %v4010 = vpop.f32.mrf.mxu0
    %v4011 = vadd.f32 %v749, %v4010
    %v4012 = vpop.f32.mrf.mxu0
    %v4013 = vadd.f32 %v753, %v4012
    %v4014 = vpop.f32.mrf.mxu0
    %v4015 = vpop.f32.mrf.mxu0
    %4016 = vdwg.mxu0
    %4017 = vmatprep.subr.bf16.mxu0 %v3001
    %4018 = vmatpush1.bf16.msra.mxu0 %v3000
    %4019 = vmatprep.subr.bf16.mxu0 %v2986
    %4020 = vmatpush1.bf16.msra.mxu0 %v2985
    %4021 = vmatprep.subr.bf16.mxu0 %v2971
    %4022 = vmatpush1.bf16.msra.mxu0 %v2970
    %4023 = vmatprep.subr.bf16.mxu0 %v2956
    %4024 = vmatpush1.bf16.msra.mxu0 %v2955
    %4025 = vmatprep.subr.bf16.mxu0 %v2941
    %4026 = vmatpush1.bf16.msra.mxu0 %v2940
    %4027 = vmatprep.subr.bf16.mxu0 %v2926
    %4028 = vmatpush1.bf16.msra.mxu0 %v2925
    %4029 = vmatprep.subr.bf16.mxu0 %v2911
    %4030 = vmatpush1.bf16.msra.mxu0 %v2910
    %4031 = vmatprep.subr.bf16.mxu0 %v2896
    %4032 = vmatpush1.bf16.msra.mxu0 %v2895
    %4033 = vmatprep.subr.bf16.mxu0 %v3121
    %4034 = vmatpush2.bf16.msra.mxu0 %v3120
    %4035 = vmatprep.subr.bf16.mxu0 %v3106
    %4036 = vmatpush2.bf16.msra.mxu0 %v3105
    %4037 = vmatprep.subr.bf16.mxu0 %v3091
    %4038 = vmatpush2.bf16.msra.mxu0 %v3090
    %4039 = vmatprep.subr.bf16.mxu0 %v3076
    %4040 = vmatpush2.bf16.msra.mxu0 %v3075
    %4041 = vmatprep.subr.bf16.mxu0 %v3061
    %4042 = vmatpush2.bf16.msra.mxu0 %v3060
    %4043 = vmatprep.subr.bf16.mxu0 %v3046
    %4044 = vmatpush2.bf16.msra.mxu0 %v3045
    %4045 = vmatprep.subr.bf16.mxu0 %v3031
    %4046 = vmatpush2.bf16.msra.mxu0 %v3030
    %4047 = vmatprep.subr.bf16.mxu0 %v3016
    %4048 = vmatpush2.bf16.msra.mxu0 %v3015
    %4049 = vmatprep.mubr.bf16.mxu0 %v92
    %4050 = vmatmul.mubr.bf16.gmra.mxu0 %v91
    %v4051 = vpop.f32.mrf.mxu0
    %v4052 = vadd.f32 %v4011, %v4051
    %v4053 = vpop.f32.mrf.mxu0
    %v4054 = vadd.f32 %v4013, %v4053
    %v4055 = vpop.f32.mrf.mxu0
    %v4056 = vpop.f32.mrf.mxu0
    %4057 = vdwg.mxu0
    %4058 = vmatprep.subr.bf16.mxu0 %v3241
    %4059 = vmatpush1.bf16.msra.mxu0 %v3240
    %4060 = vmatprep.subr.bf16.mxu0 %v3226
    %4061 = vmatpush1.bf16.msra.mxu0 %v3225
    %4062 = vmatprep.subr.bf16.mxu0 %v3211
    %4063 = vmatpush1.bf16.msra.mxu0 %v3210
    %4064 = vmatprep.subr.bf16.mxu0 %v3196
    %4065 = vmatpush1.bf16.msra.mxu0 %v3195
    %4066 = vmatprep.subr.bf16.mxu0 %v3181
    %4067 = vmatpush1.bf16.msra.mxu0 %v3180
    %4068 = vmatprep.subr.bf16.mxu0 %v3166
    %4069 = vmatpush1.bf16.msra.mxu0 %v3165
    %4070 = vmatprep.subr.bf16.mxu0 %v3151
    %4071 = vmatpush1.bf16.msra.mxu0 %v3150
    %4072 = vmatprep.subr.bf16.mxu0 %v3136
    %4073 = vmatpush1.bf16.msra.mxu0 %v3135
    %4074 = vmatprep.subr.bf16.mxu0 0
    %4075 = vmatpush2.bf16.msra.mxu0 0
    %4076 = vmatprep.subr.bf16.mxu0 0
    %4077 = vmatpush2.bf16.msra.mxu0 0
    %4078 = vmatprep.subr.bf16.mxu0 0
    %4079 = vmatpush2.bf16.msra.mxu0 0
    %4080 = vmatprep.subr.bf16.mxu0 0
    %4081 = vmatpush2.bf16.msra.mxu0 0
    %4082 = vmatprep.subr.bf16.mxu0 0
    %4083 = vmatpush2.bf16.msra.mxu0 0
    %4084 = vmatprep.subr.bf16.mxu0 0
    %4085 = vmatpush2.bf16.msra.mxu0 0
    %4086 = vmatprep.subr.bf16.mxu0 0
    %4087 = vmatpush2.bf16.msra.mxu0 0
    %4088 = vmatprep.subr.bf16.mxu0 0
    %4089 = vmatpush2.bf16.msra.mxu0 0
    %4090 = vmatprep.mubr.bf16.mxu0 0
    %4091 = vmatmul.mubr.bf16.gmra.mxu0 %v93
    %v4092 = vpop.f32.mrf.mxu0
    %v4093 = vadd.f32 %v4052, %v4092
    %v4094 = vpop.f32.mrf.mxu0
    %v4095 = vadd.f32 %v4054, %v4094
    %v4096 = vpop.f32.mrf.mxu0
    %v4097 = vpop.f32.mrf.mxu0
    %4098 = vdwg.mxu0
    %4099 = vmatprep.subr.bf16.mxu0 %v2763
    %4100 = vmatpush1.bf16.msra.mxu0 %v2762
    %4101 = vmatprep.subr.bf16.mxu0 %v2748
    %4102 = vmatpush1.bf16.msra.mxu0 %v2747
    %4103 = vmatprep.subr.bf16.mxu0 %v2733
    %4104 = vmatpush1.bf16.msra.mxu0 %v2732
    %4105 = vmatprep.subr.bf16.mxu0 %v2718
    %4106 = vmatpush1.bf16.msra.mxu0 %v2717
    %4107 = vmatprep.subr.bf16.mxu0 %v2703
    %4108 = vmatpush1.bf16.msra.mxu0 %v2702
    %4109 = vmatprep.subr.bf16.mxu0 %v2688
    %4110 = vmatpush1.bf16.msra.mxu0 %v2687
    %4111 = vmatprep.subr.bf16.mxu0 %v2673
    %4112 = vmatpush1.bf16.msra.mxu0 %v2672
    %4113 = vmatprep.subr.bf16.mxu0 %v2658
    %4114 = vmatpush1.bf16.msra.mxu0 %v2657
    %4115 = vmatprep.subr.bf16.mxu0 %v2883
    %4116 = vmatpush2.bf16.msra.mxu0 %v2882
    %4117 = vmatprep.subr.bf16.mxu0 %v2868
    %4118 = vmatpush2.bf16.msra.mxu0 %v2867
    %4119 = vmatprep.subr.bf16.mxu0 %v2853
    %4120 = vmatpush2.bf16.msra.mxu0 %v2852
    %4121 = vmatprep.subr.bf16.mxu0 %v2838
    %4122 = vmatpush2.bf16.msra.mxu0 %v2837
    %4123 = vmatprep.subr.bf16.mxu0 %v2823
    %4124 = vmatpush2.bf16.msra.mxu0 %v2822
    %4125 = vmatprep.subr.bf16.mxu0 %v2808
    %4126 = vmatpush2.bf16.msra.mxu0 %v2807
    %4127 = vmatprep.subr.bf16.mxu0 %v2793
    %4128 = vmatpush2.bf16.msra.mxu0 %v2792
    %4129 = vmatprep.subr.bf16.mxu0 %v2778
    %4130 = vmatpush2.bf16.msra.mxu0 %v2777
    %4131 = vmatprep.mubr.bf16.mxu0 %v90
    %4132 = vmatmul.mubr.bf16.gmra.mxu0 %v89
    %v4133 = vpop.f32.mrf.mxu0
    %v4134 = vadd.f32 %v757, %v4133
    %v4135 = vpop.f32.mrf.mxu0
    %v4136 = vadd.f32 %v761, %v4135
    %v4137 = vpop.f32.mrf.mxu0
    %v4138 = vpop.f32.mrf.mxu0
    %4139 = vdwg.mxu0
    %4140 = vmatprep.subr.bf16.mxu0 %v3003
    %4141 = vmatpush1.bf16.msra.mxu0 %v3002
    %4142 = vmatprep.subr.bf16.mxu0 %v2988
    %4143 = vmatpush1.bf16.msra.mxu0 %v2987
    %4144 = vmatprep.subr.bf16.mxu0 %v2973
    %4145 = vmatpush1.bf16.msra.mxu0 %v2972
    %4146 = vmatprep.subr.bf16.mxu0 %v2958
    %4147 = vmatpush1.bf16.msra.mxu0 %v2957
    %4148 = vmatprep.subr.bf16.mxu0 %v2943
    %4149 = vmatpush1.bf16.msra.mxu0 %v2942
    %4150 = vmatprep.subr.bf16.mxu0 %v2928
    %4151 = vmatpush1.bf16.msra.mxu0 %v2927
    %4152 = vmatprep.subr.bf16.mxu0 %v2913
    %4153 = vmatpush1.bf16.msra.mxu0 %v2912
    %4154 = vmatprep.subr.bf16.mxu0 %v2898
    %4155 = vmatpush1.bf16.msra.mxu0 %v2897
    %4156 = vmatprep.subr.bf16.mxu0 %v3123
    %4157 = vmatpush2.bf16.msra.mxu0 %v3122
    %4158 = vmatprep.subr.bf16.mxu0 %v3108
    %4159 = vmatpush2.bf16.msra.mxu0 %v3107
    %4160 = vmatprep.subr.bf16.mxu0 %v3093
    %4161 = vmatpush2.bf16.msra.mxu0 %v3092
    %4162 = vmatprep.subr.bf16.mxu0 %v3078
    %4163 = vmatpush2.bf16.msra.mxu0 %v3077
    %4164 = vmatprep.subr.bf16.mxu0 %v3063
    %4165 = vmatpush2.bf16.msra.mxu0 %v3062
    %4166 = vmatprep.subr.bf16.mxu0 %v3048
    %4167 = vmatpush2.bf16.msra.mxu0 %v3047
    %4168 = vmatprep.subr.bf16.mxu0 %v3033
    %4169 = vmatpush2.bf16.msra.mxu0 %v3032
    %4170 = vmatprep.subr.bf16.mxu0 %v3018
    %4171 = vmatpush2.bf16.msra.mxu0 %v3017
    %4172 = vmatprep.mubr.bf16.mxu0 %v92
    %4173 = vmatmul.mubr.bf16.gmra.mxu0 %v91
    %v4174 = vpop.f32.mrf.mxu0
    %v4175 = vadd.f32 %v4134, %v4174
    %v4176 = vpop.f32.mrf.mxu0
    %v4177 = vadd.f32 %v4136, %v4176
    %v4178 = vpop.f32.mrf.mxu0
    %v4179 = vpop.f32.mrf.mxu0
    %4180 = vdwg.mxu0
    %4181 = vmatprep.subr.bf16.mxu0 %v3243
    %4182 = vmatpush1.bf16.msra.mxu0 %v3242
    %4183 = vmatprep.subr.bf16.mxu0 %v3228
    %4184 = vmatpush1.bf16.msra.mxu0 %v3227
    %4185 = vmatprep.subr.bf16.mxu0 %v3213
    %4186 = vmatpush1.bf16.msra.mxu0 %v3212
    %4187 = vmatprep.subr.bf16.mxu0 %v3198
    %4188 = vmatpush1.bf16.msra.mxu0 %v3197
    %4189 = vmatprep.subr.bf16.mxu0 %v3183
    %4190 = vmatpush1.bf16.msra.mxu0 %v3182
    %4191 = vmatprep.subr.bf16.mxu0 %v3168
    %4192 = vmatpush1.bf16.msra.mxu0 %v3167
    %4193 = vmatprep.subr.bf16.mxu0 %v3153
    %4194 = vmatpush1.bf16.msra.mxu0 %v3152
    %4195 = vmatprep.subr.bf16.mxu0 %v3138
    %4196 = vmatpush1.bf16.msra.mxu0 %v3137
    %4197 = vmatprep.subr.bf16.mxu0 0
    %4198 = vmatpush2.bf16.msra.mxu0 0
    %4199 = vmatprep.subr.bf16.mxu0 0
    %4200 = vmatpush2.bf16.msra.mxu0 0
    %4201 = vmatprep.subr.bf16.mxu0 0
    %4202 = vmatpush2.bf16.msra.mxu0 0
    %4203 = vmatprep.subr.bf16.mxu0 0
    %4204 = vmatpush2.bf16.msra.mxu0 0
    %4205 = vmatprep.subr.bf16.mxu0 0
    %4206 = vmatpush2.bf16.msra.mxu0 0
    %4207 = vmatprep.subr.bf16.mxu0 0
    %4208 = vmatpush2.bf16.msra.mxu0 0
    %4209 = vmatprep.subr.bf16.mxu0 0
    %4210 = vmatpush2.bf16.msra.mxu0 0
    %4211 = vmatprep.subr.bf16.mxu0 0
    %4212 = vmatpush2.bf16.msra.mxu0 0
    %4213 = vmatprep.mubr.bf16.mxu0 0
    %4214 = vmatmul.mubr.bf16.gmra.mxu0 %v93
    %v4215 = vpop.f32.mrf.mxu0
    %v4216 = vadd.f32 %v4175, %v4215
    %v4217 = vpop.f32.mrf.mxu0
    %v4218 = vadd.f32 %v4177, %v4217
    %v4219 = vpop.f32.mrf.mxu0
    %v4220 = vpop.f32.mrf.mxu0
    %4221 = vdwg.mxu0
    %4222 = vmatprep.subr.bf16.mxu0 %v2765
    %4223 = vmatpush1.bf16.msra.mxu0 %v2764
    %4224 = vmatprep.subr.bf16.mxu0 %v2750
    %4225 = vmatpush1.bf16.msra.mxu0 %v2749
    %4226 = vmatprep.subr.bf16.mxu0 %v2735
    %4227 = vmatpush1.bf16.msra.mxu0 %v2734
    %4228 = vmatprep.subr.bf16.mxu0 %v2720
    %4229 = vmatpush1.bf16.msra.mxu0 %v2719
    %4230 = vmatprep.subr.bf16.mxu0 %v2705
    %4231 = vmatpush1.bf16.msra.mxu0 %v2704
    %4232 = vmatprep.subr.bf16.mxu0 %v2690
    %4233 = vmatpush1.bf16.msra.mxu0 %v2689
    %4234 = vmatprep.subr.bf16.mxu0 %v2675
    %4235 = vmatpush1.bf16.msra.mxu0 %v2674
    %4236 = vmatprep.subr.bf16.mxu0 %v2660
    %4237 = vmatpush1.bf16.msra.mxu0 %v2659
    %4238 = vmatprep.subr.bf16.mxu0 %v2885
    %4239 = vmatpush2.bf16.msra.mxu0 %v2884
    %4240 = vmatprep.subr.bf16.mxu0 %v2870
    %4241 = vmatpush2.bf16.msra.mxu0 %v2869
    %4242 = vmatprep.subr.bf16.mxu0 %v2855
    %4243 = vmatpush2.bf16.msra.mxu0 %v2854
    %4244 = vmatprep.subr.bf16.mxu0 %v2840
    %4245 = vmatpush2.bf16.msra.mxu0 %v2839
    %4246 = vmatprep.subr.bf16.mxu0 %v2825
    %4247 = vmatpush2.bf16.msra.mxu0 %v2824
    %4248 = vmatprep.subr.bf16.mxu0 %v2810
    %4249 = vmatpush2.bf16.msra.mxu0 %v2809
    %4250 = vmatprep.subr.bf16.mxu0 %v2795
    %4251 = vmatpush2.bf16.msra.mxu0 %v2794
    %4252 = vmatprep.subr.bf16.mxu0 %v2780
    %4253 = vmatpush2.bf16.msra.mxu0 %v2779
    %4254 = vmatprep.mubr.bf16.mxu0 %v90
    %4255 = vmatmul.mubr.bf16.gmra.mxu0 %v89
    %v4256 = vpop.f32.mrf.mxu0
    %v4257 = vadd.f32 %v765, %v4256
    %v4258 = vpop.f32.mrf.mxu0
    %v4259 = vadd.f32 %v769, %v4258
    %v4260 = vpop.f32.mrf.mxu0
    %v4261 = vpop.f32.mrf.mxu0
    %4262 = vdwg.mxu0
    %4263 = vmatprep.subr.bf16.mxu0 %v3005
    %4264 = vmatpush1.bf16.msra.mxu0 %v3004
    %4265 = vmatprep.subr.bf16.mxu0 %v2990
    %4266 = vmatpush1.bf16.msra.mxu0 %v2989
    %4267 = vmatprep.subr.bf16.mxu0 %v2975
    %4268 = vmatpush1.bf16.msra.mxu0 %v2974
    %4269 = vmatprep.subr.bf16.mxu0 %v2960
    %4270 = vmatpush1.bf16.msra.mxu0 %v2959
    %4271 = vmatprep.subr.bf16.mxu0 %v2945
    %4272 = vmatpush1.bf16.msra.mxu0 %v2944
    %4273 = vmatprep.subr.bf16.mxu0 %v2930
    %4274 = vmatpush1.bf16.msra.mxu0 %v2929
    %4275 = vmatprep.subr.bf16.mxu0 %v2915
    %4276 = vmatpush1.bf16.msra.mxu0 %v2914
    %4277 = vmatprep.subr.bf16.mxu0 %v2900
    %4278 = vmatpush1.bf16.msra.mxu0 %v2899
    %4279 = vmatprep.subr.bf16.mxu0 %v3125
    %4280 = vmatpush2.bf16.msra.mxu0 %v3124
    %4281 = vmatprep.subr.bf16.mxu0 %v3110
    %4282 = vmatpush2.bf16.msra.mxu0 %v3109
    %4283 = vmatprep.subr.bf16.mxu0 %v3095
    %4284 = vmatpush2.bf16.msra.mxu0 %v3094
    %4285 = vmatprep.subr.bf16.mxu0 %v3080
    %4286 = vmatpush2.bf16.msra.mxu0 %v3079
    %4287 = vmatprep.subr.bf16.mxu0 %v3065
    %4288 = vmatpush2.bf16.msra.mxu0 %v3064
    %4289 = vmatprep.subr.bf16.mxu0 %v3050
    %4290 = vmatpush2.bf16.msra.mxu0 %v3049
    %4291 = vmatprep.subr.bf16.mxu0 %v3035
    %4292 = vmatpush2.bf16.msra.mxu0 %v3034
    %4293 = vmatprep.subr.bf16.mxu0 %v3020
    %4294 = vmatpush2.bf16.msra.mxu0 %v3019
    %4295 = vmatprep.mubr.bf16.mxu0 %v92
    %4296 = vmatmul.mubr.bf16.gmra.mxu0 %v91
    %v4297 = vpop.f32.mrf.mxu0
    %v4298 = vadd.f32 %v4257, %v4297
    %v4299 = vpop.f32.mrf.mxu0
    %v4300 = vadd.f32 %v4259, %v4299
    %v4301 = vpop.f32.mrf.mxu0
    %v4302 = vpop.f32.mrf.mxu0
    %4303 = vdwg.mxu0
    %4304 = vmatprep.subr.bf16.mxu0 %v3245
    %4305 = vmatpush1.bf16.msra.mxu0 %v3244
    %4306 = vmatprep.subr.bf16.mxu0 %v3230
    %4307 = vmatpush1.bf16.msra.mxu0 %v3229
    %4308 = vmatprep.subr.bf16.mxu0 %v3215
    %4309 = vmatpush1.bf16.msra.mxu0 %v3214
    %4310 = vmatprep.subr.bf16.mxu0 %v3200
    %4311 = vmatpush1.bf16.msra.mxu0 %v3199
    %4312 = vmatprep.subr.bf16.mxu0 %v3185
    %4313 = vmatpush1.bf16.msra.mxu0 %v3184
    %4314 = vmatprep.subr.bf16.mxu0 %v3170
    %4315 = vmatpush1.bf16.msra.mxu0 %v3169
    %4316 = vmatprep.subr.bf16.mxu0 %v3155
    %4317 = vmatpush1.bf16.msra.mxu0 %v3154
    %4318 = vmatprep.subr.bf16.mxu0 %v3140
    %4319 = vmatpush1.bf16.msra.mxu0 %v3139
    %4320 = vmatprep.subr.bf16.mxu0 0
    %4321 = vmatpush2.bf16.msra.mxu0 0
    %4322 = vmatprep.subr.bf16.mxu0 0
    %4323 = vmatpush2.bf16.msra.mxu0 0
    %4324 = vmatprep.subr.bf16.mxu0 0
    %4325 = vmatpush2.bf16.msra.mxu0 0
    %4326 = vmatprep.subr.bf16.mxu0 0
    %4327 = vmatpush2.bf16.msra.mxu0 0
    %4328 = vmatprep.subr.bf16.mxu0 0
    %4329 = vmatpush2.bf16.msra.mxu0 0
    %4330 = vmatprep.subr.bf16.mxu0 0
    %4331 = vmatpush2.bf16.msra.mxu0 0
    %4332 = vmatprep.subr.bf16.mxu0 0
    %4333 = vmatpush2.bf16.msra.mxu0 0
    %4334 = vmatprep.subr.bf16.mxu0 0
    %4335 = vmatpush2.bf16.msra.mxu0 0
    %4336 = vmatprep.mubr.bf16.mxu0 0
    %4337 = vmatmul.mubr.bf16.gmra.mxu0 %v93
    %v4338 = vpop.f32.mrf.mxu0
    %v4339 = vadd.f32 %v4298, %v4338
    %v4340 = vpop.f32.mrf.mxu0
    %v4341 = vadd.f32 %v4300, %v4340
    %v4342 = vpop.f32.mrf.mxu0
    %v4343 = vpop.f32.mrf.mxu0
    %4344 = vdwg.mxu0
    %4345 = vmatprep.subr.bf16.mxu0 %v2767
    %4346 = vmatpush1.bf16.msra.mxu0 %v2766
    %4347 = vmatprep.subr.bf16.mxu0 %v2752
    %4348 = vmatpush1.bf16.msra.mxu0 %v2751
    %4349 = vmatprep.subr.bf16.mxu0 %v2737
    %4350 = vmatpush1.bf16.msra.mxu0 %v2736
    %4351 = vmatprep.subr.bf16.mxu0 %v2722
    %4352 = vmatpush1.bf16.msra.mxu0 %v2721
    %4353 = vmatprep.subr.bf16.mxu0 %v2707
    %4354 = vmatpush1.bf16.msra.mxu0 %v2706
    %4355 = vmatprep.subr.bf16.mxu0 %v2692
    %4356 = vmatpush1.bf16.msra.mxu0 %v2691
    %4357 = vmatprep.subr.bf16.mxu0 %v2677
    %4358 = vmatpush1.bf16.msra.mxu0 %v2676
    %4359 = vmatprep.subr.bf16.mxu0 %v2662
    %4360 = vmatpush1.bf16.msra.mxu0 %v2661
    %4361 = vmatprep.subr.bf16.mxu0 %v2887
    %4362 = vmatpush2.bf16.msra.mxu0 %v2886
    %4363 = vmatprep.subr.bf16.mxu0 %v2872
    %4364 = vmatpush2.bf16.msra.mxu0 %v2871
    %4365 = vmatprep.subr.bf16.mxu0 %v2857
    %4366 = vmatpush2.bf16.msra.mxu0 %v2856
    %4367 = vmatprep.subr.bf16.mxu0 %v2842
    %4368 = vmatpush2.bf16.msra.mxu0 %v2841
    %4369 = vmatprep.subr.bf16.mxu0 %v2827
    %4370 = vmatpush2.bf16.msra.mxu0 %v2826
    %4371 = vmatprep.subr.bf16.mxu0 %v2812
    %4372 = vmatpush2.bf16.msra.mxu0 %v2811
    %4373 = vmatprep.subr.bf16.mxu0 %v2797
    %4374 = vmatpush2.bf16.msra.mxu0 %v2796
    %4375 = vmatprep.subr.bf16.mxu0 %v2782
    %4376 = vmatpush2.bf16.msra.mxu0 %v2781
    %4377 = vmatprep.mubr.bf16.mxu0 %v90
    %4378 = vmatmul.mubr.bf16.gmra.mxu0 %v89
    %v4379 = vpop.f32.mrf.mxu0
    %v4380 = vadd.f32 %v773, %v4379
    %v4381 = vpop.f32.mrf.mxu0
    %v4382 = vadd.f32 %v777, %v4381
    %v4383 = vpop.f32.mrf.mxu0
    %v4384 = vpop.f32.mrf.mxu0
    %4385 = vdwg.mxu0
    %4386 = vmatprep.subr.bf16.mxu0 %v3007
    %4387 = vmatpush1.bf16.msra.mxu0 %v3006
    %4388 = vmatprep.subr.bf16.mxu0 %v2992
    %4389 = vmatpush1.bf16.msra.mxu0 %v2991
    %4390 = vmatprep.subr.bf16.mxu0 %v2977
    %4391 = vmatpush1.bf16.msra.mxu0 %v2976
    %4392 = vmatprep.subr.bf16.mxu0 %v2962
    %4393 = vmatpush1.bf16.msra.mxu0 %v2961
    %4394 = vmatprep.subr.bf16.mxu0 %v2947
    %4395 = vmatpush1.bf16.msra.mxu0 %v2946
    %4396 = vmatprep.subr.bf16.mxu0 %v2932
    %4397 = vmatpush1.bf16.msra.mxu0 %v2931
    %4398 = vmatprep.subr.bf16.mxu0 %v2917
    %4399 = vmatpush1.bf16.msra.mxu0 %v2916
    %4400 = vmatprep.subr.bf16.mxu0 %v2902
    %4401 = vmatpush1.bf16.msra.mxu0 %v2901
    %4402 = vmatprep.subr.bf16.mxu0 %v3127
    %4403 = vmatpush2.bf16.msra.mxu0 %v3126
    %4404 = vmatprep.subr.bf16.mxu0 %v3112
    %4405 = vmatpush2.bf16.msra.mxu0 %v3111
    %4406 = vmatprep.subr.bf16.mxu0 %v3097
    %4407 = vmatpush2.bf16.msra.mxu0 %v3096
    %4408 = vmatprep.subr.bf16.mxu0 %v3082
    %4409 = vmatpush2.bf16.msra.mxu0 %v3081
    %4410 = vmatprep.subr.bf16.mxu0 %v3067
    %4411 = vmatpush2.bf16.msra.mxu0 %v3066
    %4412 = vmatprep.subr.bf16.mxu0 %v3052
    %4413 = vmatpush2.bf16.msra.mxu0 %v3051
    %4414 = vmatprep.subr.bf16.mxu0 %v3037
    %4415 = vmatpush2.bf16.msra.mxu0 %v3036
    %4416 = vmatprep.subr.bf16.mxu0 %v3022
    %4417 = vmatpush2.bf16.msra.mxu0 %v3021
    %4418 = vmatprep.mubr.bf16.mxu0 %v92
    %4419 = vmatmul.mubr.bf16.gmra.mxu0 %v91
    %v4420 = vpop.f32.mrf.mxu0
    %v4421 = vadd.f32 %v4380, %v4420
    %v4422 = vpop.f32.mrf.mxu0
    %v4423 = vadd.f32 %v4382, %v4422
    %v4424 = vpop.f32.mrf.mxu0
    %v4425 = vpop.f32.mrf.mxu0
    %4426 = vdwg.mxu0
    %4427 = vmatprep.subr.bf16.mxu0 %v3247
    %4428 = vmatpush1.bf16.msra.mxu0 %v3246
    %4429 = vmatprep.subr.bf16.mxu0 %v3232
    %4430 = vmatpush1.bf16.msra.mxu0 %v3231
    %4431 = vmatprep.subr.bf16.mxu0 %v3217
    %4432 = vmatpush1.bf16.msra.mxu0 %v3216
    %4433 = vmatprep.subr.bf16.mxu0 %v3202
    %4434 = vmatpush1.bf16.msra.mxu0 %v3201
    %4435 = vmatprep.subr.bf16.mxu0 %v3187
    %4436 = vmatpush1.bf16.msra.mxu0 %v3186
    %4437 = vmatprep.subr.bf16.mxu0 %v3172
    %4438 = vmatpush1.bf16.msra.mxu0 %v3171
    %4439 = vmatprep.subr.bf16.mxu0 %v3157
    %4440 = vmatpush1.bf16.msra.mxu0 %v3156
    %4441 = vmatprep.subr.bf16.mxu0 %v3142
    %4442 = vmatpush1.bf16.msra.mxu0 %v3141
    %4443 = vmatprep.subr.bf16.mxu0 0
    %4444 = vmatpush2.bf16.msra.mxu0 0
    %4445 = vmatprep.subr.bf16.mxu0 0
    %4446 = vmatpush2.bf16.msra.mxu0 0
    %4447 = vmatprep.subr.bf16.mxu0 0
    %4448 = vmatpush2.bf16.msra.mxu0 0
    %4449 = vmatprep.subr.bf16.mxu0 0
    %4450 = vmatpush2.bf16.msra.mxu0 0
    %4451 = vmatprep.subr.bf16.mxu0 0
    %4452 = vmatpush2.bf16.msra.mxu0 0
    %4453 = vmatprep.subr.bf16.mxu0 0
    %4454 = vmatpush2.bf16.msra.mxu0 0
    %4455 = vmatprep.subr.bf16.mxu0 0
    %4456 = vmatpush2.bf16.msra.mxu0 0
    %4457 = vmatprep.subr.bf16.mxu0 0
    %4458 = vmatpush2.bf16.msra.mxu0 0
    %4459 = vmatprep.mubr.bf16.mxu0 0
    %4460 = vmatmul.mubr.bf16.gmra.mxu0 %v93
    %v4461 = vpop.f32.mrf.mxu0
    %v4462 = vadd.f32 %v4421, %v4461
    %v4463 = vpop.f32.mrf.mxu0
    %v4464 = vadd.f32 %v4423, %v4463
    %v4465 = vpop.f32.mrf.mxu0
    %v4466 = vpop.f32.mrf.mxu0
    %4467 = vdwg.mxu0
    %4468 = vmatprep.subr.bf16.mxu0 %v2769
    %4469 = vmatpush1.bf16.msra.mxu0 %v2768
    %4470 = vmatprep.subr.bf16.mxu0 %v2754
    %4471 = vmatpush1.bf16.msra.mxu0 %v2753
    %4472 = vmatprep.subr.bf16.mxu0 %v2739
    %4473 = vmatpush1.bf16.msra.mxu0 %v2738
    %4474 = vmatprep.subr.bf16.mxu0 %v2724
    %4475 = vmatpush1.bf16.msra.mxu0 %v2723
    %4476 = vmatprep.subr.bf16.mxu0 %v2709
    %4477 = vmatpush1.bf16.msra.mxu0 %v2708
    %4478 = vmatprep.subr.bf16.mxu0 %v2694
    %4479 = vmatpush1.bf16.msra.mxu0 %v2693
    %4480 = vmatprep.subr.bf16.mxu0 %v2679
    %4481 = vmatpush1.bf16.msra.mxu0 %v2678
    %4482 = vmatprep.subr.bf16.mxu0 %v2664
    %4483 = vmatpush1.bf16.msra.mxu0 %v2663
    %4484 = vmatprep.subr.bf16.mxu0 %v2889
    %4485 = vmatpush2.bf16.msra.mxu0 %v2888
    %4486 = vmatprep.subr.bf16.mxu0 %v2874
    %4487 = vmatpush2.bf16.msra.mxu0 %v2873
    %4488 = vmatprep.subr.bf16.mxu0 %v2859
    %4489 = vmatpush2.bf16.msra.mxu0 %v2858
    %4490 = vmatprep.subr.bf16.mxu0 %v2844
    %4491 = vmatpush2.bf16.msra.mxu0 %v2843
    %4492 = vmatprep.subr.bf16.mxu0 %v2829
    %4493 = vmatpush2.bf16.msra.mxu0 %v2828
    %4494 = vmatprep.subr.bf16.mxu0 %v2814
    %4495 = vmatpush2.bf16.msra.mxu0 %v2813
    %4496 = vmatprep.subr.bf16.mxu0 %v2799
    %4497 = vmatpush2.bf16.msra.mxu0 %v2798
    %4498 = vmatprep.subr.bf16.mxu0 %v2784
    %4499 = vmatpush2.bf16.msra.mxu0 %v2783
    %4500 = vmatprep.mubr.bf16.mxu0 %v90
    %4501 = vmatmul.mubr.bf16.gmra.mxu0 %v89
    %v4502 = vpop.f32.mrf.mxu0
    %v4503 = vadd.f32 %v781, %v4502
    %v4504 = vpop.f32.mrf.mxu0
    %v4505 = vadd.f32 %v785, %v4504
    %v4506 = vpop.f32.mrf.mxu0
    %v4507 = vpop.f32.mrf.mxu0
    %4508 = vdwg.mxu0
    %4509 = vmatprep.subr.bf16.mxu0 %v3009
    %4510 = vmatpush1.bf16.msra.mxu0 %v3008
    %4511 = vmatprep.subr.bf16.mxu0 %v2994
    %4512 = vmatpush1.bf16.msra.mxu0 %v2993
    %4513 = vmatprep.subr.bf16.mxu0 %v2979
    %4514 = vmatpush1.bf16.msra.mxu0 %v2978
    %4515 = vmatprep.subr.bf16.mxu0 %v2964
    %4516 = vmatpush1.bf16.msra.mxu0 %v2963
    %4517 = vmatprep.subr.bf16.mxu0 %v2949
    %4518 = vmatpush1.bf16.msra.mxu0 %v2948
    %4519 = vmatprep.subr.bf16.mxu0 %v2934
    %4520 = vmatpush1.bf16.msra.mxu0 %v2933
    %4521 = vmatprep.subr.bf16.mxu0 %v2919
    %4522 = vmatpush1.bf16.msra.mxu0 %v2918
    %4523 = vmatprep.subr.bf16.mxu0 %v2904
    %4524 = vmatpush1.bf16.msra.mxu0 %v2903
    %4525 = vmatprep.subr.bf16.mxu0 %v3129
    %4526 = vmatpush2.bf16.msra.mxu0 %v3128
    %4527 = vmatprep.subr.bf16.mxu0 %v3114
    %4528 = vmatpush2.bf16.msra.mxu0 %v3113
    %4529 = vmatprep.subr.bf16.mxu0 %v3099
    %4530 = vmatpush2.bf16.msra.mxu0 %v3098
    %4531 = vmatprep.subr.bf16.mxu0 %v3084
    %4532 = vmatpush2.bf16.msra.mxu0 %v3083
    %4533 = vmatprep.subr.bf16.mxu0 %v3069
    %4534 = vmatpush2.bf16.msra.mxu0 %v3068
    %4535 = vmatprep.subr.bf16.mxu0 %v3054
    %4536 = vmatpush2.bf16.msra.mxu0 %v3053
    %4537 = vmatprep.subr.bf16.mxu0 %v3039
    %4538 = vmatpush2.bf16.msra.mxu0 %v3038
    %4539 = vmatprep.subr.bf16.mxu0 %v3024
    %4540 = vmatpush2.bf16.msra.mxu0 %v3023
    %4541 = vmatprep.mubr.bf16.mxu0 %v92
    %4542 = vmatmul.mubr.bf16.gmra.mxu0 %v91
    %v4543 = vpop.f32.mrf.mxu0
    %v4544 = vadd.f32 %v4503, %v4543
    %v4545 = vpop.f32.mrf.mxu0
    %v4546 = vadd.f32 %v4505, %v4545
    %v4547 = vpop.f32.mrf.mxu0
    %v4548 = vpop.f32.mrf.mxu0
    %4549 = vdwg.mxu0
    %4550 = vmatprep.subr.bf16.mxu0 %v3249
    %4551 = vmatpush1.bf16.msra.mxu0 %v3248
    %4552 = vmatprep.subr.bf16.mxu0 %v3234
    %4553 = vmatpush1.bf16.msra.mxu0 %v3233
    %4554 = vmatprep.subr.bf16.mxu0 %v3219
    %4555 = vmatpush1.bf16.msra.mxu0 %v3218
    %4556 = vmatprep.subr.bf16.mxu0 %v3204
    %4557 = vmatpush1.bf16.msra.mxu0 %v3203
    %4558 = vmatprep.subr.bf16.mxu0 %v3189
    %4559 = vmatpush1.bf16.msra.mxu0 %v3188
    %4560 = vmatprep.subr.bf16.mxu0 %v3174
    %4561 = vmatpush1.bf16.msra.mxu0 %v3173
    %4562 = vmatprep.subr.bf16.mxu0 %v3159
    %4563 = vmatpush1.bf16.msra.mxu0 %v3158
    %4564 = vmatprep.subr.bf16.mxu0 %v3144
    %4565 = vmatpush1.bf16.msra.mxu0 %v3143
    %4566 = vmatprep.subr.bf16.mxu0 0
    %4567 = vmatpush2.bf16.msra.mxu0 0
    %4568 = vmatprep.subr.bf16.mxu0 0
    %4569 = vmatpush2.bf16.msra.mxu0 0
    %4570 = vmatprep.subr.bf16.mxu0 0
    %4571 = vmatpush2.bf16.msra.mxu0 0
    %4572 = vmatprep.subr.bf16.mxu0 0
    %4573 = vmatpush2.bf16.msra.mxu0 0
    %4574 = vmatprep.subr.bf16.mxu0 0
    %4575 = vmatpush2.bf16.msra.mxu0 0
    %4576 = vmatprep.subr.bf16.mxu0 0
    %4577 = vmatpush2.bf16.msra.mxu0 0
    %4578 = vmatprep.subr.bf16.mxu0 0
    %4579 = vmatpush2.bf16.msra.mxu0 0
    %4580 = vmatprep.subr.bf16.mxu0 0
    %4581 = vmatpush2.bf16.msra.mxu0 0
    %4582 = vmatprep.mubr.bf16.mxu0 0
    %4583 = vmatmul.mubr.bf16.gmra.mxu0 %v93
    %v4584 = vpop.f32.mrf.mxu0
    %v4585 = vadd.f32 %v4544, %v4584
    %v4586 = vpop.f32.mrf.mxu0
    %v4587 = vadd.f32 %v4546, %v4586
    %v4588 = vpop.f32.mrf.mxu0
    %v4589 = vpop.f32.mrf.mxu0
    %4590 = vdwg.mxu0
    %4591 = vmatprep.subr.bf16.mxu0 %v2771
    %4592 = vmatpush1.bf16.msra.mxu0 %v2770
    %4593 = vmatprep.subr.bf16.mxu0 %v2756
    %4594 = vmatpush1.bf16.msra.mxu0 %v2755
    %4595 = vmatprep.subr.bf16.mxu0 %v2741
    %4596 = vmatpush1.bf16.msra.mxu0 %v2740
    %4597 = vmatprep.subr.bf16.mxu0 %v2726
    %4598 = vmatpush1.bf16.msra.mxu0 %v2725
    %4599 = vmatprep.subr.bf16.mxu0 %v2711
    %4600 = vmatpush1.bf16.msra.mxu0 %v2710
    %4601 = vmatprep.subr.bf16.mxu0 %v2696
    %4602 = vmatpush1.bf16.msra.mxu0 %v2695
    %4603 = vmatprep.subr.bf16.mxu0 %v2681
    %4604 = vmatpush1.bf16.msra.mxu0 %v2680
    %4605 = vmatprep.subr.bf16.mxu0 %v2666
    %4606 = vmatpush1.bf16.msra.mxu0 %v2665
    %4607 = vmatprep.subr.bf16.mxu0 %v2891
    %4608 = vmatpush2.bf16.msra.mxu0 %v2890
    %4609 = vmatprep.subr.bf16.mxu0 %v2876
    %4610 = vmatpush2.bf16.msra.mxu0 %v2875
    %4611 = vmatprep.subr.bf16.mxu0 %v2861
    %4612 = vmatpush2.bf16.msra.mxu0 %v2860
    %4613 = vmatprep.subr.bf16.mxu0 %v2846
    %4614 = vmatpush2.bf16.msra.mxu0 %v2845
    %4615 = vmatprep.subr.bf16.mxu0 %v2831
    %4616 = vmatpush2.bf16.msra.mxu0 %v2830
    %4617 = vmatprep.subr.bf16.mxu0 %v2816
    %4618 = vmatpush2.bf16.msra.mxu0 %v2815
    %4619 = vmatprep.subr.bf16.mxu0 %v2801
    %4620 = vmatpush2.bf16.msra.mxu0 %v2800
    %4621 = vmatprep.subr.bf16.mxu0 %v2786
    %4622 = vmatpush2.bf16.msra.mxu0 %v2785
    %4623 = vmatprep.mubr.bf16.mxu0 %v90
    %4624 = vmatmul.mubr.bf16.gmra.mxu0 %v89
    %v4625 = vpop.f32.mrf.mxu0
    %v4626 = vadd.f32 %v789, %v4625
    %v4627 = vpop.f32.mrf.mxu0
    %v4628 = vadd.f32 %v793, %v4627
    %v4629 = vpop.f32.mrf.mxu0
    %v4630 = vpop.f32.mrf.mxu0
    %4631 = vdwg.mxu0
    %4632 = vmatprep.subr.bf16.mxu0 %v3011
    %4633 = vmatpush1.bf16.msra.mxu0 %v3010
    %4634 = vmatprep.subr.bf16.mxu0 %v2996
    %4635 = vmatpush1.bf16.msra.mxu0 %v2995
    %4636 = vmatprep.subr.bf16.mxu0 %v2981
    %4637 = vmatpush1.bf16.msra.mxu0 %v2980
    %4638 = vmatprep.subr.bf16.mxu0 %v2966
    %4639 = vmatpush1.bf16.msra.mxu0 %v2965
    %4640 = vmatprep.subr.bf16.mxu0 %v2951
    %4641 = vmatpush1.bf16.msra.mxu0 %v2950
    %4642 = vmatprep.subr.bf16.mxu0 %v2936
    %4643 = vmatpush1.bf16.msra.mxu0 %v2935
    %4644 = vmatprep.subr.bf16.mxu0 %v2921
    %4645 = vmatpush1.bf16.msra.mxu0 %v2920
    %4646 = vmatprep.subr.bf16.mxu0 %v2906
    %4647 = vmatpush1.bf16.msra.mxu0 %v2905
    %4648 = vmatprep.subr.bf16.mxu0 %v3131
    %4649 = vmatpush2.bf16.msra.mxu0 %v3130
    %4650 = vmatprep.subr.bf16.mxu0 %v3116
    %4651 = vmatpush2.bf16.msra.mxu0 %v3115
    %4652 = vmatprep.subr.bf16.mxu0 %v3101
    %4653 = vmatpush2.bf16.msra.mxu0 %v3100
    %4654 = vmatprep.subr.bf16.mxu0 %v3086
    %4655 = vmatpush2.bf16.msra.mxu0 %v3085
    %4656 = vmatprep.subr.bf16.mxu0 %v3071
    %4657 = vmatpush2.bf16.msra.mxu0 %v3070
    %4658 = vmatprep.subr.bf16.mxu0 %v3056
    %4659 = vmatpush2.bf16.msra.mxu0 %v3055
    %4660 = vmatprep.subr.bf16.mxu0 %v3041
    %4661 = vmatpush2.bf16.msra.mxu0 %v3040
    %4662 = vmatprep.subr.bf16.mxu0 %v3026
    %4663 = vmatpush2.bf16.msra.mxu0 %v3025
    %4664 = vmatprep.mubr.bf16.mxu0 %v92
    %4665 = vmatmul.mubr.bf16.gmra.mxu0 %v91
    %v4666 = vpop.f32.mrf.mxu0
    %v4667 = vadd.f32 %v4626, %v4666
    %v4668 = vpop.f32.mrf.mxu0
    %v4669 = vadd.f32 %v4628, %v4668
    %v4670 = vpop.f32.mrf.mxu0
    %v4671 = vpop.f32.mrf.mxu0
    %4672 = vdwg.mxu0
    %4673 = vmatprep.subr.bf16.mxu0 %v3251
    %4674 = vmatpush1.bf16.msra.mxu0 %v3250
    %4675 = vmatprep.subr.bf16.mxu0 %v3236
    %4676 = vmatpush1.bf16.msra.mxu0 %v3235
    %4677 = vmatprep.subr.bf16.mxu0 %v3221
    %4678 = vmatpush1.bf16.msra.mxu0 %v3220
    %4679 = vmatprep.subr.bf16.mxu0 %v3206
    %4680 = vmatpush1.bf16.msra.mxu0 %v3205
    %4681 = vmatprep.subr.bf16.mxu0 %v3191
    %4682 = vmatpush1.bf16.msra.mxu0 %v3190
    %4683 = vmatprep.subr.bf16.mxu0 %v3176
    %4684 = vmatpush1.bf16.msra.mxu0 %v3175
    %4685 = vmatprep.subr.bf16.mxu0 %v3161
    %4686 = vmatpush1.bf16.msra.mxu0 %v3160
    %4687 = vmatprep.subr.bf16.mxu0 %v3146
    %4688 = vmatpush1.bf16.msra.mxu0 %v3145
    %4689 = vmatprep.subr.bf16.mxu0 0
    %4690 = vmatpush2.bf16.msra.mxu0 0
    %4691 = vmatprep.subr.bf16.mxu0 0
    %4692 = vmatpush2.bf16.msra.mxu0 0
    %4693 = vmatprep.subr.bf16.mxu0 0
    %4694 = vmatpush2.bf16.msra.mxu0 0
    %4695 = vmatprep.subr.bf16.mxu0 0
    %4696 = vmatpush2.bf16.msra.mxu0 0
    %4697 = vmatprep.subr.bf16.mxu0 0
    %4698 = vmatpush2.bf16.msra.mxu0 0
    %4699 = vmatprep.subr.bf16.mxu0 0
    %4700 = vmatpush2.bf16.msra.mxu0 0
    %4701 = vmatprep.subr.bf16.mxu0 0
    %4702 = vmatpush2.bf16.msra.mxu0 0
    %4703 = vmatprep.subr.bf16.mxu0 0
    %4704 = vmatpush2.bf16.msra.mxu0 0
    %4705 = vmatprep.mubr.bf16.mxu0 0
    %4706 = vmatmul.mubr.bf16.gmra.mxu0 %v93
    %v4707 = vpop.f32.mrf.mxu0
    %v4708 = vadd.f32 %v4667, %v4707
    %v4709 = vpop.f32.mrf.mxu0
    %v4710 = vadd.f32 %v4669, %v4709
    %v4711 = vpop.f32.mrf.mxu0
    %v4712 = vpop.f32.mrf.mxu0
    %4713 = vdwg.mxu0
    %4714 = vmatprep.subr.bf16.mxu0 0
    %4715 = vmatpush1.bf16.msra.mxu0 %v2772
    %4716 = vmatprep.subr.bf16.mxu0 0
    %4717 = vmatpush1.bf16.msra.mxu0 %v2757
    %4718 = vmatprep.subr.bf16.mxu0 0
    %4719 = vmatpush1.bf16.msra.mxu0 %v2742
    %4720 = vmatprep.subr.bf16.mxu0 0
    %4721 = vmatpush1.bf16.msra.mxu0 %v2727
    %4722 = vmatprep.subr.bf16.mxu0 0
    %4723 = vmatpush1.bf16.msra.mxu0 %v2712
    %4724 = vmatprep.subr.bf16.mxu0 0
    %4725 = vmatpush1.bf16.msra.mxu0 %v2697
    %4726 = vmatprep.subr.bf16.mxu0 0
    %4727 = vmatpush1.bf16.msra.mxu0 %v2682
    %4728 = vmatprep.subr.bf16.mxu0 0
    %4729 = vmatpush1.bf16.msra.mxu0 %v2667
    %4730 = vmatprep.subr.bf16.mxu0 0
    %4731 = vmatpush2.bf16.msra.mxu0 %v2892
    %4732 = vmatprep.subr.bf16.mxu0 0
    %4733 = vmatpush2.bf16.msra.mxu0 %v2877
    %4734 = vmatprep.subr.bf16.mxu0 0
    %4735 = vmatpush2.bf16.msra.mxu0 %v2862
    %4736 = vmatprep.subr.bf16.mxu0 0
    %4737 = vmatpush2.bf16.msra.mxu0 %v2847
    %4738 = vmatprep.subr.bf16.mxu0 0
    %4739 = vmatpush2.bf16.msra.mxu0 %v2832
    %4740 = vmatprep.subr.bf16.mxu0 0
    %4741 = vmatpush2.bf16.msra.mxu0 %v2817
    %4742 = vmatprep.subr.bf16.mxu0 0
    %4743 = vmatpush2.bf16.msra.mxu0 %v2802
    %4744 = vmatprep.subr.bf16.mxu0 0
    %4745 = vmatpush2.bf16.msra.mxu0 %v2787
    %4746 = vmatprep.mubr.bf16.mxu0 %v90
    %4747 = vmatmul.mubr.bf16.gmra.mxu0 %v89
    %v4748 = vpop.f32.mrf.mxu0
    %v4749 = vadd.f32 %v797, %v4748
    %v4750 = vpop.f32.mrf.mxu0
    %v4751 = vpop.f32.mrf.mxu0
    %v4752 = vpop.f32.mrf.mxu0
    %4753 = vdwg.mxu0
    %4754 = vmatprep.subr.bf16.mxu0 0
    %4755 = vmatpush1.bf16.msra.mxu0 %v3012
    %4756 = vmatprep.subr.bf16.mxu0 0
    %4757 = vmatpush1.bf16.msra.mxu0 %v2997
    %4758 = vmatprep.subr.bf16.mxu0 0
    %4759 = vmatpush1.bf16.msra.mxu0 %v2982
    %4760 = vmatprep.subr.bf16.mxu0 0
    %4761 = vmatpush1.bf16.msra.mxu0 %v2967
    %4762 = vmatprep.subr.bf16.mxu0 0
    %4763 = vmatpush1.bf16.msra.mxu0 %v2952
    %4764 = vmatprep.subr.bf16.mxu0 0
    %4765 = vmatpush1.bf16.msra.mxu0 %v2937
    %4766 = vmatprep.subr.bf16.mxu0 0
    %4767 = vmatpush1.bf16.msra.mxu0 %v2922
    %4768 = vmatprep.subr.bf16.mxu0 0
    %4769 = vmatpush1.bf16.msra.mxu0 %v2907
    %4770 = vmatprep.subr.bf16.mxu0 0
    %4771 = vmatpush2.bf16.msra.mxu0 %v3132
    %4772 = vmatprep.subr.bf16.mxu0 0
    %4773 = vmatpush2.bf16.msra.mxu0 %v3117
    %4774 = vmatprep.subr.bf16.mxu0 0
    %4775 = vmatpush2.bf16.msra.mxu0 %v3102
    %4776 = vmatprep.subr.bf16.mxu0 0
    %4777 = vmatpush2.bf16.msra.mxu0 %v3087
    %4778 = vmatprep.subr.bf16.mxu0 0
    %4779 = vmatpush2.bf16.msra.mxu0 %v3072
    %4780 = vmatprep.subr.bf16.mxu0 0
    %4781 = vmatpush2.bf16.msra.mxu0 %v3057
    %4782 = vmatprep.subr.bf16.mxu0 0
    %4783 = vmatpush2.bf16.msra.mxu0 %v3042
    %4784 = vmatprep.subr.bf16.mxu0 0
    %4785 = vmatpush2.bf16.msra.mxu0 %v3027
    %4786 = vmatprep.mubr.bf16.mxu0 %v92
    %4787 = vmatmul.mubr.bf16.gmra.mxu0 %v91
    %v4788 = vpop.f32.mrf.mxu0
    %v4789 = vadd.f32 %v4749, %v4788
    %v4790 = vpop.f32.mrf.mxu0
    %v4791 = vpop.f32.mrf.mxu0
    %v4792 = vpop.f32.mrf.mxu0
    %4793 = vdwg.mxu0
    %4794 = vmatprep.subr.bf16.mxu0 0
    %4795 = vmatpush1.bf16.msra.mxu0 %v3252
    %4796 = vmatprep.subr.bf16.mxu0 0
    %4797 = vmatpush1.bf16.msra.mxu0 %v3237
    %4798 = vmatprep.subr.bf16.mxu0 0
    %4799 = vmatpush1.bf16.msra.mxu0 %v3222
    %4800 = vmatprep.subr.bf16.mxu0 0
    %4801 = vmatpush1.bf16.msra.mxu0 %v3207
    %4802 = vmatprep.subr.bf16.mxu0 0
    %4803 = vmatpush1.bf16.msra.mxu0 %v3192
    %4804 = vmatprep.subr.bf16.mxu0 0
    %4805 = vmatpush1.bf16.msra.mxu0 %v3177
    %4806 = vmatprep.subr.bf16.mxu0 0
    %4807 = vmatpush1.bf16.msra.mxu0 %v3162
    %4808 = vmatprep.subr.bf16.mxu0 0
    %4809 = vmatpush1.bf16.msra.mxu0 %v3147
    %4810 = vmatprep.subr.bf16.mxu0 0
    %4811 = vmatpush2.bf16.msra.mxu0 0
    %4812 = vmatprep.subr.bf16.mxu0 0
    %4813 = vmatpush2.bf16.msra.mxu0 0
    %4814 = vmatprep.subr.bf16.mxu0 0
    %4815 = vmatpush2.bf16.msra.mxu0 0
    %4816 = vmatprep.subr.bf16.mxu0 0
    %4817 = vmatpush2.bf16.msra.mxu0 0
    %4818 = vmatprep.subr.bf16.mxu0 0
    %4819 = vmatpush2.bf16.msra.mxu0 0
    %4820 = vmatprep.subr.bf16.mxu0 0
    %4821 = vmatpush2.bf16.msra.mxu0 0
    %4822 = vmatprep.subr.bf16.mxu0 0
    %4823 = vmatpush2.bf16.msra.mxu0 0
    %4824 = vmatprep.subr.bf16.mxu0 0
    %4825 = vmatpush2.bf16.msra.mxu0 0
    %4826 = vmatprep.mubr.bf16.mxu0 0
    %4827 = vmatmul.mubr.bf16.gmra.mxu0 %v93
    %v4828 = vpop.f32.mrf.mxu0
    %v4829 = vadd.f32 %v4789, %v4828
    %v4830 = vpop.f32.mrf.mxu0
    %v4831 = vpop.f32.mrf.mxu0
    %v4832 = vpop.f32.mrf.mxu0
    %4833 = vdwg.mxu0
    %v4834 = vpack.c.bf16 %v3970, %v3970
    %v4835 = vpack.c.bf16 %v3972, %v3972
    %v4836 = vpack.c.bf16 %v4218, %v4218
    %v4837 = vpack.c.bf16 %v4339, %v4339
    %v4838 = vpack.c.bf16 %v4585, %v4585
    %v4839 = vpack.c.bf16 %v4587, %v4587
    %vm4840 = vcmask 261120
    %v4842 = vsel %vm4840, %v4835, 0
    %v4845 = vsel %vm4840, %v4837, 0
    %4847 = vmatprep.subr.bf16.mxu0 0
    %4848 = vmatpush1.bf16.xpose.msra.mxu0 0
    %4849 = vmatprep.subr.bf16.mxu0 0
    %4850 = vmatpush1.bf16.xpose.msra.mxu0 0
    %4851 = vmatprep.subr.bf16.mxu0 0
    %4852 = vmatpush1.bf16.xpose.msra.mxu0 0
    %4853 = vmatprep.subr.bf16.mxu0 0
    %4854 = vmatpush1.bf16.xpose.msra.mxu0 0
    %4855 = vmatprep.subr.bf16.mxu0 0
    %4856 = vmatpush1.bf16.xpose.msra.mxu0 0
    %4857 = vmatprep.subr.bf16.mxu0 0
    %4858 = vmatpush1.bf16.xpose.msra.mxu0 0
    %4859 = vmatprep.subr.bf16.mxu0 0
    %4860 = vmatpush1.bf16.xpose.msra.mxu0 0
    %4861 = vmatprep.subr.bf16.mxu0 %v4845
    %4862 = vmatpush1.bf16.xpose.msra.mxu0 %v4836
    %4863 = vmatprep.subr.bf16.mxu0 0
    %4864 = vmatpush2.bf16.xpose.msra.mxu0 0
    %4865 = vmatprep.subr.bf16.mxu0 0
    %4866 = vmatpush2.bf16.xpose.msra.mxu0 0
    %4867 = vmatprep.subr.bf16.mxu0 0
    %4868 = vmatpush2.bf16.xpose.msra.mxu0 0
    %4869 = vmatprep.subr.bf16.mxu0 0
    %4870 = vmatpush2.bf16.xpose.msra.mxu0 0
    %4871 = vmatprep.subr.bf16.mxu0 0
    %4872 = vmatpush2.bf16.xpose.msra.mxu0 0
    %4873 = vmatprep.subr.bf16.mxu0 0
    %4874 = vmatpush2.bf16.xpose.msra.mxu0 0
    %4875 = vmatprep.subr.bf16.mxu0 0
    %4876 = vmatpush2.bf16.xpose.msra.mxu0 0
    %4877 = vmatprep.subr.bf16.mxu0 0
    %4878 = vmatpush2.bf16.xpose.msra.mxu0 0
    %4879 = vmatprep.mubr.bf16.mxu0 %v4842
    %4880 = vmatmul.mubr.bf16.gmra.mxu0 %v4834
    %v4881 = vpop.f32.mrf.mxu0
    %v4882 = vadd.f32 0.0, %v4881
    %v4883 = vpop.f32.mrf.mxu0
    %v4884 = vpop.f32.mrf.mxu0
    %v4885 = vpop.f32.mrf.mxu0
    %4886 = vdwg.mxu0
    %vm4887 = vcmask 64512
    %v4888 = vsel %vm4887, %v4882, -inf
    %4889 = vmax.xlane.f32.xlu0 %v4888
    %v4890 = vpop.xlane.xlu0 %4889
    %v4891 = vsub.f32 %v4882, %v4890
    %v4892 = vmul.f32 %v4891, 1.442695
    %v4893 = vpow.pop %v4892
    %v4894 = vsel %vm4887, %v4893, 0.0
    %4895 = vadd.xlane.f32.xlu0 %v4894
    %v4896 = vpop.xlane.xlu0 %4895
    %v4897 = vrcp.pop %v4896
    %v4898 = vmul.f32 %v4893, %v4897
    %v4899 = vpack.c.bf16 %v4898, %v4898
    %v4901 = vsel %vm4887, %v4899, 0
    %vm4903 = vcmask 1043456
    %v4905 = vsel %vm4903, %v4838, 0
    %v4908 = vsel %vm4903, %v4839, 0
    %4910 = vmatprep.subr.bf16.mxu0 0
    %4911 = vmatpush1.bf16.msra.mxu0 0
    %4912 = vmatprep.subr.bf16.mxu0 0
    %4913 = vmatpush1.bf16.msra.mxu0 0
    %4914 = vmatprep.subr.bf16.mxu0 0
    %4915 = vmatpush1.bf16.msra.mxu0 0
    %4916 = vmatprep.subr.bf16.mxu0 0
    %4917 = vmatpush1.bf16.msra.mxu0 0
    %4918 = vmatprep.subr.bf16.mxu0 0
    %4919 = vmatpush1.bf16.msra.mxu0 0
    %4920 = vmatprep.subr.bf16.mxu0 0
    %4921 = vmatpush1.bf16.msra.mxu0 0
    %4922 = vmatprep.subr.bf16.mxu0 0
    %4923 = vmatpush1.bf16.msra.mxu0 0
    %4924 = vmatprep.subr.bf16.mxu0 %v4908
    %4925 = vmatpush1.bf16.msra.mxu0 %v4905
    %4926 = vmatprep.subr.bf16.mxu0 0
    %4927 = vmatpush2.bf16.msra.mxu0 0
    %4928 = vmatprep.subr.bf16.mxu0 0
    %4929 = vmatpush2.bf16.msra.mxu0 0
    %4930 = vmatprep.subr.bf16.mxu0 0
    %4931 = vmatpush2.bf16.msra.mxu0 0
    %4932 = vmatprep.subr.bf16.mxu0 0
    %4933 = vmatpush2.bf16.msra.mxu0 0
    %4934 = vmatprep.subr.bf16.mxu0 0
    %4935 = vmatpush2.bf16.msra.mxu0 0
    %4936 = vmatprep.subr.bf16.mxu0 0
    %4937 = vmatpush2.bf16.msra.mxu0 0
    %4938 = vmatprep.subr.bf16.mxu0 0
    %4939 = vmatpush2.bf16.msra.mxu0 0
    %4940 = vmatprep.subr.bf16.mxu0 0
    %4941 = vmatpush2.bf16.msra.mxu0 0
    %4942 = vmatprep.mubr.bf16.mxu0 0
    %4943 = vmatmul.mubr.bf16.gmra.mxu0 %v4901
    %v4944 = vpop.f32.mrf.mxu0
    %v4945 = vadd.f32 0.0, %v4944
    %v4946 = vpop.f32.mrf.mxu0
    %v4947 = vadd.f32 0.0, %v4946
    %v4948 = vpop.f32.mrf.mxu0
    %v4949 = vpop.f32.mrf.mxu0
    %4950 = vdwg.mxu0
    %v4951 = vpack.c.bf16 %v4945, %v4945
    %v4952 = vpack.c.bf16 %v4947, %v4947
    %v4953 = vpack.c.bf16 %v4093, %v4093
    %v4954 = vpack.c.bf16 %v4341, %v4341
    %v4955 = vpack.c.bf16 %v4708, %v4708
    %4958 = vrot.lane.b32.xlu0 %v4835, 96
    %v4959 = vpop.permute.xlu0 %4958
    %4960 = vrot.lane.b32.xlu0 %v4953, 96
    %v4961 = vpop.permute.xlu0 %4960
    %vm4962 = vcmask 785408
    %v4963 = vsel %vm4962, %v4959, %v4961
    %4967 = vrot.lane.b32.xlu0 %v4837, 96
    %v4968 = vpop.permute.xlu0 %4967
    %4969 = vrot.lane.b32.xlu0 %v4954, 96
    %v4970 = vpop.permute.xlu0 %4969
    %v4971 = vsel %vm4962, %v4968, %v4970
    %v4974 = vsel %vm4840, %v4961, 0
    %v4977 = vsel %vm4840, %v4970, 0
    %4979 = vmatprep.subr.bf16.mxu0 0
    %4980 = vmatpush1.bf16.xpose.msra.mxu0 0
    %4981 = vmatprep.subr.bf16.mxu0 0
    %4982 = vmatpush1.bf16.xpose.msra.mxu0 0
    %4983 = vmatprep.subr.bf16.mxu0 0
    %4984 = vmatpush1.bf16.xpose.msra.mxu0 0
    %4985 = vmatprep.subr.bf16.mxu0 0
    %4986 = vmatpush1.bf16.xpose.msra.mxu0 0
    %4987 = vmatprep.subr.bf16.mxu0 0
    %4988 = vmatpush1.bf16.xpose.msra.mxu0 0
    %4989 = vmatprep.subr.bf16.mxu0 0
    %4990 = vmatpush1.bf16.xpose.msra.mxu0 0
    %4991 = vmatprep.subr.bf16.mxu0 0
    %4992 = vmatpush1.bf16.xpose.msra.mxu0 0
    %4993 = vmatprep.subr.bf16.mxu0 %v4977
    %4994 = vmatpush1.bf16.xpose.msra.mxu0 %v4971
    %4995 = vmatprep.subr.bf16.mxu0 0
    %4996 = vmatpush2.bf16.xpose.msra.mxu0 0
    %4997 = vmatprep.subr.bf16.mxu0 0
    %4998 = vmatpush2.bf16.xpose.msra.mxu0 0
    %4999 = vmatprep.subr.bf16.mxu0 0
    %5000 = vmatpush2.bf16.xpose.msra.mxu0 0
    %5001 = vmatprep.subr.bf16.mxu0 0
    %5002 = vmatpush2.bf16.xpose.msra.mxu0 0
    %5003 = vmatprep.subr.bf16.mxu0 0
    %5004 = vmatpush2.bf16.xpose.msra.mxu0 0
    %5005 = vmatprep.subr.bf16.mxu0 0
    %5006 = vmatpush2.bf16.xpose.msra.mxu0 0
    %5007 = vmatprep.subr.bf16.mxu0 0
    %5008 = vmatpush2.bf16.xpose.msra.mxu0 0
    %5009 = vmatprep.subr.bf16.mxu0 0
    %5010 = vmatpush2.bf16.xpose.msra.mxu0 0
    %5011 = vmatprep.mubr.bf16.mxu0 %v4974
    %5012 = vmatmul.mubr.bf16.gmra.mxu0 %v4963
    %v5013 = vpop.f32.mrf.mxu0
    %v5014 = vadd.f32 0.0, %v5013
    %v5015 = vpop.f32.mrf.mxu0
    %v5016 = vpop.f32.mrf.mxu0
    %v5017 = vpop.f32.mrf.mxu0
    %5018 = vdwg.mxu0
    %v5019 = vsel %vm4887, %v5014, -inf
    %5020 = vmax.xlane.f32.xlu0 %v5019
    %v5021 = vpop.xlane.xlu0 %5020
    %v5022 = vsub.f32 %v5014, %v5021
    %v5023 = vmul.f32 %v5022, 1.442695
    %v5024 = vpow.pop %v5023
    %v5025 = vsel %vm4887, %v5024, 0.0
    %5026 = vadd.xlane.f32.xlu0 %v5025
    %v5027 = vpop.xlane.xlu0 %5026
    %v5028 = vrcp.pop %v5027
    %v5029 = vmul.f32 %v5024, %v5028
    %v5030 = vpack.c.bf16 %v5029, %v5029
    %5033 = vrot.lane.b32.xlu0 %v4839, 96
    %v5034 = vpop.permute.xlu0 %5033
    %5035 = vrot.lane.b32.xlu0 %v4955, 96
    %v5036 = vpop.permute.xlu0 %5035
    %v5037 = vsel %vm4962, %v5034, %v5036
    %v5039 = vsel %vm4887, %v5030, 0
    %v5042 = vsel %vm4903, %v5037, 0
    %v5045 = vsel %vm4903, %v5036, 0
    %5047 = vmatprep.subr.bf16.mxu0 0
    %5048 = vmatpush1.bf16.msra.mxu0 0
    %5049 = vmatprep.subr.bf16.mxu0 0
    %5050 = vmatpush1.bf16.msra.mxu0 0
    %5051 = vmatprep.subr.bf16.mxu0 0
    %5052 = vmatpush1.bf16.msra.mxu0 0
    %5053 = vmatprep.subr.bf16.mxu0 0
    %5054 = vmatpush1.bf16.msra.mxu0 0
    %5055 = vmatprep.subr.bf16.mxu0 0
    %5056 = vmatpush1.bf16.msra.mxu0 0
    %5057 = vmatprep.subr.bf16.mxu0 0
    %5058 = vmatpush1.bf16.msra.mxu0 0
    %5059 = vmatprep.subr.bf16.mxu0 0
    %5060 = vmatpush1.bf16.msra.mxu0 0
    %5061 = vmatprep.subr.bf16.mxu0 %v5045
    %5062 = vmatpush1.bf16.msra.mxu0 %v5042
    %5063 = vmatprep.subr.bf16.mxu0 0
    %5064 = vmatpush2.bf16.msra.mxu0 0
    %5065 = vmatprep.subr.bf16.mxu0 0
    %5066 = vmatpush2.bf16.msra.mxu0 0
    %5067 = vmatprep.subr.bf16.mxu0 0
    %5068 = vmatpush2.bf16.msra.mxu0 0
    %5069 = vmatprep.subr.bf16.mxu0 0
    %5070 = vmatpush2.bf16.msra.mxu0 0
    %5071 = vmatprep.subr.bf16.mxu0 0
    %5072 = vmatpush2.bf16.msra.mxu0 0
    %5073 = vmatprep.subr.bf16.mxu0 0
    %5074 = vmatpush2.bf16.msra.mxu0 0
    %5075 = vmatprep.subr.bf16.mxu0 0
    %5076 = vmatpush2.bf16.msra.mxu0 0
    %5077 = vmatprep.subr.bf16.mxu0 0
    %5078 = vmatpush2.bf16.msra.mxu0 0
    %5079 = vmatprep.mubr.bf16.mxu0 0
    %5080 = vmatmul.mubr.bf16.gmra.mxu0 %v5039
    %v5081 = vpop.f32.mrf.mxu0
    %v5082 = vadd.f32 0.0, %v5081
    %v5083 = vpop.f32.mrf.mxu0
    %v5084 = vadd.f32 0.0, %v5083
    %v5085 = vpop.f32.mrf.mxu0
    %v5086 = vpop.f32.mrf.mxu0
    %5087 = vdwg.mxu0
    %v5088 = vpack.c.bf16 %v5082, %v5082
    %v5089 = vpack.c.bf16 %v5084, %v5084
    %v5090 = vpack.c.bf16 %v4095, %v4095
    %v5091 = vpack.c.bf16 %v4462, %v4462
    %v5092 = vpack.c.bf16 %v4710, %v4710
    %5094 = vrot.lane.b32.xlu0 %v4953, 64
    %v5095 = vpop.permute.xlu0 %5094
    %5096 = vrot.lane.b32.xlu0 %v5090, 64
    %v5097 = vpop.permute.xlu0 %5096
    %vm5098 = vcmask 523264
    %v5099 = vsel %vm5098, %v5095, %v5097
    %5102 = vrot.lane.b32.xlu0 %v4954, 64
    %v5103 = vpop.permute.xlu0 %5102
    %5104 = vrot.lane.b32.xlu0 %v5091, 64
    %v5105 = vpop.permute.xlu0 %5104
    %v5106 = vsel %vm5098, %v5103, %v5105
    %v5109 = vsel %vm4840, %v5097, 0
    %v5112 = vsel %vm4840, %v5105, 0
    %5114 = vmatprep.subr.bf16.mxu0 0
    %5115 = vmatpush1.bf16.xpose.msra.mxu0 0
    %5116 = vmatprep.subr.bf16.mxu0 0
    %5117 = vmatpush1.bf16.xpose.msra.mxu0 0
    %5118 = vmatprep.subr.bf16.mxu0 0
    %5119 = vmatpush1.bf16.xpose.msra.mxu0 0
    %5120 = vmatprep.subr.bf16.mxu0 0
    %5121 = vmatpush1.bf16.xpose.msra.mxu0 0
    %5122 = vmatprep.subr.bf16.mxu0 0
    %5123 = vmatpush1.bf16.xpose.msra.mxu0 0
    %5124 = vmatprep.subr.bf16.mxu0 0
    %5125 = vmatpush1.bf16.xpose.msra.mxu0 0
    %5126 = vmatprep.subr.bf16.mxu0 0
    %5127 = vmatpush1.bf16.xpose.msra.mxu0 0
    %5128 = vmatprep.subr.bf16.mxu0 %v5112
    %5129 = vmatpush1.bf16.xpose.msra.mxu0 %v5106
    %5130 = vmatprep.subr.bf16.mxu0 0
    %5131 = vmatpush2.bf16.xpose.msra.mxu0 0
    %5132 = vmatprep.subr.bf16.mxu0 0
    %5133 = vmatpush2.bf16.xpose.msra.mxu0 0
    %5134 = vmatprep.subr.bf16.mxu0 0
    %5135 = vmatpush2.bf16.xpose.msra.mxu0 0
    %5136 = vmatprep.subr.bf16.mxu0 0
    %5137 = vmatpush2.bf16.xpose.msra.mxu0 0
    %5138 = vmatprep.subr.bf16.mxu0 0
    %5139 = vmatpush2.bf16.xpose.msra.mxu0 0
    %5140 = vmatprep.subr.bf16.mxu0 0
    %5141 = vmatpush2.bf16.xpose.msra.mxu0 0
    %5142 = vmatprep.subr.bf16.mxu0 0
    %5143 = vmatpush2.bf16.xpose.msra.mxu0 0
    %5144 = vmatprep.subr.bf16.mxu0 0
    %5145 = vmatpush2.bf16.xpose.msra.mxu0 0
    %5146 = vmatprep.mubr.bf16.mxu0 %v5109
    %5147 = vmatmul.mubr.bf16.gmra.mxu0 %v5099
    %v5148 = vpop.f32.mrf.mxu0
    %v5149 = vadd.f32 0.0, %v5148
    %v5150 = vpop.f32.mrf.mxu0
    %v5151 = vpop.f32.mrf.mxu0
    %v5152 = vpop.f32.mrf.mxu0
    %5153 = vdwg.mxu0
    %v5154 = vsel %vm4887, %v5149, -inf
    %5155 = vmax.xlane.f32.xlu0 %v5154
    %v5156 = vpop.xlane.xlu0 %5155
    %v5157 = vsub.f32 %v5149, %v5156
    %v5158 = vmul.f32 %v5157, 1.442695
    %v5159 = vpow.pop %v5158
    %v5160 = vsel %vm4887, %v5159, 0.0
    %5161 = vadd.xlane.f32.xlu0 %v5160
    %v5162 = vpop.xlane.xlu0 %5161
    %v5163 = vrcp.pop %v5162
    %v5164 = vmul.f32 %v5159, %v5163
    %v5165 = vpack.c.bf16 %v5164, %v5164
    %5167 = vrot.lane.b32.xlu0 %v4955, 64
    %v5168 = vpop.permute.xlu0 %5167
    %5169 = vrot.lane.b32.xlu0 %v5092, 64
    %v5170 = vpop.permute.xlu0 %5169
    %v5171 = vsel %vm5098, %v5168, %v5170
    %v5173 = vsel %vm4887, %v5165, 0
    %v5176 = vsel %vm4903, %v5171, 0
    %v5179 = vsel %vm4903, %v5170, 0
    %5181 = vmatprep.subr.bf16.mxu0 0
    %5182 = vmatpush1.bf16.msra.mxu0 0
    %5183 = vmatprep.subr.bf16.mxu0 0
    %5184 = vmatpush1.bf16.msra.mxu0 0
    %5185 = vmatprep.subr.bf16.mxu0 0
    %5186 = vmatpush1.bf16.msra.mxu0 0
    %5187 = vmatprep.subr.bf16.mxu0 0
    %5188 = vmatpush1.bf16.msra.mxu0 0
    %5189 = vmatprep.subr.bf16.mxu0 0
    %5190 = vmatpush1.bf16.msra.mxu0 0
    %5191 = vmatprep.subr.bf16.mxu0 0
    %5192 = vmatpush1.bf16.msra.mxu0 0
    %5193 = vmatprep.subr.bf16.mxu0 0
    %5194 = vmatpush1.bf16.msra.mxu0 0
    %5195 = vmatprep.subr.bf16.mxu0 %v5179
    %5196 = vmatpush1.bf16.msra.mxu0 %v5176
    %5197 = vmatprep.subr.bf16.mxu0 0
    %5198 = vmatpush2.bf16.msra.mxu0 0
    %5199 = vmatprep.subr.bf16.mxu0 0
    %5200 = vmatpush2.bf16.msra.mxu0 0
    %5201 = vmatprep.subr.bf16.mxu0 0
    %5202 = vmatpush2.bf16.msra.mxu0 0
    %5203 = vmatprep.subr.bf16.mxu0 0
    %5204 = vmatpush2.bf16.msra.mxu0 0
    %5205 = vmatprep.subr.bf16.mxu0 0
    %5206 = vmatpush2.bf16.msra.mxu0 0
    %5207 = vmatprep.subr.bf16.mxu0 0
    %5208 = vmatpush2.bf16.msra.mxu0 0
    %5209 = vmatprep.subr.bf16.mxu0 0
    %5210 = vmatpush2.bf16.msra.mxu0 0
    %5211 = vmatprep.subr.bf16.mxu0 0
    %5212 = vmatpush2.bf16.msra.mxu0 0
    %5213 = vmatprep.mubr.bf16.mxu0 0
    %5214 = vmatmul.mubr.bf16.gmra.mxu0 %v5173
    %v5215 = vpop.f32.mrf.mxu0
    %v5216 = vadd.f32 0.0, %v5215
    %v5217 = vpop.f32.mrf.mxu0
    %v5218 = vadd.f32 0.0, %v5217
    %v5219 = vpop.f32.mrf.mxu0
    %v5220 = vpop.f32.mrf.mxu0
    %5221 = vdwg.mxu0
    %v5222 = vpack.c.bf16 %v5216, %v5216
    %v5223 = vpack.c.bf16 %v5218, %v5218
    %v5224 = vpack.c.bf16 %v4216, %v4216
    %v5225 = vpack.c.bf16 %v4464, %v4464
    %v5226 = vpack.c.bf16 %v4829, %v4829
    %5228 = vrot.lane.b32.xlu0 %v5090, 32
    %v5229 = vpop.permute.xlu0 %5228
    %5230 = vrot.lane.b32.xlu0 %v5224, 32
    %v5231 = vpop.permute.xlu0 %5230
    %vm5232 = vcmask 261120
    %v5233 = vsel %vm5232, %v5229, %v5231
    %5236 = vrot.lane.b32.xlu0 %v5091, 32
    %v5237 = vpop.permute.xlu0 %5236
    %5238 = vrot.lane.b32.xlu0 %v5225, 32
    %v5239 = vpop.permute.xlu0 %5238
    %v5240 = vsel %vm5232, %v5237, %v5239
    %v5243 = vsel %vm4840, %v5231, 0
    %v5246 = vsel %vm4840, %v5239, 0
    %5248 = vmatprep.subr.bf16.mxu0 0
    %5249 = vmatpush1.bf16.xpose.msra.mxu0 0
    %5250 = vmatprep.subr.bf16.mxu0 0
    %5251 = vmatpush1.bf16.xpose.msra.mxu0 0
    %5252 = vmatprep.subr.bf16.mxu0 0
    %5253 = vmatpush1.bf16.xpose.msra.mxu0 0
    %5254 = vmatprep.subr.bf16.mxu0 0
    %5255 = vmatpush1.bf16.xpose.msra.mxu0 0
    %5256 = vmatprep.subr.bf16.mxu0 0
    %5257 = vmatpush1.bf16.xpose.msra.mxu0 0
    %5258 = vmatprep.subr.bf16.mxu0 0
    %5259 = vmatpush1.bf16.xpose.msra.mxu0 0
    %5260 = vmatprep.subr.bf16.mxu0 0
    %5261 = vmatpush1.bf16.xpose.msra.mxu0 0
    %5262 = vmatprep.subr.bf16.mxu0 %v5246
    %5263 = vmatpush1.bf16.xpose.msra.mxu0 %v5240
    %5264 = vmatprep.subr.bf16.mxu0 0
    %5265 = vmatpush2.bf16.xpose.msra.mxu0 0
    %5266 = vmatprep.subr.bf16.mxu0 0
    %5267 = vmatpush2.bf16.xpose.msra.mxu0 0
    %5268 = vmatprep.subr.bf16.mxu0 0
    %5269 = vmatpush2.bf16.xpose.msra.mxu0 0
    %5270 = vmatprep.subr.bf16.mxu0 0
    %5271 = vmatpush2.bf16.xpose.msra.mxu0 0
    %5272 = vmatprep.subr.bf16.mxu0 0
    %5273 = vmatpush2.bf16.xpose.msra.mxu0 0
    %5274 = vmatprep.subr.bf16.mxu0 0
    %5275 = vmatpush2.bf16.xpose.msra.mxu0 0
    %5276 = vmatprep.subr.bf16.mxu0 0
    %5277 = vmatpush2.bf16.xpose.msra.mxu0 0
    %5278 = vmatprep.subr.bf16.mxu0 0
    %5279 = vmatpush2.bf16.xpose.msra.mxu0 0
    %5280 = vmatprep.mubr.bf16.mxu0 %v5243
    %5281 = vmatmul.mubr.bf16.gmra.mxu0 %v5233
    %v5282 = vpop.f32.mrf.mxu0
    %v5283 = vadd.f32 0.0, %v5282
    %v5284 = vpop.f32.mrf.mxu0
    %v5285 = vpop.f32.mrf.mxu0
    %v5286 = vpop.f32.mrf.mxu0
    %5287 = vdwg.mxu0
    %v5288 = vsel %vm4887, %v5283, -inf
    %5289 = vmax.xlane.f32.xlu0 %v5288
    %v5290 = vpop.xlane.xlu0 %5289
    %v5291 = vsub.f32 %v5283, %v5290
    %v5292 = vmul.f32 %v5291, 1.442695
    %v5293 = vpow.pop %v5292
    %v5294 = vsel %vm4887, %v5293, 0.0
    %5295 = vadd.xlane.f32.xlu0 %v5294
    %v5296 = vpop.xlane.xlu0 %5295
    %v5297 = vrcp.pop %v5296
    %v5298 = vmul.f32 %v5293, %v5297
    %v5299 = vpack.c.bf16 %v5298, %v5298
    %5301 = vrot.lane.b32.xlu0 %v5092, 32
    %v5302 = vpop.permute.xlu0 %5301
    %5303 = vrot.lane.b32.xlu0 %v5226, 32
    %v5304 = vpop.permute.xlu0 %5303
    %v5305 = vsel %vm5232, %v5302, %v5304
    %v5307 = vsel %vm4887, %v5299, 0
    %v5310 = vsel %vm4903, %v5305, 0
    %v5313 = vsel %vm4903, %v5304, 0
    %5315 = vmatprep.subr.bf16.mxu0 0
    %5316 = vmatpush1.bf16.msra.mxu0 0
    %5317 = vmatprep.subr.bf16.mxu0 0
    %5318 = vmatpush1.bf16.msra.mxu0 0
    %5319 = vmatprep.subr.bf16.mxu0 0
    %5320 = vmatpush1.bf16.msra.mxu0 0
    %5321 = vmatprep.subr.bf16.mxu0 0
    %5322 = vmatpush1.bf16.msra.mxu0 0
    %5323 = vmatprep.subr.bf16.mxu0 0
    %5324 = vmatpush1.bf16.msra.mxu0 0
    %5325 = vmatprep.subr.bf16.mxu0 0
    %5326 = vmatpush1.bf16.msra.mxu0 0
    %5327 = vmatprep.subr.bf16.mxu0 0
    %5328 = vmatpush1.bf16.msra.mxu0 0
    %5329 = vmatprep.subr.bf16.mxu0 %v5313
    %5330 = vmatpush1.bf16.msra.mxu0 %v5310
    %5331 = vmatprep.subr.bf16.mxu0 0
    %5332 = vmatpush2.bf16.msra.mxu0 0
    %5333 = vmatprep.subr.bf16.mxu0 0
    %5334 = vmatpush2.bf16.msra.mxu0 0
    %5335 = vmatprep.subr.bf16.mxu0 0
    %5336 = vmatpush2.bf16.msra.mxu0 0
    %5337 = vmatprep.subr.bf16.mxu0 0
    %5338 = vmatpush2.bf16.msra.mxu0 0
    %5339 = vmatprep.subr.bf16.mxu0 0
    %5340 = vmatpush2.bf16.msra.mxu0 0
    %5341 = vmatprep.subr.bf16.mxu0 0
    %5342 = vmatpush2.bf16.msra.mxu0 0
    %5343 = vmatprep.subr.bf16.mxu0 0
    %5344 = vmatpush2.bf16.msra.mxu0 0
    %5345 = vmatprep.subr.bf16.mxu0 0
    %5346 = vmatpush2.bf16.msra.mxu0 0
    %5347 = vmatprep.mubr.bf16.mxu0 0
    %5348 = vmatmul.mubr.bf16.gmra.mxu0 %v5307
    %v5349 = vpop.f32.mrf.mxu0
    %v5350 = vadd.f32 0.0, %v5349
    %v5351 = vpop.f32.mrf.mxu0
    %v5352 = vadd.f32 0.0, %v5351
    %v5353 = vpop.f32.mrf.mxu0
    %v5354 = vpop.f32.mrf.mxu0
    %5355 = vdwg.mxu0
    %v5356 = vpack.c.bf16 %v5350, %v5350
    %v5357 = vpack.c.bf16 %v5352, %v5352
    %5360 = vrot.lane.b32.xlu0 %v5088, 32
    %v5361 = vpop.permute.xlu0 %5360
    %5362 = vrot.lane.b32.xlu0 %v5089, 32
    %v5363 = vpop.permute.xlu0 %5362
    %v5364 = vsel %vm5232, %v5361, %v5363
    %5367 = vrot.lane.b32.xlu0 %v5222, 64
    %v5368 = vpop.permute.xlu0 %5367
    %5369 = vrot.lane.b32.xlu0 %v5223, 64
    %v5370 = vpop.permute.xlu0 %5369
    %v5371 = vsel %vm5098, %v5368, %v5370
    %5374 = vrot.lane.b32.xlu0 %v5356, 96
    %v5375 = vpop.permute.xlu0 %5374
    %5376 = vrot.lane.b32.xlu0 %v5357, 96
    %v5377 = vpop.permute.xlu0 %5376
    %v5378 = vsel %vm4962, %v5375, %v5377
    %v5382 = vsel %vm4840, %v4952, %v5361
    %vm5384 = vcmask 523264
    %v5387 = vsel %vm5384, %v5364, %v5368
    %vm5389 = vcmask 785408
    %v5392 = vsel %vm5389, %v5371, %v5375
    %v5394 = vld [vmem:[#allocation8] sm:$0xff]
    %v5395 = vld [vmem:[#allocation8 + $0x8] sm:$0xff]
    %v5396 = vld [vmem:[#allocation8 + $0x10] sm:$0xf]
    %v5397 = vld [vmem:[#allocation8 + $0x14] sm:$0xff]
    %v5398 = vld [vmem:[#allocation8 + $0x1c] sm:$0xff]
    %v5399 = vld [vmem:[#allocation8 + $0x24] sm:$0xf]
    %v5400 = vld [vmem:[#allocation8 + $0x28] sm:$0xff]
    %v5401 = vld [vmem:[#allocation8 + $0x30] sm:$0xff]
    %v5402 = vld [vmem:[#allocation8 + $0x38] sm:$0xf]
    %v5403 = vld [vmem:[#allocation8 + $0x3c] sm:$0xff]
    %v5404 = vld [vmem:[#allocation8 + $0x44] sm:$0xff]
    %v5405 = vld [vmem:[#allocation8 + $0x4c] sm:$0xf]
    %v5406 = vld [vmem:[#allocation8 + $0x50] sm:$0xff]
    %v5407 = vld [vmem:[#allocation8 + $0x58] sm:$0xff]
    %v5408 = vld [vmem:[#allocation8 + $0x60] sm:$0xf]
    %v5409 = vld [vmem:[#allocation8 + $0x64] sm:$0xff]
    %v5410 = vld [vmem:[#allocation8 + $0x6c] sm:$0xff]
    %v5411 = vld [vmem:[#allocation8 + $0x74] sm:$0xf]
    %v5412 = vld [vmem:[#allocation8 + $0x78] sm:$0xff]
    %v5413 = vld [vmem:[#allocation8 + $0x80] sm:$0xff]
    %v5414 = vld [vmem:[#allocation8 + $0x88] sm:$0xf]
    %v5415 = vld [vmem:[#allocation8 + $0x8c] sm:$0xff]
    %v5416 = vld [vmem:[#allocation8 + $0x94] sm:$0xff]
    %v5417 = vld [vmem:[#allocation8 + $0x9c] sm:$0xf]
    %v5418 = vld [vmem:[#allocation8 + $0xa0] sm:$0xff]
    %v5419 = vld [vmem:[#allocation8 + $0xa8] sm:$0xff]
    %v5420 = vld [vmem:[#allocation8 + $0xb0] sm:$0xf]
    %v5421 = vld [vmem:[#allocation8 + $0xb4] sm:$0xff]
    %v5422 = vld [vmem:[#allocation8 + $0xbc] sm:$0xff]
    %v5423 = vld [vmem:[#allocation8 + $0xc4] sm:$0xf]
    %v5424 = vld [vmem:[#allocation8 + $0xc8] sm:$0xff]
    %v5425 = vld [vmem:[#allocation8 + $0xd0] sm:$0xff]
    %v5426 = vld [vmem:[#allocation8 + $0xd8] sm:$0xf]
    %v5427 = vld [vmem:[#allocation8 + $0xdc] sm:$0xff]
    %v5428 = vld [vmem:[#allocation8 + $0xe4] sm:$0xff]
    %v5429 = vld [vmem:[#allocation8 + $0xec] sm:$0xf]
    %v5430 = vld [vmem:[#allocation8 + $0xf0] sm:$0xff]
    %v5431 = vld [vmem:[#allocation8 + $0xf8] sm:$0xff]
    %v5432 = vld [vmem:[#allocation8 + $0x100] sm:$0xf]
    %v5433 = vld [vmem:[#allocation8 + $0x104] sm:$0xff]
    %v5434 = vld [vmem:[#allocation8 + $0x10c] sm:$0xff]
    %v5435 = vld [vmem:[#allocation8 + $0x114] sm:$0xf]
    %v5436 = vld [vmem:[#allocation8 + $0x118] sm:$0xff]
    %v5437 = vld [vmem:[#allocation8 + $0x120] sm:$0xff]
    %v5438 = vld [vmem:[#allocation8 + $0x128] sm:$0xf]
    %v5439 = vld [vmem:[#allocation8 + $0x12c] sm:$0xff]
    %v5440 = vld [vmem:[#allocation8 + $0x134] sm:$0xff]
    %v5441 = vld [vmem:[#allocation8 + $0x13c] sm:$0xf]
    %v5442 = vld [vmem:[#allocation8 + $0x140] sm:$0xff]
    %v5443 = vld [vmem:[#allocation8 + $0x148] sm:$0xff]
    %v5444 = vld [vmem:[#allocation8 + $0x150] sm:$0xf]
    %v5445 = vld [vmem:[#allocation8 + $0x154] sm:$0xff]
    %v5446 = vld [vmem:[#allocation8 + $0x15c] sm:$0xff]
    %v5447 = vld [vmem:[#allocation8 + $0x164] sm:$0xf]
    %v5448 = vld [vmem:[#allocation8 + $0x168] sm:$0xff]
    %v5449 = vld [vmem:[#allocation8 + $0x170] sm:$0xff]
    %v5450 = vld [vmem:[#allocation8 + $0x178] sm:$0xf]
    %v5451 = vld [vmem:[#allocation8 + $0x17c] sm:$0xff]
    %v5452 = vld [vmem:[#allocation8 + $0x184] sm:$0xff]
    %v5453 = vld [vmem:[#allocation8 + $0x18c] sm:$0xf]
    %v5454 = vld [vmem:[#allocation8 + $0x190] sm:$0xff]
    %v5455 = vld [vmem:[#allocation8 + $0x198] sm:$0xff]
    %v5456 = vld [vmem:[#allocation8 + $0x1a0] sm:$0xf]
    %v5457 = vld [vmem:[#allocation8 + $0x1a4] sm:$0xff]
    %v5458 = vld [vmem:[#allocation8 + $0x1ac] sm:$0xff]
    %v5459 = vld [vmem:[#allocation8 + $0x1b4] sm:$0xf]
    %v5460 = vld [vmem:[#allocation8 + $0x1b8] sm:$0xff]
    %v5461 = vld [vmem:[#allocation8 + $0x1c0] sm:$0xff]
    %v5462 = vld [vmem:[#allocation8 + $0x1c8] sm:$0xf]
    %v5463 = vld [vmem:[#allocation8 + $0x1cc] sm:$0xff]
    %v5464 = vld [vmem:[#allocation8 + $0x1d4] sm:$0xff]
    %v5465 = vld [vmem:[#allocation8 + $0x1dc] sm:$0xf]
    %v5466 = vld [vmem:[#allocation8 + $0x1e0] sm:$0xff]
    %v5467 = vld [vmem:[#allocation8 + $0x1e8] sm:$0xff]
    %v5468 = vld [vmem:[#allocation8 + $0x1f0] sm:$0xf]
    %v5469 = vld [vmem:[#allocation8 + $0x1f4] sm:$0xff]
    %v5470 = vld [vmem:[#allocation8 + $0x1fc] sm:$0xff]
    %v5471 = vld [vmem:[#allocation8 + $0x204] sm:$0xf]
    %v5472 = vld [vmem:[#allocation8 + $0x208] sm:$0xff]
    %v5473 = vld [vmem:[#allocation8 + $0x210] sm:$0xff]
    %v5474 = vld [vmem:[#allocation8 + $0x218] sm:$0xf]
    %v5475 = vld [vmem:[#allocation8 + $0x21c] sm:$0xff]
    %v5476 = vld [vmem:[#allocation8 + $0x224] sm:$0xff]
    %v5477 = vld [vmem:[#allocation8 + $0x22c] sm:$0xf]
    %v5478 = vld [vmem:[#allocation8 + $0x230] sm:$0xff]
    %v5479 = vld [vmem:[#allocation8 + $0x238] sm:$0xff]
    %v5480 = vld [vmem:[#allocation8 + $0x240] sm:$0xf]
    %v5481 = vld [vmem:[#allocation8 + $0x244] sm:$0xff]
    %v5482 = vld [vmem:[#allocation8 + $0x24c] sm:$0xff]
    %v5483 = vld [vmem:[#allocation8 + $0x254] sm:$0xf]
    %v5484 = vld [vmem:[#allocation8 + $0x258] sm:$0xff]
    %v5485 = vld [vmem:[#allocation8 + $0x260] sm:$0xff]
    %v5486 = vld [vmem:[#allocation8 + $0x268] sm:$0xf]
    %v5487 = vld [vmem:[#allocation8 + $0x26c] sm:$0xff]
    %v5488 = vld [vmem:[#allocation8 + $0x274] sm:$0xff]
    %v5489 = vld [vmem:[#allocation8 + $0x27c] sm:$0xf]
    %v5490 = vld [vmem:[#allocation8 + $0x280] sm:$0xff]
    %v5491 = vld [vmem:[#allocation8 + $0x288] sm:$0xff]
    %v5492 = vld [vmem:[#allocation8 + $0x290] sm:$0xf]
    %v5493 = vld [vmem:[#allocation8 + $0x294] sm:$0xff]
    %v5494 = vld [vmem:[#allocation8 + $0x29c] sm:$0xff]
    %v5495 = vld [vmem:[#allocation8 + $0x2a4] sm:$0xf]
    %v5496 = vld [vmem:[#allocation8 + $0x2a8] sm:$0xff]
    %v5497 = vld [vmem:[#allocation8 + $0x2b0] sm:$0xff]
    %v5498 = vld [vmem:[#allocation8 + $0x2b8] sm:$0xf]
    %v5499 = vld [vmem:[#allocation8 + $0x2bc] sm:$0xff]
    %v5500 = vld [vmem:[#allocation8 + $0x2c4] sm:$0xff]
    %v5501 = vld [vmem:[#allocation8 + $0x2cc] sm:$0xf]
    %v5502 = vld [vmem:[#allocation8 + $0x2d0] sm:$0xff]
    %v5503 = vld [vmem:[#allocation8 + $0x2d8] sm:$0xff]
    %v5504 = vld [vmem:[#allocation8 + $0x2e0] sm:$0xf]
    %v5505 = vld [vmem:[#allocation8 + $0x2e4] sm:$0xff]
    %v5506 = vld [vmem:[#allocation8 + $0x2ec] sm:$0xff]
    %v5507 = vld [vmem:[#allocation8 + $0x2f4] sm:$0xf]
    %v5508 = vld [vmem:[#allocation8 + $0x2f8] sm:$0xff]
    %v5509 = vld [vmem:[#allocation8 + $0x300] sm:$0xff]
    %v5510 = vld [vmem:[#allocation8 + $0x308] sm:$0xf]
    %v5511 = vld [vmem:[#allocation8 + $0x30c] sm:$0xff]
    %v5512 = vld [vmem:[#allocation8 + $0x314] sm:$0xff]
    %v5513 = vld [vmem:[#allocation8 + $0x31c] sm:$0xf]
    %v5514 = vld [vmem:[#allocation8 + $0x320] sm:$0xff]
    %v5515 = vld [vmem:[#allocation8 + $0x328] sm:$0xff]
    %v5516 = vld [vmem:[#allocation8 + $0x330] sm:$0xf]
    %v5517 = vld [vmem:[#allocation8 + $0x334] sm:$0xff]
    %v5518 = vld [vmem:[#allocation8 + $0x33c] sm:$0xff]
    %v5519 = vld [vmem:[#allocation8 + $0x344] sm:$0xf]
    %v5520 = vld [vmem:[#allocation8 + $0x348] sm:$0xff]
    %v5521 = vld [vmem:[#allocation8 + $0x350] sm:$0xff]
    %v5522 = vld [vmem:[#allocation8 + $0x358] sm:$0xf]
    %v5523 = vld [vmem:[#allocation8 + $0x35c] sm:$0xff]
    %v5524 = vld [vmem:[#allocation8 + $0x364] sm:$0xff]
    %v5525 = vld [vmem:[#allocation8 + $0x36c] sm:$0xf]
    %v5526 = vld [vmem:[#allocation8 + $0x370] sm:$0xff]
    %v5527 = vld [vmem:[#allocation8 + $0x378] sm:$0xff]
    %v5528 = vld [vmem:[#allocation8 + $0x380] sm:$0xf]
    %v5529 = vld [vmem:[#allocation8 + $0x384] sm:$0xff]
    %v5530 = vld [vmem:[#allocation8 + $0x38c] sm:$0xff]
    %v5531 = vld [vmem:[#allocation8 + $0x394] sm:$0xf]
    %v5532 = vld [vmem:[#allocation8 + $0x398] sm:$0xff]
    %v5533 = vld [vmem:[#allocation8 + $0x3a0] sm:$0xff]
    %v5534 = vld [vmem:[#allocation8 + $0x3a8] sm:$0xf]
    %v5535 = vld [vmem:[#allocation8 + $0x3ac] sm:$0xff]
    %v5536 = vld [vmem:[#allocation8 + $0x3b4] sm:$0xff]
    %v5537 = vld [vmem:[#allocation8 + $0x3bc] sm:$0xf]
    %v5538 = vld [vmem:[#allocation8 + $0x3c0] sm:$0xff]
    %v5539 = vld [vmem:[#allocation8 + $0x3c8] sm:$0xff]
    %v5540 = vld [vmem:[#allocation8 + $0x3d0] sm:$0xf]
    %v5541 = vld [vmem:[#allocation8 + $0x3d4] sm:$0xff]
    %v5542 = vld [vmem:[#allocation8 + $0x3dc] sm:$0xff]
    %v5543 = vld [vmem:[#allocation8 + $0x3e4] sm:$0xf]
    %v5544 = vld [vmem:[#allocation8 + $0x3e8] sm:$0xff]
    %v5545 = vld [vmem:[#allocation8 + $0x3f0] sm:$0xff]
    %v5546 = vld [vmem:[#allocation8 + $0x3f8] sm:$0xf]
    %v5547 = vld [vmem:[#allocation8 + $0x3fc] sm:$0xff]
    %v5548 = vld [vmem:[#allocation8 + $0x404] sm:$0xff]
    %v5549 = vld [vmem:[#allocation8 + $0x40c] sm:$0xf]
    %v5550 = vld [vmem:[#allocation8 + $0x410] sm:$0xff]
    %v5551 = vld [vmem:[#allocation8 + $0x418] sm:$0xff]
    %v5552 = vld [vmem:[#allocation8 + $0x420] sm:$0xf]
    %v5553 = vld [vmem:[#allocation8 + $0x424] sm:$0xff]
    %v5554 = vld [vmem:[#allocation8 + $0x42c] sm:$0xff]
    %v5555 = vld [vmem:[#allocation8 + $0x434] sm:$0xf]
    %v5556 = vld [vmem:[#allocation8 + $0x438] sm:$0xff]
    %v5557 = vld [vmem:[#allocation8 + $0x440] sm:$0xff]
    %v5558 = vld [vmem:[#allocation8 + $0x448] sm:$0xf]
    %v5559 = vld [vmem:[#allocation8 + $0x44c] sm:$0xff]
    %v5560 = vld [vmem:[#allocation8 + $0x454] sm:$0xff]
    %v5561 = vld [vmem:[#allocation8 + $0x45c] sm:$0xf]
    %v5562 = vld [vmem:[#allocation8 + $0x460] sm:$0xff]
    %v5563 = vld [vmem:[#allocation8 + $0x468] sm:$0xff]
    %v5564 = vld [vmem:[#allocation8 + $0x470] sm:$0xf]
    %v5565 = vld [vmem:[#allocation8 + $0x474] sm:$0xff]
    %v5566 = vld [vmem:[#allocation8 + $0x47c] sm:$0xff]
    %v5567 = vld [vmem:[#allocation8 + $0x484] sm:$0xf]
    %v5568 = vld [vmem:[#allocation8 + $0x488] sm:$0xff]
    %v5569 = vld [vmem:[#allocation8 + $0x490] sm:$0xff]
    %v5570 = vld [vmem:[#allocation8 + $0x498] sm:$0xf]
    %v5571 = vld [vmem:[#allocation8 + $0x49c] sm:$0xff]
    %v5572 = vld [vmem:[#allocation8 + $0x4a4] sm:$0xff]
    %v5573 = vld [vmem:[#allocation8 + $0x4ac] sm:$0xf]
    %v5574 = vld [vmem:[#allocation8 + $0x4b0] sm:$0xff]
    %v5575 = vld [vmem:[#allocation8 + $0x4b8] sm:$0xff]
    %v5576 = vld [vmem:[#allocation8 + $0x4c0] sm:$0xf]
    %v5577 = vld [vmem:[#allocation8 + $0x4c4] sm:$0xff]
    %v5578 = vld [vmem:[#allocation8 + $0x4cc] sm:$0xff]
    %v5579 = vld [vmem:[#allocation8 + $0x4d4] sm:$0xf]
    %v5580 = vld [vmem:[#allocation8 + $0x4d8] sm:$0xff]
    %v5581 = vld [vmem:[#allocation8 + $0x4e0] sm:$0xff]
    %v5582 = vld [vmem:[#allocation8 + $0x4e8] sm:$0xf]
    %v5583 = vld [vmem:[#allocation8 + $0x4ec] sm:$0xff]
    %v5584 = vld [vmem:[#allocation8 + $0x4f4] sm:$0xff]
    %v5585 = vld [vmem:[#allocation8 + $0x4fc] sm:$0xf]
    %v5586 = vld [vmem:[#allocation8 + $0x500] sm:$0xff]
    %v5587 = vld [vmem:[#allocation8 + $0x508] sm:$0xff]
    %v5588 = vld [vmem:[#allocation8 + $0x510] sm:$0xf]
    %v5589 = vld [vmem:[#allocation8 + $0x514] sm:$0xff]
    %v5590 = vld [vmem:[#allocation8 + $0x51c] sm:$0xff]
    %v5591 = vld [vmem:[#allocation8 + $0x524] sm:$0xf]
    %v5592 = vld [vmem:[#allocation8 + $0x528] sm:$0xff]
    %v5593 = vld [vmem:[#allocation8 + $0x530] sm:$0xff]
    %v5594 = vld [vmem:[#allocation8 + $0x538] sm:$0xf]
    %v5595 = vld [vmem:[#allocation8 + $0x53c] sm:$0xff]
    %v5596 = vld [vmem:[#allocation8 + $0x544] sm:$0xff]
    %v5597 = vld [vmem:[#allocation8 + $0x54c] sm:$0xf]
    %v5598 = vld [vmem:[#allocation8 + $0x550] sm:$0xff]
    %v5599 = vld [vmem:[#allocation8 + $0x558] sm:$0xff]
    %v5600 = vld [vmem:[#allocation8 + $0x560] sm:$0xf]
    %v5601 = vld [vmem:[#allocation8 + $0x564] sm:$0xff]
    %v5602 = vld [vmem:[#allocation8 + $0x56c] sm:$0xff]
    %v5603 = vld [vmem:[#allocation8 + $0x574] sm:$0xf]
    %v5604 = vld [vmem:[#allocation8 + $0x578] sm:$0xff]
    %v5605 = vld [vmem:[#allocation8 + $0x580] sm:$0xff]
    %v5606 = vld [vmem:[#allocation8 + $0x588] sm:$0xf]
    %v5607 = vld [vmem:[#allocation8 + $0x58c] sm:$0xff]
    %v5608 = vld [vmem:[#allocation8 + $0x594] sm:$0xff]
    %v5609 = vld [vmem:[#allocation8 + $0x59c] sm:$0xf]
    %v5610 = vld [vmem:[#allocation8 + $0x5a0] sm:$0xff]
    %v5611 = vld [vmem:[#allocation8 + $0x5a8] sm:$0xff]
    %v5612 = vld [vmem:[#allocation8 + $0x5b0] sm:$0xf]
    %v5613 = vld [vmem:[#allocation8 + $0x5b4] sm:$0xff]
    %v5614 = vld [vmem:[#allocation8 + $0x5bc] sm:$0xff]
    %v5615 = vld [vmem:[#allocation8 + $0x5c4] sm:$0xf]
    %v5616 = vld [vmem:[#allocation8 + $0x5c8] sm:$0xff]
    %v5617 = vld [vmem:[#allocation8 + $0x5d0] sm:$0xff]
    %v5618 = vld [vmem:[#allocation8 + $0x5d8] sm:$0xf]
    %v5619 = vld [vmem:[#allocation8 + $0x5dc] sm:$0xff]
    %v5620 = vld [vmem:[#allocation8 + $0x5e4] sm:$0xff]
    %v5621 = vld [vmem:[#allocation8 + $0x5ec] sm:$0xf]
    %v5622 = vld [vmem:[#allocation8 + $0x5f0] sm:$0xff]
    %v5623 = vld [vmem:[#allocation8 + $0x5f8] sm:$0xff]
    %v5624 = vld [vmem:[#allocation8 + $0x600] sm:$0xf]
    %v5625 = vld [vmem:[#allocation8 + $0x604] sm:$0xff]
    %v5626 = vld [vmem:[#allocation8 + $0x60c] sm:$0xff]
    %v5627 = vld [vmem:[#allocation8 + $0x614] sm:$0xf]
    %v5628 = vld [vmem:[#allocation8 + $0x618] sm:$0xff]
    %v5629 = vld [vmem:[#allocation8 + $0x620] sm:$0xff]
    %v5630 = vld [vmem:[#allocation8 + $0x628] sm:$0xf]
    %v5631 = vld [vmem:[#allocation8 + $0x62c] sm:$0xff]
    %v5632 = vld [vmem:[#allocation8 + $0x634] sm:$0xff]
    %v5633 = vld [vmem:[#allocation8 + $0x63c] sm:$0xf]
    %v5634 = vld [vmem:[#allocation10] sm:$0x1f]
    %v5636 = vlaneseq
    %v5637 = vshrl.u32 %v5636, 7
    %v5638 = vsub.s32 0, %v5637
    %v5639 = vrot.slane %v5634, %v5638
    %v5640 = vlaneseq
    %v5641 = vshrl.u32 %v5640, 7
    %v5642 = vsub.s32 1, %v5641
    %v5643 = vrot.slane %v5634, %v5642
    %v5644 = vlaneseq
    %v5645 = vshrl.u32 %v5644, 7
    %v5646 = vsub.s32 2, %v5645
    %v5647 = vrot.slane %v5634, %v5646
    %v5648 = vlaneseq
    %v5649 = vshrl.u32 %v5648, 7
    %v5650 = vsub.s32 3, %v5649
    %v5651 = vrot.slane %v5634, %v5650
    %v5652 = vlaneseq
    %v5653 = vshrl.u32 %v5652, 7
    %v5654 = vsub.s32 4, %v5653
    %v5655 = vrot.slane %v5634, %v5654
    %v5901 = vunpack.c.l.b16 %v5394
    %v5902 = vunpack.c.h.b16 %v5394
    %v5903 = vunpack.c.l.b16 %v5395
    %v5904 = vunpack.c.h.b16 %v5395
    %v5905 = vunpack.c.l.b16 %v5396
    %v5906 = vunpack.c.l.b16 %v5397
    %v5907 = vunpack.c.h.b16 %v5397
    %v5908 = vunpack.c.l.b16 %v5398
    %v5909 = vunpack.c.h.b16 %v5398
    %v5910 = vunpack.c.l.b16 %v5399
    %v5911 = vunpack.c.l.b16 %v5400
    %v5912 = vunpack.c.h.b16 %v5400
    %v5913 = vunpack.c.l.b16 %v5401
    %v5914 = vunpack.c.h.b16 %v5401
    %v5915 = vunpack.c.l.b16 %v5402
    %v5916 = vunpack.c.l.b16 %v5403
    %v5917 = vunpack.c.h.b16 %v5403
    %v5918 = vunpack.c.l.b16 %v5404
    %v5919 = vunpack.c.h.b16 %v5404
    %v5920 = vunpack.c.l.b16 %v5405
    %v5921 = vunpack.c.l.b16 %v5406
    %v5922 = vunpack.c.h.b16 %v5406
    %v5923 = vunpack.c.l.b16 %v5407
    %v5924 = vunpack.c.h.b16 %v5407
    %v5925 = vunpack.c.l.b16 %v5408
    %v5926 = vunpack.c.l.b16 %v5409
    %v5927 = vunpack.c.h.b16 %v5409
    %v5928 = vunpack.c.l.b16 %v5410
    %v5929 = vunpack.c.h.b16 %v5410
    %v5930 = vunpack.c.l.b16 %v5411
    %v5931 = vunpack.c.l.b16 %v5412
    %v5932 = vunpack.c.h.b16 %v5412
    %v5933 = vunpack.c.l.b16 %v5413
    %v5934 = vunpack.c.h.b16 %v5413
    %v5935 = vunpack.c.l.b16 %v5414
    %v5936 = vunpack.c.l.b16 %v5415
    %v5937 = vunpack.c.h.b16 %v5415
    %v5938 = vunpack.c.l.b16 %v5416
    %v5939 = vunpack.c.h.b16 %v5416
    %v5940 = vunpack.c.l.b16 %v5417
    %v5941 = vunpack.c.l.b16 %v5418
    %v5942 = vunpack.c.h.b16 %v5418
    %v5943 = vunpack.c.l.b16 %v5419
    %v5944 = vunpack.c.h.b16 %v5419
    %v5945 = vunpack.c.l.b16 %v5420
    %v5946 = vunpack.c.l.b16 %v5421
    %v5947 = vunpack.c.h.b16 %v5421
    %v5948 = vunpack.c.l.b16 %v5422
    %v5949 = vunpack.c.h.b16 %v5422
    %v5950 = vunpack.c.l.b16 %v5423
    %v5951 = vunpack.c.l.b16 %v5424
    %v5952 = vunpack.c.h.b16 %v5424
    %v5953 = vunpack.c.l.b16 %v5425
    %v5954 = vunpack.c.h.b16 %v5425
    %v5955 = vunpack.c.l.b16 %v5426
    %v5956 = vunpack.c.l.b16 %v5427
    %v5957 = vunpack.c.h.b16 %v5427
    %v5958 = vunpack.c.l.b16 %v5428
    %v5959 = vunpack.c.h.b16 %v5428
    %v5960 = vunpack.c.l.b16 %v5429
    %v5961 = vunpack.c.l.b16 %v5430
    %v5962 = vunpack.c.h.b16 %v5430
    %v5963 = vunpack.c.l.b16 %v5431
    %v5964 = vunpack.c.h.b16 %v5431
    %v5965 = vunpack.c.l.b16 %v5432
    %v5966 = vunpack.c.l.b16 %v5433
    %v5967 = vunpack.c.h.b16 %v5433
    %v5968 = vunpack.c.l.b16 %v5434
    %v5969 = vunpack.c.h.b16 %v5434
    %v5970 = vunpack.c.l.b16 %v5435
    %v5971 = vunpack.c.l.b16 %v5436
    %v5972 = vunpack.c.h.b16 %v5436
    %v5973 = vunpack.c.l.b16 %v5437
    %v5974 = vunpack.c.h.b16 %v5437
    %v5975 = vunpack.c.l.b16 %v5438
    %v5976 = vunpack.c.l.b16 %v5439
    %v5977 = vunpack.c.h.b16 %v5439
    %v5978 = vunpack.c.l.b16 %v5440
    %v5979 = vunpack.c.h.b16 %v5440
    %v5980 = vunpack.c.l.b16 %v5441
    %v5981 = vunpack.c.l.b16 %v5442
    %v5982 = vunpack.c.h.b16 %v5442
    %v5983 = vunpack.c.l.b16 %v5443
    %v5984 = vunpack.c.h.b16 %v5443
    %v5985 = vunpack.c.l.b16 %v5444
    %v5986 = vunpack.c.l.b16 %v5445
    %v5987 = vunpack.c.h.b16 %v5445
    %v5988 = vunpack.c.l.b16 %v5446
    %v5989 = vunpack.c.h.b16 %v5446
    %v5990 = vunpack.c.l.b16 %v5447
    %v5991 = vunpack.c.l.b16 %v5448
    %v5992 = vunpack.c.h.b16 %v5448
    %v5993 = vunpack.c.l.b16 %v5449
    %v5994 = vunpack.c.h.b16 %v5449
    %v5995 = vunpack.c.l.b16 %v5450
    %v5996 = vunpack.c.l.b16 %v5451
    %v5997 = vunpack.c.h.b16 %v5451
    %v5998 = vunpack.c.l.b16 %v5452
    %v5999 = vunpack.c.h.b16 %v5452
    %v6000 = vunpack.c.l.b16 %v5453
    %v6001 = vunpack.c.l.b16 %v5454
    %v6002 = vunpack.c.h.b16 %v5454
    %v6003 = vunpack.c.l.b16 %v5455
    %v6004 = vunpack.c.h.b16 %v5455
    %v6005 = vunpack.c.l.b16 %v5456
    %v6006 = vunpack.c.l.b16 %v5457
    %v6007 = vunpack.c.h.b16 %v5457
    %v6008 = vunpack.c.l.b16 %v5458
    %v6009 = vunpack.c.h.b16 %v5458
    %v6010 = vunpack.c.l.b16 %v5459
    %v6011 = vunpack.c.l.b16 %v5460
    %v6012 = vunpack.c.h.b16 %v5460
    %v6013 = vunpack.c.l.b16 %v5461
    %v6014 = vunpack.c.h.b16 %v5461
    %v6015 = vunpack.c.l.b16 %v5462
    %v6016 = vunpack.c.l.b16 %v5463
    %v6017 = vunpack.c.h.b16 %v5463
    %v6018 = vunpack.c.l.b16 %v5464
    %v6019 = vunpack.c.h.b16 %v5464
    %v6020 = vunpack.c.l.b16 %v5465
    %v6021 = vunpack.c.l.b16 %v5466
    %v6022 = vunpack.c.h.b16 %v5466
    %v6023 = vunpack.c.l.b16 %v5467
    %v6024 = vunpack.c.h.b16 %v5467
    %v6025 = vunpack.c.l.b16 %v5468
    %v6026 = vunpack.c.l.b16 %v5469
    %v6027 = vunpack.c.h.b16 %v5469
    %v6028 = vunpack.c.l.b16 %v5470
    %v6029 = vunpack.c.h.b16 %v5470
    %v6030 = vunpack.c.l.b16 %v5471
    %v6031 = vunpack.c.l.b16 %v5472
    %v6032 = vunpack.c.h.b16 %v5472
    %v6033 = vunpack.c.l.b16 %v5473
    %v6034 = vunpack.c.h.b16 %v5473
    %v6035 = vunpack.c.l.b16 %v5474
    %v6036 = vunpack.c.l.b16 %v5475
    %v6037 = vunpack.c.h.b16 %v5475
    %v6038 = vunpack.c.l.b16 %v5476
    %v6039 = vunpack.c.h.b16 %v5476
    %v6040 = vunpack.c.l.b16 %v5477
    %v6041 = vunpack.c.l.b16 %v5478
    %v6042 = vunpack.c.h.b16 %v5478
    %v6043 = vunpack.c.l.b16 %v5479
    %v6044 = vunpack.c.h.b16 %v5479
    %v6045 = vunpack.c.l.b16 %v5480
    %v6046 = vunpack.c.l.b16 %v5481
    %v6047 = vunpack.c.h.b16 %v5481
    %v6048 = vunpack.c.l.b16 %v5482
    %v6049 = vunpack.c.h.b16 %v5482
    %v6050 = vunpack.c.l.b16 %v5483
    %v6051 = vunpack.c.l.b16 %v5484
    %v6052 = vunpack.c.h.b16 %v5484
    %v6053 = vunpack.c.l.b16 %v5485
    %v6054 = vunpack.c.h.b16 %v5485
    %v6055 = vunpack.c.l.b16 %v5486
    %v6056 = vunpack.c.l.b16 %v5487
    %v6057 = vunpack.c.h.b16 %v5487
    %v6058 = vunpack.c.l.b16 %v5488
    %v6059 = vunpack.c.h.b16 %v5488
    %v6060 = vunpack.c.l.b16 %v5489
    %v6061 = vunpack.c.l.b16 %v5490
    %v6062 = vunpack.c.h.b16 %v5490
    %v6063 = vunpack.c.l.b16 %v5491
    %v6064 = vunpack.c.h.b16 %v5491
    %v6065 = vunpack.c.l.b16 %v5492
    %v6066 = vunpack.c.l.b16 %v5493
    %v6067 = vunpack.c.h.b16 %v5493
    %v6068 = vunpack.c.l.b16 %v5494
    %v6069 = vunpack.c.h.b16 %v5494
    %v6070 = vunpack.c.l.b16 %v5495
    %v6071 = vunpack.c.l.b16 %v5496
    %v6072 = vunpack.c.h.b16 %v5496
    %v6073 = vunpack.c.l.b16 %v5497
    %v6074 = vunpack.c.h.b16 %v5497
    %v6075 = vunpack.c.l.b16 %v5498
    %v6076 = vunpack.c.l.b16 %v5499
    %v6077 = vunpack.c.h.b16 %v5499
    %v6078 = vunpack.c.l.b16 %v5500
    %v6079 = vunpack.c.h.b16 %v5500
    %v6080 = vunpack.c.l.b16 %v5501
    %v6081 = vunpack.c.l.b16 %v5502
    %v6082 = vunpack.c.h.b16 %v5502
    %v6083 = vunpack.c.l.b16 %v5503
    %v6084 = vunpack.c.h.b16 %v5503
    %v6085 = vunpack.c.l.b16 %v5504
    %v6086 = vunpack.c.l.b16 %v5505
    %v6087 = vunpack.c.h.b16 %v5505
    %v6088 = vunpack.c.l.b16 %v5506
    %v6089 = vunpack.c.h.b16 %v5506
    %v6090 = vunpack.c.l.b16 %v5507
    %v6091 = vunpack.c.l.b16 %v5508
    %v6092 = vunpack.c.h.b16 %v5508
    %v6093 = vunpack.c.l.b16 %v5509
    %v6094 = vunpack.c.h.b16 %v5509
    %v6095 = vunpack.c.l.b16 %v5510
    %v6096 = vunpack.c.l.b16 %v5511
    %v6097 = vunpack.c.h.b16 %v5511
    %v6098 = vunpack.c.l.b16 %v5512
    %v6099 = vunpack.c.h.b16 %v5512
    %v6100 = vunpack.c.l.b16 %v5513
    %v6101 = vunpack.c.l.b16 %v5514
    %v6102 = vunpack.c.h.b16 %v5514
    %v6103 = vunpack.c.l.b16 %v5515
    %v6104 = vunpack.c.h.b16 %v5515
    %v6105 = vunpack.c.l.b16 %v5516
    %v6106 = vunpack.c.l.b16 %v5517
    %v6107 = vunpack.c.h.b16 %v5517
    %v6108 = vunpack.c.l.b16 %v5518
    %v6109 = vunpack.c.h.b16 %v5518
    %v6110 = vunpack.c.l.b16 %v5519
    %v6111 = vunpack.c.l.b16 %v5520
    %v6112 = vunpack.c.h.b16 %v5520
    %v6113 = vunpack.c.l.b16 %v5521
    %v6114 = vunpack.c.h.b16 %v5521
    %v6115 = vunpack.c.l.b16 %v5522
    %v6116 = vunpack.c.l.b16 %v5523
    %v6117 = vunpack.c.h.b16 %v5523
    %v6118 = vunpack.c.l.b16 %v5524
    %v6119 = vunpack.c.h.b16 %v5524
    %v6120 = vunpack.c.l.b16 %v5525
    %v6121 = vunpack.c.l.b16 %v5526
    %v6122 = vunpack.c.h.b16 %v5526
    %v6123 = vunpack.c.l.b16 %v5527
    %v6124 = vunpack.c.h.b16 %v5527
    %v6125 = vunpack.c.l.b16 %v5528
    %v6126 = vunpack.c.l.b16 %v5529
    %v6127 = vunpack.c.h.b16 %v5529
    %v6128 = vunpack.c.l.b16 %v5530
    %v6129 = vunpack.c.h.b16 %v5530
    %v6130 = vunpack.c.l.b16 %v5531
    %v6131 = vunpack.c.l.b16 %v5532
    %v6132 = vunpack.c.h.b16 %v5532
    %v6133 = vunpack.c.l.b16 %v5533
    %v6134 = vunpack.c.h.b16 %v5533
    %v6135 = vunpack.c.l.b16 %v5534
    %v6136 = vunpack.c.l.b16 %v5535
    %v6137 = vunpack.c.h.b16 %v5535
    %v6138 = vunpack.c.l.b16 %v5536
    %v6139 = vunpack.c.h.b16 %v5536
    %v6140 = vunpack.c.l.b16 %v5537
    %v6141 = vunpack.c.l.b16 %v5538
    %v6142 = vunpack.c.h.b16 %v5538
    %v6143 = vunpack.c.l.b16 %v5539
    %v6144 = vunpack.c.h.b16 %v5539
    %v6145 = vunpack.c.l.b16 %v5540
    %v6146 = vunpack.c.l.b16 %v5541
    %v6147 = vunpack.c.h.b16 %v5541
    %v6148 = vunpack.c.l.b16 %v5542
    %v6149 = vunpack.c.h.b16 %v5542
    %v6150 = vunpack.c.l.b16 %v5543
    %v6151 = vunpack.c.l.b16 %v5544
    %v6152 = vunpack.c.h.b16 %v5544
    %v6153 = vunpack.c.l.b16 %v5545
    %v6154 = vunpack.c.h.b16 %v5545
    %v6155 = vunpack.c.l.b16 %v5546
    %v6156 = vunpack.c.l.b16 %v5547
    %v6157 = vunpack.c.h.b16 %v5547
    %v6158 = vunpack.c.l.b16 %v5548
    %v6159 = vunpack.c.h.b16 %v5548
    %v6160 = vunpack.c.l.b16 %v5549
    %v6161 = vunpack.c.l.b16 %v5550
    %v6162 = vunpack.c.h.b16 %v5550
    %v6163 = vunpack.c.l.b16 %v5551
    %v6164 = vunpack.c.h.b16 %v5551
    %v6165 = vunpack.c.l.b16 %v5552
    %v6166 = vunpack.c.l.b16 %v5553
    %v6167 = vunpack.c.h.b16 %v5553
    %v6168 = vunpack.c.l.b16 %v5554
    %v6169 = vunpack.c.h.b16 %v5554
    %v6170 = vunpack.c.l.b16 %v5555
    %v6171 = vunpack.c.l.b16 %v5556
    %v6172 = vunpack.c.h.b16 %v5556
    %v6173 = vunpack.c.l.b16 %v5557
    %v6174 = vunpack.c.h.b16 %v5557
    %v6175 = vunpack.c.l.b16 %v5558
    %v6176 = vunpack.c.l.b16 %v5559
    %v6177 = vunpack.c.h.b16 %v5559
    %v6178 = vunpack.c.l.b16 %v5560
    %v6179 = vunpack.c.h.b16 %v5560
    %v6180 = vunpack.c.l.b16 %v5561
    %v6181 = vunpack.c.l.b16 %v5562
    %v6182 = vunpack.c.h.b16 %v5562
    %v6183 = vunpack.c.l.b16 %v5563
    %v6184 = vunpack.c.h.b16 %v5563
    %v6185 = vunpack.c.l.b16 %v5564
    %v6186 = vunpack.c.l.b16 %v5565
    %v6187 = vunpack.c.h.b16 %v5565
    %v6188 = vunpack.c.l.b16 %v5566
    %v6189 = vunpack.c.h.b16 %v5566
    %v6190 = vunpack.c.l.b16 %v5567
    %v6191 = vunpack.c.l.b16 %v5568
    %v6192 = vunpack.c.h.b16 %v5568
    %v6193 = vunpack.c.l.b16 %v5569
    %v6194 = vunpack.c.h.b16 %v5569
    %v6195 = vunpack.c.l.b16 %v5570
    %v6196 = vunpack.c.l.b16 %v5571
    %v6197 = vunpack.c.h.b16 %v5571
    %v6198 = vunpack.c.l.b16 %v5572
    %v6199 = vunpack.c.h.b16 %v5572
    %v6200 = vunpack.c.l.b16 %v5573
    %v6201 = vunpack.c.l.b16 %v5574
    %v6202 = vunpack.c.h.b16 %v5574
    %v6203 = vunpack.c.l.b16 %v5575
    %v6204 = vunpack.c.h.b16 %v5575
    %v6205 = vunpack.c.l.b16 %v5576
    %v6206 = vunpack.c.l.b16 %v5577
    %v6207 = vunpack.c.h.b16 %v5577
    %v6208 = vunpack.c.l.b16 %v5578
    %v6209 = vunpack.c.h.b16 %v5578
    %v6210 = vunpack.c.l.b16 %v5579
    %v6211 = vunpack.c.l.b16 %v5580
    %v6212 = vunpack.c.h.b16 %v5580
    %v6213 = vunpack.c.l.b16 %v5581
    %v6214 = vunpack.c.h.b16 %v5581
    %v6215 = vunpack.c.l.b16 %v5582
    %v6216 = vunpack.c.l.b16 %v5583
    %v6217 = vunpack.c.h.b16 %v5583
    %v6218 = vunpack.c.l.b16 %v5584
    %v6219 = vunpack.c.h.b16 %v5584
    %v6220 = vunpack.c.l.b16 %v5585
    %v6221 = vunpack.c.l.b16 %v5586
    %v6222 = vunpack.c.h.b16 %v5586
    %v6223 = vunpack.c.l.b16 %v5587
    %v6224 = vunpack.c.h.b16 %v5587
    %v6225 = vunpack.c.l.b16 %v5588
    %v6226 = vunpack.c.l.b16 %v5589
    %v6227 = vunpack.c.h.b16 %v5589
    %v6228 = vunpack.c.l.b16 %v5590
    %v6229 = vunpack.c.h.b16 %v5590
    %v6230 = vunpack.c.l.b16 %v5591
    %v6231 = vunpack.c.l.b16 %v5592
    %v6232 = vunpack.c.h.b16 %v5592
    %v6233 = vunpack.c.l.b16 %v5593
    %v6234 = vunpack.c.h.b16 %v5593
    %v6235 = vunpack.c.l.b16 %v5594
    %v6236 = vunpack.c.l.b16 %v5595
    %v6237 = vunpack.c.h.b16 %v5595
    %v6238 = vunpack.c.l.b16 %v5596
    %v6239 = vunpack.c.h.b16 %v5596
    %v6240 = vunpack.c.l.b16 %v5597
    %v6241 = vunpack.c.l.b16 %v5598
    %v6242 = vunpack.c.h.b16 %v5598
    %v6243 = vunpack.c.l.b16 %v5599
    %v6244 = vunpack.c.h.b16 %v5599
    %v6245 = vunpack.c.l.b16 %v5600
    %v6246 = vunpack.c.l.b16 %v5601
    %v6247 = vunpack.c.h.b16 %v5601
    %v6248 = vunpack.c.l.b16 %v5602
    %v6249 = vunpack.c.h.b16 %v5602
    %v6250 = vunpack.c.l.b16 %v5603
    %v6251 = vunpack.c.l.b16 %v5604
    %v6252 = vunpack.c.h.b16 %v5604
    %v6253 = vunpack.c.l.b16 %v5605
    %v6254 = vunpack.c.h.b16 %v5605
    %v6255 = vunpack.c.l.b16 %v5606
    %v6256 = vunpack.c.l.b16 %v5607
    %v6257 = vunpack.c.h.b16 %v5607
    %v6258 = vunpack.c.l.b16 %v5608
    %v6259 = vunpack.c.h.b16 %v5608
    %v6260 = vunpack.c.l.b16 %v5609
    %v6261 = vunpack.c.l.b16 %v5610
    %v6262 = vunpack.c.h.b16 %v5610
    %v6263 = vunpack.c.l.b16 %v5611
    %v6264 = vunpack.c.h.b16 %v5611
    %v6265 = vunpack.c.l.b16 %v5612
    %v6266 = vunpack.c.l.b16 %v5613
    %v6267 = vunpack.c.h.b16 %v5613
    %v6268 = vunpack.c.l.b16 %v5614
    %v6269 = vunpack.c.h.b16 %v5614
    %v6270 = vunpack.c.l.b16 %v5615
    %v6271 = vunpack.c.l.b16 %v5616
    %v6272 = vunpack.c.h.b16 %v5616
    %v6273 = vunpack.c.l.b16 %v5617
    %v6274 = vunpack.c.h.b16 %v5617
    %v6275 = vunpack.c.l.b16 %v5618
    %v6276 = vunpack.c.l.b16 %v5619
    %v6277 = vunpack.c.h.b16 %v5619
    %v6278 = vunpack.c.l.b16 %v5620
    %v6279 = vunpack.c.h.b16 %v5620
    %v6280 = vunpack.c.l.b16 %v5621
    %v6281 = vunpack.c.l.b16 %v5622
    %v6282 = vunpack.c.h.b16 %v5622
    %v6283 = vunpack.c.l.b16 %v5623
    %v6284 = vunpack.c.h.b16 %v5623
    %v6285 = vunpack.c.l.b16 %v5624
    %v6286 = vunpack.c.l.b16 %v5625
    %v6287 = vunpack.c.h.b16 %v5625
    %v6288 = vunpack.c.l.b16 %v5626
    %v6289 = vunpack.c.h.b16 %v5626
    %v6290 = vunpack.c.l.b16 %v5627
    %v6291 = vunpack.c.l.b16 %v5628
    %v6292 = vunpack.c.h.b16 %v5628
    %v6293 = vunpack.c.l.b16 %v5629
    %v6294 = vunpack.c.h.b16 %v5629
    %v6295 = vunpack.c.l.b16 %v5630
    %v6296 = vunpack.c.l.b16 %v5631
    %v6297 = vunpack.c.h.b16 %v5631
    %v6298 = vunpack.c.l.b16 %v5632
    %v6299 = vunpack.c.h.b16 %v5632
    %v6300 = vunpack.c.l.b16 %v5633
    %v6301 = vpack.c.b16 %v5906, %v5901
    %v6302 = vpack.c.b16 %v5907, %v5902
    %v6303 = vpack.c.b16 %v5908, %v5903
    %v6304 = vpack.c.b16 %v5909, %v5904
    %v6305 = vpack.c.b16 %v5910, %v5905
    %v6306 = vpack.c.b16 %v5916, %v5911
    %v6307 = vpack.c.b16 %v5917, %v5912
    %v6308 = vpack.c.b16 %v5918, %v5913
    %v6309 = vpack.c.b16 %v5919, %v5914
    %v6310 = vpack.c.b16 %v5920, %v5915
    %v6311 = vpack.c.b16 %v5926, %v5921
    %v6312 = vpack.c.b16 %v5927, %v5922
    %v6313 = vpack.c.b16 %v5928, %v5923
    %v6314 = vpack.c.b16 %v5929, %v5924
    %v6315 = vpack.c.b16 %v5930, %v5925
    %v6316 = vpack.c.b16 %v5936, %v5931
    %v6317 = vpack.c.b16 %v5937, %v5932
    %v6318 = vpack.c.b16 %v5938, %v5933
    %v6319 = vpack.c.b16 %v5939, %v5934
    %v6320 = vpack.c.b16 %v5940, %v5935
    %v6321 = vpack.c.b16 %v5946, %v5941
    %v6322 = vpack.c.b16 %v5947, %v5942
    %v6323 = vpack.c.b16 %v5948, %v5943
    %v6324 = vpack.c.b16 %v5949, %v5944
    %v6325 = vpack.c.b16 %v5950, %v5945
    %v6326 = vpack.c.b16 %v5956, %v5951
    %v6327 = vpack.c.b16 %v5957, %v5952
    %v6328 = vpack.c.b16 %v5958, %v5953
    %v6329 = vpack.c.b16 %v5959, %v5954
    %v6330 = vpack.c.b16 %v5960, %v5955
    %v6331 = vpack.c.b16 %v5966, %v5961
    %v6332 = vpack.c.b16 %v5967, %v5962
    %v6333 = vpack.c.b16 %v5968, %v5963
    %v6334 = vpack.c.b16 %v5969, %v5964
    %v6335 = vpack.c.b16 %v5970, %v5965
    %v6336 = vpack.c.b16 %v5976, %v5971
    %v6337 = vpack.c.b16 %v5977, %v5972
    %v6338 = vpack.c.b16 %v5978, %v5973
    %v6339 = vpack.c.b16 %v5979, %v5974
    %v6340 = vpack.c.b16 %v5980, %v5975
    %v6341 = vpack.c.b16 %v5986, %v5981
    %v6342 = vpack.c.b16 %v5987, %v5982
    %v6343 = vpack.c.b16 %v5988, %v5983
    %v6344 = vpack.c.b16 %v5989, %v5984
    %v6345 = vpack.c.b16 %v5990, %v5985
    %v6346 = vpack.c.b16 %v5996, %v5991
    %v6347 = vpack.c.b16 %v5997, %v5992
    %v6348 = vpack.c.b16 %v5998, %v5993
    %v6349 = vpack.c.b16 %v5999, %v5994
    %v6350 = vpack.c.b16 %v6000, %v5995
    %v6351 = vpack.c.b16 %v6006, %v6001
    %v6352 = vpack.c.b16 %v6007, %v6002
    %v6353 = vpack.c.b16 %v6008, %v6003
    %v6354 = vpack.c.b16 %v6009, %v6004
    %v6355 = vpack.c.b16 %v6010, %v6005
    %v6356 = vpack.c.b16 %v6016, %v6011
    %v6357 = vpack.c.b16 %v6017, %v6012
    %v6358 = vpack.c.b16 %v6018, %v6013
    %v6359 = vpack.c.b16 %v6019, %v6014
    %v6360 = vpack.c.b16 %v6020, %v6015
    %v6361 = vpack.c.b16 %v6026, %v6021
    %v6362 = vpack.c.b16 %v6027, %v6022
    %v6363 = vpack.c.b16 %v6028, %v6023
    %v6364 = vpack.c.b16 %v6029, %v6024
    %v6365 = vpack.c.b16 %v6030, %v6025
    %v6366 = vpack.c.b16 %v6036, %v6031
    %v6367 = vpack.c.b16 %v6037, %v6032
    %v6368 = vpack.c.b16 %v6038, %v6033
    %v6369 = vpack.c.b16 %v6039, %v6034
    %v6370 = vpack.c.b16 %v6040, %v6035
    %v6371 = vpack.c.b16 %v6046, %v6041
    %v6372 = vpack.c.b16 %v6047, %v6042
    %v6373 = vpack.c.b16 %v6048, %v6043
    %v6374 = vpack.c.b16 %v6049, %v6044
    %v6375 = vpack.c.b16 %v6050, %v6045
    %v6376 = vpack.c.b16 %v6056, %v6051
    %v6377 = vpack.c.b16 %v6057, %v6052
    %v6378 = vpack.c.b16 %v6058, %v6053
    %v6379 = vpack.c.b16 %v6059, %v6054
    %v6380 = vpack.c.b16 %v6060, %v6055
    %v6381 = vpack.c.b16 %v6066, %v6061
    %v6382 = vpack.c.b16 %v6067, %v6062
    %v6383 = vpack.c.b16 %v6068, %v6063
    %v6384 = vpack.c.b16 %v6069, %v6064
    %v6385 = vpack.c.b16 %v6070, %v6065
    %v6386 = vpack.c.b16 %v6076, %v6071
    %v6387 = vpack.c.b16 %v6077, %v6072
    %v6388 = vpack.c.b16 %v6078, %v6073
    %v6389 = vpack.c.b16 %v6079, %v6074
    %v6390 = vpack.c.b16 %v6080, %v6075
    %v6391 = vpack.c.b16 %v6086, %v6081
    %v6392 = vpack.c.b16 %v6087, %v6082
    %v6393 = vpack.c.b16 %v6088, %v6083
    %v6394 = vpack.c.b16 %v6089, %v6084
    %v6395 = vpack.c.b16 %v6090, %v6085
    %v6396 = vpack.c.b16 %v6096, %v6091
    %v6397 = vpack.c.b16 %v6097, %v6092
    %v6398 = vpack.c.b16 %v6098, %v6093
    %v6399 = vpack.c.b16 %v6099, %v6094
    %v6400 = vpack.c.b16 %v6100, %v6095
    %v6401 = vpack.c.b16 %v6106, %v6101
    %v6402 = vpack.c.b16 %v6107, %v6102
    %v6403 = vpack.c.b16 %v6108, %v6103
    %v6404 = vpack.c.b16 %v6109, %v6104
    %v6405 = vpack.c.b16 %v6110, %v6105
    %v6406 = vpack.c.b16 %v6116, %v6111
    %v6407 = vpack.c.b16 %v6117, %v6112
    %v6408 = vpack.c.b16 %v6118, %v6113
    %v6409 = vpack.c.b16 %v6119, %v6114
    %v6410 = vpack.c.b16 %v6120, %v6115
    %v6411 = vpack.c.b16 %v6126, %v6121
    %v6412 = vpack.c.b16 %v6127, %v6122
    %v6413 = vpack.c.b16 %v6128, %v6123
    %v6414 = vpack.c.b16 %v6129, %v6124
    %v6415 = vpack.c.b16 %v6130, %v6125
    %v6416 = vpack.c.b16 %v6136, %v6131
    %v6417 = vpack.c.b16 %v6137, %v6132
    %v6418 = vpack.c.b16 %v6138, %v6133
    %v6419 = vpack.c.b16 %v6139, %v6134
    %v6420 = vpack.c.b16 %v6140, %v6135
    %v6421 = vpack.c.b16 %v6146, %v6141
    %v6422 = vpack.c.b16 %v6147, %v6142
    %v6423 = vpack.c.b16 %v6148, %v6143
    %v6424 = vpack.c.b16 %v6149, %v6144
    %v6425 = vpack.c.b16 %v6150, %v6145
    %v6426 = vpack.c.b16 %v6156, %v6151
    %v6427 = vpack.c.b16 %v6157, %v6152
    %v6428 = vpack.c.b16 %v6158, %v6153
    %v6429 = vpack.c.b16 %v6159, %v6154
    %v6430 = vpack.c.b16 %v6160, %v6155
    %v6431 = vpack.c.b16 %v6166, %v6161
    %v6432 = vpack.c.b16 %v6167, %v6162
    %v6433 = vpack.c.b16 %v6168, %v6163
    %v6434 = vpack.c.b16 %v6169, %v6164
    %v6435 = vpack.c.b16 %v6170, %v6165
    %v6436 = vpack.c.b16 %v6176, %v6171
    %v6437 = vpack.c.b16 %v6177, %v6172
    %v6438 = vpack.c.b16 %v6178, %v6173
    %v6439 = vpack.c.b16 %v6179, %v6174
    %v6440 = vpack.c.b16 %v6180, %v6175
    %v6441 = vpack.c.b16 %v6186, %v6181
    %v6442 = vpack.c.b16 %v6187, %v6182
    %v6443 = vpack.c.b16 %v6188, %v6183
    %v6444 = vpack.c.b16 %v6189, %v6184
    %v6445 = vpack.c.b16 %v6190, %v6185
    %v6446 = vpack.c.b16 %v6196, %v6191
    %v6447 = vpack.c.b16 %v6197, %v6192
    %v6448 = vpack.c.b16 %v6198, %v6193
    %v6449 = vpack.c.b16 %v6199, %v6194
    %v6450 = vpack.c.b16 %v6200, %v6195
    %v6451 = vpack.c.b16 %v6206, %v6201
    %v6452 = vpack.c.b16 %v6207, %v6202
    %v6453 = vpack.c.b16 %v6208, %v6203
    %v6454 = vpack.c.b16 %v6209, %v6204
    %v6455 = vpack.c.b16 %v6210, %v6205
    %v6456 = vpack.c.b16 %v6216, %v6211
    %v6457 = vpack.c.b16 %v6217, %v6212
    %v6458 = vpack.c.b16 %v6218, %v6213
    %v6459 = vpack.c.b16 %v6219, %v6214
    %v6460 = vpack.c.b16 %v6220, %v6215
    %v6461 = vpack.c.b16 %v6226, %v6221
    %v6462 = vpack.c.b16 %v6227, %v6222
    %v6463 = vpack.c.b16 %v6228, %v6223
    %v6464 = vpack.c.b16 %v6229, %v6224
    %v6465 = vpack.c.b16 %v6230, %v6225
    %v6466 = vpack.c.b16 %v6236, %v6231
    %v6467 = vpack.c.b16 %v6237, %v6232
    %v6468 = vpack.c.b16 %v6238, %v6233
    %v6469 = vpack.c.b16 %v6239, %v6234
    %v6470 = vpack.c.b16 %v6240, %v6235
    %v6471 = vpack.c.b16 %v6246, %v6241
    %v6472 = vpack.c.b16 %v6247, %v6242
    %v6473 = vpack.c.b16 %v6248, %v6243
    %v6474 = vpack.c.b16 %v6249, %v6244
    %v6475 = vpack.c.b16 %v6250, %v6245
    %v6476 = vpack.c.b16 %v6256, %v6251
    %v6477 = vpack.c.b16 %v6257, %v6252
    %v6478 = vpack.c.b16 %v6258, %v6253
    %v6479 = vpack.c.b16 %v6259, %v6254
    %v6480 = vpack.c.b16 %v6260, %v6255
    %v6481 = vpack.c.b16 %v6266, %v6261
    %v6482 = vpack.c.b16 %v6267, %v6262
    %v6483 = vpack.c.b16 %v6268, %v6263
    %v6484 = vpack.c.b16 %v6269, %v6264
    %v6485 = vpack.c.b16 %v6270, %v6265
    %v6486 = vpack.c.b16 %v6276, %v6271
    %v6487 = vpack.c.b16 %v6277, %v6272
    %v6488 = vpack.c.b16 %v6278, %v6273
    %v6489 = vpack.c.b16 %v6279, %v6274
    %v6490 = vpack.c.b16 %v6280, %v6275
    %v6491 = vpack.c.b16 %v6286, %v6281
    %v6492 = vpack.c.b16 %v6287, %v6282
    %v6493 = vpack.c.b16 %v6288, %v6283
    %v6494 = vpack.c.b16 %v6289, %v6284
    %v6495 = vpack.c.b16 %v6290, %v6285
    %v6496 = vpack.c.b16 %v6296, %v6291
    %v6497 = vpack.c.b16 %v6297, %v6292
    %v6498 = vpack.c.b16 %v6298, %v6293
    %v6499 = vpack.c.b16 %v6299, %v6294
    %v6500 = vpack.c.b16 %v6300, %v6295
    %6701 = vmatprep.subr.bf16.mxu0 %v6337
    %6702 = vmatpush1.bf16.msra.mxu0 %v6336
    %6703 = vmatprep.subr.bf16.mxu0 %v6332
    %6704 = vmatpush1.bf16.msra.mxu0 %v6331
    %6705 = vmatprep.subr.bf16.mxu0 %v6327
    %6706 = vmatpush1.bf16.msra.mxu0 %v6326
    %6707 = vmatprep.subr.bf16.mxu0 %v6322
    %6708 = vmatpush1.bf16.msra.mxu0 %v6321
    %6709 = vmatprep.subr.bf16.mxu0 %v6317
    %6710 = vmatpush1.bf16.msra.mxu0 %v6316
    %6711 = vmatprep.subr.bf16.mxu0 %v6312
    %6712 = vmatpush1.bf16.msra.mxu0 %v6311
    %6713 = vmatprep.subr.bf16.mxu0 %v6307
    %6714 = vmatpush1.bf16.msra.mxu0 %v6306
    %6715 = vmatprep.subr.bf16.mxu0 %v6302
    %6716 = vmatpush1.bf16.msra.mxu0 %v6301
    %6717 = vmatprep.subr.bf16.mxu0 %v6377
    %6718 = vmatpush2.bf16.msra.mxu0 %v6376
    %6719 = vmatprep.subr.bf16.mxu0 %v6372
    %6720 = vmatpush2.bf16.msra.mxu0 %v6371
    %6721 = vmatprep.subr.bf16.mxu0 %v6367
    %6722 = vmatpush2.bf16.msra.mxu0 %v6366
    %6723 = vmatprep.subr.bf16.mxu0 %v6362
    %6724 = vmatpush2.bf16.msra.mxu0 %v6361
    %6725 = vmatprep.subr.bf16.mxu0 %v6357
    %6726 = vmatpush2.bf16.msra.mxu0 %v6356
    %6727 = vmatprep.subr.bf16.mxu0 %v6352
    %6728 = vmatpush2.bf16.msra.mxu0 %v6351
    %6729 = vmatprep.subr.bf16.mxu0 %v6347
    %6730 = vmatpush2.bf16.msra.mxu0 %v6346
    %6731 = vmatprep.subr.bf16.mxu0 %v6342
    %6732 = vmatpush2.bf16.msra.mxu0 %v6341
    %6733 = vmatprep.mubr.bf16.mxu0 %v5382
    %6734 = vmatmul.mubr.bf16.gmra.mxu0 %v4951
    %v6735 = vpop.f32.mrf.mxu0
    %v6736 = vadd.f32 %v5639, %v6735
    %v6737 = vpop.f32.mrf.mxu0
    %v6738 = vadd.f32 %v5643, %v6737
    %v6739 = vpop.f32.mrf.mxu0
    %v6740 = vpop.f32.mrf.mxu0
    %6741 = vdwg.mxu0
    %6742 = vmatprep.subr.bf16.mxu0 %v6417
    %6743 = vmatpush1.bf16.msra.mxu0 %v6416
    %6744 = vmatprep.subr.bf16.mxu0 %v6412
    %6745 = vmatpush1.bf16.msra.mxu0 %v6411
    %6746 = vmatprep.subr.bf16.mxu0 %v6407
    %6747 = vmatpush1.bf16.msra.mxu0 %v6406
    %6748 = vmatprep.subr.bf16.mxu0 %v6402
    %6749 = vmatpush1.bf16.msra.mxu0 %v6401
    %6750 = vmatprep.subr.bf16.mxu0 %v6397
    %6751 = vmatpush1.bf16.msra.mxu0 %v6396
    %6752 = vmatprep.subr.bf16.mxu0 %v6392
    %6753 = vmatpush1.bf16.msra.mxu0 %v6391
    %6754 = vmatprep.subr.bf16.mxu0 %v6387
    %6755 = vmatpush1.bf16.msra.mxu0 %v6386
    %6756 = vmatprep.subr.bf16.mxu0 %v6382
    %6757 = vmatpush1.bf16.msra.mxu0 %v6381
    %6758 = vmatprep.subr.bf16.mxu0 %v6457
    %6759 = vmatpush2.bf16.msra.mxu0 %v6456
    %6760 = vmatprep.subr.bf16.mxu0 %v6452
    %6761 = vmatpush2.bf16.msra.mxu0 %v6451
    %6762 = vmatprep.subr.bf16.mxu0 %v6447
    %6763 = vmatpush2.bf16.msra.mxu0 %v6446
    %6764 = vmatprep.subr.bf16.mxu0 %v6442
    %6765 = vmatpush2.bf16.msra.mxu0 %v6441
    %6766 = vmatprep.subr.bf16.mxu0 %v6437
    %6767 = vmatpush2.bf16.msra.mxu0 %v6436
    %6768 = vmatprep.subr.bf16.mxu0 %v6432
    %6769 = vmatpush2.bf16.msra.mxu0 %v6431
    %6770 = vmatprep.subr.bf16.mxu0 %v6427
    %6771 = vmatpush2.bf16.msra.mxu0 %v6426
    %6772 = vmatprep.subr.bf16.mxu0 %v6422
    %6773 = vmatpush2.bf16.msra.mxu0 %v6421
    %6774 = vmatprep.mubr.bf16.mxu0 %v5392
    %6775 = vmatmul.mubr.bf16.gmra.mxu0 %v5387
    %v6776 = vpop.f32.mrf.mxu0
    %v6777 = vadd.f32 %v6736, %v6776
    %v6778 = vpop.f32.mrf.mxu0
    %v6779 = vadd.f32 %v6738, %v6778
    %v6780 = vpop.f32.mrf.mxu0
    %v6781 = vpop.f32.mrf.mxu0
    %6782 = vdwg.mxu0
    %6783 = vmatprep.subr.bf16.mxu0 %v6497
    %6784 = vmatpush1.bf16.msra.mxu0 %v6496
    %6785 = vmatprep.subr.bf16.mxu0 %v6492
    %6786 = vmatpush1.bf16.msra.mxu0 %v6491
    %6787 = vmatprep.subr.bf16.mxu0 %v6487
    %6788 = vmatpush1.bf16.msra.mxu0 %v6486
    %6789 = vmatprep.subr.bf16.mxu0 %v6482
    %6790 = vmatpush1.bf16.msra.mxu0 %v6481
    %6791 = vmatprep.subr.bf16.mxu0 %v6477
    %6792 = vmatpush1.bf16.msra.mxu0 %v6476
    %6793 = vmatprep.subr.bf16.mxu0 %v6472
    %6794 = vmatpush1.bf16.msra.mxu0 %v6471
    %6795 = vmatprep.subr.bf16.mxu0 %v6467
    %6796 = vmatpush1.bf16.msra.mxu0 %v6466
    %6797 = vmatprep.subr.bf16.mxu0 %v6462
    %6798 = vmatpush1.bf16.msra.mxu0 %v6461
    %6799 = vmatprep.subr.bf16.mxu0 0
    %6800 = vmatpush2.bf16.msra.mxu0 0
    %6801 = vmatprep.subr.bf16.mxu0 0
    %6802 = vmatpush2.bf16.msra.mxu0 0
    %6803 = vmatprep.subr.bf16.mxu0 0
    %6804 = vmatpush2.bf16.msra.mxu0 0
    %6805 = vmatprep.subr.bf16.mxu0 0
    %6806 = vmatpush2.bf16.msra.mxu0 0
    %6807 = vmatprep.subr.bf16.mxu0 0
    %6808 = vmatpush2.bf16.msra.mxu0 0
    %6809 = vmatprep.subr.bf16.mxu0 0
    %6810 = vmatpush2.bf16.msra.mxu0 0
    %6811 = vmatprep.subr.bf16.mxu0 0
    %6812 = vmatpush2.bf16.msra.mxu0 0
    %6813 = vmatprep.subr.bf16.mxu0 0
    %6814 = vmatpush2.bf16.msra.mxu0 0
    %6815 = vmatprep.mubr.bf16.mxu0 0
    %6816 = vmatmul.mubr.bf16.gmra.mxu0 %v5378
    %v6817 = vpop.f32.mrf.mxu0
    %v6818 = vadd.f32 %v6777, %v6817
    %v6819 = vpop.f32.mrf.mxu0
    %v6820 = vadd.f32 %v6779, %v6819
    %v6821 = vpop.f32.mrf.mxu0
    %v6822 = vpop.f32.mrf.mxu0
    %6823 = vdwg.mxu0
    %6824 = vmatprep.subr.bf16.mxu0 %v6339
    %6825 = vmatpush1.bf16.msra.mxu0 %v6338
    %6826 = vmatprep.subr.bf16.mxu0 %v6334
    %6827 = vmatpush1.bf16.msra.mxu0 %v6333
    %6828 = vmatprep.subr.bf16.mxu0 %v6329
    %6829 = vmatpush1.bf16.msra.mxu0 %v6328
    %6830 = vmatprep.subr.bf16.mxu0 %v6324
    %6831 = vmatpush1.bf16.msra.mxu0 %v6323
    %6832 = vmatprep.subr.bf16.mxu0 %v6319
    %6833 = vmatpush1.bf16.msra.mxu0 %v6318
    %6834 = vmatprep.subr.bf16.mxu0 %v6314
    %6835 = vmatpush1.bf16.msra.mxu0 %v6313
    %6836 = vmatprep.subr.bf16.mxu0 %v6309
    %6837 = vmatpush1.bf16.msra.mxu0 %v6308
    %6838 = vmatprep.subr.bf16.mxu0 %v6304
    %6839 = vmatpush1.bf16.msra.mxu0 %v6303
    %6840 = vmatprep.subr.bf16.mxu0 %v6379
    %6841 = vmatpush2.bf16.msra.mxu0 %v6378
    %6842 = vmatprep.subr.bf16.mxu0 %v6374
    %6843 = vmatpush2.bf16.msra.mxu0 %v6373
    %6844 = vmatprep.subr.bf16.mxu0 %v6369
    %6845 = vmatpush2.bf16.msra.mxu0 %v6368
    %6846 = vmatprep.subr.bf16.mxu0 %v6364
    %6847 = vmatpush2.bf16.msra.mxu0 %v6363
    %6848 = vmatprep.subr.bf16.mxu0 %v6359
    %6849 = vmatpush2.bf16.msra.mxu0 %v6358
    %6850 = vmatprep.subr.bf16.mxu0 %v6354
    %6851 = vmatpush2.bf16.msra.mxu0 %v6353
    %6852 = vmatprep.subr.bf16.mxu0 %v6349
    %6853 = vmatpush2.bf16.msra.mxu0 %v6348
    %6854 = vmatprep.subr.bf16.mxu0 %v6344
    %6855 = vmatpush2.bf16.msra.mxu0 %v6343
    %6856 = vmatprep.mubr.bf16.mxu0 %v5382
    %6857 = vmatmul.mubr.bf16.gmra.mxu0 %v4951
    %v6858 = vpop.f32.mrf.mxu0
    %v6859 = vadd.f32 %v5647, %v6858
    %v6860 = vpop.f32.mrf.mxu0
    %v6861 = vadd.f32 %v5651, %v6860
    %v6862 = vpop.f32.mrf.mxu0
    %v6863 = vpop.f32.mrf.mxu0
    %6864 = vdwg.mxu0
    %6865 = vmatprep.subr.bf16.mxu0 %v6419
    %6866 = vmatpush1.bf16.msra.mxu0 %v6418
    %6867 = vmatprep.subr.bf16.mxu0 %v6414
    %6868 = vmatpush1.bf16.msra.mxu0 %v6413
    %6869 = vmatprep.subr.bf16.mxu0 %v6409
    %6870 = vmatpush1.bf16.msra.mxu0 %v6408
    %6871 = vmatprep.subr.bf16.mxu0 %v6404
    %6872 = vmatpush1.bf16.msra.mxu0 %v6403
    %6873 = vmatprep.subr.bf16.mxu0 %v6399
    %6874 = vmatpush1.bf16.msra.mxu0 %v6398
    %6875 = vmatprep.subr.bf16.mxu0 %v6394
    %6876 = vmatpush1.bf16.msra.mxu0 %v6393
    %6877 = vmatprep.subr.bf16.mxu0 %v6389
    %6878 = vmatpush1.bf16.msra.mxu0 %v6388
    %6879 = vmatprep.subr.bf16.mxu0 %v6384
    %6880 = vmatpush1.bf16.msra.mxu0 %v6383
    %6881 = vmatprep.subr.bf16.mxu0 %v6459
    %6882 = vmatpush2.bf16.msra.mxu0 %v6458
    %6883 = vmatprep.subr.bf16.mxu0 %v6454
    %6884 = vmatpush2.bf16.msra.mxu0 %v6453
    %6885 = vmatprep.subr.bf16.mxu0 %v6449
    %6886 = vmatpush2.bf16.msra.mxu0 %v6448
    %6887 = vmatprep.subr.bf16.mxu0 %v6444
    %6888 = vmatpush2.bf16.msra.mxu0 %v6443
    %6889 = vmatprep.subr.bf16.mxu0 %v6439
    %6890 = vmatpush2.bf16.msra.mxu0 %v6438
    %6891 = vmatprep.subr.bf16.mxu0 %v6434
    %6892 = vmatpush2.bf16.msra.mxu0 %v6433
    %6893 = vmatprep.subr.bf16.mxu0 %v6429
    %6894 = vmatpush2.bf16.msra.mxu0 %v6428
    %6895 = vmatprep.subr.bf16.mxu0 %v6424
    %6896 = vmatpush2.bf16.msra.mxu0 %v6423
    %6897 = vmatprep.mubr.bf16.mxu0 %v5392
    %6898 = vmatmul.mubr.bf16.gmra.mxu0 %v5387
    %v6899 = vpop.f32.mrf.mxu0
    %v6900 = vadd.f32 %v6859, %v6899
    %v6901 = vpop.f32.mrf.mxu0
    %v6902 = vadd.f32 %v6861, %v6901
    %v6903 = vpop.f32.mrf.mxu0
    %v6904 = vpop.f32.mrf.mxu0
    %6905 = vdwg.mxu0
    %6906 = vmatprep.subr.bf16.mxu0 %v6499
    %6907 = vmatpush1.bf16.msra.mxu0 %v6498
    %6908 = vmatprep.subr.bf16.mxu0 %v6494
    %6909 = vmatpush1.bf16.msra.mxu0 %v6493
    %6910 = vmatprep.subr.bf16.mxu0 %v6489
    %6911 = vmatpush1.bf16.msra.mxu0 %v6488
    %6912 = vmatprep.subr.bf16.mxu0 %v6484
    %6913 = vmatpush1.bf16.msra.mxu0 %v6483
    %6914 = vmatprep.subr.bf16.mxu0 %v6479
    %6915 = vmatpush1.bf16.msra.mxu0 %v6478
    %6916 = vmatprep.subr.bf16.mxu0 %v6474
    %6917 = vmatpush1.bf16.msra.mxu0 %v6473
    %6918 = vmatprep.subr.bf16.mxu0 %v6469
    %6919 = vmatpush1.bf16.msra.mxu0 %v6468
    %6920 = vmatprep.subr.bf16.mxu0 %v6464
    %6921 = vmatpush1.bf16.msra.mxu0 %v6463
    %6922 = vmatprep.subr.bf16.mxu0 0
    %6923 = vmatpush2.bf16.msra.mxu0 0
    %6924 = vmatprep.subr.bf16.mxu0 0
    %6925 = vmatpush2.bf16.msra.mxu0 0
    %6926 = vmatprep.subr.bf16.mxu0 0
    %6927 = vmatpush2.bf16.msra.mxu0 0
    %6928 = vmatprep.subr.bf16.mxu0 0
    %6929 = vmatpush2.bf16.msra.mxu0 0
    %6930 = vmatprep.subr.bf16.mxu0 0
    %6931 = vmatpush2.bf16.msra.mxu0 0
    %6932 = vmatprep.subr.bf16.mxu0 0
    %6933 = vmatpush2.bf16.msra.mxu0 0
    %6934 = vmatprep.subr.bf16.mxu0 0
    %6935 = vmatpush2.bf16.msra.mxu0 0
    %6936 = vmatprep.subr.bf16.mxu0 0
    %6937 = vmatpush2.bf16.msra.mxu0 0
    %6938 = vmatprep.mubr.bf16.mxu0 0
    %6939 = vmatmul.mubr.bf16.gmra.mxu0 %v5378
    %v6940 = vpop.f32.mrf.mxu0
    %v6941 = vadd.f32 %v6900, %v6940
    %v6942 = vpop.f32.mrf.mxu0
    %v6943 = vadd.f32 %v6902, %v6942
    %v6944 = vpop.f32.mrf.mxu0
    %v6945 = vpop.f32.mrf.mxu0
    %6946 = vdwg.mxu0
    %6947 = vmatprep.subr.bf16.mxu0 0
    %6948 = vmatpush1.bf16.msra.mxu0 %v6340
    %6949 = vmatprep.subr.bf16.mxu0 0
    %6950 = vmatpush1.bf16.msra.mxu0 %v6335
    %6951 = vmatprep.subr.bf16.mxu0 0
    %6952 = vmatpush1.bf16.msra.mxu0 %v6330
    %6953 = vmatprep.subr.bf16.mxu0 0
    %6954 = vmatpush1.bf16.msra.mxu0 %v6325
    %6955 = vmatprep.subr.bf16.mxu0 0
    %6956 = vmatpush1.bf16.msra.mxu0 %v6320
    %6957 = vmatprep.subr.bf16.mxu0 0
    %6958 = vmatpush1.bf16.msra.mxu0 %v6315
    %6959 = vmatprep.subr.bf16.mxu0 0
    %6960 = vmatpush1.bf16.msra.mxu0 %v6310
    %6961 = vmatprep.subr.bf16.mxu0 0
    %6962 = vmatpush1.bf16.msra.mxu0 %v6305
    %6963 = vmatprep.subr.bf16.mxu0 0
    %6964 = vmatpush2.bf16.msra.mxu0 %v6380
    %6965 = vmatprep.subr.bf16.mxu0 0
    %6966 = vmatpush2.bf16.msra.mxu0 %v6375
    %6967 = vmatprep.subr.bf16.mxu0 0
    %6968 = vmatpush2.bf16.msra.mxu0 %v6370
    %6969 = vmatprep.subr.bf16.mxu0 0
    %6970 = vmatpush2.bf16.msra.mxu0 %v6365
    %6971 = vmatprep.subr.bf16.mxu0 0
    %6972 = vmatpush2.bf16.msra.mxu0 %v6360
    %6973 = vmatprep.subr.bf16.mxu0 0
    %6974 = vmatpush2.bf16.msra.mxu0 %v6355
    %6975 = vmatprep.subr.bf16.mxu0 0
    %6976 = vmatpush2.bf16.msra.mxu0 %v6350
    %6977 = vmatprep.subr.bf16.mxu0 0
    %6978 = vmatpush2.bf16.msra.mxu0 %v6345
    %6979 = vmatprep.mubr.bf16.mxu0 %v5382
    %6980 = vmatmul.mubr.bf16.gmra.mxu0 %v4951
    %v6981 = vpop.f32.mrf.mxu0
    %v6982 = vadd.f32 %v5655, %v6981
    %v6983 = vpop.f32.mrf.mxu0
    %v6984 = vpop.f32.mrf.mxu0
    %v6985 = vpop.f32.mrf.mxu0
    %6986 = vdwg.mxu0
    %6987 = vmatprep.subr.bf16.mxu0 0
    %6988 = vmatpush1.bf16.msra.mxu0 %v6420
    %6989 = vmatprep.subr.bf16.mxu0 0
    %6990 = vmatpush1.bf16.msra.mxu0 %v6415
    %6991 = vmatprep.subr.bf16.mxu0 0
    %6992 = vmatpush1.bf16.msra.mxu0 %v6410
    %6993 = vmatprep.subr.bf16.mxu0 0
    %6994 = vmatpush1.bf16.msra.mxu0 %v6405
    %6995 = vmatprep.subr.bf16.mxu0 0
    %6996 = vmatpush1.bf16.msra.mxu0 %v6400
    %6997 = vmatprep.subr.bf16.mxu0 0
    %6998 = vmatpush1.bf16.msra.mxu0 %v6395
    %6999 = vmatprep.subr.bf16.mxu0 0
    %7000 = vmatpush1.bf16.msra.mxu0 %v6390
    %7001 = vmatprep.subr.bf16.mxu0 0
    %7002 = vmatpush1.bf16.msra.mxu0 %v6385
    %7003 = vmatprep.subr.bf16.mxu0 0
    %7004 = vmatpush2.bf16.msra.mxu0 %v6460
    %7005 = vmatprep.subr.bf16.mxu0 0
    %7006 = vmatpush2.bf16.msra.mxu0 %v6455
    %7007 = vmatprep.subr.bf16.mxu0 0
    %7008 = vmatpush2.bf16.msra.mxu0 %v6450
    %7009 = vmatprep.subr.bf16.mxu0 0
    %7010 = vmatpush2.bf16.msra.mxu0 %v6445
    %7011 = vmatprep.subr.bf16.mxu0 0
    %7012 = vmatpush2.bf16.msra.mxu0 %v6440
    %7013 = vmatprep.subr.bf16.mxu0 0
    %7014 = vmatpush2.bf16.msra.mxu0 %v6435
    %7015 = vmatprep.subr.bf16.mxu0 0
    %7016 = vmatpush2.bf16.msra.mxu0 %v6430
    %7017 = vmatprep.subr.bf16.mxu0 0
    %7018 = vmatpush2.bf16.msra.mxu0 %v6425
    %7019 = vmatprep.mubr.bf16.mxu0 %v5392
    %7020 = vmatmul.mubr.bf16.gmra.mxu0 %v5387
    %v7021 = vpop.f32.mrf.mxu0
    %v7022 = vadd.f32 %v6982, %v7021
    %v7023 = vpop.f32.mrf.mxu0
    %v7024 = vpop.f32.mrf.mxu0
    %v7025 = vpop.f32.mrf.mxu0
    %7026 = vdwg.mxu0
    %7027 = vmatprep.subr.bf16.mxu0 0
    %7028 = vmatpush1.bf16.msra.mxu0 %v6500
    %7029 = vmatprep.subr.bf16.mxu0 0
    %7030 = vmatpush1.bf16.msra.mxu0 %v6495
    %7031 = vmatprep.subr.bf16.mxu0 0
    %7032 = vmatpush1.bf16.msra.mxu0 %v6490
    %7033 = vmatprep.subr.bf16.mxu0 0
    %7034 = vmatpush1.bf16.msra.mxu0 %v6485
    %7035 = vmatprep.subr.bf16.mxu0 0
    %7036 = vmatpush1.bf16.msra.mxu0 %v6480
    %7037 = vmatprep.subr.bf16.mxu0 0
    %7038 = vmatpush1.bf16.msra.mxu0 %v6475
    %7039 = vmatprep.subr.bf16.mxu0 0
    %7040 = vmatpush1.bf16.msra.mxu0 %v6470
    %7041 = vmatprep.subr.bf16.mxu0 0
    %7042 = vmatpush1.bf16.msra.mxu0 %v6465
    %7043 = vmatprep.subr.bf16.mxu0 0
    %7044 = vmatpush2.bf16.msra.mxu0 0
    %7045 = vmatprep.subr.bf16.mxu0 0
    %7046 = vmatpush2.bf16.msra.mxu0 0
    %7047 = vmatprep.subr.bf16.mxu0 0
    %7048 = vmatpush2.bf16.msra.mxu0 0
    %7049 = vmatprep.subr.bf16.mxu0 0
    %7050 = vmatpush2.bf16.msra.mxu0 0
    %7051 = vmatprep.subr.bf16.mxu0 0
    %7052 = vmatpush2.bf16.msra.mxu0 0
    %7053 = vmatprep.subr.bf16.mxu0 0
    %7054 = vmatpush2.bf16.msra.mxu0 0
    %7055 = vmatprep.subr.bf16.mxu0 0
    %7056 = vmatpush2.bf16.msra.mxu0 0
    %7057 = vmatprep.subr.bf16.mxu0 0
    %7058 = vmatpush2.bf16.msra.mxu0 0
    %7059 = vmatprep.mubr.bf16.mxu0 0
    %7060 = vmatmul.mubr.bf16.gmra.mxu0 %v5378
    %v7061 = vpop.f32.mrf.mxu0
    %v7062 = vadd.f32 %v7022, %v7061
    %v7063 = vpop.f32.mrf.mxu0
    %v7064 = vpop.f32.mrf.mxu0
    %v7065 = vpop.f32.mrf.mxu0
    %7066 = vdwg.mxu0
    %7067 = vst [vmem:[#allocation11] sm:$0xff] %v6818
    %7068 = vst [vmem:[#allocation11 + $0x8] sm:$0xff] %v6820
    %7069 = vst [vmem:[#allocation11 + $0x10] sm:$0xff] %v6941
    %7070 = vst [vmem:[#allocation11 + $0x18] sm:$0xff] %v6943
    %7071 = vst [vmem:[#allocation11 + $0x20] sm:$0xff] %v7062
    // Predicated region
    $region42: #{tpu_custom_call.1} parent=1 // pred_check
      _
    $region43: #{tpu_custom_call.1} parent=1 // pred_check_branch
      %7073 = sbr.rel (0) target = $region45
    $region44: #{tpu_custom_call.1} parent=1 // pred_region
      %s7075 = ssub.s32 640, 640
      %7076 = vsyncadd [#allocation4], %s7075
      %s7078 = sshll.u32 [#allocation11], 4
      %s7079 = int_to_ptr.vmem [resolvable:$true] %s7078
      %7081 = dma.vmem_to_hbm [thread:$0]  %s7079, 640, %s5, [#allocation4]
    $region45: #{tpu_custom_call.1} parent=1 // pred_fallthru
      _
    // Predicated region
    $region46: #{tpu_custom_call.1} parent=1 // pred_check
      _
    $region47: #{tpu_custom_call.1} parent=1 // pred_check_branch
      %7083 = sbr.rel (0) target = $region49
    $region48: #{tpu_custom_call.1} parent=1 // pred_region
      %7084 = dma.done [#allocation4], 640
    $region49: #{tpu_custom_call.1} parent=1 // pred_fallthru
      _
    %7085 = vsyncpa [#allocation3], 1
    %7086 = vsyncpa [#allocation6], 1
    %7087 = vsyncpa [#allocation9], 1
    %7088 = vsyncpa [#allocation4], 1

</llo_original>
